<compile_context>
chip_gen: v7x
topology: tpu7x:2x2x1
jax: 0.10.0
libtpu: 0.0.40
codegen_flags: <defaults>
</compile_context>

<pallas_src>
import functools

import jax
import jax.numpy as jnp
from jax.experimental import pallas as pl
from jax.experimental.pallas import tpu as pltpu


# ----------------------------------------------------------------------------
# helpers
# ----------------------------------------------------------------------------

_TM_MAX = 256  # 256-aligned row tiles to feed the 256-wide MXU on v6e/v7x


def _round_up(x, m):
    return ((x + m - 1) // m) * m


def _tile_rows(m):
    mp = _round_up(m, 8)
    tm = min(_TM_MAX, mp)
    mp = _round_up(mp, tm)
    return mp, tm


def _im2col(x, kh, kw):
    """x: NHWC -> (N*H*W, kh*kw*C) patches ('same' padding). Plain-JAX glue."""
    n, h, w, c = x.shape
    ph, pw = kh // 2, kw // 2
    xp = jnp.pad(x, ((0, 0), (ph, ph), (pw, pw), (0, 0)))
    cols = [xp[:, dy:dy + h, dx:dx + w, :] for dy in range(kh) for dx in range(kw)]
    patches = jnp.concatenate(cols, axis=-1)          # (N, H, W, kh*kw*C)
    return patches.reshape(n * h * w, kh * kw * c)


# ----------------------------------------------------------------------------
# Pallas kernels
# ----------------------------------------------------------------------------

def _mm_kernel(x_ref, w_ref, b_ref, o_ref, *, activation):
    """(TM,K)f32 -> bf16 -> @ (K,N)bf16 -> f32 acc -> +bias -> activation."""
    y = jnp.dot(x_ref[...].astype(jnp.bfloat16), w_ref[...],
                preferred_element_type=jnp.float32)
    y = y + b_ref[...]
    if activation == "relu":
        y = jnp.maximum(y, 0.0)
    elif activation == "sigmoid":
        y = jax.nn.sigmoid(y)
    o_ref[...] = y.astype(o_ref.dtype)


def _head_kernel(x_ref, w5_ref, b5_ref, w6_ref, b6_ref, o_ref):
    """Fused conv5(+BN,ReLU) -> conv6(1x1).  Real result replicated in all 128 lanes
    of the second matmul (column 0 is sliced out in the wrapper)."""
    y = jnp.dot(x_ref[...].astype(jnp.bfloat16), w5_ref[...],
                preferred_element_type=jnp.float32)
    y = jnp.maximum(y + b5_ref[...], 0.0)
    z = jnp.dot(y.astype(jnp.bfloat16), w6_ref[...],
                preferred_element_type=jnp.float32)
    o_ref[...] = (z + b6_ref[...]).astype(o_ref.dtype)


def _sa_fused_kernel(p_ref, w_ref, att_ref, o_ref):
    """Spatial attention: sigmoid(7x7-conv(maps)) * att, fused.
    w has its single output column replicated across all 128 lanes, so every
    lane of `s` carries the same per-pixel attention value -> plain elementwise mul."""
    s = jnp.dot(p_ref[...].astype(jnp.bfloat16), w_ref[...],
                preferred_element_type=jnp.float32)
    o_ref[...] = (att_ref[...] * jax.nn.sigmoid(s)).astype(o_ref.dtype)


def _ca_sa_kernel(x_ref, w1_ref, w2_ref, att_ref, maps_ref):
    """Channel attention (global-avg -> fc1 -> relu -> fc2 -> sigmoid -> x*att),
    batched over N, plus the spatial-attention mean/max maps of the result."""
    x = x_ref[...]                                    # (N, H*W, C) f32
    n, _, c = x.shape
    m = jnp.mean(x, axis=1)                           # (N, C)
    pad = (-n) % 8
    if pad:                                           # keep matmul rows sublane-aligned
        m = jnp.concatenate([m, jnp.zeros((pad, c), m.dtype)], axis=0)
    h = jnp.maximum(jnp.dot(m, w1_ref[...], preferred_element_type=jnp.float32), 0.0)
    a = jax.nn.sigmoid(jnp.dot(h, w2_ref[...], preferred_element_type=jnp.float32))
    a = a[:n]                                         # (N, C)
    att = x * a[:, None, :]                           # (N, H*W, C)
    att_ref[...] = att
    avg = jnp.mean(att, axis=-1, keepdims=True)
    mx = jnp.max(att, axis=-1, keepdims=True)
    maps_ref[...] = jnp.concatenate([avg, mx], axis=-1)   # channel order: [avg, max]


def _max4_kernel(a_ref, b_ref, c_ref, d_ref, o_ref):
    """Elementwise max of the four 2x2-window corners (maxpool reduction)."""
    o_ref[...] = jnp.maximum(jnp.maximum(a_ref[...], b_ref[...]),
                             jnp.maximum(c_ref[...], d_ref[...]))


# ----------------------------------------------------------------------------
# Pallas wrappers
# ----------------------------------------------------------------------------

def matmul_bias_act(x, w, b, activation):
    """x:(M,K) f32, w:(K,N) (cast to bf16), b:(N,) f32 -> (M,N) f32."""
    m, k = x.shape
    assert w.shape[0] == k, (x.shape, w.shape)
    nout = w.shape[1]
    kp = _round_up(k, 128)
    if kp != k:
        x = jnp.pad(x, ((0, 0), (0, kp - k)))
        w = jnp.pad(w, ((0, kp - k), (0, 0)))
    w = w.astype(jnp.bfloat16)
    mp, tm = _tile_rows(m)
    if mp != m:
        x = jnp.pad(x, ((0, mp - m), (0, 0)))
    out = pl.pallas_call(
        functools.partial(_mm_kernel, activation=activation),
        out_shape=jax.ShapeDtypeStruct((mp, nout), jnp.float32),
        grid=(mp // tm,),
        in_specs=[
            pl.BlockSpec((tm, kp), lambda i: (i, 0)),
            pl.BlockSpec((kp, nout), lambda i: (0, 0)),
            pl.BlockSpec((1, nout), lambda i: (0, 0)),
        ],
        out_specs=pl.BlockSpec((tm, nout), lambda i: (i, 0)),
        compiler_params=pltpu.CompilerParams(dimension_semantics=("parallel",)),
    )(x, w, b.reshape(1, nout).astype(jnp.float32))
    return out[:m]


def conv3x3_bn_relu(x, w, b):
    """'same' 3x3 conv with BN folded into w/b, ReLU epilogue."""
    n, h, wd, cin = x.shape
    cout = w.shape[1]
    patches = _im2col(x, 3, 3)                        # (M, 9*Cin)
    y = matmul_bias_act(patches, w, b, "relu")
    return y.reshape(n, h, wd, cout)


def deconv2x2(x, w, b):
    """ConvTranspose2d(k=2,s=2): matmul Cin->4*Cout in Pallas, interleave in glue."""
    n, h, wd, cin = x.shape
    cout = w.shape[1] // 4
    y = matmul_bias_act(x.reshape(n * h * wd, cin), w, b, None)   # (M, 4*Cout)
    y = y.reshape(n, h, wd, 2, 2, cout)
    y = jnp.transpose(y, (0, 1, 3, 2, 4, 5)).reshape(n, 2 * h, 2 * wd, cout)
    return y


def maxpool2x2(x):
    n, h, wd, c = x.shape
    h2, w2 = h // 2, wd // 2
    a = x[:, 0::2, 0::2, :].reshape(-1, c)
    b = x[:, 0::2, 1::2, :].reshape(-1, c)
    cc = x[:, 1::2, 0::2, :].reshape(-1, c)
    d = x[:, 1::2, 1::2, :].reshape(-1, c)
    m = n * h2 * w2
    mp, tm = _tile_rows(m)
    if mp != m:
        pads = ((0, mp - m), (0, 0))
        a, b, cc, d = (jnp.pad(t, pads) for t in (a, b, cc, d))
    out = pl.pallas_call(
        _max4_kernel,
        out_shape=jax.ShapeDtypeStruct((mp, c), x.dtype),
        grid=(mp // tm,),
        in_specs=[pl.BlockSpec((tm, c), lambda i: (i, 0))] * 4,
        out_specs=pl.BlockSpec((tm, c), lambda i: (i, 0)),
        compiler_params=pltpu.CompilerParams(dimension_semantics=("parallel",)),
    )(a, b, cc, d)
    return out[:m].reshape(n, h2, w2, c)


def head_conv(x, w5, b5, w6, b6):
    """Fused conv5(+BN,ReLU)+conv6(1x1).  x:(N,H,W,128) -> (N,H,W,1)."""
    n, h, wd, c = x.shape
    patches = _im2col(x, 3, 3)                        # (M, 9*128)
    m, k = patches.shape
    assert k == w5.shape[0], (k, w5.shape)
    mp, tm = _tile_rows(m)
    if mp != m:
        patches = jnp.pad(patches, ((0, mp - m), (0, 0)))
    out = pl.pallas_call(
        _head_kernel,
        out_shape=jax.ShapeDtypeStruct((mp, 128), jnp.float32),
        grid=(mp // tm,),
        in_specs=[
            pl.BlockSpec((tm, k), lambda i: (i, 0)),
            pl.BlockSpec((k, 128), lambda i: (0, 0)),
            pl.BlockSpec((1, 128), lambda i: (0, 0)),
            pl.BlockSpec((128, 128), lambda i: (0, 0)),
            pl.BlockSpec((1, 128), lambda i: (0, 0)),
        ],
        out_specs=pl.BlockSpec((tm, 128), lambda i: (i, 0)),
        compiler_params=pltpu.CompilerParams(dimension_semantics=("parallel",)),
    )(patches, w5, b5.reshape(1, 128), w6, b6.reshape(1, 128))
    return out[:m, 0:1].reshape(n, h, wd, 1)


def channel_attention_sa_maps(up2, w1, w2):
    """Returns (att = ca(up2)*up2 as (N,H*W,C), maps = [mean_c, max_c] as (N,H,W,2))."""
    n, h, wd, c = up2.shape
    x = up2.reshape(n, h * wd, c)
    att, maps = pl.pallas_call(
        _ca_sa_kernel,
        out_shape=(jax.ShapeDtypeStruct((n, h * wd, c), jnp.float32),
                   jax.ShapeDtypeStruct((n, h * wd, 2), jnp.float32)),
    )(x, w1, w2)
    return att, maps.reshape(n, h, wd, 2)


def spatial_attention_apply(maps, att_flat, w_rep):
    """att * sigmoid(conv7x7(maps)), fused.  maps:(N,H,W,2), att_flat:(N*H*W,128)."""
    n, h, wd, _ = maps.shape
    patches = _im2col(maps, 7, 7)                     # (M, 98)
    m, k = patches.shape
    patches = jnp.pad(patches, ((0, 0), (0, 128 - k)))
    mp, tm = _tile_rows(m)
    if mp != m:
        patches = jnp.pad(patches, ((0, mp - m), (0, 0)))
        att_flat = jnp.pad(att_flat, ((0, mp - m), (0, 0)))
    out = pl.pallas_call(
        _sa_fused_kernel,
        out_shape=jax.ShapeDtypeStruct((mp, 128), jnp.float32),
        grid=(mp // tm,),
        in_specs=[
            pl.BlockSpec((tm, 128), lambda i: (i, 0)),
            pl.BlockSpec((128, 128), lambda i: (0, 0)),
            pl.BlockSpec((tm, 128), lambda i: (i, 0)),
        ],
        out_specs=pl.BlockSpec((tm, 128), lambda i: (i, 0)),
        compiler_params=pltpu.CompilerParams(dimension_semantics=("parallel",)),
    )(patches, w_rep, att_flat)
    return out[:m]


# ----------------------------------------------------------------------------
# Parameters (deterministic synthetic init, BN folded, bf16 weights, MXU-friendly pads)
# ----------------------------------------------------------------------------

def init_params(key):
    keys = list(jax.random.split(key, 48))
    kit = iter(keys)

    def nrm(shape, std=0.1):
        return std * jax.random.normal(next(kit), shape, dtype=jnp.float32)

    def conv_bn(cin, cout, k=3, eps=1e-5):
        w = nrm((k, k, cin, cout), std=0.05)
        b = nrm((cout,))
        gamma = 1.0 + nrm((cout,))
        beta = nrm((cout,))
        mean = nrm((cout,))
        var = 1.0 + jnp.abs(nrm((cout,)))
        scale = gamma / jnp.sqrt(var + eps)             # folded eval-mode BN
        w_f = (w * scale).reshape(k * k * cin, cout)    # scale folded into weights
        b_f = (b - mean) * scale + beta
        return w_f.astype(jnp.bfloat16), b_f

    p = {}
    p["c1w"], p["c1b"] = conv_bn(3, 64)
    p["c2w"], p["c2b"] = conv_bn(64, 128)
    p["c3w"], p["c3b"] = conv_bn(128, 256)
    p["c4w"], p["c4b"] = conv_bn(256, 128)

    # conv5 (Cout=2, BN folded) padded to 128 lane-dense columns.
    w5, b5 = conv_bn(128, 2)                            # (1152, 2), (2,)
    p["w5"] = jnp.zeros((9 * 128, 128), jnp.bfloat16).at[:, :2].set(w5)
    p["b5"] = jnp.zeros((128,), jnp.float32).at[:2].set(b5)

    # conv6 (1x1, 2 -> 1), single output column replicated across all 128 lanes.
    w6 = nrm((2, 1), std=0.05)
    b6 = nrm((1,))
    w6_rep = jnp.zeros((128, 128), jnp.float32).at[:2, :].set(jnp.tile(w6, (1, 128)))
    p["w6"] = w6_rep.astype(jnp.bfloat16)
    p["b6"] = jnp.full((128,), b6[0], jnp.float32)

    # deconvs: (Cin, kh, kw, Cout) -> (Cin, 4*Cout) matmul weight.
    d1w = nrm((256, 2, 2, 128), std=0.05)
    p["d1w"] = d1w.reshape(256, 4 * 128).astype(jnp.bfloat16)
    p["d1b"] = jnp.tile(nrm((128,)), 4)
    d2w = nrm((128, 2, 2, 64), std=0.05)
    p["d2w"] = d2w.reshape(128, 4 * 64).astype(jnp.bfloat16)
    p["d2b"] = jnp.tile(nrm((64,)), 4)

    # Channel attention (C=128, ratio=16 -> hidden 8), bias-free FCs, padded to 128.
    ca_w1 = nrm((128, 8), std=0.05)
    ca_w2 = nrm((8, 128), std=0.05)
    p["ca_w1"] = jnp.zeros((128, 128), jnp.float32).at[:, :8].set(ca_w1)
    p["ca_w2"] = jnp.zeros((128, 128), jnp.float32).at[:8, :].set(ca_w2)

    # Spatial attention 7x7 conv (2 -> 1, bias-free): flatten to (98,1), replicate the
    # single output column across 128 lanes, zero-pad K 98 -> 128.
    sa_w = nrm((7, 7, 2, 1), std=0.05).reshape(98, 1)
    p["sa_w"] = (jnp.zeros((128, 128), jnp.float32)
                 .at[:98, :].set(jnp.tile(sa_w, (1, 128)))).astype(jnp.bfloat16)
    return p


# ----------------------------------------------------------------------------
# Forward pass
# ----------------------------------------------------------------------------

@jax.jit
def deepcl_forward(x_nchw, p):
    x = jnp.transpose(x_nchw, (0, 2, 3, 1))             # NCHW -> NHWC

    c1 = conv3x3_bn_relu(x, p["c1w"], p["c1b"])          # (N,16,16,64)
    p1 = maxpool2x2(c1)                                  # (N, 8, 8,64)
    c2 = conv3x3_bn_relu(p1, p["c2w"], p["c2b"])         # (N, 8, 8,128)
    p2 = maxpool2x2(c2)                                  # (N, 4, 4,128)
    c3 = conv3x3_bn_relu(p2, p["c3w"], p["c3b"])         # (N, 4, 4,256)

    up1 = deconv2x2(c3, p["d1w"], p["d1b"])              # (N, 8, 8,128)
    up1 = jnp.concatenate([up1, c2], axis=-1)            # 256 ch
    c4 = conv3x3_bn_relu(up1, p["c4w"], p["c4b"])        # (N, 8, 8,128)

    up2 = deconv2x2(c4, p["d2w"], p["d2b"])              # (N,16,16,64)
    up2 = jnp.concatenate([up2, c1], axis=-1)            # 128 ch

    # out1 = conv6(conv5(up2))  (fused head kernel)
    out1 = head_conv(up2, p["w5"], p["b5"], p["w6"], p["b6"])

    # attention branch: att = ca(up2)*up2 ; att = sa(att)*att ; out2 = conv6(conv5(att))
    n, h, w, c = up2.shape
    att, maps = channel_attention_sa_maps(up2, p["ca_w1"], p["ca_w2"])
    att2 = spatial_attention_apply(maps, att.reshape(n * h * w, c), p["sa_w"])
    att2 = att2.reshape(n, h, w, c)
    out2 = head_conv(att2, p["w5"], p["b5"], p["w6"], p["b6"])

    # back to PyTorch NCHW
    return (jnp.transpose(out1, (0, 3, 1, 2)),
            jnp.transpose(out2, (0, 3, 1, 2)))


if __name__ == "__main__":
    key = jax.random.PRNGKey(0)
    pkey, xkey = jax.random.split(key)
    params = init_params(pkey)

    # PyTorch-style NCHW input: batch=2, channels=3, 16x16 spatial.
    x = jax.random.normal(xkey, (2, 3, 16, 16), dtype=jnp.float32)

    out1, out2 = deepcl_forward(x, params)
    jax.block_until_ready((out1, out2))

    assert out1.shape == (2, 1, 16, 16), out1.shape
    assert out2.shape == (2, 1, 16, 16), out2.shape
    assert bool(jnp.all(jnp.isfinite(out1))) and bool(jnp.all(jnp.isfinite(out2)))
    print("KERNEL_OK")
</pallas_src>

<mosaic_0001>
module attributes {stable_mosaic.version = 11 : i64} {
  func.func @_mm_kernel(%arg0: i32, %arg1: memref<256x128xf32, #tpu.memory_space<vmem>>, %arg2: memref<128x64xbf16, #tpu.memory_space<vmem>>, %arg3: memref<1x64xf32, #tpu.memory_space<vmem>>, %arg4: memref<256x64xf32, #tpu.memory_space<vmem>>) attributes {dimension_semantics = [#tpu.dimension_semantics<parallel>], iteration_bounds = array<i64: 2>, scalar_prefetch = 0 : i64, scratch_operands = 0 : i64, tpu.core_type = #tpu.core_type<tc>, window_params = [{transform_indices = @transform_0, window_bounds = array<i64: 256, 128>}, {pipeline_mode = #tpu.pipeline_mode<synchronous>, transform_indices = @transform_1, window_bounds = array<i64: 128, 64>}, {pipeline_mode = #tpu.pipeline_mode<synchronous>, transform_indices = @transform_2, window_bounds = array<i64: 1, 64>}, {transform_indices = @transform_3, window_bounds = array<i64: 256, 64>}]} {
    %c0 = arith.constant 0 : index
    %c0_0 = arith.constant 0 : index
    %0 = vector.load %arg1[%c0, %c0_0] : memref<256x128xf32, #tpu.memory_space<vmem>>, vector<256x128xf32>
    %1 = arith.truncf %0 : vector<256x128xf32> to vector<256x128xbf16>
    %c0_1 = arith.constant 0 : index
    %c0_2 = arith.constant 0 : index
    %2 = vector.load %arg2[%c0_1, %c0_2] : memref<128x64xbf16, #tpu.memory_space<vmem>>, vector<128x64xbf16>
    %cst = arith.constant dense<0.000000e+00> : vector<256x64xf32>
    %3 = tpu.matmul %1, %2, %cst {dimension_numbers = #tpu.dot_dimension_numbers<[1], [0], [0], [1], [0, 0, 1, 1], [], []>} : vector<256x128xbf16>, vector<128x64xbf16>, vector<256x64xf32> -> vector<256x64xf32>
    %c0_3 = arith.constant 0 : index
    %c0_4 = arith.constant 0 : index
    %4 = vector.load %arg3[%c0_3, %c0_4] : memref<1x64xf32, #tpu.memory_space<vmem>>, vector<1x64xf32>
    %5 = vector.broadcast %4 : vector<1x64xf32> to vector<256x64xf32>
    %6 = arith.addf %3, %5 : vector<256x64xf32>
    %cst_5 = arith.constant 0.000000e+00 : f32
    %7 = vector.broadcast %cst_5 : f32 to vector<256x64xf32>
    %8 = arith.maximumf %6, %7 : vector<256x64xf32>
    %c0_6 = arith.constant 0 : index
    %c0_7 = arith.constant 0 : index
    %9 = vector.load %arg4[%c0_6, %c0_7] : memref<256x64xf32, #tpu.memory_space<vmem>>, vector<256x64xf32>
    tpu.vector_store %arg4[%c0_6, %c0_7], %8 {strides = array<i32>} : memref<256x64xf32, #tpu.memory_space<vmem>>, vector<256x64xf32>,
    return
  }
  func.func @transform_0(%arg0: i32) -> (i32, i32) {
    %c0_i32 = arith.constant 0 : i32
    %c0_i32_0 = arith.constant 0 : i32
    return %arg0, %c0_i32 : i32, i32
  }
  func.func @transform_1(%arg0: i32) -> (i32, i32) {
    %c0_i32 = arith.constant 0 : i32
    %c0_i32_0 = arith.constant 0 : i32
    %c0_i32_1 = arith.constant 0 : i32
    return %c0_i32, %c0_i32_0 : i32, i32
  }
  func.func @transform_2(%arg0: i32) -> (i32, i32) {
    %c0_i32 = arith.constant 0 : i32
    %c0_i32_0 = arith.constant 0 : i32
    %c0_i32_1 = arith.constant 0 : i32
    return %c0_i32, %c0_i32_0 : i32, i32
  }
  func.func @transform_3(%arg0: i32) -> (i32, i32) {
    %c0_i32 = arith.constant 0 : i32
    %c0_i32_0 = arith.constant 0 : i32
    return %arg0, %c0_i32 : i32, i32
  }
}

module attributes {stable_mosaic.version = 11 : i64} {
  func.func @_max4_kernel(%arg0: i32, %arg1: memref<128x64xf32, #tpu.memory_space<vmem>>, %arg2: memref<128x64xf32, #tpu.memory_space<vmem>>, %arg3: memref<128x64xf32, #tpu.memory_space<vmem>>, %arg4: memref<128x64xf32, #tpu.memory_space<vmem>>, %arg5: memref<128x64xf32, #tpu.memory_space<vmem>>) attributes {dimension_semantics = [#tpu.dimension_semantics<parallel>], iteration_bounds = array<i64: 1>, scalar_prefetch = 0 : i64, scratch_operands = 0 : i64, tpu.core_type = #tpu.core_type<tc>, window_params = [{transform_indices = @transform_0, window_bounds = array<i64: 128, 64>}, {transform_indices = @transform_1, window_bounds = array<i64: 128, 64>}, {transform_indices = @transform_2, window_bounds = array<i64: 128, 64>}, {transform_indices = @transform_3, window_bounds = array<i64: 128, 64>}, {transform_indices = @transform_4, window_bounds = array<i64: 128, 64>}]} {
    %c0 = arith.constant 0 : index
    %c0_0 = arith.constant 0 : index
    %0 = vector.load %arg1[%c0, %c0_0] : memref<128x64xf32, #tpu.memory_space<vmem>>, vector<128x64xf32>
    %c0_1 = arith.constant 0 : index
    %c0_2 = arith.constant 0 : index
    %1 = vector.load %arg2[%c0_1, %c0_2] : memref<128x64xf32, #tpu.memory_space<vmem>>, vector<128x64xf32>
    %2 = arith.maximumf %0, %1 : vector<128x64xf32>
    %c0_3 = arith.constant 0 : index
    %c0_4 = arith.constant 0 : index
    %3 = vector.load %arg3[%c0_3, %c0_4] : memref<128x64xf32, #tpu.memory_space<vmem>>, vector<128x64xf32>
    %c0_5 = arith.constant 0 : index
    %c0_6 = arith.constant 0 : index
    %4 = vector.load %arg4[%c0_5, %c0_6] : memref<128x64xf32, #tpu.memory_space<vmem>>, vector<128x64xf32>
    %5 = arith.maximumf %3, %4 : vector<128x64xf32>
    %6 = arith.maximumf %2, %5 : vector<128x64xf32>
    %c0_7 = arith.constant 0 : index
    %c0_8 = arith.constant 0 : index
    %7 = vector.load %arg5[%c0_7, %c0_8] : memref<128x64xf32, #tpu.memory_space<vmem>>, vector<128x64xf32>
    tpu.vector_store %arg5[%c0_7, %c0_8], %6 {strides = array<i32>} : memref<128x64xf32, #tpu.memory_space<vmem>>, vector<128x64xf32>,
    return
  }
  func.func @transform_0(%arg0: i32) -> (i32, i32) {
    %c0_i32 = arith.constant 0 : i32
    %c0_i32_0 = arith.constant 0 : i32
    return %arg0, %c0_i32 : i32, i32
  }
  func.func @transform_1(%arg0: i32) -> (i32, i32) {
    %c0_i32 = arith.constant 0 : i32
    %c0_i32_0 = arith.constant 0 : i32
    return %arg0, %c0_i32 : i32, i32
  }
  func.func @transform_2(%arg0: i32) -> (i32, i32) {
    %c0_i32 = arith.constant 0 : i32
    %c0_i32_0 = arith.constant 0 : i32
    return %arg0, %c0_i32 : i32, i32
  }
  func.func @transform_3(%arg0: i32) -> (i32, i32) {
    %c0_i32 = arith.constant 0 : i32
    %c0_i32_0 = arith.constant 0 : i32
    return %arg0, %c0_i32 : i32, i32
  }
  func.func @transform_4(%arg0: i32) -> (i32, i32) {
    %c0_i32 = arith.constant 0 : i32
    %c0_i32_0 = arith.constant 0 : i32
    return %arg0, %c0_i32 : i32, i32
  }
}

module attributes {stable_mosaic.version = 11 : i64} {
  func.func @_mm_kernel(%arg0: i32, %arg1: memref<128x640xf32, #tpu.memory_space<vmem>>, %arg2: memref<640x128xbf16, #tpu.memory_space<vmem>>, %arg3: memref<1x128xf32, #tpu.memory_space<vmem>>, %arg4: memref<128x128xf32, #tpu.memory_space<vmem>>) attributes {dimension_semantics = [#tpu.dimension_semantics<parallel>], iteration_bounds = array<i64: 1>, scalar_prefetch = 0 : i64, scratch_operands = 0 : i64, tpu.core_type = #tpu.core_type<tc>, window_params = [{transform_indices = @transform_0, window_bounds = array<i64: 128, 640>}, {pipeline_mode = #tpu.pipeline_mode<synchronous>, transform_indices = @transform_1, window_bounds = array<i64: 640, 128>}, {pipeline_mode = #tpu.pipeline_mode<synchronous>, transform_indices = @transform_2, window_bounds = array<i64: 1, 128>}, {transform_indices = @transform_3, window_bounds = array<i64: 128, 128>}]} {
    %c0 = arith.constant 0 : index
    %c0_0 = arith.constant 0 : index
    %0 = vector.load %arg1[%c0, %c0_0] : memref<128x640xf32, #tpu.memory_space<vmem>>, vector<128x640xf32>
    %1 = arith.truncf %0 : vector<128x640xf32> to vector<128x640xbf16>
    %c0_1 = arith.constant 0 : index
    %c0_2 = arith.constant 0 : index
    %2 = vector.load %arg2[%c0_1, %c0_2] : memref<640x128xbf16, #tpu.memory_space<vmem>>, vector<640x128xbf16>
    %cst = arith.constant dense<0.000000e+00> : vector<128x128xf32>
    %3 = tpu.matmul %1, %2, %cst {dimension_numbers = #tpu.dot_dimension_numbers<[1], [0], [0], [1], [0, 0, 1, 1], [], []>} : vector<128x640xbf16>, vector<640x128xbf16>, vector<128x128xf32> -> vector<128x128xf32>
    %c0_3 = arith.constant 0 : index
    %c0_4 = arith.constant 0 : index
    %4 = vector.load %arg3[%c0_3, %c0_4] : memref<1x128xf32, #tpu.memory_space<vmem>>, vector<1x128xf32>
    %5 = vector.broadcast %4 : vector<1x128xf32> to vector<128x128xf32>
    %6 = arith.addf %3, %5 : vector<128x128xf32>
    %cst_5 = arith.constant 0.000000e+00 : f32
    %7 = vector.broadcast %cst_5 : f32 to vector<128x128xf32>
    %8 = arith.maximumf %6, %7 : vector<128x128xf32>
    %c0_6 = arith.constant 0 : index
    %c0_7 = arith.constant 0 : index
    %9 = vector.load %arg4[%c0_6, %c0_7] : memref<128x128xf32, #tpu.memory_space<vmem>>, vector<128x128xf32>
    tpu.vector_store %arg4[%c0_6, %c0_7], %8 {strides = array<i32>} : memref<128x128xf32, #tpu.memory_space<vmem>>, vector<128x128xf32>,
    return
  }
  func.func @transform_0(%arg0: i32) -> (i32, i32) {
    %c0_i32 = arith.constant 0 : i32
    %c0_i32_0 = arith.constant 0 : i32
    return %arg0, %c0_i32 : i32, i32
  }
  func.func @transform_1(%arg0: i32) -> (i32, i32) {
    %c0_i32 = arith.constant 0 : i32
    %c0_i32_0 = arith.constant 0 : i32
    %c0_i32_1 = arith.constant 0 : i32
    return %c0_i32, %c0_i32_0 : i32, i32
  }
  func.func @transform_2(%arg0: i32) -> (i32, i32) {
    %c0_i32 = arith.constant 0 : i32
    %c0_i32_0 = arith.constant 0 : i32
    %c0_i32_1 = arith.constant 0 : i32
    return %c0_i32, %c0_i32_0 : i32, i32
  }
  func.func @transform_3(%arg0: i32) -> (i32, i32) {
    %c0_i32 = arith.constant 0 : i32
    %c0_i32_0 = arith.constant 0 : i32
    return %arg0, %c0_i32 : i32, i32
  }
}

module attributes {stable_mosaic.version = 11 : i64} {
  func.func @_max4_kernel(%arg0: i32, %arg1: memref<32x128xf32, #tpu.memory_space<vmem>>, %arg2: memref<32x128xf32, #tpu.memory_space<vmem>>, %arg3: memref<32x128xf32, #tpu.memory_space<vmem>>, %arg4: memref<32x128xf32, #tpu.memory_space<vmem>>, %arg5: memref<32x128xf32, #tpu.memory_space<vmem>>) attributes {dimension_semantics = [#tpu.dimension_semantics<parallel>], iteration_bounds = array<i64: 1>, scalar_prefetch = 0 : i64, scratch_operands = 0 : i64, tpu.core_type = #tpu.core_type<tc>, window_params = [{transform_indices = @transform_0, window_bounds = array<i64: 32, 128>}, {transform_indices = @transform_1, window_bounds = array<i64: 32, 128>}, {transform_indices = @transform_2, window_bounds = array<i64: 32, 128>}, {transform_indices = @transform_3, window_bounds = array<i64: 32, 128>}, {transform_indices = @transform_4, window_bounds = array<i64: 32, 128>}]} {
    %c0 = arith.constant 0 : index
    %c0_0 = arith.constant 0 : index
    %0 = vector.load %arg1[%c0, %c0_0] : memref<32x128xf32, #tpu.memory_space<vmem>>, vector<32x128xf32>
    %c0_1 = arith.constant 0 : index
    %c0_2 = arith.constant 0 : index
    %1 = vector.load %arg2[%c0_1, %c0_2] : memref<32x128xf32, #tpu.memory_space<vmem>>, vector<32x128xf32>
    %2 = arith.maximumf %0, %1 : vector<32x128xf32>
    %c0_3 = arith.constant 0 : index
    %c0_4 = arith.constant 0 : index
    %3 = vector.load %arg3[%c0_3, %c0_4] : memref<32x128xf32, #tpu.memory_space<vmem>>, vector<32x128xf32>
    %c0_5 = arith.constant 0 : index
    %c0_6 = arith.constant 0 : index
    %4 = vector.load %arg4[%c0_5, %c0_6] : memref<32x128xf32, #tpu.memory_space<vmem>>, vector<32x128xf32>
    %5 = arith.maximumf %3, %4 : vector<32x128xf32>
    %6 = arith.maximumf %2, %5 : vector<32x128xf32>
    %c0_7 = arith.constant 0 : index
    %c0_8 = arith.constant 0 : index
    %7 = vector.load %arg5[%c0_7, %c0_8] : memref<32x128xf32, #tpu.memory_space<vmem>>, vector<32x128xf32>
    tpu.vector_store %arg5[%c0_7, %c0_8], %6 {strides = array<i32>} : memref<32x128xf32, #tpu.memory_space<vmem>>, vector<32x128xf32>,
    return
  }
  func.func @transform_0(%arg0: i32) -> (i32, i32) {
    %c0_i32 = arith.constant 0 : i32
    %c0_i32_0 = arith.constant 0 : i32
    return %arg0, %c0_i32 : i32, i32
  }
  func.func @transform_1(%arg0: i32) -> (i32, i32) {
    %c0_i32 = arith.constant 0 : i32
    %c0_i32_0 = arith.constant 0 : i32
    return %arg0, %c0_i32 : i32, i32
  }
  func.func @transform_2(%arg0: i32) -> (i32, i32) {
    %c0_i32 = arith.constant 0 : i32
    %c0_i32_0 = arith.constant 0 : i32
    return %arg0, %c0_i32 : i32, i32
  }
  func.func @transform_3(%arg0: i32) -> (i32, i32) {
    %c0_i32 = arith.constant 0 : i32
    %c0_i32_0 = arith.constant 0 : i32
    return %arg0, %c0_i32 : i32, i32
  }
  func.func @transform_4(%arg0: i32) -> (i32, i32) {
    %c0_i32 = arith.constant 0 : i32
    %c0_i32_0 = arith.constant 0 : i32
    return %arg0, %c0_i32 : i32, i32
  }
}

module attributes {stable_mosaic.version = 11 : i64} {
  func.func @_mm_kernel(%arg0: i32, %arg1: memref<32x1152xf32, #tpu.memory_space<vmem>>, %arg2: memref<1152x256xbf16, #tpu.memory_space<vmem>>, %arg3: memref<1x256xf32, #tpu.memory_space<vmem>>, %arg4: memref<32x256xf32, #tpu.memory_space<vmem>>) attributes {dimension_semantics = [#tpu.dimension_semantics<parallel>], iteration_bounds = array<i64: 1>, scalar_prefetch = 0 : i64, scratch_operands = 0 : i64, tpu.core_type = #tpu.core_type<tc>, window_params = [{transform_indices = @transform_0, window_bounds = array<i64: 32, 1152>}, {pipeline_mode = #tpu.pipeline_mode<synchronous>, transform_indices = @transform_1, window_bounds = array<i64: 1152, 256>}, {pipeline_mode = #tpu.pipeline_mode<synchronous>, transform_indices = @transform_2, window_bounds = array<i64: 1, 256>}, {transform_indices = @transform_3, window_bounds = array<i64: 32, 256>}]} {
    %c0 = arith.constant 0 : index
    %c0_0 = arith.constant 0 : index
    %0 = vector.load %arg1[%c0, %c0_0] : memref<32x1152xf32, #tpu.memory_space<vmem>>, vector<32x1152xf32>
    %1 = arith.truncf %0 : vector<32x1152xf32> to vector<32x1152xbf16>
    %c0_1 = arith.constant 0 : index
    %c0_2 = arith.constant 0 : index
    %2 = vector.load %arg2[%c0_1, %c0_2] : memref<1152x256xbf16, #tpu.memory_space<vmem>>, vector<1152x256xbf16>
    %cst = arith.constant dense<0.000000e+00> : vector<32x256xf32>
    %3 = tpu.matmul %1, %2, %cst {dimension_numbers = #tpu.dot_dimension_numbers<[1], [0], [0], [1], [0, 0, 1, 1], [], []>} : vector<32x1152xbf16>, vector<1152x256xbf16>, vector<32x256xf32> -> vector<32x256xf32>
    %c0_3 = arith.constant 0 : index
    %c0_4 = arith.constant 0 : index
    %4 = vector.load %arg3[%c0_3, %c0_4] : memref<1x256xf32, #tpu.memory_space<vmem>>, vector<1x256xf32>
    %5 = vector.broadcast %4 : vector<1x256xf32> to vector<32x256xf32>
    %6 = arith.addf %3, %5 : vector<32x256xf32>
    %cst_5 = arith.constant 0.000000e+00 : f32
    %7 = vector.broadcast %cst_5 : f32 to vector<32x256xf32>
    %8 = arith.maximumf %6, %7 : vector<32x256xf32>
    %c0_6 = arith.constant 0 : index
    %c0_7 = arith.constant 0 : index
    %9 = vector.load %arg4[%c0_6, %c0_7] : memref<32x256xf32, #tpu.memory_space<vmem>>, vector<32x256xf32>
    tpu.vector_store %arg4[%c0_6, %c0_7], %8 {strides = array<i32>} : memref<32x256xf32, #tpu.memory_space<vmem>>, vector<32x256xf32>,
    return
  }
  func.func @transform_0(%arg0: i32) -> (i32, i32) {
    %c0_i32 = arith.constant 0 : i32
    %c0_i32_0 = arith.constant 0 : i32
    return %arg0, %c0_i32 : i32, i32
  }
  func.func @transform_1(%arg0: i32) -> (i32, i32) {
    %c0_i32 = arith.constant 0 : i32
    %c0_i32_0 = arith.constant 0 : i32
    %c0_i32_1 = arith.constant 0 : i32
    return %c0_i32, %c0_i32_0 : i32, i32
  }
  func.func @transform_2(%arg0: i32) -> (i32, i32) {
    %c0_i32 = arith.constant 0 : i32
    %c0_i32_0 = arith.constant 0 : i32
    %c0_i32_1 = arith.constant 0 : i32
    return %c0_i32, %c0_i32_0 : i32, i32
  }
  func.func @transform_3(%arg0: i32) -> (i32, i32) {
    %c0_i32 = arith.constant 0 : i32
    %c0_i32_0 = arith.constant 0 : i32
    return %arg0, %c0_i32 : i32, i32
  }
}

module attributes {stable_mosaic.version = 11 : i64} {
  func.func @_mm_kernel(%arg0: i32, %arg1: memref<32x256xf32, #tpu.memory_space<vmem>>, %arg2: memref<256x512xbf16, #tpu.memory_space<vmem>>, %arg3: memref<1x512xf32, #tpu.memory_space<vmem>>, %arg4: memref<32x512xf32, #tpu.memory_space<vmem>>) attributes {dimension_semantics = [#tpu.dimension_semantics<parallel>], iteration_bounds = array<i64: 1>, scalar_prefetch = 0 : i64, scratch_operands = 0 : i64, tpu.core_type = #tpu.core_type<tc>, window_params = [{transform_indices = @transform_0, window_bounds = array<i64: 32, 256>}, {pipeline_mode = #tpu.pipeline_mode<synchronous>, transform_indices = @transform_1, window_bounds = array<i64: 256, 512>}, {pipeline_mode = #tpu.pipeline_mode<synchronous>, transform_indices = @transform_2, window_bounds = array<i64: 1, 512>}, {transform_indices = @transform_3, window_bounds = array<i64: 32, 512>}]} {
    %c0 = arith.constant 0 : index
    %c0_0 = arith.constant 0 : index
    %0 = vector.load %arg1[%c0, %c0_0] : memref<32x256xf32, #tpu.memory_space<vmem>>, vector<32x256xf32>
    %1 = arith.truncf %0 : vector<32x256xf32> to vector<32x256xbf16>
    %c0_1 = arith.constant 0 : index
    %c0_2 = arith.constant 0 : index
    %2 = vector.load %arg2[%c0_1, %c0_2] : memref<256x512xbf16, #tpu.memory_space<vmem>>, vector<256x512xbf16>
    %cst = arith.constant dense<0.000000e+00> : vector<32x512xf32>
    %3 = tpu.matmul %1, %2, %cst {dimension_numbers = #tpu.dot_dimension_numbers<[1], [0], [0], [1], [0, 0, 1, 1], [], []>} : vector<32x256xbf16>, vector<256x512xbf16>, vector<32x512xf32> -> vector<32x512xf32>
    %c0_3 = arith.constant 0 : index
    %c0_4 = arith.constant 0 : index
    %4 = vector.load %arg3[%c0_3, %c0_4] : memref<1x512xf32, #tpu.memory_space<vmem>>, vector<1x512xf32>
    %5 = vector.broadcast %4 : vector<1x512xf32> to vector<32x512xf32>
    %6 = arith.addf %3, %5 : vector<32x512xf32>
    %c0_5 = arith.constant 0 : index
    %c0_6 = arith.constant 0 : index
    %7 = vector.load %arg4[%c0_5, %c0_6] : memref<32x512xf32, #tpu.memory_space<vmem>>, vector<32x512xf32>
    tpu.vector_store %arg4[%c0_5, %c0_6], %6 {strides = array<i32>} : memref<32x512xf32, #tpu.memory_space<vmem>>, vector<32x512xf32>,
    return
  }
  func.func @transform_0(%arg0: i32) -> (i32, i32) {
    %c0_i32 = arith.constant 0 : i32
    %c0_i32_0 = arith.constant 0 : i32
    return %arg0, %c0_i32 : i32, i32
  }
  func.func @transform_1(%arg0: i32) -> (i32, i32) {
    %c0_i32 = arith.constant 0 : i32
    %c0_i32_0 = arith.constant 0 : i32
    %c0_i32_1 = arith.constant 0 : i32
    return %c0_i32, %c0_i32_0 : i32, i32
  }
  func.func @transform_2(%arg0: i32) -> (i32, i32) {
    %c0_i32 = arith.constant 0 : i32
    %c0_i32_0 = arith.constant 0 : i32
    %c0_i32_1 = arith.constant 0 : i32
    return %c0_i32, %c0_i32_0 : i32, i32
  }
  func.func @transform_3(%arg0: i32) -> (i32, i32) {
    %c0_i32 = arith.constant 0 : i32
    %c0_i32_0 = arith.constant 0 : i32
    return %arg0, %c0_i32 : i32, i32
  }
}

module attributes {stable_mosaic.version = 11 : i64} {
  func.func @_mm_kernel(%arg0: i32, %arg1: memref<128x128xf32, #tpu.memory_space<vmem>>, %arg2: memref<128x256xbf16, #tpu.memory_space<vmem>>, %arg3: memref<1x256xf32, #tpu.memory_space<vmem>>, %arg4: memref<128x256xf32, #tpu.memory_space<vmem>>) attributes {dimension_semantics = [#tpu.dimension_semantics<parallel>], iteration_bounds = array<i64: 1>, scalar_prefetch = 0 : i64, scratch_operands = 0 : i64, tpu.core_type = #tpu.core_type<tc>, window_params = [{transform_indices = @transform_0, window_bounds = array<i64: 128, 128>}, {pipeline_mode = #tpu.pipeline_mode<synchronous>, transform_indices = @transform_1, window_bounds = array<i64: 128, 256>}, {pipeline_mode = #tpu.pipeline_mode<synchronous>, transform_indices = @transform_2, window_bounds = array<i64: 1, 256>}, {transform_indices = @transform_3, window_bounds = array<i64: 128, 256>}]} {
    %c0 = arith.constant 0 : index
    %c0_0 = arith.constant 0 : index
    %0 = vector.load %arg1[%c0, %c0_0] : memref<128x128xf32, #tpu.memory_space<vmem>>, vector<128x128xf32>
    %1 = arith.truncf %0 : vector<128x128xf32> to vector<128x128xbf16>
    %c0_1 = arith.constant 0 : index
    %c0_2 = arith.constant 0 : index
    %2 = vector.load %arg2[%c0_1, %c0_2] : memref<128x256xbf16, #tpu.memory_space<vmem>>, vector<128x256xbf16>
    %cst = arith.constant dense<0.000000e+00> : vector<128x256xf32>
    %3 = tpu.matmul %1, %2, %cst {dimension_numbers = #tpu.dot_dimension_numbers<[1], [0], [0], [1], [0, 0, 1, 1], [], []>} : vector<128x128xbf16>, vector<128x256xbf16>, vector<128x256xf32> -> vector<128x256xf32>
    %c0_3 = arith.constant 0 : index
    %c0_4 = arith.constant 0 : index
    %4 = vector.load %arg3[%c0_3, %c0_4] : memref<1x256xf32, #tpu.memory_space<vmem>>, vector<1x256xf32>
    %5 = vector.broadcast %4 : vector<1x256xf32> to vector<128x256xf32>
    %6 = arith.addf %3, %5 : vector<128x256xf32>
    %c0_5 = arith.constant 0 : index
    %c0_6 = arith.constant 0 : index
    %7 = vector.load %arg4[%c0_5, %c0_6] : memref<128x256xf32, #tpu.memory_space<vmem>>, vector<128x256xf32>
    tpu.vector_store %arg4[%c0_5, %c0_6], %6 {strides = array<i32>} : memref<128x256xf32, #tpu.memory_space<vmem>>, vector<128x256xf32>,
    return
  }
  func.func @transform_0(%arg0: i32) -> (i32, i32) {
    %c0_i32 = arith.constant 0 : i32
    %c0_i32_0 = arith.constant 0 : i32
    return %arg0, %c0_i32 : i32, i32
  }
  func.func @transform_1(%arg0: i32) -> (i32, i32) {
    %c0_i32 = arith.constant 0 : i32
    %c0_i32_0 = arith.constant 0 : i32
    %c0_i32_1 = arith.constant 0 : i32
    return %c0_i32, %c0_i32_0 : i32, i32
  }
  func.func @transform_2(%arg0: i32) -> (i32, i32) {
    %c0_i32 = arith.constant 0 : i32
    %c0_i32_0 = arith.constant 0 : i32
    %c0_i32_1 = arith.constant 0 : i32
    return %c0_i32, %c0_i32_0 : i32, i32
  }
  func.func @transform_3(%arg0: i32) -> (i32, i32) {
    %c0_i32 = arith.constant 0 : i32
    %c0_i32_0 = arith.constant 0 : i32
    return %arg0, %c0_i32 : i32, i32
  }
}

module attributes {stable_mosaic.version = 11 : i64} {
  func.func @_mm_kernel(%arg0: i32, %arg1: memref<128x2304xf32, #tpu.memory_space<vmem>>, %arg2: memref<2304x128xbf16, #tpu.memory_space<vmem>>, %arg3: memref<1x128xf32, #tpu.memory_space<vmem>>, %arg4: memref<128x128xf32, #tpu.memory_space<vmem>>) attributes {dimension_semantics = [#tpu.dimension_semantics<parallel>], iteration_bounds = array<i64: 1>, scalar_prefetch = 0 : i64, scratch_operands = 0 : i64, tpu.core_type = #tpu.core_type<tc>, window_params = [{transform_indices = @transform_0, window_bounds = array<i64: 128, 2304>}, {pipeline_mode = #tpu.pipeline_mode<synchronous>, transform_indices = @transform_1, window_bounds = array<i64: 2304, 128>}, {pipeline_mode = #tpu.pipeline_mode<synchronous>, transform_indices = @transform_2, window_bounds = array<i64: 1, 128>}, {transform_indices = @transform_3, window_bounds = array<i64: 128, 128>}]} {
    %c0 = arith.constant 0 : index
    %c0_0 = arith.constant 0 : index
    %0 = vector.load %arg1[%c0, %c0_0] : memref<128x2304xf32, #tpu.memory_space<vmem>>, vector<128x2304xf32>
    %1 = arith.truncf %0 : vector<128x2304xf32> to vector<128x2304xbf16>
    %c0_1 = arith.constant 0 : index
    %c0_2 = arith.constant 0 : index
    %2 = vector.load %arg2[%c0_1, %c0_2] : memref<2304x128xbf16, #tpu.memory_space<vmem>>, vector<2304x128xbf16>
    %cst = arith.constant dense<0.000000e+00> : vector<128x128xf32>
    %3 = tpu.matmul %1, %2, %cst {dimension_numbers = #tpu.dot_dimension_numbers<[1], [0], [0], [1], [0, 0, 1, 1], [], []>} : vector<128x2304xbf16>, vector<2304x128xbf16>, vector<128x128xf32> -> vector<128x128xf32>
    %c0_3 = arith.constant 0 : index
    %c0_4 = arith.constant 0 : index
    %4 = vector.load %arg3[%c0_3, %c0_4] : memref<1x128xf32, #tpu.memory_space<vmem>>, vector<1x128xf32>
    %5 = vector.broadcast %4 : vector<1x128xf32> to vector<128x128xf32>
    %6 = arith.addf %3, %5 : vector<128x128xf32>
    %cst_5 = arith.constant 0.000000e+00 : f32
    %7 = vector.broadcast %cst_5 : f32 to vector<128x128xf32>
    %8 = arith.maximumf %6, %7 : vector<128x128xf32>
    %c0_6 = arith.constant 0 : index
    %c0_7 = arith.constant 0 : index
    %9 = vector.load %arg4[%c0_6, %c0_7] : memref<128x128xf32, #tpu.memory_space<vmem>>, vector<128x128xf32>
    tpu.vector_store %arg4[%c0_6, %c0_7], %8 {strides = array<i32>} : memref<128x128xf32, #tpu.memory_space<vmem>>, vector<128x128xf32>,
    return
  }
  func.func @transform_0(%arg0: i32) -> (i32, i32) {
    %c0_i32 = arith.constant 0 : i32
    %c0_i32_0 = arith.constant 0 : i32
    return %arg0, %c0_i32 : i32, i32
  }
  func.func @transform_1(%arg0: i32) -> (i32, i32) {
    %c0_i32 = arith.constant 0 : i32
    %c0_i32_0 = arith.constant 0 : i32
    %c0_i32_1 = arith.constant 0 : i32
    return %c0_i32, %c0_i32_0 : i32, i32
  }
  func.func @transform_2(%arg0: i32) -> (i32, i32) {
    %c0_i32 = arith.constant 0 : i32
    %c0_i32_0 = arith.constant 0 : i32
    %c0_i32_1 = arith.constant 0 : i32
    return %c0_i32, %c0_i32_0 : i32, i32
  }
  func.func @transform_3(%arg0: i32) -> (i32, i32) {
    %c0_i32 = arith.constant 0 : i32
    %c0_i32_0 = arith.constant 0 : i32
    return %arg0, %c0_i32 : i32, i32
  }
}

module attributes {stable_mosaic.version = 11 : i64} {
  func.func @_ca_sa_kernel(%arg0: memref<2x256x128xf32, #tpu.memory_space<vmem>>, %arg1: memref<128x128xf32, #tpu.memory_space<vmem>>, %arg2: memref<128x128xf32, #tpu.memory_space<vmem>>, %arg3: memref<2x256x128xf32, #tpu.memory_space<vmem>>, %arg4: memref<2x256x2xf32, #tpu.memory_space<vmem>>) attributes {dimension_semantics = [], scalar_prefetch = 0 : i64, scratch_operands = 0 : i64, tpu.core_type = #tpu.core_type<tc>} {
    %c0 = arith.constant 0 : index
    %c0_0 = arith.constant 0 : index
    %c0_1 = arith.constant 0 : index
    %0 = vector.load %arg0[%c0, %c0_0, %c0_1] : memref<2x256x128xf32, #tpu.memory_space<vmem>>, vector<2x256x128xf32>
    %cst = arith.constant dense<0.000000e+00> : vector<2x128xf32>
    %1 = vector.multi_reduction <add>, %0, %cst [1] : vector<2x256x128xf32> to vector<2x128xf32>
    %cst_2 = arith.constant 2.560000e+02 : f32
    %2 = vector.broadcast %cst_2 : f32 to vector<2x128xf32>
    %3 = arith.divf %1, %2 : vector<2x128xf32>
    %cst_3 = arith.constant 0.000000e+00 : f32
    %4 = vector.broadcast %cst_3 : f32 to vector<6x128xf32>
    %5 = tpu.concatenate %3, %4 in 0 : vector<2x128xf32>, vector<6x128xf32> -> vector<8x128xf32>
    %c0_4 = arith.constant 0 : index
    %c0_5 = arith.constant 0 : index
    %6 = vector.load %arg1[%c0_4, %c0_5] : memref<128x128xf32, #tpu.memory_space<vmem>>, vector<128x128xf32>
    %cst_6 = arith.constant dense<0.000000e+00> : vector<8x128xf32>
    %7 = tpu.matmul %5, %6, %cst_6 {dimension_numbers = #tpu.dot_dimension_numbers<[1], [0], [0], [1], [0, 0, 1, 1], [], []>} : vector<8x128xf32>, vector<128x128xf32>, vector<8x128xf32> -> vector<8x128xf32>
    %cst_7 = arith.constant 0.000000e+00 : f32
    %8 = vector.broadcast %cst_7 : f32 to vector<8x128xf32>
    %9 = arith.maximumf %7, %8 : vector<8x128xf32>
    %c0_8 = arith.constant 0 : index
    %c0_9 = arith.constant 0 : index
    %10 = vector.load %arg2[%c0_8, %c0_9] : memref<128x128xf32, #tpu.memory_space<vmem>>, vector<128x128xf32>
    %cst_10 = arith.constant dense<0.000000e+00> : vector<8x128xf32>
    %11 = tpu.matmul %9, %10, %cst_10 {dimension_numbers = #tpu.dot_dimension_numbers<[1], [0], [0], [1], [0, 0, 1, 1], [], []>} : vector<8x128xf32>, vector<128x128xf32>, vector<8x128xf32> -> vector<8x128xf32>
    %12 = arith.negf %11 : vector<8x128xf32>
    %13 = math.exp %12 : vector<8x128xf32>
    %cst_11 = arith.constant 1.000000e+00 : f32
    %14 = vector.broadcast %cst_11 : f32 to vector<8x128xf32>
    %15 = arith.addf %14, %13 : vector<8x128xf32>
    %16 = arith.divf %14, %15 : vector<8x128xf32>
    %17 = vector.extract_strided_slice %16 {offsets = [0, 0], sizes = [2, 128], strides = [1, 1]} : vector<8x128xf32> to vector<2x128xf32>
    %18 = vector.shape_cast %17 : vector<2x128xf32> to vector<2x1x128xf32>
    %19 = vector.broadcast %18 : vector<2x1x128xf32> to vector<2x256x128xf32>
    %20 = arith.mulf %0, %19 : vector<2x256x128xf32>
    %c0_12 = arith.constant 0 : index
    %c0_13 = arith.constant 0 : index
    %c0_14 = arith.constant 0 : index
    %21 = vector.load %arg3[%c0_12, %c0_13, %c0_14] : memref<2x256x128xf32, #tpu.memory_space<vmem>>, vector<2x256x128xf32>
    tpu.vector_store %arg3[%c0_12, %c0_13, %c0_14], %20 {strides = array<i32>} : memref<2x256x128xf32, #tpu.memory_space<vmem>>, vector<2x256x128xf32>,
    %cst_15 = arith.constant dense<0.000000e+00> : vector<2x256xf32>
    %22 = vector.multi_reduction <add>, %20, %cst_15 [2] : vector<2x256x128xf32> to vector<2x256xf32>
    %23 = vector.shape_cast %22 : vector<2x256xf32> to vector<2x256x1xf32>
    %cst_16 = arith.constant 1.280000e+02 : f32
    %24 = vector.broadcast %cst_16 : f32 to vector<2x256x1xf32>
    %25 = arith.divf %23, %24 : vector<2x256x1xf32>
    %cst_17 = arith.constant dense<0xFF800000> : vector<2x256xf32>
    %26 = vector.multi_reduction <maximumf>, %20, %cst_17 [2] : vector<2x256x128xf32> to vector<2x256xf32>
    %27 = vector.shape_cast %26 : vector<2x256xf32> to vector<2x256x1xf32>
    %28 = tpu.concatenate %25, %27 in 2 : vector<2x256x1xf32>, vector<2x256x1xf32> -> vector<2x256x2xf32>
    %c0_18 = arith.constant 0 : index
    %c0_19 = arith.constant 0 : index
    %c0_20 = arith.constant 0 : index
    %29 = vector.load %arg4[%c0_18, %c0_19, %c0_20] : memref<2x256x2xf32, #tpu.memory_space<vmem>>, vector<2x256x2xf32>
    tpu.vector_store %arg4[%c0_18, %c0_19, %c0_20], %28 {strides = array<i32>} : memref<2x256x2xf32, #tpu.memory_space<vmem>>, vector<2x256x2xf32>,
    return
  }
}

module attributes {stable_mosaic.version = 11 : i64} {
  func.func @_head_kernel(%arg0: i32, %arg1: memref<256x1152xf32, #tpu.memory_space<vmem>>, %arg2: memref<1152x128xbf16, #tpu.memory_space<vmem>>, %arg3: memref<1x128xf32, #tpu.memory_space<vmem>>, %arg4: memref<128x128xbf16, #tpu.memory_space<vmem>>, %arg5: memref<1x128xf32, #tpu.memory_space<vmem>>, %arg6: memref<256x128xf32, #tpu.memory_space<vmem>>) attributes {dimension_semantics = [#tpu.dimension_semantics<parallel>], iteration_bounds = array<i64: 2>, scalar_prefetch = 0 : i64, scratch_operands = 0 : i64, tpu.core_type = #tpu.core_type<tc>, window_params = [{transform_indices = @transform_0, window_bounds = array<i64: 256, 1152>}, {pipeline_mode = #tpu.pipeline_mode<synchronous>, transform_indices = @transform_1, window_bounds = array<i64: 1152, 128>}, {pipeline_mode = #tpu.pipeline_mode<synchronous>, transform_indices = @transform_2, window_bounds = array<i64: 1, 128>}, {pipeline_mode = #tpu.pipeline_mode<synchronous>, transform_indices = @transform_3, window_bounds = array<i64: 128, 128>}, {pipeline_mode = #tpu.pipeline_mode<synchronous>, transform_indices = @transform_4, window_bounds = array<i64: 1, 128>}, {transform_indices = @transform_5, window_bounds = array<i64: 256, 128>}]} {
    %c0 = arith.constant 0 : index
    %c0_0 = arith.constant 0 : index
    %0 = vector.load %arg1[%c0, %c0_0] : memref<256x1152xf32, #tpu.memory_space<vmem>>, vector<256x1152xf32>
    %1 = arith.truncf %0 : vector<256x1152xf32> to vector<256x1152xbf16>
    %c0_1 = arith.constant 0 : index
    %c0_2 = arith.constant 0 : index
    %2 = vector.load %arg2[%c0_1, %c0_2] : memref<1152x128xbf16, #tpu.memory_space<vmem>>, vector<1152x128xbf16>
    %cst = arith.constant dense<0.000000e+00> : vector<256x128xf32>
    %3 = tpu.matmul %1, %2, %cst {dimension_numbers = #tpu.dot_dimension_numbers<[1], [0], [0], [1], [0, 0, 1, 1], [], []>} : vector<256x1152xbf16>, vector<1152x128xbf16>, vector<256x128xf32> -> vector<256x128xf32>
    %c0_3 = arith.constant 0 : index
    %c0_4 = arith.constant 0 : index
    %4 = vector.load %arg3[%c0_3, %c0_4] : memref<1x128xf32, #tpu.memory_space<vmem>>, vector<1x128xf32>
    %5 = vector.broadcast %4 : vector<1x128xf32> to vector<256x128xf32>
    %6 = arith.addf %3, %5 : vector<256x128xf32>
    %cst_5 = arith.constant 0.000000e+00 : f32
    %7 = vector.broadcast %cst_5 : f32 to vector<256x128xf32>
    %8 = arith.maximumf %6, %7 : vector<256x128xf32>
    %9 = arith.truncf %8 : vector<256x128xf32> to vector<256x128xbf16>
    %c0_6 = arith.constant 0 : index
    %c0_7 = arith.constant 0 : index
    %10 = vector.load %arg4[%c0_6, %c0_7] : memref<128x128xbf16, #tpu.memory_space<vmem>>, vector<128x128xbf16>
    %cst_8 = arith.constant dense<0.000000e+00> : vector<256x128xf32>
    %11 = tpu.matmul %9, %10, %cst_8 {dimension_numbers = #tpu.dot_dimension_numbers<[1], [0], [0], [1], [0, 0, 1, 1], [], []>} : vector<256x128xbf16>, vector<128x128xbf16>, vector<256x128xf32> -> vector<256x128xf32>
    %c0_9 = arith.constant 0 : index
    %c0_10 = arith.constant 0 : index
    %12 = vector.load %arg5[%c0_9, %c0_10] : memref<1x128xf32, #tpu.memory_space<vmem>>, vector<1x128xf32>
    %13 = vector.broadcast %12 : vector<1x128xf32> to vector<256x128xf32>
    %14 = arith.addf %11, %13 : vector<256x128xf32>
    %c0_11 = arith.constant 0 : index
    %c0_12 = arith.constant 0 : index
    %15 = vector.load %arg6[%c0_11, %c0_12] : memref<256x128xf32, #tpu.memory_space<vmem>>, vector<256x128xf32>
    tpu.vector_store %arg6[%c0_11, %c0_12], %14 {strides = array<i32>} : memref<256x128xf32, #tpu.memory_space<vmem>>, vector<256x128xf32>,
    return
  }
  func.func @transform_0(%arg0: i32) -> (i32, i32) {
    %c0_i32 = arith.constant 0 : i32
    %c0_i32_0 = arith.constant 0 : i32
    return %arg0, %c0_i32 : i32, i32
  }
  func.func @transform_1(%arg0: i32) -> (i32, i32) {
    %c0_i32 = arith.constant 0 : i32
    %c0_i32_0 = arith.constant 0 : i32
    %c0_i32_1 = arith.constant 0 : i32
    return %c0_i32, %c0_i32_0 : i32, i32
  }
  func.func @transform_2(%arg0: i32) -> (i32, i32) {
    %c0_i32 = arith.constant 0 : i32
    %c0_i32_0 = arith.constant 0 : i32
    %c0_i32_1 = arith.constant 0 : i32
    return %c0_i32, %c0_i32_0 : i32, i32
  }
  func.func @transform_3(%arg0: i32) -> (i32, i32) {
    %c0_i32 = arith.constant 0 : i32
    %c0_i32_0 = arith.constant 0 : i32
    %c0_i32_1 = arith.constant 0 : i32
    return %c0_i32, %c0_i32_0 : i32, i32
  }
  func.func @transform_4(%arg0: i32) -> (i32, i32) {
    %c0_i32 = arith.constant 0 : i32
    %c0_i32_0 = arith.constant 0 : i32
    %c0_i32_1 = arith.constant 0 : i32
    return %c0_i32, %c0_i32_0 : i32, i32
  }
  func.func @transform_5(%arg0: i32) -> (i32, i32) {
    %c0_i32 = arith.constant 0 : i32
    %c0_i32_0 = arith.constant 0 : i32
    return %arg0, %c0_i32 : i32, i32
  }
}

module attributes {stable_mosaic.version = 11 : i64} {
  func.func @_sa_fused_kernel(%arg0: i32, %arg1: memref<256x128xf32, #tpu.memory_space<vmem>>, %arg2: memref<128x128xbf16, #tpu.memory_space<vmem>>, %arg3: memref<256x128xf32, #tpu.memory_space<vmem>>, %arg4: memref<256x128xf32, #tpu.memory_space<vmem>>) attributes {dimension_semantics = [#tpu.dimension_semantics<parallel>], iteration_bounds = array<i64: 2>, scalar_prefetch = 0 : i64, scratch_operands = 0 : i64, tpu.core_type = #tpu.core_type<tc>, window_params = [{transform_indices = @transform_0, window_bounds = array<i64: 256, 128>}, {pipeline_mode = #tpu.pipeline_mode<synchronous>, transform_indices = @transform_1, window_bounds = array<i64: 128, 128>}, {transform_indices = @transform_2, window_bounds = array<i64: 256, 128>}, {transform_indices = @transform_3, window_bounds = array<i64: 256, 128>}]} {
    %c0 = arith.constant 0 : index
    %c0_0 = arith.constant 0 : index
    %0 = vector.load %arg1[%c0, %c0_0] : memref<256x128xf32, #tpu.memory_space<vmem>>, vector<256x128xf32>
    %1 = arith.truncf %0 : vector<256x128xf32> to vector<256x128xbf16>
    %c0_1 = arith.constant 0 : index
    %c0_2 = arith.constant 0 : index
    %2 = vector.load %arg2[%c0_1, %c0_2] : memref<128x128xbf16, #tpu.memory_space<vmem>>, vector<128x128xbf16>
    %cst = arith.constant dense<0.000000e+00> : vector<256x128xf32>
    %3 = tpu.matmul %1, %2, %cst {dimension_numbers = #tpu.dot_dimension_numbers<[1], [0], [0], [1], [0, 0, 1, 1], [], []>} : vector<256x128xbf16>, vector<128x128xbf16>, vector<256x128xf32> -> vector<256x128xf32>
    %c0_3 = arith.constant 0 : index
    %c0_4 = arith.constant 0 : index
    %4 = vector.load %arg3[%c0_3, %c0_4] : memref<256x128xf32, #tpu.memory_space<vmem>>, vector<256x128xf32>
    %5 = arith.negf %3 : vector<256x128xf32>
    %6 = math.exp %5 : vector<256x128xf32>
    %cst_5 = arith.constant 1.000000e+00 : f32
    %7 = vector.broadcast %cst_5 : f32 to vector<256x128xf32>
    %8 = arith.addf %7, %6 : vector<256x128xf32>
    %9 = arith.divf %7, %8 : vector<256x128xf32>
    %10 = arith.mulf %4, %9 : vector<256x128xf32>
    %c0_6 = arith.constant 0 : index
    %c0_7 = arith.constant 0 : index
    %11 = vector.load %arg4[%c0_6, %c0_7] : memref<256x128xf32, #tpu.memory_space<vmem>>, vector<256x128xf32>
    tpu.vector_store %arg4[%c0_6, %c0_7], %10 {strides = array<i32>} : memref<256x128xf32, #tpu.memory_space<vmem>>, vector<256x128xf32>,
    return
  }
  func.func @transform_0(%arg0: i32) -> (i32, i32) {
    %c0_i32 = arith.constant 0 : i32
    %c0_i32_0 = arith.constant 0 : i32
    return %arg0, %c0_i32 : i32, i32
  }
  func.func @transform_1(%arg0: i32) -> (i32, i32) {
    %c0_i32 = arith.constant 0 : i32
    %c0_i32_0 = arith.constant 0 : i32
    %c0_i32_1 = arith.constant 0 : i32
    return %c0_i32, %c0_i32_0 : i32, i32
  }
  func.func @transform_2(%arg0: i32) -> (i32, i32) {
    %c0_i32 = arith.constant 0 : i32
    %c0_i32_0 = arith.constant 0 : i32
    return %arg0, %c0_i32 : i32, i32
  }
  func.func @transform_3(%arg0: i32) -> (i32, i32) {
    %c0_i32 = arith.constant 0 : i32
    %c0_i32_0 = arith.constant 0 : i32
    return %arg0, %c0_i32 : i32, i32
  }
}

</mosaic_0001>

<llo_original>
// kernel: deepcl_forward.13
$region0: #{deepcl_forward.13}
  #allocation0 [shape = 'u32[]', space=smem, size = 0x4, offset = 0x4, fixed_abs, tag = 'smem constant byte address 0x4 - core index']
  #allocation1 [shape = 'u32[144,128]{1,0:T(1,128)}', space=vmem, size = 0x12000, scoped, tag = 'internal scratch']
  %s0 = inlined_call_operand.vmem [shape: f32[128,64], index: 0, kind: input, shape index: {}]
  %s1 = inlined_call_operand.vmem [shape: f32[128,64], index: 1, kind: input, shape index: {}]
  %s2 = inlined_call_operand.vmem [shape: f32[128,64], index: 2, kind: input, shape index: {}]
  %s3 = inlined_call_operand.vmem [shape: f32[128,64], index: 3, kind: input, shape index: {}]
  %s4 = inlined_call_operand.vmem [shape: f32[128,64], index: 4, kind: output, shape index: {}]
  %s5 = sld [smem:[#allocation0]]
  $region26: #{deepcl_forward.13} parent=0
    _
  %s7 = ssub.s32 1, %s5
  %s8 = scalar_select 0, %s7, %s5
  // Predicated region
  $region2: #{deepcl_forward.13} parent=0 // pred_check
    _
  $region3: #{deepcl_forward.13} parent=0 // pred_check_branch
    %10 = sbr.rel (0) target = $region5
  $region4: #{deepcl_forward.13} parent=0 // pred_region
    _
  $region5: #{deepcl_forward.13} parent=0 // pred_fallthru
    _
  // Predicated region
  $region6: #{deepcl_forward.13} parent=0 // pred_check
    _
  $region7: #{deepcl_forward.13} parent=0 // pred_check_branch
    %12 = sbr.rel (0) target = $region9
  $region8: #{deepcl_forward.13} parent=0 // pred_region
    _
  $region9: #{deepcl_forward.13} parent=0 // pred_fallthru
    _
  // Predicated region
  $region10: #{deepcl_forward.13} parent=0 // pred_check
    _
  $region11: #{deepcl_forward.13} parent=0 // pred_check_branch
    %14 = sbr.rel (0) target = $region13
  $region12: #{deepcl_forward.13} parent=0 // pred_region
    _
  $region13: #{deepcl_forward.13} parent=0 // pred_fallthru
    _
  // Predicated region
  $region14: #{deepcl_forward.13} parent=0 // pred_check
    _
  $region15: #{deepcl_forward.13} parent=0 // pred_check_branch
    %16 = sbr.rel (0) target = $region17
  $region16: #{deepcl_forward.13} parent=0 // pred_region
    _
  $region17: #{deepcl_forward.13} parent=0 // pred_fallthru
    _
  %v17 = vld [vmem:[%s0] sm:$0xff]
  %v18 = vld [vmem:[%s0 + $0x8] sm:$0xff]
  %v19 = vld [vmem:[%s0 + $0x10] sm:$0xff]
  %v20 = vld [vmem:[%s0 + $0x18] sm:$0xff]
  %v21 = vld [vmem:[%s0 + $0x20] sm:$0xff]
  %v22 = vld [vmem:[%s0 + $0x28] sm:$0xff]
  %v23 = vld [vmem:[%s0 + $0x30] sm:$0xff]
  %v24 = vld [vmem:[%s0 + $0x38] sm:$0xff]
  %v25 = vld [vmem:[%s0 + $0x40] sm:$0xff]
  %v26 = vld [vmem:[%s0 + $0x48] sm:$0xff]
  %v27 = vld [vmem:[%s0 + $0x50] sm:$0xff]
  %v28 = vld [vmem:[%s0 + $0x58] sm:$0xff]
  %v29 = vld [vmem:[%s0 + $0x60] sm:$0xff]
  %v30 = vld [vmem:[%s0 + $0x68] sm:$0xff]
  %v31 = vld [vmem:[%s0 + $0x70] sm:$0xff]
  %v32 = vld [vmem:[%s0 + $0x78] sm:$0xff]
  %v33 = vld [vmem:[%s1] sm:$0xff]
  %v34 = vld [vmem:[%s1 + $0x8] sm:$0xff]
  %v35 = vld [vmem:[%s1 + $0x10] sm:$0xff]
  %v36 = vld [vmem:[%s1 + $0x18] sm:$0xff]
  %v37 = vld [vmem:[%s1 + $0x20] sm:$0xff]
  %v38 = vld [vmem:[%s1 + $0x28] sm:$0xff]
  %v39 = vld [vmem:[%s1 + $0x30] sm:$0xff]
  %v40 = vld [vmem:[%s1 + $0x38] sm:$0xff]
  %v41 = vld [vmem:[%s1 + $0x40] sm:$0xff]
  %v42 = vld [vmem:[%s1 + $0x48] sm:$0xff]
  %v43 = vld [vmem:[%s1 + $0x50] sm:$0xff]
  %v44 = vld [vmem:[%s1 + $0x58] sm:$0xff]
  %v45 = vld [vmem:[%s1 + $0x60] sm:$0xff]
  %v46 = vld [vmem:[%s1 + $0x68] sm:$0xff]
  %v47 = vld [vmem:[%s1 + $0x70] sm:$0xff]
  %v48 = vld [vmem:[%s1 + $0x78] sm:$0xff]
  %v49 = vmax.f32 %v17, %v33
  %v50 = vmax.f32 %v18, %v34
  %v51 = vmax.f32 %v19, %v35
  %v52 = vmax.f32 %v20, %v36
  %v53 = vmax.f32 %v21, %v37
  %v54 = vmax.f32 %v22, %v38
  %v55 = vmax.f32 %v23, %v39
  %v56 = vmax.f32 %v24, %v40
  %v57 = vmax.f32 %v25, %v41
  %v58 = vmax.f32 %v26, %v42
  %v59 = vmax.f32 %v27, %v43
  %v60 = vmax.f32 %v28, %v44
  %v61 = vmax.f32 %v29, %v45
  %v62 = vmax.f32 %v30, %v46
  %v63 = vmax.f32 %v31, %v47
  %v64 = vmax.f32 %v32, %v48
  %v65 = vld [vmem:[%s2] sm:$0xff]
  %v66 = vld [vmem:[%s2 + $0x8] sm:$0xff]
  %v67 = vld [vmem:[%s2 + $0x10] sm:$0xff]
  %v68 = vld [vmem:[%s2 + $0x18] sm:$0xff]
  %v69 = vld [vmem:[%s2 + $0x20] sm:$0xff]
  %v70 = vld [vmem:[%s2 + $0x28] sm:$0xff]
  %v71 = vld [vmem:[%s2 + $0x30] sm:$0xff]
  %v72 = vld [vmem:[%s2 + $0x38] sm:$0xff]
  %v73 = vld [vmem:[%s2 + $0x40] sm:$0xff]
  %v74 = vld [vmem:[%s2 + $0x48] sm:$0xff]
  %v75 = vld [vmem:[%s2 + $0x50] sm:$0xff]
  %v76 = vld [vmem:[%s2 + $0x58] sm:$0xff]
  %v77 = vld [vmem:[%s2 + $0x60] sm:$0xff]
  %v78 = vld [vmem:[%s2 + $0x68] sm:$0xff]
  %v79 = vld [vmem:[%s2 + $0x70] sm:$0xff]
  %v80 = vld [vmem:[%s2 + $0x78] sm:$0xff]
  %v81 = vld [vmem:[%s3] sm:$0xff]
  %v82 = vld [vmem:[%s3 + $0x8] sm:$0xff]
  %v83 = vld [vmem:[%s3 + $0x10] sm:$0xff]
  %v84 = vld [vmem:[%s3 + $0x18] sm:$0xff]
  %v85 = vld [vmem:[%s3 + $0x20] sm:$0xff]
  %v86 = vld [vmem:[%s3 + $0x28] sm:$0xff]
  %v87 = vld [vmem:[%s3 + $0x30] sm:$0xff]
  %v88 = vld [vmem:[%s3 + $0x38] sm:$0xff]
  %v89 = vld [vmem:[%s3 + $0x40] sm:$0xff]
  %v90 = vld [vmem:[%s3 + $0x48] sm:$0xff]
  %v91 = vld [vmem:[%s3 + $0x50] sm:$0xff]
  %v92 = vld [vmem:[%s3 + $0x58] sm:$0xff]
  %v93 = vld [vmem:[%s3 + $0x60] sm:$0xff]
  %v94 = vld [vmem:[%s3 + $0x68] sm:$0xff]
  %v95 = vld [vmem:[%s3 + $0x70] sm:$0xff]
  %v96 = vld [vmem:[%s3 + $0x78] sm:$0xff]
  %v97 = vmax.f32 %v65, %v81
  %v98 = vmax.f32 %v66, %v82
  %v99 = vmax.f32 %v67, %v83
  %v100 = vmax.f32 %v68, %v84
  %v101 = vmax.f32 %v69, %v85
  %v102 = vmax.f32 %v70, %v86
  %v103 = vmax.f32 %v71, %v87
  %v104 = vmax.f32 %v72, %v88
  %v105 = vmax.f32 %v73, %v89
  %v106 = vmax.f32 %v74, %v90
  %v107 = vmax.f32 %v75, %v91
  %v108 = vmax.f32 %v76, %v92
  %v109 = vmax.f32 %v77, %v93
  %v110 = vmax.f32 %v78, %v94
  %v111 = vmax.f32 %v79, %v95
  %v112 = vmax.f32 %v80, %v96
  %v113 = vmax.f32 %v49, %v97
  %v114 = vmax.f32 %v50, %v98
  %v115 = vmax.f32 %v51, %v99
  %v116 = vmax.f32 %v52, %v100
  %v117 = vmax.f32 %v53, %v101
  %v118 = vmax.f32 %v54, %v102
  %v119 = vmax.f32 %v55, %v103
  %v120 = vmax.f32 %v56, %v104
  %v121 = vmax.f32 %v57, %v105
  %v122 = vmax.f32 %v58, %v106
  %v123 = vmax.f32 %v59, %v107
  %v124 = vmax.f32 %v60, %v108
  %v125 = vmax.f32 %v61, %v109
  %v126 = vmax.f32 %v62, %v110
  %v127 = vmax.f32 %v63, %v111
  %v128 = vmax.f32 %v64, %v112
  %vm129 = vcmask 523264
  %130 = vst.msk [vmem:[%s4] sm:$0xff] %vm129, %v113
  %131 = vst.msk [vmem:[%s4 + $0x8] sm:$0xff] %vm129, %v114
  %132 = vst.msk [vmem:[%s4 + $0x10] sm:$0xff] %vm129, %v115
  %133 = vst.msk [vmem:[%s4 + $0x18] sm:$0xff] %vm129, %v116
  %134 = vst.msk [vmem:[%s4 + $0x20] sm:$0xff] %vm129, %v117
  %135 = vst.msk [vmem:[%s4 + $0x28] sm:$0xff] %vm129, %v118
  %136 = vst.msk [vmem:[%s4 + $0x30] sm:$0xff] %vm129, %v119
  %137 = vst.msk [vmem:[%s4 + $0x38] sm:$0xff] %vm129, %v120
  %138 = vst.msk [vmem:[%s4 + $0x40] sm:$0xff] %vm129, %v121
  %139 = vst.msk [vmem:[%s4 + $0x48] sm:$0xff] %vm129, %v122
  %140 = vst.msk [vmem:[%s4 + $0x50] sm:$0xff] %vm129, %v123
  %141 = vst.msk [vmem:[%s4 + $0x58] sm:$0xff] %vm129, %v124
  %142 = vst.msk [vmem:[%s4 + $0x60] sm:$0xff] %vm129, %v125
  %143 = vst.msk [vmem:[%s4 + $0x68] sm:$0xff] %vm129, %v126
  %144 = vst.msk [vmem:[%s4 + $0x70] sm:$0xff] %vm129, %v127
  %145 = vst.msk [vmem:[%s4 + $0x78] sm:$0xff] %vm129, %v128
  // Predicated region
  $region18: #{deepcl_forward.13} parent=0 // pred_check
    _
  $region19: #{deepcl_forward.13} parent=0 // pred_check_branch
    %147 = sbr.rel (0) target = $region21
  $region20: #{deepcl_forward.13} parent=0 // pred_region
    _
  $region21: #{deepcl_forward.13} parent=0 // pred_fallthru
    _
  // Predicated region
  $region22: #{deepcl_forward.13} parent=0 // pred_check
    _
  $region23: #{deepcl_forward.13} parent=0 // pred_check_branch
    %149 = sbr.rel (0) target = $region25
  $region24: #{deepcl_forward.13} parent=0 // pred_region
    _
  $region25: #{deepcl_forward.13} parent=0 // pred_fallthru
    _

// kernel: deepcl_forward.12
$region0: #{deepcl_forward.12}
  #allocation0 [shape = 'u32[]', space=smem, size = 0x4, offset = 0x4, fixed_abs, tag = 'smem constant byte address 0x4 - core index']
  #allocation1 [shape = 'u32[144,128]{1,0:T(1,128)}', space=vmem, size = 0x12000, scoped, tag = 'internal scratch']
  %s0 = inlined_call_operand.vmem [shape: f32[512,128], index: 0, kind: input, shape index: {}]
  %s1 = inlined_call_operand.vmem [shape: bf16[128,64], index: 1, kind: input, shape index: {}]
  %s2 = inlined_call_operand.vmem [shape: f32[1,64], index: 2, kind: input, shape index: {}]
  %s3 = inlined_call_operand.vmem [shape: f32[512,64], index: 3, kind: output, shape index: {}]
  %s4 = sld [smem:[#allocation0]]
  $region45: #{deepcl_forward.12} parent=0
    _
  %s6 = ssub.s32 1, %s4
  %s7 = scalar_select 0, %s6, %s4
  loop: start=0, step=1, limit=4
  $region2: #{deepcl_forward.12} parent=0 // loop_pre_header
    _
  $region3: #{deepcl_forward.12} parent=0 // loop_header
    %s9 = sphi 0, %s13
    %p10 = scmp.ge.s32.totalorder %s9, 4
    %s19 = sphi 0, %s21
    %s22 = sphi 0, %s19
    %s23 = sphi 0, %s22
    %s39 = sphi 0, %s23
    %s43 = sphi 0, %s43
    %s45 = sphi 0, %s43
    %s46 = sphi 0, %s45
    %s60 = sphi 0, %s46
    %s64 = sphi 0, %s64
    %s66 = sphi 0, %s64
    %s67 = sphi 0, %s66
    %s81 = sphi 0, %s67
    %s87 = sphi 0, %s89
    %s90 = sphi 0, %s87
    %s91 = sphi 0, %s90
    %s107 = sphi 0, %s91
  $region4: #{deepcl_forward.12} parent=0 // loop_header_branch
    %12 = sbr.rel (%p10) target = $region8
  $region5: #{deepcl_forward.12} parent=0 // loop_body
    %s14 = ssub.s32 %s9, 1
    %s15 = ssub.s32 %s9, 2
    %s16 = sadd.s32 %s9, 1
    %s17 = ssub.s32 %s9, %s16
    %p18 = scmp.eq.s32.totalorder %s17, 0
    %s20 = sadd.s32 %s19, 1
    %s21 = scalar_select %p18, %s19, %s20
    %p24 = pneg %p18
    %p25 = scmp.eq.s32.totalorder %s9, 1
    %p26 = por %p24, %p25
    %p27 = scmp.ne.s32.totalorder %s19, %s22
    %p28 = scmp.eq.s32.totalorder %s9, 0
    %p29 = por %p27, %p28
    %p30 = scmp.ne.s32.totalorder %s19, %s22
    %p31 = scmp.eq.s32.totalorder %s14, 1
    %p32 = por %p30, %p31
    %p33 = scmp.ne.s32.totalorder %s22, %s23
    %p34 = scmp.eq.s32.totalorder %s14, 0
    %p35 = por %p33, %p34
    %p36 = scmp.ne.s32.totalorder %s22, %s23
    %p37 = scmp.eq.s32.totalorder %s15, 1
    %p38 = por %p36, %p37
    %p40 = scmp.ne.s32.totalorder %s23, %s39
    %p41 = scmp.eq.s32.totalorder %s15, 0
    %p42 = por %p40, %p41
    %s44 = sadd.s32 %s43, 1
    %p47 = scmp.eq.s32.totalorder %s9, 1
    %p48 = scmp.ne.s32.totalorder %s43, %s45
    %p49 = scmp.eq.s32.totalorder %s9, 0
    %p50 = por %p48, %p49
    %p51 = scmp.ne.s32.totalorder %s43, %s45
    %p52 = scmp.eq.s32.totalorder %s14, 1
    %p53 = por %p51, %p52
    %p54 = scmp.ne.s32.totalorder %s45, %s46
    %p55 = scmp.eq.s32.totalorder %s14, 0
    %p56 = por %p54, %p55
    %p57 = scmp.ne.s32.totalorder %s45, %s46
    %p58 = scmp.eq.s32.totalorder %s15, 1
    %p59 = por %p57, %p58
    %p61 = scmp.ne.s32.totalorder %s46, %s60
    %p62 = scmp.eq.s32.totalorder %s15, 0
    %p63 = por %p61, %p62
    %s65 = sadd.s32 %s64, 1
    %p68 = scmp.eq.s32.totalorder %s9, 1
    %p69 = scmp.ne.s32.totalorder %s64, %s66
    %p70 = scmp.eq.s32.totalorder %s9, 0
    %p71 = por %p69, %p70
    %p72 = scmp.ne.s32.totalorder %s64, %s66
    %p73 = scmp.eq.s32.totalorder %s14, 1
    %p74 = por %p72, %p73
    %p75 = scmp.ne.s32.totalorder %s66, %s67
    %p76 = scmp.eq.s32.totalorder %s14, 0
    %p77 = por %p75, %p76
    %p78 = scmp.ne.s32.totalorder %s66, %s67
    %p79 = scmp.eq.s32.totalorder %s15, 1
    %p80 = por %p78, %p79
    %p82 = scmp.ne.s32.totalorder %s67, %s81
    %p83 = scmp.eq.s32.totalorder %s15, 0
    %p84 = por %p82, %p83
    %s85 = ssub.s32 %s9, %s16
    %p86 = scmp.eq.s32.totalorder %s85, 0
    %s88 = sadd.s32 %s87, 1
    %s89 = scalar_select %p86, %s87, %s88
    %p92 = pneg %p86
    %p93 = scmp.eq.s32.totalorder %s9, 1
    %p94 = por %p92, %p93
    %p95 = scmp.ne.s32.totalorder %s87, %s90
    %p96 = scmp.eq.s32.totalorder %s9, 0
    %p97 = por %p95, %p96
    %p98 = scmp.ne.s32.totalorder %s87, %s90
    %p99 = scmp.eq.s32.totalorder %s14, 1
    %p100 = por %p98, %p99
    %p101 = scmp.ne.s32.totalorder %s90, %s91
    %p102 = scmp.eq.s32.totalorder %s14, 0
    %p103 = por %p101, %p102
    %p104 = scmp.ne.s32.totalorder %s90, %s91
    %p105 = scmp.eq.s32.totalorder %s15, 1
    %p106 = por %p104, %p105
    %p108 = scmp.ne.s32.totalorder %s91, %s107
    %p109 = scmp.eq.s32.totalorder %s15, 0
    %p110 = por %p108, %p109
    %p111 = scmp.le.s32.totalorder 1, %s9
    %p112 = scmp.lt.s32.totalorder %s9, 3
    %p113 = pnand %p111, %p112
    %p114 = pneg %p113
    // Predicated region
    $region9: #{deepcl_forward.12} parent=5 // pred_check
      _
    $region10: #{deepcl_forward.12} parent=5 // pred_check_branch
      %116 = sbr.rel (%p113) target = $region12
    $region11: #{deepcl_forward.12} parent=5 // pred_region
      %s117 = ssub.s32 %s9, 1
      // Predicated region
      $region13: #{deepcl_forward.12} parent=11 // pred_check
        %p118 = pneg %p56
      $region14: #{deepcl_forward.12} parent=11 // pred_check_branch
        %120 = sbr.rel (%p118) target = $region16
      $region15: #{deepcl_forward.12} parent=11 // pred_region
        _
      $region16: #{deepcl_forward.12} parent=11 // pred_fallthru
        _
      // Predicated region
      $region17: #{deepcl_forward.12} parent=11 // pred_check
        %p121 = pneg %p77
      $region18: #{deepcl_forward.12} parent=11 // pred_check_branch
        %123 = sbr.rel (%p121) target = $region20
      $region19: #{deepcl_forward.12} parent=11 // pred_region
        _
      $region20: #{deepcl_forward.12} parent=11 // pred_fallthru
        _
    $region12: #{deepcl_forward.12} parent=5 // pred_fallthru
      _
    %p124 = scmp.lt.s32.totalorder %s9, 2
    // Predicated region
    $region21: #{deepcl_forward.12} parent=5 // pred_check
      %p125 = pneg %p124
    $region22: #{deepcl_forward.12} parent=5 // pred_check_branch
      %127 = sbr.rel (%p125) target = $region24
    $region23: #{deepcl_forward.12} parent=5 // pred_region
      // Predicated region
      $region25: #{deepcl_forward.12} parent=23 // pred_check
        %p128 = pneg %p29
      $region26: #{deepcl_forward.12} parent=23 // pred_check_branch
        %130 = sbr.rel (%p128) target = $region28
      $region27: #{deepcl_forward.12} parent=23 // pred_region
        %s131 = smul.u32 32, %s9
        %p132 = scmp.lt.s32.totalorder %s131, 63
        %s133 = scalar_select %p132, %s131, 63
        %s134 = smul.addr %s133, 8
        %s135 = scalar_lea.vmem %s0, %s134
        %s136 = smul.u32 32, %s9
      $region28: #{deepcl_forward.12} parent=23 // pred_fallthru
        _
    $region24: #{deepcl_forward.12} parent=5 // pred_fallthru
      _
    %p137 = scmp.le.s32.totalorder 1, %s9
    %p138 = scmp.lt.s32.totalorder %s9, 3
    %p139 = pnand %p137, %p138
    %p140 = pneg %p139
    // Predicated region
    $region29: #{deepcl_forward.12} parent=5 // pred_check
      _
    $region30: #{deepcl_forward.12} parent=5 // pred_check_branch
      %142 = sbr.rel (%p139) target = $region32
    $region31: #{deepcl_forward.12} parent=5 // pred_region
      %s143 = ssub.s32 %s9, 1
      %s144 = smul.u32 32, %s14
      %p145 = scmp.lt.s32.totalorder %s144, 63
      %s146 = scalar_select %p145, %s144, 63
      %s147 = smul.addr %s146, 8
      %s148 = scalar_lea.vmem %s0, %s147
      %p149 = pneg %p35
      %p150 = pneg %p32
      %p151 = pneg %p56
      %p152 = pneg %p53
      %p153 = pneg %p77
      %p154 = pneg %p74
      %p155 = pneg %p103
      %p156 = pneg %p100
      %s157 = smul.u32 32, %s14
      %p158 = scmp.lt.s32.totalorder %s157, 63
      %s159 = scalar_select %p158, %s157, 63
      %s160 = smul.addr %s159, 8
      %s161 = scalar_lea.vmem %s3, %s160
      %s162 = smul.u32 32, %s14
      %p163 = scmp.lt.s32.totalorder %s162, 63
      %s164 = scalar_select %p163, %s162, 63
      %s165 = smul.addr %s164, 8
      %s166 = scalar_lea.vmem %s0, %s165
      %s167 = smul.u32 32, %s14
      %s168 = smul.u32 32, %s14
      %p169 = scmp.lt.s32.totalorder %s168, 63
      %s170 = scalar_select %p169, %s168, 63
      %s171 = smul.addr %s170, 8
      %s172 = scalar_lea.vmem %s3, %s171
      %s173 = smul.u32 32, %s14
      %v175 = vld [vmem:[%s166] sm:$0xff]
      %v176 = vld [vmem:[%s166 + $0x8] sm:$0xff]
      %v177 = vld [vmem:[%s166 + $0x10] sm:$0xff]
      %v178 = vld [vmem:[%s166 + $0x18] sm:$0xff]
      %v179 = vld [vmem:[%s166 + $0x20] sm:$0xff]
      %v180 = vld [vmem:[%s166 + $0x28] sm:$0xff]
      %v181 = vld [vmem:[%s166 + $0x30] sm:$0xff]
      %v182 = vld [vmem:[%s166 + $0x38] sm:$0xff]
      %v183 = vld [vmem:[%s166 + $0x40] sm:$0xff]
      %v184 = vld [vmem:[%s166 + $0x48] sm:$0xff]
      %v185 = vld [vmem:[%s166 + $0x50] sm:$0xff]
      %v186 = vld [vmem:[%s166 + $0x58] sm:$0xff]
      %v187 = vld [vmem:[%s166 + $0x60] sm:$0xff]
      %v188 = vld [vmem:[%s166 + $0x68] sm:$0xff]
      %v189 = vld [vmem:[%s166 + $0x70] sm:$0xff]
      %v190 = vld [vmem:[%s166 + $0x78] sm:$0xff]
      %v191 = vld [vmem:[%s166 + $0x80] sm:$0xff]
      %v192 = vld [vmem:[%s166 + $0x88] sm:$0xff]
      %v193 = vld [vmem:[%s166 + $0x90] sm:$0xff]
      %v194 = vld [vmem:[%s166 + $0x98] sm:$0xff]
      %v195 = vld [vmem:[%s166 + $0xa0] sm:$0xff]
      %v196 = vld [vmem:[%s166 + $0xa8] sm:$0xff]
      %v197 = vld [vmem:[%s166 + $0xb0] sm:$0xff]
      %v198 = vld [vmem:[%s166 + $0xb8] sm:$0xff]
      %v199 = vld [vmem:[%s166 + $0xc0] sm:$0xff]
      %v200 = vld [vmem:[%s166 + $0xc8] sm:$0xff]
      %v201 = vld [vmem:[%s166 + $0xd0] sm:$0xff]
      %v202 = vld [vmem:[%s166 + $0xd8] sm:$0xff]
      %v203 = vld [vmem:[%s166 + $0xe0] sm:$0xff]
      %v204 = vld [vmem:[%s166 + $0xe8] sm:$0xff]
      %v205 = vld [vmem:[%s166 + $0xf0] sm:$0xff]
      %v206 = vld [vmem:[%s166 + $0xf8] sm:$0xff]
      %v207 = vpack.c.bf16 %v176, %v175
      %v208 = vpack.c.bf16 %v178, %v177
      %v209 = vpack.c.bf16 %v180, %v179
      %v210 = vpack.c.bf16 %v182, %v181
      %v211 = vpack.c.bf16 %v184, %v183
      %v212 = vpack.c.bf16 %v186, %v185
      %v213 = vpack.c.bf16 %v188, %v187
      %v214 = vpack.c.bf16 %v190, %v189
      %v215 = vpack.c.bf16 %v192, %v191
      %v216 = vpack.c.bf16 %v194, %v193
      %v217 = vpack.c.bf16 %v196, %v195
      %v218 = vpack.c.bf16 %v198, %v197
      %v219 = vpack.c.bf16 %v200, %v199
      %v220 = vpack.c.bf16 %v202, %v201
      %v221 = vpack.c.bf16 %v204, %v203
      %v222 = vpack.c.bf16 %v206, %v205
      %v223 = vld [vmem:[%s1] sm:$0xf]
      %v224 = vld [vmem:[%s1 + $0x4] sm:$0xf]
      %v225 = vld [vmem:[%s1 + $0x8] sm:$0xf]
      %v226 = vld [vmem:[%s1 + $0xc] sm:$0xf]
      %v227 = vld [vmem:[%s1 + $0x10] sm:$0xf]
      %v228 = vld [vmem:[%s1 + $0x14] sm:$0xf]
      %v229 = vld [vmem:[%s1 + $0x18] sm:$0xf]
      %v230 = vld [vmem:[%s1 + $0x1c] sm:$0xf]
      %v231 = vld [vmem:[%s1 + $0x20] sm:$0xf]
      %v232 = vld [vmem:[%s1 + $0x24] sm:$0xf]
      %v233 = vld [vmem:[%s1 + $0x28] sm:$0xf]
      %v234 = vld [vmem:[%s1 + $0x2c] sm:$0xf]
      %v235 = vld [vmem:[%s1 + $0x30] sm:$0xf]
      %v236 = vld [vmem:[%s1 + $0x34] sm:$0xf]
      %v237 = vld [vmem:[%s1 + $0x38] sm:$0xf]
      %v238 = vld [vmem:[%s1 + $0x3c] sm:$0xf]
      %v239 = vld [vmem:[%s2] sm:$0x1]
      %v241 = vlaneseq
      %v242 = vshrl.u32 %v241, 7
      %v243 = vsub.s32 0, %v242
      %v244 = vrot.slane %v239, %v243
      %v262 = vunpack.c.l.b16 %v223
      %v263 = vunpack.c.l.b16 %v224
      %v264 = vunpack.c.l.b16 %v225
      %v265 = vunpack.c.l.b16 %v226
      %v266 = vunpack.c.l.b16 %v227
      %v267 = vunpack.c.l.b16 %v228
      %v268 = vunpack.c.l.b16 %v229
      %v269 = vunpack.c.l.b16 %v230
      %v270 = vunpack.c.l.b16 %v231
      %v271 = vunpack.c.l.b16 %v232
      %v272 = vunpack.c.l.b16 %v233
      %v273 = vunpack.c.l.b16 %v234
      %v274 = vunpack.c.l.b16 %v235
      %v275 = vunpack.c.l.b16 %v236
      %v276 = vunpack.c.l.b16 %v237
      %v277 = vunpack.c.l.b16 %v238
      %v278 = vpack.c.b16 %v263, %v262
      %v279 = vpack.c.b16 %v265, %v264
      %v280 = vpack.c.b16 %v267, %v266
      %v281 = vpack.c.b16 %v269, %v268
      %v282 = vpack.c.b16 %v271, %v270
      %v283 = vpack.c.b16 %v273, %v272
      %v284 = vpack.c.b16 %v275, %v274
      %v285 = vpack.c.b16 %v277, %v276
      %294 = vmatprep.subr.bf16.mxu0 0
      %295 = vmatpush1.bf16.msra.mxu0 %v278
      %296 = vmatprep.subr.bf16.mxu0 0
      %297 = vmatpush1.bf16.msra.mxu0 %v279
      %298 = vmatprep.subr.bf16.mxu0 0
      %299 = vmatpush1.bf16.msra.mxu0 %v280
      %300 = vmatprep.subr.bf16.mxu0 0
      %301 = vmatpush1.bf16.msra.mxu0 %v281
      %302 = vmatprep.subr.bf16.mxu0 0
      %303 = vmatpush1.bf16.msra.mxu0 %v282
      %304 = vmatprep.subr.bf16.mxu0 0
      %305 = vmatpush1.bf16.msra.mxu0 %v283
      %306 = vmatprep.subr.bf16.mxu0 0
      %307 = vmatpush1.bf16.msra.mxu0 %v284
      %308 = vmatprep.subr.bf16.mxu0 0
      %309 = vmatpush1.bf16.msra.mxu0 %v285
      %310 = vmatprep.subr.bf16.mxu0 0
      %311 = vmatpush1.bf16.msra.mxu0 0
      %312 = vmatprep.subr.bf16.mxu0 0
      %313 = vmatpush1.bf16.msra.mxu0 0
      %314 = vmatprep.subr.bf16.mxu0 0
      %315 = vmatpush1.bf16.msra.mxu0 0
      %316 = vmatprep.subr.bf16.mxu0 0
      %317 = vmatpush1.bf16.msra.mxu0 0
      %318 = vmatprep.subr.bf16.mxu0 0
      %319 = vmatpush1.bf16.msra.mxu0 0
      %320 = vmatprep.subr.bf16.mxu0 0
      %321 = vmatpush1.bf16.msra.mxu0 0
      %322 = vmatprep.subr.bf16.mxu0 0
      %323 = vmatpush1.bf16.msra.mxu0 0
      %324 = vmatprep.subr.bf16.mxu0 0
      %325 = vmatpush1.bf16.msra.mxu0 0
      %326 = vmatprep.mubr.bf16.mxu0 0
      %327 = vmatmul.mubr.bf16.gmra.mrb[0].mxu0 %v207
      %v328 = vpop.f32.mrb[0].mxu0
      %v329 = vadd.f32 %v244, %v328
      %v330 = vpop.f32.mrb[0].mxu0
      %v331 = vpop.f32.mrb[0].mxu0
      %v332 = vadd.f32 %v244, %v331
      %v333 = vpop.f32.mrb[0].mxu0
      %334 = vmatprep.mubr.bf16.mxu0 0
      %335 = vmatmul.mubr.bf16.gmra.mrb[0].mxu0 %v208
      %v336 = vpop.f32.mrb[0].mxu0
      %v337 = vadd.f32 %v244, %v336
      %v338 = vpop.f32.mrb[0].mxu0
      %v339 = vpop.f32.mrb[0].mxu0
      %v340 = vadd.f32 %v244, %v339
      %v341 = vpop.f32.mrb[0].mxu0
      %342 = vmatprep.mubr.bf16.mxu0 0
      %343 = vmatmul.mubr.bf16.gmra.mrb[0].mxu0 %v209
      %v344 = vpop.f32.mrb[0].mxu0
      %v345 = vadd.f32 %v244, %v344
      %v346 = vpop.f32.mrb[0].mxu0
      %v347 = vpop.f32.mrb[0].mxu0
      %v348 = vadd.f32 %v244, %v347
      %v349 = vpop.f32.mrb[0].mxu0
      %350 = vmatprep.mubr.bf16.mxu0 0
      %351 = vmatmul.mubr.bf16.gmra.mrb[0].mxu0 %v210
      %v352 = vpop.f32.mrb[0].mxu0
      %v353 = vadd.f32 %v244, %v352
      %v354 = vpop.f32.mrb[0].mxu0
      %v355 = vpop.f32.mrb[0].mxu0
      %v356 = vadd.f32 %v244, %v355
      %v357 = vpop.f32.mrb[0].mxu0
      %358 = vmatprep.mubr.bf16.mxu0 0
      %359 = vmatmul.mubr.bf16.gmra.mrb[0].mxu0 %v211
      %v360 = vpop.f32.mrb[0].mxu0
      %v361 = vadd.f32 %v244, %v360
      %v362 = vpop.f32.mrb[0].mxu0
      %v363 = vpop.f32.mrb[0].mxu0
      %v364 = vadd.f32 %v244, %v363
      %v365 = vpop.f32.mrb[0].mxu0
      %366 = vmatprep.mubr.bf16.mxu0 0
      %367 = vmatmul.mubr.bf16.gmra.mrb[0].mxu0 %v212
      %v368 = vpop.f32.mrb[0].mxu0
      %v369 = vadd.f32 %v244, %v368
      %v370 = vpop.f32.mrb[0].mxu0
      %v371 = vpop.f32.mrb[0].mxu0
      %v372 = vadd.f32 %v244, %v371
      %v373 = vpop.f32.mrb[0].mxu0
      %374 = vmatprep.mubr.bf16.mxu0 0
      %375 = vmatmul.mubr.bf16.gmra.mrb[0].mxu0 %v213
      %v376 = vpop.f32.mrb[0].mxu0
      %v377 = vadd.f32 %v244, %v376
      %v378 = vpop.f32.mrb[0].mxu0
      %v379 = vpop.f32.mrb[0].mxu0
      %v380 = vadd.f32 %v244, %v379
      %v381 = vpop.f32.mrb[0].mxu0
      %382 = vmatprep.mubr.bf16.mxu0 0
      %383 = vmatmul.mubr.bf16.gmra.mrb[0].mxu0 %v214
      %v384 = vpop.f32.mrb[0].mxu0
      %v385 = vadd.f32 %v244, %v384
      %v386 = vpop.f32.mrb[0].mxu0
      %v387 = vpop.f32.mrb[0].mxu0
      %v388 = vadd.f32 %v244, %v387
      %v389 = vpop.f32.mrb[0].mxu0
      %390 = vmatprep.mubr.bf16.mxu0 0
      %391 = vmatmul.mubr.bf16.gmra.mrb[0].mxu0 %v215
      %v392 = vpop.f32.mrb[0].mxu0
      %v393 = vadd.f32 %v244, %v392
      %v394 = vpop.f32.mrb[0].mxu0
      %v395 = vpop.f32.mrb[0].mxu0
      %v396 = vadd.f32 %v244, %v395
      %v397 = vpop.f32.mrb[0].mxu0
      %398 = vmatprep.mubr.bf16.mxu0 0
      %399 = vmatmul.mubr.bf16.gmra.mrb[0].mxu0 %v216
      %v400 = vpop.f32.mrb[0].mxu0
      %v401 = vadd.f32 %v244, %v400
      %v402 = vpop.f32.mrb[0].mxu0
      %v403 = vpop.f32.mrb[0].mxu0
      %v404 = vadd.f32 %v244, %v403
      %v405 = vpop.f32.mrb[0].mxu0
      %406 = vmatprep.mubr.bf16.mxu0 0
      %407 = vmatmul.mubr.bf16.gmra.mrb[0].mxu0 %v217
      %v408 = vpop.f32.mrb[0].mxu0
      %v409 = vadd.f32 %v244, %v408
      %v410 = vpop.f32.mrb[0].mxu0
      %v411 = vpop.f32.mrb[0].mxu0
      %v412 = vadd.f32 %v244, %v411
      %v413 = vpop.f32.mrb[0].mxu0
      %414 = vmatprep.mubr.bf16.mxu0 0
      %415 = vmatmul.mubr.bf16.gmra.mrb[0].mxu0 %v218
      %v416 = vpop.f32.mrb[0].mxu0
      %v417 = vadd.f32 %v244, %v416
      %v418 = vpop.f32.mrb[0].mxu0
      %v419 = vpop.f32.mrb[0].mxu0
      %v420 = vadd.f32 %v244, %v419
      %v421 = vpop.f32.mrb[0].mxu0
      %422 = vmatprep.mubr.bf16.mxu0 0
      %423 = vmatmul.mubr.bf16.gmra.mrb[0].mxu0 %v219
      %v424 = vpop.f32.mrb[0].mxu0
      %v425 = vadd.f32 %v244, %v424
      %v426 = vpop.f32.mrb[0].mxu0
      %v427 = vpop.f32.mrb[0].mxu0
      %v428 = vadd.f32 %v244, %v427
      %v429 = vpop.f32.mrb[0].mxu0
      %430 = vmatprep.mubr.bf16.mxu0 0
      %431 = vmatmul.mubr.bf16.gmra.mrb[0].mxu0 %v220
      %v432 = vpop.f32.mrb[0].mxu0
      %v433 = vadd.f32 %v244, %v432
      %v434 = vpop.f32.mrb[0].mxu0
      %v435 = vpop.f32.mrb[0].mxu0
      %v436 = vadd.f32 %v244, %v435
      %v437 = vpop.f32.mrb[0].mxu0
      %438 = vmatprep.mubr.bf16.mxu0 0
      %439 = vmatmul.mubr.bf16.gmra.mrb[0].mxu0 %v221
      %v440 = vpop.f32.mrb[0].mxu0
      %v441 = vadd.f32 %v244, %v440
      %v442 = vpop.f32.mrb[0].mxu0
      %v443 = vpop.f32.mrb[0].mxu0
      %v444 = vadd.f32 %v244, %v443
      %v445 = vpop.f32.mrb[0].mxu0
      %446 = vmatprep.mubr.bf16.mxu0 0
      %447 = vmatmul.mubr.bf16.gmra.mrb[0].mxu0 %v222
      %v448 = vpop.f32.mrb[0].mxu0
      %v449 = vadd.f32 %v244, %v448
      %v450 = vpop.f32.mrb[0].mxu0
      %v451 = vpop.f32.mrb[0].mxu0
      %v452 = vadd.f32 %v244, %v451
      %v453 = vpop.f32.mrb[0].mxu0
      %454 = vdwg.mxu0
      %v455 = vmax.f32 %v329, 0.0
      %v456 = vmax.f32 %v332, 0.0
      %v457 = vmax.f32 %v337, 0.0
      %v458 = vmax.f32 %v340, 0.0
      %v459 = vmax.f32 %v345, 0.0
      %v460 = vmax.f32 %v348, 0.0
      %v461 = vmax.f32 %v353, 0.0
      %v462 = vmax.f32 %v356, 0.0
      %v463 = vmax.f32 %v361, 0.0
      %v464 = vmax.f32 %v364, 0.0
      %v465 = vmax.f32 %v369, 0.0
      %v466 = vmax.f32 %v372, 0.0
      %v467 = vmax.f32 %v377, 0.0
      %v468 = vmax.f32 %v380, 0.0
      %v469 = vmax.f32 %v385, 0.0
      %v470 = vmax.f32 %v388, 0.0
      %v471 = vmax.f32 %v393, 0.0
      %v472 = vmax.f32 %v396, 0.0
      %v473 = vmax.f32 %v401, 0.0
      %v474 = vmax.f32 %v404, 0.0
      %v475 = vmax.f32 %v409, 0.0
      %v476 = vmax.f32 %v412, 0.0
      %v477 = vmax.f32 %v417, 0.0
      %v478 = vmax.f32 %v420, 0.0
      %v479 = vmax.f32 %v425, 0.0
      %v480 = vmax.f32 %v428, 0.0
      %v481 = vmax.f32 %v433, 0.0
      %v482 = vmax.f32 %v436, 0.0
      %v483 = vmax.f32 %v441, 0.0
      %v484 = vmax.f32 %v444, 0.0
      %v485 = vmax.f32 %v449, 0.0
      %v486 = vmax.f32 %v452, 0.0
      %vm487 = vcmask 523264
      %488 = vst.msk [vmem:[%s172] sm:$0xff] %vm487, %v455
      %489 = vst.msk [vmem:[%s172 + $0x8] sm:$0xff] %vm487, %v456
      %490 = vst.msk [vmem:[%s172 + $0x10] sm:$0xff] %vm487, %v457
      %491 = vst.msk [vmem:[%s172 + $0x18] sm:$0xff] %vm487, %v458
      %492 = vst.msk [vmem:[%s172 + $0x20] sm:$0xff] %vm487, %v459
      %493 = vst.msk [vmem:[%s172 + $0x28] sm:$0xff] %vm487, %v460
      %494 = vst.msk [vmem:[%s172 + $0x30] sm:$0xff] %vm487, %v461
      %495 = vst.msk [vmem:[%s172 + $0x38] sm:$0xff] %vm487, %v462
      %496 = vst.msk [vmem:[%s172 + $0x40] sm:$0xff] %vm487, %v463
      %497 = vst.msk [vmem:[%s172 + $0x48] sm:$0xff] %vm487, %v464
      %498 = vst.msk [vmem:[%s172 + $0x50] sm:$0xff] %vm487, %v465
      %499 = vst.msk [vmem:[%s172 + $0x58] sm:$0xff] %vm487, %v466
      %500 = vst.msk [vmem:[%s172 + $0x60] sm:$0xff] %vm487, %v467
      %501 = vst.msk [vmem:[%s172 + $0x68] sm:$0xff] %vm487, %v468
      %502 = vst.msk [vmem:[%s172 + $0x70] sm:$0xff] %vm487, %v469
      %503 = vst.msk [vmem:[%s172 + $0x78] sm:$0xff] %vm487, %v470
      %504 = vst.msk [vmem:[%s172 + $0x80] sm:$0xff] %vm487, %v471
      %505 = vst.msk [vmem:[%s172 + $0x88] sm:$0xff] %vm487, %v472
      %506 = vst.msk [vmem:[%s172 + $0x90] sm:$0xff] %vm487, %v473
      %507 = vst.msk [vmem:[%s172 + $0x98] sm:$0xff] %vm487, %v474
      %508 = vst.msk [vmem:[%s172 + $0xa0] sm:$0xff] %vm487, %v475
      %509 = vst.msk [vmem:[%s172 + $0xa8] sm:$0xff] %vm487, %v476
      %510 = vst.msk [vmem:[%s172 + $0xb0] sm:$0xff] %vm487, %v477
      %511 = vst.msk [vmem:[%s172 + $0xb8] sm:$0xff] %vm487, %v478
      %512 = vst.msk [vmem:[%s172 + $0xc0] sm:$0xff] %vm487, %v479
      %513 = vst.msk [vmem:[%s172 + $0xc8] sm:$0xff] %vm487, %v480
      %514 = vst.msk [vmem:[%s172 + $0xd0] sm:$0xff] %vm487, %v481
      %515 = vst.msk [vmem:[%s172 + $0xd8] sm:$0xff] %vm487, %v482
      %516 = vst.msk [vmem:[%s172 + $0xe0] sm:$0xff] %vm487, %v483
      %517 = vst.msk [vmem:[%s172 + $0xe8] sm:$0xff] %vm487, %v484
      %518 = vst.msk [vmem:[%s172 + $0xf0] sm:$0xff] %vm487, %v485
      %519 = vst.msk [vmem:[%s172 + $0xf8] sm:$0xff] %vm487, %v486
      %s520 = smul.u32 32, %s14
      %p521 = scmp.lt.s32.totalorder %s520, 63
      %s522 = scalar_select %p521, %s520, 63
      %s523 = smul.addr %s522, 8
      %s524 = scalar_lea.vmem %s3, %s523
      // Predicated region
      $region33: #{deepcl_forward.12} parent=31 // pred_check
        %p525 = pneg %p100
      $region34: #{deepcl_forward.12} parent=31 // pred_check_branch
        %527 = sbr.rel (%p525) target = $region36
      $region35: #{deepcl_forward.12} parent=31 // pred_region
        %s528 = smul.u32 32, %s14
      $region36: #{deepcl_forward.12} parent=31 // pred_fallthru
        _
    $region32: #{deepcl_forward.12} parent=5 // pred_fallthru
      _
    %p529 = scmp.le.s32.totalorder 2, %s9
    // Predicated region
    $region37: #{deepcl_forward.12} parent=5 // pred_check
      %p530 = pneg %p529
    $region38: #{deepcl_forward.12} parent=5 // pred_check_branch
      %532 = sbr.rel (%p530) target = $region40
    $region39: #{deepcl_forward.12} parent=5 // pred_region
      %s533 = ssub.s32 %s9, 2
      // Predicated region
      $region41: #{deepcl_forward.12} parent=39 // pred_check
        %p534 = pneg %p106
      $region42: #{deepcl_forward.12} parent=39 // pred_check_branch
        %536 = sbr.rel (%p534) target = $region44
      $region43: #{deepcl_forward.12} parent=39 // pred_region
        %s537 = smul.u32 32, %s15
        %p538 = scmp.lt.s32.totalorder %s537, 63
        %s539 = scalar_select %p538, %s537, 63
        %s540 = smul.addr %s539, 8
        %s541 = scalar_lea.vmem %s3, %s540
      $region44: #{deepcl_forward.12} parent=39 // pred_fallthru
        _
    $region40: #{deepcl_forward.12} parent=5 // pred_fallthru
      _
  $region6: #{deepcl_forward.12} parent=0 // loop_footer
    %s13 = sadd.s32 1, %s9
  $region7: #{deepcl_forward.12} parent=0 // loop_footer_branch
    %8 = sbr.rel target = $region3
  $region8: #{deepcl_forward.12} parent=0 // loop_exit
    _

// kernel: deepcl_forward.15
$region0: #{deepcl_forward.15}
  #allocation0 [shape = 'u32[]', space=smem, size = 0x4, offset = 0x4, fixed_abs, tag = 'smem constant byte address 0x4 - core index']
  #allocation1 [shape = 'u32[144,128]{1,0:T(1,128)}', space=vmem, size = 0x12000, scoped, tag = 'internal scratch']
  %s0 = inlined_call_operand.vmem [shape: f32[32,128], index: 0, kind: input, shape index: {}]
  %s1 = inlined_call_operand.vmem [shape: f32[32,128], index: 1, kind: input, shape index: {}]
  %s2 = inlined_call_operand.vmem [shape: f32[32,128], index: 2, kind: input, shape index: {}]
  %s3 = inlined_call_operand.vmem [shape: f32[32,128], index: 3, kind: input, shape index: {}]
  %s4 = inlined_call_operand.vmem [shape: f32[32,128], index: 4, kind: output, shape index: {}]
  %s5 = sld [smem:[#allocation0]]
  $region26: #{deepcl_forward.15} parent=0
    _
  %s7 = ssub.s32 1, %s5
  %s8 = scalar_select 0, %s7, %s5
  // Predicated region
  $region2: #{deepcl_forward.15} parent=0 // pred_check
    _
  $region3: #{deepcl_forward.15} parent=0 // pred_check_branch
    %10 = sbr.rel (0) target = $region5
  $region4: #{deepcl_forward.15} parent=0 // pred_region
    _
  $region5: #{deepcl_forward.15} parent=0 // pred_fallthru
    _
  // Predicated region
  $region6: #{deepcl_forward.15} parent=0 // pred_check
    _
  $region7: #{deepcl_forward.15} parent=0 // pred_check_branch
    %12 = sbr.rel (0) target = $region9
  $region8: #{deepcl_forward.15} parent=0 // pred_region
    _
  $region9: #{deepcl_forward.15} parent=0 // pred_fallthru
    _
  // Predicated region
  $region10: #{deepcl_forward.15} parent=0 // pred_check
    _
  $region11: #{deepcl_forward.15} parent=0 // pred_check_branch
    %14 = sbr.rel (0) target = $region13
  $region12: #{deepcl_forward.15} parent=0 // pred_region
    _
  $region13: #{deepcl_forward.15} parent=0 // pred_fallthru
    _
  // Predicated region
  $region14: #{deepcl_forward.15} parent=0 // pred_check
    _
  $region15: #{deepcl_forward.15} parent=0 // pred_check_branch
    %16 = sbr.rel (0) target = $region17
  $region16: #{deepcl_forward.15} parent=0 // pred_region
    _
  $region17: #{deepcl_forward.15} parent=0 // pred_fallthru
    _
  %v17 = vld [vmem:[%s0] sm:$0xff]
  %v18 = vld [vmem:[%s0 + $0x8] sm:$0xff]
  %v19 = vld [vmem:[%s0 + $0x10] sm:$0xff]
  %v20 = vld [vmem:[%s0 + $0x18] sm:$0xff]
  %v21 = vld [vmem:[%s1] sm:$0xff]
  %v22 = vld [vmem:[%s1 + $0x8] sm:$0xff]
  %v23 = vld [vmem:[%s1 + $0x10] sm:$0xff]
  %v24 = vld [vmem:[%s1 + $0x18] sm:$0xff]
  %v25 = vmax.f32 %v17, %v21
  %v26 = vmax.f32 %v18, %v22
  %v27 = vmax.f32 %v19, %v23
  %v28 = vmax.f32 %v20, %v24
  %v29 = vld [vmem:[%s2] sm:$0xff]
  %v30 = vld [vmem:[%s2 + $0x8] sm:$0xff]
  %v31 = vld [vmem:[%s2 + $0x10] sm:$0xff]
  %v32 = vld [vmem:[%s2 + $0x18] sm:$0xff]
  %v33 = vld [vmem:[%s3] sm:$0xff]
  %v34 = vld [vmem:[%s3 + $0x8] sm:$0xff]
  %v35 = vld [vmem:[%s3 + $0x10] sm:$0xff]
  %v36 = vld [vmem:[%s3 + $0x18] sm:$0xff]
  %v37 = vmax.f32 %v29, %v33
  %v38 = vmax.f32 %v30, %v34
  %v39 = vmax.f32 %v31, %v35
  %v40 = vmax.f32 %v32, %v36
  %v41 = vmax.f32 %v25, %v37
  %v42 = vmax.f32 %v26, %v38
  %v43 = vmax.f32 %v27, %v39
  %v44 = vmax.f32 %v28, %v40
  %45 = vst [vmem:[%s4] sm:$0xff] %v41
  %46 = vst [vmem:[%s4 + $0x8] sm:$0xff] %v42
  %47 = vst [vmem:[%s4 + $0x10] sm:$0xff] %v43
  %48 = vst [vmem:[%s4 + $0x18] sm:$0xff] %v44
  // Predicated region
  $region18: #{deepcl_forward.15} parent=0 // pred_check
    _
  $region19: #{deepcl_forward.15} parent=0 // pred_check_branch
    %50 = sbr.rel (0) target = $region21
  $region20: #{deepcl_forward.15} parent=0 // pred_region
    _
  $region21: #{deepcl_forward.15} parent=0 // pred_fallthru
    _
  // Predicated region
  $region22: #{deepcl_forward.15} parent=0 // pred_check
    _
  $region23: #{deepcl_forward.15} parent=0 // pred_check_branch
    %52 = sbr.rel (0) target = $region25
  $region24: #{deepcl_forward.15} parent=0 // pred_region
    _
  $region25: #{deepcl_forward.15} parent=0 // pred_fallthru
    _

// kernel: deepcl_forward.14
$region0: #{deepcl_forward.14}
  #allocation0 [shape = 'u32[]', space=smem, size = 0x4, offset = 0x4, fixed_abs, tag = 'smem constant byte address 0x4 - core index']
  #allocation1 [shape = 'u32[144,128]{1,0:T(1,128)}', space=vmem, size = 0x12000, scoped, tag = 'internal scratch']
  %s0 = inlined_call_operand.vmem [shape: f32[128,640], index: 0, kind: input, shape index: {}]
  %s1 = inlined_call_operand.vmem [shape: bf16[640,128], index: 1, kind: input, shape index: {}]
  %s2 = inlined_call_operand.vmem [shape: f32[1,128], index: 2, kind: input, shape index: {}]
  %s3 = inlined_call_operand.vmem [shape: f32[128,128], index: 3, kind: output, shape index: {}]
  %s4 = sld [smem:[#allocation0]]
  $region22: #{deepcl_forward.14} parent=0
    _
  %s6 = ssub.s32 1, %s4
  %s7 = scalar_select 0, %s6, %s4
  // Predicated region
  $region2: #{deepcl_forward.14} parent=0 // pred_check
    _
  $region3: #{deepcl_forward.14} parent=0 // pred_check_branch
    %9 = sbr.rel (0) target = $region5
  $region4: #{deepcl_forward.14} parent=0 // pred_region
    _
  $region5: #{deepcl_forward.14} parent=0 // pred_fallthru
    _
  // Predicated region
  $region6: #{deepcl_forward.14} parent=0 // pred_check
    _
  $region7: #{deepcl_forward.14} parent=0 // pred_check_branch
    %11 = sbr.rel (0) target = $region9
  $region8: #{deepcl_forward.14} parent=0 // pred_region
    _
  $region9: #{deepcl_forward.14} parent=0 // pred_fallthru
    _
  // Predicated region
  $region10: #{deepcl_forward.14} parent=0 // pred_check
    _
  $region11: #{deepcl_forward.14} parent=0 // pred_check_branch
    %13 = sbr.rel (0) target = $region13
  $region12: #{deepcl_forward.14} parent=0 // pred_region
    _
  $region13: #{deepcl_forward.14} parent=0 // pred_fallthru
    _
  %v15 = vld [vmem:[%s0] sm:$0xff]
  %v16 = vld [vmem:[%s0 + $0x8] sm:$0xff]
  %v17 = vld [vmem:[%s0 + $0x10] sm:$0xff]
  %v18 = vld [vmem:[%s0 + $0x18] sm:$0xff]
  %v19 = vld [vmem:[%s0 + $0x20] sm:$0xff]
  %v20 = vld [vmem:[%s0 + $0x28] sm:$0xff]
  %v21 = vld [vmem:[%s0 + $0x30] sm:$0xff]
  %v22 = vld [vmem:[%s0 + $0x38] sm:$0xff]
  %v23 = vld [vmem:[%s0 + $0x40] sm:$0xff]
  %v24 = vld [vmem:[%s0 + $0x48] sm:$0xff]
  %v25 = vld [vmem:[%s0 + $0x50] sm:$0xff]
  %v26 = vld [vmem:[%s0 + $0x58] sm:$0xff]
  %v27 = vld [vmem:[%s0 + $0x60] sm:$0xff]
  %v28 = vld [vmem:[%s0 + $0x68] sm:$0xff]
  %v29 = vld [vmem:[%s0 + $0x70] sm:$0xff]
  %v30 = vld [vmem:[%s0 + $0x78] sm:$0xff]
  %v31 = vld [vmem:[%s0 + $0x80] sm:$0xff]
  %v32 = vld [vmem:[%s0 + $0x88] sm:$0xff]
  %v33 = vld [vmem:[%s0 + $0x90] sm:$0xff]
  %v34 = vld [vmem:[%s0 + $0x98] sm:$0xff]
  %v35 = vld [vmem:[%s0 + $0xa0] sm:$0xff]
  %v36 = vld [vmem:[%s0 + $0xa8] sm:$0xff]
  %v37 = vld [vmem:[%s0 + $0xb0] sm:$0xff]
  %v38 = vld [vmem:[%s0 + $0xb8] sm:$0xff]
  %v39 = vld [vmem:[%s0 + $0xc0] sm:$0xff]
  %v40 = vld [vmem:[%s0 + $0xc8] sm:$0xff]
  %v41 = vld [vmem:[%s0 + $0xd0] sm:$0xff]
  %v42 = vld [vmem:[%s0 + $0xd8] sm:$0xff]
  %v43 = vld [vmem:[%s0 + $0xe0] sm:$0xff]
  %v44 = vld [vmem:[%s0 + $0xe8] sm:$0xff]
  %v45 = vld [vmem:[%s0 + $0xf0] sm:$0xff]
  %v46 = vld [vmem:[%s0 + $0xf8] sm:$0xff]
  %v47 = vld [vmem:[%s0 + $0x100] sm:$0xff]
  %v48 = vld [vmem:[%s0 + $0x108] sm:$0xff]
  %v49 = vld [vmem:[%s0 + $0x110] sm:$0xff]
  %v50 = vld [vmem:[%s0 + $0x118] sm:$0xff]
  %v51 = vld [vmem:[%s0 + $0x120] sm:$0xff]
  %v52 = vld [vmem:[%s0 + $0x128] sm:$0xff]
  %v53 = vld [vmem:[%s0 + $0x130] sm:$0xff]
  %v54 = vld [vmem:[%s0 + $0x138] sm:$0xff]
  %v55 = vld [vmem:[%s0 + $0x140] sm:$0xff]
  %v56 = vld [vmem:[%s0 + $0x148] sm:$0xff]
  %v57 = vld [vmem:[%s0 + $0x150] sm:$0xff]
  %v58 = vld [vmem:[%s0 + $0x158] sm:$0xff]
  %v59 = vld [vmem:[%s0 + $0x160] sm:$0xff]
  %v60 = vld [vmem:[%s0 + $0x168] sm:$0xff]
  %v61 = vld [vmem:[%s0 + $0x170] sm:$0xff]
  %v62 = vld [vmem:[%s0 + $0x178] sm:$0xff]
  %v63 = vld [vmem:[%s0 + $0x180] sm:$0xff]
  %v64 = vld [vmem:[%s0 + $0x188] sm:$0xff]
  %v65 = vld [vmem:[%s0 + $0x190] sm:$0xff]
  %v66 = vld [vmem:[%s0 + $0x198] sm:$0xff]
  %v67 = vld [vmem:[%s0 + $0x1a0] sm:$0xff]
  %v68 = vld [vmem:[%s0 + $0x1a8] sm:$0xff]
  %v69 = vld [vmem:[%s0 + $0x1b0] sm:$0xff]
  %v70 = vld [vmem:[%s0 + $0x1b8] sm:$0xff]
  %v71 = vld [vmem:[%s0 + $0x1c0] sm:$0xff]
  %v72 = vld [vmem:[%s0 + $0x1c8] sm:$0xff]
  %v73 = vld [vmem:[%s0 + $0x1d0] sm:$0xff]
  %v74 = vld [vmem:[%s0 + $0x1d8] sm:$0xff]
  %v75 = vld [vmem:[%s0 + $0x1e0] sm:$0xff]
  %v76 = vld [vmem:[%s0 + $0x1e8] sm:$0xff]
  %v77 = vld [vmem:[%s0 + $0x1f0] sm:$0xff]
  %v78 = vld [vmem:[%s0 + $0x1f8] sm:$0xff]
  %v79 = vld [vmem:[%s0 + $0x200] sm:$0xff]
  %v80 = vld [vmem:[%s0 + $0x208] sm:$0xff]
  %v81 = vld [vmem:[%s0 + $0x210] sm:$0xff]
  %v82 = vld [vmem:[%s0 + $0x218] sm:$0xff]
  %v83 = vld [vmem:[%s0 + $0x220] sm:$0xff]
  %v84 = vld [vmem:[%s0 + $0x228] sm:$0xff]
  %v85 = vld [vmem:[%s0 + $0x230] sm:$0xff]
  %v86 = vld [vmem:[%s0 + $0x238] sm:$0xff]
  %v87 = vld [vmem:[%s0 + $0x240] sm:$0xff]
  %v88 = vld [vmem:[%s0 + $0x248] sm:$0xff]
  %v89 = vld [vmem:[%s0 + $0x250] sm:$0xff]
  %v90 = vld [vmem:[%s0 + $0x258] sm:$0xff]
  %v91 = vld [vmem:[%s0 + $0x260] sm:$0xff]
  %v92 = vld [vmem:[%s0 + $0x268] sm:$0xff]
  %v93 = vld [vmem:[%s0 + $0x270] sm:$0xff]
  %v94 = vld [vmem:[%s0 + $0x278] sm:$0xff]
  %v95 = vpack.c.bf16 %v20, %v15
  %v96 = vpack.c.bf16 %v21, %v16
  %v97 = vpack.c.bf16 %v22, %v17
  %v98 = vpack.c.bf16 %v23, %v18
  %v99 = vpack.c.bf16 %v24, %v19
  %v100 = vpack.c.bf16 %v30, %v25
  %v101 = vpack.c.bf16 %v31, %v26
  %v102 = vpack.c.bf16 %v32, %v27
  %v103 = vpack.c.bf16 %v33, %v28
  %v104 = vpack.c.bf16 %v34, %v29
  %v105 = vpack.c.bf16 %v40, %v35
  %v106 = vpack.c.bf16 %v41, %v36
  %v107 = vpack.c.bf16 %v42, %v37
  %v108 = vpack.c.bf16 %v43, %v38
  %v109 = vpack.c.bf16 %v44, %v39
  %v110 = vpack.c.bf16 %v50, %v45
  %v111 = vpack.c.bf16 %v51, %v46
  %v112 = vpack.c.bf16 %v52, %v47
  %v113 = vpack.c.bf16 %v53, %v48
  %v114 = vpack.c.bf16 %v54, %v49
  %v115 = vpack.c.bf16 %v60, %v55
  %v116 = vpack.c.bf16 %v61, %v56
  %v117 = vpack.c.bf16 %v62, %v57
  %v118 = vpack.c.bf16 %v63, %v58
  %v119 = vpack.c.bf16 %v64, %v59
  %v120 = vpack.c.bf16 %v70, %v65
  %v121 = vpack.c.bf16 %v71, %v66
  %v122 = vpack.c.bf16 %v72, %v67
  %v123 = vpack.c.bf16 %v73, %v68
  %v124 = vpack.c.bf16 %v74, %v69
  %v125 = vpack.c.bf16 %v80, %v75
  %v126 = vpack.c.bf16 %v81, %v76
  %v127 = vpack.c.bf16 %v82, %v77
  %v128 = vpack.c.bf16 %v83, %v78
  %v129 = vpack.c.bf16 %v84, %v79
  %v130 = vpack.c.bf16 %v90, %v85
  %v131 = vpack.c.bf16 %v91, %v86
  %v132 = vpack.c.bf16 %v92, %v87
  %v133 = vpack.c.bf16 %v93, %v88
  %v134 = vpack.c.bf16 %v94, %v89
  %v135 = vld [vmem:[%s1] sm:$0xf]
  %v136 = vld [vmem:[%s1 + $0x4] sm:$0xf]
  %v137 = vld [vmem:[%s1 + $0x8] sm:$0xf]
  %v138 = vld [vmem:[%s1 + $0xc] sm:$0xf]
  %v139 = vld [vmem:[%s1 + $0x10] sm:$0xf]
  %v140 = vld [vmem:[%s1 + $0x14] sm:$0xf]
  %v141 = vld [vmem:[%s1 + $0x18] sm:$0xf]
  %v142 = vld [vmem:[%s1 + $0x1c] sm:$0xf]
  %v143 = vld [vmem:[%s1 + $0x20] sm:$0xf]
  %v144 = vld [vmem:[%s1 + $0x24] sm:$0xf]
  %v145 = vld [vmem:[%s1 + $0x28] sm:$0xf]
  %v146 = vld [vmem:[%s1 + $0x2c] sm:$0xf]
  %v147 = vld [vmem:[%s1 + $0x30] sm:$0xf]
  %v148 = vld [vmem:[%s1 + $0x34] sm:$0xf]
  %v149 = vld [vmem:[%s1 + $0x38] sm:$0xf]
  %v150 = vld [vmem:[%s1 + $0x3c] sm:$0xf]
  %v151 = vld [vmem:[%s1 + $0x40] sm:$0xf]
  %v152 = vld [vmem:[%s1 + $0x44] sm:$0xf]
  %v153 = vld [vmem:[%s1 + $0x48] sm:$0xf]
  %v154 = vld [vmem:[%s1 + $0x4c] sm:$0xf]
  %v155 = vld [vmem:[%s1 + $0x50] sm:$0xf]
  %v156 = vld [vmem:[%s1 + $0x54] sm:$0xf]
  %v157 = vld [vmem:[%s1 + $0x58] sm:$0xf]
  %v158 = vld [vmem:[%s1 + $0x5c] sm:$0xf]
  %v159 = vld [vmem:[%s1 + $0x60] sm:$0xf]
  %v160 = vld [vmem:[%s1 + $0x64] sm:$0xf]
  %v161 = vld [vmem:[%s1 + $0x68] sm:$0xf]
  %v162 = vld [vmem:[%s1 + $0x6c] sm:$0xf]
  %v163 = vld [vmem:[%s1 + $0x70] sm:$0xf]
  %v164 = vld [vmem:[%s1 + $0x74] sm:$0xf]
  %v165 = vld [vmem:[%s1 + $0x78] sm:$0xf]
  %v166 = vld [vmem:[%s1 + $0x7c] sm:$0xf]
  %v167 = vld [vmem:[%s1 + $0x80] sm:$0xf]
  %v168 = vld [vmem:[%s1 + $0x84] sm:$0xf]
  %v169 = vld [vmem:[%s1 + $0x88] sm:$0xf]
  %v170 = vld [vmem:[%s1 + $0x8c] sm:$0xf]
  %v171 = vld [vmem:[%s1 + $0x90] sm:$0xf]
  %v172 = vld [vmem:[%s1 + $0x94] sm:$0xf]
  %v173 = vld [vmem:[%s1 + $0x98] sm:$0xf]
  %v174 = vld [vmem:[%s1 + $0x9c] sm:$0xf]
  %v175 = vld [vmem:[%s1 + $0xa0] sm:$0xf]
  %v176 = vld [vmem:[%s1 + $0xa4] sm:$0xf]
  %v177 = vld [vmem:[%s1 + $0xa8] sm:$0xf]
  %v178 = vld [vmem:[%s1 + $0xac] sm:$0xf]
  %v179 = vld [vmem:[%s1 + $0xb0] sm:$0xf]
  %v180 = vld [vmem:[%s1 + $0xb4] sm:$0xf]
  %v181 = vld [vmem:[%s1 + $0xb8] sm:$0xf]
  %v182 = vld [vmem:[%s1 + $0xbc] sm:$0xf]
  %v183 = vld [vmem:[%s1 + $0xc0] sm:$0xf]
  %v184 = vld [vmem:[%s1 + $0xc4] sm:$0xf]
  %v185 = vld [vmem:[%s1 + $0xc8] sm:$0xf]
  %v186 = vld [vmem:[%s1 + $0xcc] sm:$0xf]
  %v187 = vld [vmem:[%s1 + $0xd0] sm:$0xf]
  %v188 = vld [vmem:[%s1 + $0xd4] sm:$0xf]
  %v189 = vld [vmem:[%s1 + $0xd8] sm:$0xf]
  %v190 = vld [vmem:[%s1 + $0xdc] sm:$0xf]
  %v191 = vld [vmem:[%s1 + $0xe0] sm:$0xf]
  %v192 = vld [vmem:[%s1 + $0xe4] sm:$0xf]
  %v193 = vld [vmem:[%s1 + $0xe8] sm:$0xf]
  %v194 = vld [vmem:[%s1 + $0xec] sm:$0xf]
  %v195 = vld [vmem:[%s1 + $0xf0] sm:$0xf]
  %v196 = vld [vmem:[%s1 + $0xf4] sm:$0xf]
  %v197 = vld [vmem:[%s1 + $0xf8] sm:$0xf]
  %v198 = vld [vmem:[%s1 + $0xfc] sm:$0xf]
  %v199 = vld [vmem:[%s1 + $0x100] sm:$0xf]
  %v200 = vld [vmem:[%s1 + $0x104] sm:$0xf]
  %v201 = vld [vmem:[%s1 + $0x108] sm:$0xf]
  %v202 = vld [vmem:[%s1 + $0x10c] sm:$0xf]
  %v203 = vld [vmem:[%s1 + $0x110] sm:$0xf]
  %v204 = vld [vmem:[%s1 + $0x114] sm:$0xf]
  %v205 = vld [vmem:[%s1 + $0x118] sm:$0xf]
  %v206 = vld [vmem:[%s1 + $0x11c] sm:$0xf]
  %v207 = vld [vmem:[%s1 + $0x120] sm:$0xf]
  %v208 = vld [vmem:[%s1 + $0x124] sm:$0xf]
  %v209 = vld [vmem:[%s1 + $0x128] sm:$0xf]
  %v210 = vld [vmem:[%s1 + $0x12c] sm:$0xf]
  %v211 = vld [vmem:[%s1 + $0x130] sm:$0xf]
  %v212 = vld [vmem:[%s1 + $0x134] sm:$0xf]
  %v213 = vld [vmem:[%s1 + $0x138] sm:$0xf]
  %v214 = vld [vmem:[%s1 + $0x13c] sm:$0xf]
  %v215 = vld [vmem:[%s2] sm:$0x1]
  %v217 = vlaneseq
  %v218 = vshrl.u32 %v217, 7
  %v219 = vsub.s32 0, %v218
  %v220 = vrot.slane %v215, %v219
  %v302 = vunpack.c.l.b16 %v135
  %v303 = vunpack.c.l.b16 %v136
  %v304 = vunpack.c.l.b16 %v137
  %v305 = vunpack.c.l.b16 %v138
  %v306 = vunpack.c.l.b16 %v139
  %v307 = vunpack.c.l.b16 %v140
  %v308 = vunpack.c.l.b16 %v141
  %v309 = vunpack.c.l.b16 %v142
  %v310 = vunpack.c.l.b16 %v143
  %v311 = vunpack.c.l.b16 %v144
  %v312 = vunpack.c.l.b16 %v145
  %v313 = vunpack.c.l.b16 %v146
  %v314 = vunpack.c.l.b16 %v147
  %v315 = vunpack.c.l.b16 %v148
  %v316 = vunpack.c.l.b16 %v149
  %v317 = vunpack.c.l.b16 %v150
  %v318 = vunpack.c.l.b16 %v151
  %v319 = vunpack.c.l.b16 %v152
  %v320 = vunpack.c.l.b16 %v153
  %v321 = vunpack.c.l.b16 %v154
  %v322 = vunpack.c.l.b16 %v155
  %v323 = vunpack.c.l.b16 %v156
  %v324 = vunpack.c.l.b16 %v157
  %v325 = vunpack.c.l.b16 %v158
  %v326 = vunpack.c.l.b16 %v159
  %v327 = vunpack.c.l.b16 %v160
  %v328 = vunpack.c.l.b16 %v161
  %v329 = vunpack.c.l.b16 %v162
  %v330 = vunpack.c.l.b16 %v163
  %v331 = vunpack.c.l.b16 %v164
  %v332 = vunpack.c.l.b16 %v165
  %v333 = vunpack.c.l.b16 %v166
  %v334 = vunpack.c.l.b16 %v167
  %v335 = vunpack.c.l.b16 %v168
  %v336 = vunpack.c.l.b16 %v169
  %v337 = vunpack.c.l.b16 %v170
  %v338 = vunpack.c.l.b16 %v171
  %v339 = vunpack.c.l.b16 %v172
  %v340 = vunpack.c.l.b16 %v173
  %v341 = vunpack.c.l.b16 %v174
  %v342 = vunpack.c.l.b16 %v175
  %v343 = vunpack.c.l.b16 %v176
  %v344 = vunpack.c.l.b16 %v177
  %v345 = vunpack.c.l.b16 %v178
  %v346 = vunpack.c.l.b16 %v179
  %v347 = vunpack.c.l.b16 %v180
  %v348 = vunpack.c.l.b16 %v181
  %v349 = vunpack.c.l.b16 %v182
  %v350 = vunpack.c.l.b16 %v183
  %v351 = vunpack.c.l.b16 %v184
  %v352 = vunpack.c.l.b16 %v185
  %v353 = vunpack.c.l.b16 %v186
  %v354 = vunpack.c.l.b16 %v187
  %v355 = vunpack.c.l.b16 %v188
  %v356 = vunpack.c.l.b16 %v189
  %v357 = vunpack.c.l.b16 %v190
  %v358 = vunpack.c.l.b16 %v191
  %v359 = vunpack.c.l.b16 %v192
  %v360 = vunpack.c.l.b16 %v193
  %v361 = vunpack.c.l.b16 %v194
  %v362 = vunpack.c.l.b16 %v195
  %v363 = vunpack.c.l.b16 %v196
  %v364 = vunpack.c.l.b16 %v197
  %v365 = vunpack.c.l.b16 %v198
  %v366 = vunpack.c.l.b16 %v199
  %v367 = vunpack.c.l.b16 %v200
  %v368 = vunpack.c.l.b16 %v201
  %v369 = vunpack.c.l.b16 %v202
  %v370 = vunpack.c.l.b16 %v203
  %v371 = vunpack.c.l.b16 %v204
  %v372 = vunpack.c.l.b16 %v205
  %v373 = vunpack.c.l.b16 %v206
  %v374 = vunpack.c.l.b16 %v207
  %v375 = vunpack.c.l.b16 %v208
  %v376 = vunpack.c.l.b16 %v209
  %v377 = vunpack.c.l.b16 %v210
  %v378 = vunpack.c.l.b16 %v211
  %v379 = vunpack.c.l.b16 %v212
  %v380 = vunpack.c.l.b16 %v213
  %v381 = vunpack.c.l.b16 %v214
  %v382 = vpack.c.b16 %v303, %v302
  %v383 = vpack.c.b16 %v305, %v304
  %v384 = vpack.c.b16 %v307, %v306
  %v385 = vpack.c.b16 %v309, %v308
  %v386 = vpack.c.b16 %v311, %v310
  %v387 = vpack.c.b16 %v313, %v312
  %v388 = vpack.c.b16 %v315, %v314
  %v389 = vpack.c.b16 %v317, %v316
  %v390 = vpack.c.b16 %v319, %v318
  %v391 = vpack.c.b16 %v321, %v320
  %v392 = vpack.c.b16 %v323, %v322
  %v393 = vpack.c.b16 %v325, %v324
  %v394 = vpack.c.b16 %v327, %v326
  %v395 = vpack.c.b16 %v329, %v328
  %v396 = vpack.c.b16 %v331, %v330
  %v397 = vpack.c.b16 %v333, %v332
  %v398 = vpack.c.b16 %v335, %v334
  %v399 = vpack.c.b16 %v337, %v336
  %v400 = vpack.c.b16 %v339, %v338
  %v401 = vpack.c.b16 %v341, %v340
  %v402 = vpack.c.b16 %v343, %v342
  %v403 = vpack.c.b16 %v345, %v344
  %v404 = vpack.c.b16 %v347, %v346
  %v405 = vpack.c.b16 %v349, %v348
  %v406 = vpack.c.b16 %v351, %v350
  %v407 = vpack.c.b16 %v353, %v352
  %v408 = vpack.c.b16 %v355, %v354
  %v409 = vpack.c.b16 %v357, %v356
  %v410 = vpack.c.b16 %v359, %v358
  %v411 = vpack.c.b16 %v361, %v360
  %v412 = vpack.c.b16 %v363, %v362
  %v413 = vpack.c.b16 %v365, %v364
  %v414 = vpack.c.b16 %v367, %v366
  %v415 = vpack.c.b16 %v369, %v368
  %v416 = vpack.c.b16 %v371, %v370
  %v417 = vpack.c.b16 %v373, %v372
  %v418 = vpack.c.b16 %v375, %v374
  %v419 = vpack.c.b16 %v377, %v376
  %v420 = vpack.c.b16 %v379, %v378
  %v421 = vpack.c.b16 %v381, %v380
  %462 = vmatprep.subr.bf16.mxu0 0
  %463 = vmatpush1.bf16.msra.mxu0 %v382
  %464 = vmatprep.subr.bf16.mxu0 0
  %465 = vmatpush1.bf16.msra.mxu0 %v383
  %466 = vmatprep.subr.bf16.mxu0 0
  %467 = vmatpush1.bf16.msra.mxu0 %v384
  %468 = vmatprep.subr.bf16.mxu0 0
  %469 = vmatpush1.bf16.msra.mxu0 %v385
  %470 = vmatprep.subr.bf16.mxu0 0
  %471 = vmatpush1.bf16.msra.mxu0 %v386
  %472 = vmatprep.subr.bf16.mxu0 0
  %473 = vmatpush1.bf16.msra.mxu0 %v387
  %474 = vmatprep.subr.bf16.mxu0 0
  %475 = vmatpush1.bf16.msra.mxu0 %v388
  %476 = vmatprep.subr.bf16.mxu0 0
  %477 = vmatpush1.bf16.msra.mxu0 %v389
  %478 = vmatprep.subr.bf16.mxu0 0
  %479 = vmatpush1.bf16.msra.mxu0 %v390
  %480 = vmatprep.subr.bf16.mxu0 0
  %481 = vmatpush1.bf16.msra.mxu0 %v391
  %482 = vmatprep.subr.bf16.mxu0 0
  %483 = vmatpush1.bf16.msra.mxu0 %v392
  %484 = vmatprep.subr.bf16.mxu0 0
  %485 = vmatpush1.bf16.msra.mxu0 %v393
  %486 = vmatprep.subr.bf16.mxu0 0
  %487 = vmatpush1.bf16.msra.mxu0 %v394
  %488 = vmatprep.subr.bf16.mxu0 0
  %489 = vmatpush1.bf16.msra.mxu0 %v395
  %490 = vmatprep.subr.bf16.mxu0 0
  %491 = vmatpush1.bf16.msra.mxu0 %v396
  %492 = vmatprep.subr.bf16.mxu0 0
  %493 = vmatpush1.bf16.msra.mxu0 %v397
  %494 = vmatprep.mubr.bf16.mxu0 %v96
  %495 = vmatmul.mubr.bf16.gmra.mrb[0].mxu0 %v95
  %v496 = vpop.f32.mrb[0].mxu0
  %v497 = vadd.f32 %v220, %v496
  %v498 = vpop.f32.mrb[0].mxu0
  %v499 = vpop.f32.mrb[0].mxu0
  %v500 = vadd.f32 %v220, %v499
  %v501 = vpop.f32.mrb[0].mxu0
  %502 = vmatprep.mubr.bf16.mxu0 %v101
  %503 = vmatmul.mubr.bf16.gmra.mrb[0].mxu0 %v100
  %v504 = vpop.f32.mrb[0].mxu0
  %v505 = vadd.f32 %v220, %v504
  %v506 = vpop.f32.mrb[0].mxu0
  %v507 = vpop.f32.mrb[0].mxu0
  %v508 = vadd.f32 %v220, %v507
  %v509 = vpop.f32.mrb[0].mxu0
  %510 = vmatprep.mubr.bf16.mxu0 %v106
  %511 = vmatmul.mubr.bf16.gmra.mrb[0].mxu0 %v105
  %v512 = vpop.f32.mrb[0].mxu0
  %v513 = vadd.f32 %v220, %v512
  %v514 = vpop.f32.mrb[0].mxu0
  %v515 = vpop.f32.mrb[0].mxu0
  %v516 = vadd.f32 %v220, %v515
  %v517 = vpop.f32.mrb[0].mxu0
  %518 = vmatprep.mubr.bf16.mxu0 %v111
  %519 = vmatmul.mubr.bf16.gmra.mrb[0].mxu0 %v110
  %v520 = vpop.f32.mrb[0].mxu0
  %v521 = vadd.f32 %v220, %v520
  %v522 = vpop.f32.mrb[0].mxu0
  %v523 = vpop.f32.mrb[0].mxu0
  %v524 = vadd.f32 %v220, %v523
  %v525 = vpop.f32.mrb[0].mxu0
  %526 = vmatprep.mubr.bf16.mxu0 %v116
  %527 = vmatmul.mubr.bf16.gmra.mrb[0].mxu0 %v115
  %v528 = vpop.f32.mrb[0].mxu0
  %v529 = vadd.f32 %v220, %v528
  %v530 = vpop.f32.mrb[0].mxu0
  %v531 = vpop.f32.mrb[0].mxu0
  %v532 = vadd.f32 %v220, %v531
  %v533 = vpop.f32.mrb[0].mxu0
  %534 = vmatprep.mubr.bf16.mxu0 %v121
  %535 = vmatmul.mubr.bf16.gmra.mrb[0].mxu0 %v120
  %v536 = vpop.f32.mrb[0].mxu0
  %v537 = vadd.f32 %v220, %v536
  %v538 = vpop.f32.mrb[0].mxu0
  %v539 = vpop.f32.mrb[0].mxu0
  %v540 = vadd.f32 %v220, %v539
  %v541 = vpop.f32.mrb[0].mxu0
  %542 = vmatprep.mubr.bf16.mxu0 %v126
  %543 = vmatmul.mubr.bf16.gmra.mrb[0].mxu0 %v125
  %v544 = vpop.f32.mrb[0].mxu0
  %v545 = vadd.f32 %v220, %v544
  %v546 = vpop.f32.mrb[0].mxu0
  %v547 = vpop.f32.mrb[0].mxu0
  %v548 = vadd.f32 %v220, %v547
  %v549 = vpop.f32.mrb[0].mxu0
  %550 = vmatprep.mubr.bf16.mxu0 %v131
  %551 = vmatmul.mubr.bf16.gmra.mrb[0].mxu0 %v130
  %v552 = vpop.f32.mrb[0].mxu0
  %v553 = vadd.f32 %v220, %v552
  %v554 = vpop.f32.mrb[0].mxu0
  %v555 = vpop.f32.mrb[0].mxu0
  %v556 = vadd.f32 %v220, %v555
  %v557 = vpop.f32.mrb[0].mxu0
  %558 = vdwg.mxu0
  %559 = vmatprep.subr.bf16.mxu0 0
  %560 = vmatpush1.bf16.msra.mxu0 %v398
  %561 = vmatprep.subr.bf16.mxu0 0
  %562 = vmatpush1.bf16.msra.mxu0 %v399
  %563 = vmatprep.subr.bf16.mxu0 0
  %564 = vmatpush1.bf16.msra.mxu0 %v400
  %565 = vmatprep.subr.bf16.mxu0 0
  %566 = vmatpush1.bf16.msra.mxu0 %v401
  %567 = vmatprep.subr.bf16.mxu0 0
  %568 = vmatpush1.bf16.msra.mxu0 %v402
  %569 = vmatprep.subr.bf16.mxu0 0
  %570 = vmatpush1.bf16.msra.mxu0 %v403
  %571 = vmatprep.subr.bf16.mxu0 0
  %572 = vmatpush1.bf16.msra.mxu0 %v404
  %573 = vmatprep.subr.bf16.mxu0 0
  %574 = vmatpush1.bf16.msra.mxu0 %v405
  %575 = vmatprep.subr.bf16.mxu0 0
  %576 = vmatpush1.bf16.msra.mxu0 %v406
  %577 = vmatprep.subr.bf16.mxu0 0
  %578 = vmatpush1.bf16.msra.mxu0 %v407
  %579 = vmatprep.subr.bf16.mxu0 0
  %580 = vmatpush1.bf16.msra.mxu0 %v408
  %581 = vmatprep.subr.bf16.mxu0 0
  %582 = vmatpush1.bf16.msra.mxu0 %v409
  %583 = vmatprep.subr.bf16.mxu0 0
  %584 = vmatpush1.bf16.msra.mxu0 %v410
  %585 = vmatprep.subr.bf16.mxu0 0
  %586 = vmatpush1.bf16.msra.mxu0 %v411
  %587 = vmatprep.subr.bf16.mxu0 0
  %588 = vmatpush1.bf16.msra.mxu0 %v412
  %589 = vmatprep.subr.bf16.mxu0 0
  %590 = vmatpush1.bf16.msra.mxu0 %v413
  %591 = vmatprep.mubr.bf16.mxu0 %v98
  %592 = vmatmul.mubr.bf16.gmra.mrb[0].mxu0 %v97
  %v593 = vpop.f32.mrb[0].mxu0
  %v594 = vadd.f32 %v497, %v593
  %v595 = vpop.f32.mrb[0].mxu0
  %v596 = vpop.f32.mrb[0].mxu0
  %v597 = vadd.f32 %v500, %v596
  %v598 = vpop.f32.mrb[0].mxu0
  %599 = vmatprep.mubr.bf16.mxu0 %v103
  %600 = vmatmul.mubr.bf16.gmra.mrb[0].mxu0 %v102
  %v601 = vpop.f32.mrb[0].mxu0
  %v602 = vadd.f32 %v505, %v601
  %v603 = vpop.f32.mrb[0].mxu0
  %v604 = vpop.f32.mrb[0].mxu0
  %v605 = vadd.f32 %v508, %v604
  %v606 = vpop.f32.mrb[0].mxu0
  %607 = vmatprep.mubr.bf16.mxu0 %v108
  %608 = vmatmul.mubr.bf16.gmra.mrb[0].mxu0 %v107
  %v609 = vpop.f32.mrb[0].mxu0
  %v610 = vadd.f32 %v513, %v609
  %v611 = vpop.f32.mrb[0].mxu0
  %v612 = vpop.f32.mrb[0].mxu0
  %v613 = vadd.f32 %v516, %v612
  %v614 = vpop.f32.mrb[0].mxu0
  %615 = vmatprep.mubr.bf16.mxu0 %v113
  %616 = vmatmul.mubr.bf16.gmra.mrb[0].mxu0 %v112
  %v617 = vpop.f32.mrb[0].mxu0
  %v618 = vadd.f32 %v521, %v617
  %v619 = vpop.f32.mrb[0].mxu0
  %v620 = vpop.f32.mrb[0].mxu0
  %v621 = vadd.f32 %v524, %v620
  %v622 = vpop.f32.mrb[0].mxu0
  %623 = vmatprep.mubr.bf16.mxu0 %v118
  %624 = vmatmul.mubr.bf16.gmra.mrb[0].mxu0 %v117
  %v625 = vpop.f32.mrb[0].mxu0
  %v626 = vadd.f32 %v529, %v625
  %v627 = vpop.f32.mrb[0].mxu0
  %v628 = vpop.f32.mrb[0].mxu0
  %v629 = vadd.f32 %v532, %v628
  %v630 = vpop.f32.mrb[0].mxu0
  %631 = vmatprep.mubr.bf16.mxu0 %v123
  %632 = vmatmul.mubr.bf16.gmra.mrb[0].mxu0 %v122
  %v633 = vpop.f32.mrb[0].mxu0
  %v634 = vadd.f32 %v537, %v633
  %v635 = vpop.f32.mrb[0].mxu0
  %v636 = vpop.f32.mrb[0].mxu0
  %v637 = vadd.f32 %v540, %v636
  %v638 = vpop.f32.mrb[0].mxu0
  %639 = vmatprep.mubr.bf16.mxu0 %v128
  %640 = vmatmul.mubr.bf16.gmra.mrb[0].mxu0 %v127
  %v641 = vpop.f32.mrb[0].mxu0
  %v642 = vadd.f32 %v545, %v641
  %v643 = vpop.f32.mrb[0].mxu0
  %v644 = vpop.f32.mrb[0].mxu0
  %v645 = vadd.f32 %v548, %v644
  %v646 = vpop.f32.mrb[0].mxu0
  %647 = vmatprep.mubr.bf16.mxu0 %v133
  %648 = vmatmul.mubr.bf16.gmra.mrb[0].mxu0 %v132
  %v649 = vpop.f32.mrb[0].mxu0
  %v650 = vadd.f32 %v553, %v649
  %v651 = vpop.f32.mrb[0].mxu0
  %v652 = vpop.f32.mrb[0].mxu0
  %v653 = vadd.f32 %v556, %v652
  %v654 = vpop.f32.mrb[0].mxu0
  %655 = vdwg.mxu0
  %656 = vmatprep.subr.bf16.mxu0 0
  %657 = vmatpush1.bf16.msra.mxu0 %v414
  %658 = vmatprep.subr.bf16.mxu0 0
  %659 = vmatpush1.bf16.msra.mxu0 %v415
  %660 = vmatprep.subr.bf16.mxu0 0
  %661 = vmatpush1.bf16.msra.mxu0 %v416
  %662 = vmatprep.subr.bf16.mxu0 0
  %663 = vmatpush1.bf16.msra.mxu0 %v417
  %664 = vmatprep.subr.bf16.mxu0 0
  %665 = vmatpush1.bf16.msra.mxu0 %v418
  %666 = vmatprep.subr.bf16.mxu0 0
  %667 = vmatpush1.bf16.msra.mxu0 %v419
  %668 = vmatprep.subr.bf16.mxu0 0
  %669 = vmatpush1.bf16.msra.mxu0 %v420
  %670 = vmatprep.subr.bf16.mxu0 0
  %671 = vmatpush1.bf16.msra.mxu0 %v421
  %672 = vmatprep.subr.bf16.mxu0 0
  %673 = vmatpush1.bf16.msra.mxu0 0
  %674 = vmatprep.subr.bf16.mxu0 0
  %675 = vmatpush1.bf16.msra.mxu0 0
  %676 = vmatprep.subr.bf16.mxu0 0
  %677 = vmatpush1.bf16.msra.mxu0 0
  %678 = vmatprep.subr.bf16.mxu0 0
  %679 = vmatpush1.bf16.msra.mxu0 0
  %680 = vmatprep.subr.bf16.mxu0 0
  %681 = vmatpush1.bf16.msra.mxu0 0
  %682 = vmatprep.subr.bf16.mxu0 0
  %683 = vmatpush1.bf16.msra.mxu0 0
  %684 = vmatprep.subr.bf16.mxu0 0
  %685 = vmatpush1.bf16.msra.mxu0 0
  %686 = vmatprep.subr.bf16.mxu0 0
  %687 = vmatpush1.bf16.msra.mxu0 0
  %688 = vmatprep.mubr.bf16.mxu0 0
  %689 = vmatmul.mubr.bf16.gmra.mrb[0].mxu0 %v99
  %v690 = vpop.f32.mrb[0].mxu0
  %v691 = vadd.f32 %v594, %v690
  %v692 = vpop.f32.mrb[0].mxu0
  %v693 = vpop.f32.mrb[0].mxu0
  %v694 = vadd.f32 %v597, %v693
  %v695 = vpop.f32.mrb[0].mxu0
  %696 = vmatprep.mubr.bf16.mxu0 0
  %697 = vmatmul.mubr.bf16.gmra.mrb[0].mxu0 %v104
  %v698 = vpop.f32.mrb[0].mxu0
  %v699 = vadd.f32 %v602, %v698
  %v700 = vpop.f32.mrb[0].mxu0
  %v701 = vpop.f32.mrb[0].mxu0
  %v702 = vadd.f32 %v605, %v701
  %v703 = vpop.f32.mrb[0].mxu0
  %704 = vmatprep.mubr.bf16.mxu0 0
  %705 = vmatmul.mubr.bf16.gmra.mrb[0].mxu0 %v109
  %v706 = vpop.f32.mrb[0].mxu0
  %v707 = vadd.f32 %v610, %v706
  %v708 = vpop.f32.mrb[0].mxu0
  %v709 = vpop.f32.mrb[0].mxu0
  %v710 = vadd.f32 %v613, %v709
  %v711 = vpop.f32.mrb[0].mxu0
  %712 = vmatprep.mubr.bf16.mxu0 0
  %713 = vmatmul.mubr.bf16.gmra.mrb[0].mxu0 %v114
  %v714 = vpop.f32.mrb[0].mxu0
  %v715 = vadd.f32 %v618, %v714
  %v716 = vpop.f32.mrb[0].mxu0
  %v717 = vpop.f32.mrb[0].mxu0
  %v718 = vadd.f32 %v621, %v717
  %v719 = vpop.f32.mrb[0].mxu0
  %720 = vmatprep.mubr.bf16.mxu0 0
  %721 = vmatmul.mubr.bf16.gmra.mrb[0].mxu0 %v119
  %v722 = vpop.f32.mrb[0].mxu0
  %v723 = vadd.f32 %v626, %v722
  %v724 = vpop.f32.mrb[0].mxu0
  %v725 = vpop.f32.mrb[0].mxu0
  %v726 = vadd.f32 %v629, %v725
  %v727 = vpop.f32.mrb[0].mxu0
  %728 = vmatprep.mubr.bf16.mxu0 0
  %729 = vmatmul.mubr.bf16.gmra.mrb[0].mxu0 %v124
  %v730 = vpop.f32.mrb[0].mxu0
  %v731 = vadd.f32 %v634, %v730
  %v732 = vpop.f32.mrb[0].mxu0
  %v733 = vpop.f32.mrb[0].mxu0
  %v734 = vadd.f32 %v637, %v733
  %v735 = vpop.f32.mrb[0].mxu0
  %736 = vmatprep.mubr.bf16.mxu0 0
  %737 = vmatmul.mubr.bf16.gmra.mrb[0].mxu0 %v129
  %v738 = vpop.f32.mrb[0].mxu0
  %v739 = vadd.f32 %v642, %v738
  %v740 = vpop.f32.mrb[0].mxu0
  %v741 = vpop.f32.mrb[0].mxu0
  %v742 = vadd.f32 %v645, %v741
  %v743 = vpop.f32.mrb[0].mxu0
  %744 = vmatprep.mubr.bf16.mxu0 0
  %745 = vmatmul.mubr.bf16.gmra.mrb[0].mxu0 %v134
  %v746 = vpop.f32.mrb[0].mxu0
  %v747 = vadd.f32 %v650, %v746
  %v748 = vpop.f32.mrb[0].mxu0
  %v749 = vpop.f32.mrb[0].mxu0
  %v750 = vadd.f32 %v653, %v749
  %v751 = vpop.f32.mrb[0].mxu0
  %752 = vdwg.mxu0
  %v753 = vmax.f32 %v691, 0.0
  %v754 = vmax.f32 %v694, 0.0
  %v755 = vmax.f32 %v699, 0.0
  %v756 = vmax.f32 %v702, 0.0
  %v757 = vmax.f32 %v707, 0.0
  %v758 = vmax.f32 %v710, 0.0
  %v759 = vmax.f32 %v715, 0.0
  %v760 = vmax.f32 %v718, 0.0
  %v761 = vmax.f32 %v723, 0.0
  %v762 = vmax.f32 %v726, 0.0
  %v763 = vmax.f32 %v731, 0.0
  %v764 = vmax.f32 %v734, 0.0
  %v765 = vmax.f32 %v739, 0.0
  %v766 = vmax.f32 %v742, 0.0
  %v767 = vmax.f32 %v747, 0.0
  %v768 = vmax.f32 %v750, 0.0
  %769 = vst [vmem:[%s3] sm:$0xff] %v753
  %770 = vst [vmem:[%s3 + $0x8] sm:$0xff] %v754
  %771 = vst [vmem:[%s3 + $0x10] sm:$0xff] %v755
  %772 = vst [vmem:[%s3 + $0x18] sm:$0xff] %v756
  %773 = vst [vmem:[%s3 + $0x20] sm:$0xff] %v757
  %774 = vst [vmem:[%s3 + $0x28] sm:$0xff] %v758
  %775 = vst [vmem:[%s3 + $0x30] sm:$0xff] %v759
  %776 = vst [vmem:[%s3 + $0x38] sm:$0xff] %v760
  %777 = vst [vmem:[%s3 + $0x40] sm:$0xff] %v761
  %778 = vst [vmem:[%s3 + $0x48] sm:$0xff] %v762
  %779 = vst [vmem:[%s3 + $0x50] sm:$0xff] %v763
  %780 = vst [vmem:[%s3 + $0x58] sm:$0xff] %v764
  %781 = vst [vmem:[%s3 + $0x60] sm:$0xff] %v765
  %782 = vst [vmem:[%s3 + $0x68] sm:$0xff] %v766
  %783 = vst [vmem:[%s3 + $0x70] sm:$0xff] %v767
  %784 = vst [vmem:[%s3 + $0x78] sm:$0xff] %v768
  // Predicated region
  $region14: #{deepcl_forward.14} parent=0 // pred_check
    _
  $region15: #{deepcl_forward.14} parent=0 // pred_check_branch
    %786 = sbr.rel (0) target = $region17
  $region16: #{deepcl_forward.14} parent=0 // pred_region
    _
  $region17: #{deepcl_forward.14} parent=0 // pred_fallthru
    _
  // Predicated region
  $region18: #{deepcl_forward.14} parent=0 // pred_check
    _
  $region19: #{deepcl_forward.14} parent=0 // pred_check_branch
    %788 = sbr.rel (0) target = $region21
  $region20: #{deepcl_forward.14} parent=0 // pred_region
    _
  $region21: #{deepcl_forward.14} parent=0 // pred_fallthru
    _

// kernel: deepcl_forward.17
$region0: #{deepcl_forward.17}
  #allocation0 [shape = 'u32[]', space=smem, size = 0x4, offset = 0x4, fixed_abs, tag = 'smem constant byte address 0x4 - core index']
  #allocation1 [shape = 'u32[144,128]{1,0:T(1,128)}', space=vmem, size = 0x12000, scoped, tag = 'internal scratch']
  %s0 = inlined_call_operand.vmem [shape: f32[32,256], index: 0, kind: input, shape index: {}]
  %s1 = inlined_call_operand.vmem [shape: bf16[256,512], index: 1, kind: input, shape index: {}]
  %s2 = inlined_call_operand.vmem [shape: f32[1,512], index: 2, kind: input, shape index: {}]
  %s3 = inlined_call_operand.vmem [shape: f32[32,512], index: 3, kind: output, shape index: {}]
  %s4 = sld [smem:[#allocation0]]
  $region22: #{deepcl_forward.17} parent=0
    _
  %s6 = ssub.s32 1, %s4
  %s7 = scalar_select 0, %s6, %s4
  // Predicated region
  $region2: #{deepcl_forward.17} parent=0 // pred_check
    _
  $region3: #{deepcl_forward.17} parent=0 // pred_check_branch
    %9 = sbr.rel (0) target = $region5
  $region4: #{deepcl_forward.17} parent=0 // pred_region
    _
  $region5: #{deepcl_forward.17} parent=0 // pred_fallthru
    _
  // Predicated region
  $region6: #{deepcl_forward.17} parent=0 // pred_check
    _
  $region7: #{deepcl_forward.17} parent=0 // pred_check_branch
    %11 = sbr.rel (0) target = $region9
  $region8: #{deepcl_forward.17} parent=0 // pred_region
    _
  $region9: #{deepcl_forward.17} parent=0 // pred_fallthru
    _
  // Predicated region
  $region10: #{deepcl_forward.17} parent=0 // pred_check
    _
  $region11: #{deepcl_forward.17} parent=0 // pred_check_branch
    %13 = sbr.rel (0) target = $region13
  $region12: #{deepcl_forward.17} parent=0 // pred_region
    _
  $region13: #{deepcl_forward.17} parent=0 // pred_fallthru
    _
  %v14 = vld [vmem:[%s0] sm:$0xff]
  %v15 = vld [vmem:[%s0 + $0x8] sm:$0xff]
  %v16 = vld [vmem:[%s0 + $0x10] sm:$0xff]
  %v17 = vld [vmem:[%s0 + $0x18] sm:$0xff]
  %v18 = vld [vmem:[%s0 + $0x20] sm:$0xff]
  %v19 = vld [vmem:[%s0 + $0x28] sm:$0xff]
  %v20 = vld [vmem:[%s0 + $0x30] sm:$0xff]
  %v21 = vld [vmem:[%s0 + $0x38] sm:$0xff]
  %v22 = vpack.c.bf16 %v16, %v14
  %v23 = vpack.c.bf16 %v17, %v15
  %v24 = vpack.c.bf16 %v20, %v18
  %v25 = vpack.c.bf16 %v21, %v19
  %v26 = vld [vmem:[%s1] sm:$0xff]
  %v27 = vld [vmem:[%s1 + $0x8] sm:$0xff]
  %v28 = vld [vmem:[%s1 + $0x10] sm:$0xff]
  %v29 = vld [vmem:[%s1 + $0x18] sm:$0xff]
  %v30 = vld [vmem:[%s1 + $0x20] sm:$0xff]
  %v31 = vld [vmem:[%s1 + $0x28] sm:$0xff]
  %v32 = vld [vmem:[%s1 + $0x30] sm:$0xff]
  %v33 = vld [vmem:[%s1 + $0x38] sm:$0xff]
  %v34 = vld [vmem:[%s1 + $0x40] sm:$0xff]
  %v35 = vld [vmem:[%s1 + $0x48] sm:$0xff]
  %v36 = vld [vmem:[%s1 + $0x50] sm:$0xff]
  %v37 = vld [vmem:[%s1 + $0x58] sm:$0xff]
  %v38 = vld [vmem:[%s1 + $0x60] sm:$0xff]
  %v39 = vld [vmem:[%s1 + $0x68] sm:$0xff]
  %v40 = vld [vmem:[%s1 + $0x70] sm:$0xff]
  %v41 = vld [vmem:[%s1 + $0x78] sm:$0xff]
  %v42 = vld [vmem:[%s1 + $0x80] sm:$0xff]
  %v43 = vld [vmem:[%s1 + $0x88] sm:$0xff]
  %v44 = vld [vmem:[%s1 + $0x90] sm:$0xff]
  %v45 = vld [vmem:[%s1 + $0x98] sm:$0xff]
  %v46 = vld [vmem:[%s1 + $0xa0] sm:$0xff]
  %v47 = vld [vmem:[%s1 + $0xa8] sm:$0xff]
  %v48 = vld [vmem:[%s1 + $0xb0] sm:$0xff]
  %v49 = vld [vmem:[%s1 + $0xb8] sm:$0xff]
  %v50 = vld [vmem:[%s1 + $0xc0] sm:$0xff]
  %v51 = vld [vmem:[%s1 + $0xc8] sm:$0xff]
  %v52 = vld [vmem:[%s1 + $0xd0] sm:$0xff]
  %v53 = vld [vmem:[%s1 + $0xd8] sm:$0xff]
  %v54 = vld [vmem:[%s1 + $0xe0] sm:$0xff]
  %v55 = vld [vmem:[%s1 + $0xe8] sm:$0xff]
  %v56 = vld [vmem:[%s1 + $0xf0] sm:$0xff]
  %v57 = vld [vmem:[%s1 + $0xf8] sm:$0xff]
  %v58 = vld [vmem:[%s1 + $0x100] sm:$0xff]
  %v59 = vld [vmem:[%s1 + $0x108] sm:$0xff]
  %v60 = vld [vmem:[%s1 + $0x110] sm:$0xff]
  %v61 = vld [vmem:[%s1 + $0x118] sm:$0xff]
  %v62 = vld [vmem:[%s1 + $0x120] sm:$0xff]
  %v63 = vld [vmem:[%s1 + $0x128] sm:$0xff]
  %v64 = vld [vmem:[%s1 + $0x130] sm:$0xff]
  %v65 = vld [vmem:[%s1 + $0x138] sm:$0xff]
  %v66 = vld [vmem:[%s1 + $0x140] sm:$0xff]
  %v67 = vld [vmem:[%s1 + $0x148] sm:$0xff]
  %v68 = vld [vmem:[%s1 + $0x150] sm:$0xff]
  %v69 = vld [vmem:[%s1 + $0x158] sm:$0xff]
  %v70 = vld [vmem:[%s1 + $0x160] sm:$0xff]
  %v71 = vld [vmem:[%s1 + $0x168] sm:$0xff]
  %v72 = vld [vmem:[%s1 + $0x170] sm:$0xff]
  %v73 = vld [vmem:[%s1 + $0x178] sm:$0xff]
  %v74 = vld [vmem:[%s1 + $0x180] sm:$0xff]
  %v75 = vld [vmem:[%s1 + $0x188] sm:$0xff]
  %v76 = vld [vmem:[%s1 + $0x190] sm:$0xff]
  %v77 = vld [vmem:[%s1 + $0x198] sm:$0xff]
  %v78 = vld [vmem:[%s1 + $0x1a0] sm:$0xff]
  %v79 = vld [vmem:[%s1 + $0x1a8] sm:$0xff]
  %v80 = vld [vmem:[%s1 + $0x1b0] sm:$0xff]
  %v81 = vld [vmem:[%s1 + $0x1b8] sm:$0xff]
  %v82 = vld [vmem:[%s1 + $0x1c0] sm:$0xff]
  %v83 = vld [vmem:[%s1 + $0x1c8] sm:$0xff]
  %v84 = vld [vmem:[%s1 + $0x1d0] sm:$0xff]
  %v85 = vld [vmem:[%s1 + $0x1d8] sm:$0xff]
  %v86 = vld [vmem:[%s1 + $0x1e0] sm:$0xff]
  %v87 = vld [vmem:[%s1 + $0x1e8] sm:$0xff]
  %v88 = vld [vmem:[%s1 + $0x1f0] sm:$0xff]
  %v89 = vld [vmem:[%s1 + $0x1f8] sm:$0xff]
  %v90 = vld [vmem:[%s2] sm:$0xf]
  %v92 = vlaneseq
  %v93 = vshrl.u32 %v92, 7
  %v94 = vsub.s32 0, %v93
  %v95 = vrot.slane %v90, %v94
  %v96 = vlaneseq
  %v97 = vshrl.u32 %v96, 7
  %v98 = vsub.s32 1, %v97
  %v99 = vrot.slane %v90, %v98
  %v100 = vlaneseq
  %v101 = vshrl.u32 %v100, 7
  %v102 = vsub.s32 2, %v101
  %v103 = vrot.slane %v90, %v102
  %v104 = vlaneseq
  %v105 = vshrl.u32 %v104, 7
  %v106 = vsub.s32 3, %v105
  %v107 = vrot.slane %v90, %v106
  %v176 = vunpack.c.l.b16 %v26
  %v177 = vunpack.c.h.b16 %v26
  %v178 = vunpack.c.l.b16 %v27
  %v179 = vunpack.c.h.b16 %v27
  %v180 = vunpack.c.l.b16 %v28
  %v181 = vunpack.c.h.b16 %v28
  %v182 = vunpack.c.l.b16 %v29
  %v183 = vunpack.c.h.b16 %v29
  %v184 = vunpack.c.l.b16 %v30
  %v185 = vunpack.c.h.b16 %v30
  %v186 = vunpack.c.l.b16 %v31
  %v187 = vunpack.c.h.b16 %v31
  %v188 = vunpack.c.l.b16 %v32
  %v189 = vunpack.c.h.b16 %v32
  %v190 = vunpack.c.l.b16 %v33
  %v191 = vunpack.c.h.b16 %v33
  %v192 = vunpack.c.l.b16 %v34
  %v193 = vunpack.c.h.b16 %v34
  %v194 = vunpack.c.l.b16 %v35
  %v195 = vunpack.c.h.b16 %v35
  %v196 = vunpack.c.l.b16 %v36
  %v197 = vunpack.c.h.b16 %v36
  %v198 = vunpack.c.l.b16 %v37
  %v199 = vunpack.c.h.b16 %v37
  %v200 = vunpack.c.l.b16 %v38
  %v201 = vunpack.c.h.b16 %v38
  %v202 = vunpack.c.l.b16 %v39
  %v203 = vunpack.c.h.b16 %v39
  %v204 = vunpack.c.l.b16 %v40
  %v205 = vunpack.c.h.b16 %v40
  %v206 = vunpack.c.l.b16 %v41
  %v207 = vunpack.c.h.b16 %v41
  %v208 = vunpack.c.l.b16 %v42
  %v209 = vunpack.c.h.b16 %v42
  %v210 = vunpack.c.l.b16 %v43
  %v211 = vunpack.c.h.b16 %v43
  %v212 = vunpack.c.l.b16 %v44
  %v213 = vunpack.c.h.b16 %v44
  %v214 = vunpack.c.l.b16 %v45
  %v215 = vunpack.c.h.b16 %v45
  %v216 = vunpack.c.l.b16 %v46
  %v217 = vunpack.c.h.b16 %v46
  %v218 = vunpack.c.l.b16 %v47
  %v219 = vunpack.c.h.b16 %v47
  %v220 = vunpack.c.l.b16 %v48
  %v221 = vunpack.c.h.b16 %v48
  %v222 = vunpack.c.l.b16 %v49
  %v223 = vunpack.c.h.b16 %v49
  %v224 = vunpack.c.l.b16 %v50
  %v225 = vunpack.c.h.b16 %v50
  %v226 = vunpack.c.l.b16 %v51
  %v227 = vunpack.c.h.b16 %v51
  %v228 = vunpack.c.l.b16 %v52
  %v229 = vunpack.c.h.b16 %v52
  %v230 = vunpack.c.l.b16 %v53
  %v231 = vunpack.c.h.b16 %v53
  %v232 = vunpack.c.l.b16 %v54
  %v233 = vunpack.c.h.b16 %v54
  %v234 = vunpack.c.l.b16 %v55
  %v235 = vunpack.c.h.b16 %v55
  %v236 = vunpack.c.l.b16 %v56
  %v237 = vunpack.c.h.b16 %v56
  %v238 = vunpack.c.l.b16 %v57
  %v239 = vunpack.c.h.b16 %v57
  %v240 = vunpack.c.l.b16 %v58
  %v241 = vunpack.c.h.b16 %v58
  %v242 = vunpack.c.l.b16 %v59
  %v243 = vunpack.c.h.b16 %v59
  %v244 = vunpack.c.l.b16 %v60
  %v245 = vunpack.c.h.b16 %v60
  %v246 = vunpack.c.l.b16 %v61
  %v247 = vunpack.c.h.b16 %v61
  %v248 = vunpack.c.l.b16 %v62
  %v249 = vunpack.c.h.b16 %v62
  %v250 = vunpack.c.l.b16 %v63
  %v251 = vunpack.c.h.b16 %v63
  %v252 = vunpack.c.l.b16 %v64
  %v253 = vunpack.c.h.b16 %v64
  %v254 = vunpack.c.l.b16 %v65
  %v255 = vunpack.c.h.b16 %v65
  %v256 = vunpack.c.l.b16 %v66
  %v257 = vunpack.c.h.b16 %v66
  %v258 = vunpack.c.l.b16 %v67
  %v259 = vunpack.c.h.b16 %v67
  %v260 = vunpack.c.l.b16 %v68
  %v261 = vunpack.c.h.b16 %v68
  %v262 = vunpack.c.l.b16 %v69
  %v263 = vunpack.c.h.b16 %v69
  %v264 = vunpack.c.l.b16 %v70
  %v265 = vunpack.c.h.b16 %v70
  %v266 = vunpack.c.l.b16 %v71
  %v267 = vunpack.c.h.b16 %v71
  %v268 = vunpack.c.l.b16 %v72
  %v269 = vunpack.c.h.b16 %v72
  %v270 = vunpack.c.l.b16 %v73
  %v271 = vunpack.c.h.b16 %v73
  %v272 = vunpack.c.l.b16 %v74
  %v273 = vunpack.c.h.b16 %v74
  %v274 = vunpack.c.l.b16 %v75
  %v275 = vunpack.c.h.b16 %v75
  %v276 = vunpack.c.l.b16 %v76
  %v277 = vunpack.c.h.b16 %v76
  %v278 = vunpack.c.l.b16 %v77
  %v279 = vunpack.c.h.b16 %v77
  %v280 = vunpack.c.l.b16 %v78
  %v281 = vunpack.c.h.b16 %v78
  %v282 = vunpack.c.l.b16 %v79
  %v283 = vunpack.c.h.b16 %v79
  %v284 = vunpack.c.l.b16 %v80
  %v285 = vunpack.c.h.b16 %v80
  %v286 = vunpack.c.l.b16 %v81
  %v287 = vunpack.c.h.b16 %v81
  %v288 = vunpack.c.l.b16 %v82
  %v289 = vunpack.c.h.b16 %v82
  %v290 = vunpack.c.l.b16 %v83
  %v291 = vunpack.c.h.b16 %v83
  %v292 = vunpack.c.l.b16 %v84
  %v293 = vunpack.c.h.b16 %v84
  %v294 = vunpack.c.l.b16 %v85
  %v295 = vunpack.c.h.b16 %v85
  %v296 = vunpack.c.l.b16 %v86
  %v297 = vunpack.c.h.b16 %v86
  %v298 = vunpack.c.l.b16 %v87
  %v299 = vunpack.c.h.b16 %v87
  %v300 = vunpack.c.l.b16 %v88
  %v301 = vunpack.c.h.b16 %v88
  %v302 = vunpack.c.l.b16 %v89
  %v303 = vunpack.c.h.b16 %v89
  %v304 = vpack.c.b16 %v180, %v176
  %v305 = vpack.c.b16 %v181, %v177
  %v306 = vpack.c.b16 %v182, %v178
  %v307 = vpack.c.b16 %v183, %v179
  %v308 = vpack.c.b16 %v188, %v184
  %v309 = vpack.c.b16 %v189, %v185
  %v310 = vpack.c.b16 %v190, %v186
  %v311 = vpack.c.b16 %v191, %v187
  %v312 = vpack.c.b16 %v196, %v192
  %v313 = vpack.c.b16 %v197, %v193
  %v314 = vpack.c.b16 %v198, %v194
  %v315 = vpack.c.b16 %v199, %v195
  %v316 = vpack.c.b16 %v204, %v200
  %v317 = vpack.c.b16 %v205, %v201
  %v318 = vpack.c.b16 %v206, %v202
  %v319 = vpack.c.b16 %v207, %v203
  %v320 = vpack.c.b16 %v212, %v208
  %v321 = vpack.c.b16 %v213, %v209
  %v322 = vpack.c.b16 %v214, %v210
  %v323 = vpack.c.b16 %v215, %v211
  %v324 = vpack.c.b16 %v220, %v216
  %v325 = vpack.c.b16 %v221, %v217
  %v326 = vpack.c.b16 %v222, %v218
  %v327 = vpack.c.b16 %v223, %v219
  %v328 = vpack.c.b16 %v228, %v224
  %v329 = vpack.c.b16 %v229, %v225
  %v330 = vpack.c.b16 %v230, %v226
  %v331 = vpack.c.b16 %v231, %v227
  %v332 = vpack.c.b16 %v236, %v232
  %v333 = vpack.c.b16 %v237, %v233
  %v334 = vpack.c.b16 %v238, %v234
  %v335 = vpack.c.b16 %v239, %v235
  %v336 = vpack.c.b16 %v244, %v240
  %v337 = vpack.c.b16 %v245, %v241
  %v338 = vpack.c.b16 %v246, %v242
  %v339 = vpack.c.b16 %v247, %v243
  %v340 = vpack.c.b16 %v252, %v248
  %v341 = vpack.c.b16 %v253, %v249
  %v342 = vpack.c.b16 %v254, %v250
  %v343 = vpack.c.b16 %v255, %v251
  %v344 = vpack.c.b16 %v260, %v256
  %v345 = vpack.c.b16 %v261, %v257
  %v346 = vpack.c.b16 %v262, %v258
  %v347 = vpack.c.b16 %v263, %v259
  %v348 = vpack.c.b16 %v268, %v264
  %v349 = vpack.c.b16 %v269, %v265
  %v350 = vpack.c.b16 %v270, %v266
  %v351 = vpack.c.b16 %v271, %v267
  %v352 = vpack.c.b16 %v276, %v272
  %v353 = vpack.c.b16 %v277, %v273
  %v354 = vpack.c.b16 %v278, %v274
  %v355 = vpack.c.b16 %v279, %v275
  %v356 = vpack.c.b16 %v284, %v280
  %v357 = vpack.c.b16 %v285, %v281
  %v358 = vpack.c.b16 %v286, %v282
  %v359 = vpack.c.b16 %v287, %v283
  %v360 = vpack.c.b16 %v292, %v288
  %v361 = vpack.c.b16 %v293, %v289
  %v362 = vpack.c.b16 %v294, %v290
  %v363 = vpack.c.b16 %v295, %v291
  %v364 = vpack.c.b16 %v300, %v296
  %v365 = vpack.c.b16 %v301, %v297
  %v366 = vpack.c.b16 %v302, %v298
  %v367 = vpack.c.b16 %v303, %v299
  %432 = vmatprep.subr.bf16.mxu0 %v305
  %433 = vmatpush1.bf16.msra.mxu0 %v304
  %434 = vmatprep.subr.bf16.mxu0 %v309
  %435 = vmatpush1.bf16.msra.mxu0 %v308
  %436 = vmatprep.subr.bf16.mxu0 %v313
  %437 = vmatpush1.bf16.msra.mxu0 %v312
  %438 = vmatprep.subr.bf16.mxu0 %v317
  %439 = vmatpush1.bf16.msra.mxu0 %v316
  %440 = vmatprep.subr.bf16.mxu0 %v321
  %441 = vmatpush1.bf16.msra.mxu0 %v320
  %442 = vmatprep.subr.bf16.mxu0 %v325
  %443 = vmatpush1.bf16.msra.mxu0 %v324
  %444 = vmatprep.subr.bf16.mxu0 %v329
  %445 = vmatpush1.bf16.msra.mxu0 %v328
  %446 = vmatprep.subr.bf16.mxu0 %v333
  %447 = vmatpush1.bf16.msra.mxu0 %v332
  %448 = vmatprep.subr.bf16.mxu0 %v337
  %449 = vmatpush1.bf16.msra.mxu0 %v336
  %450 = vmatprep.subr.bf16.mxu0 %v341
  %451 = vmatpush1.bf16.msra.mxu0 %v340
  %452 = vmatprep.subr.bf16.mxu0 %v345
  %453 = vmatpush1.bf16.msra.mxu0 %v344
  %454 = vmatprep.subr.bf16.mxu0 %v349
  %455 = vmatpush1.bf16.msra.mxu0 %v348
  %456 = vmatprep.subr.bf16.mxu0 %v353
  %457 = vmatpush1.bf16.msra.mxu0 %v352
  %458 = vmatprep.subr.bf16.mxu0 %v357
  %459 = vmatpush1.bf16.msra.mxu0 %v356
  %460 = vmatprep.subr.bf16.mxu0 %v361
  %461 = vmatpush1.bf16.msra.mxu0 %v360
  %462 = vmatprep.subr.bf16.mxu0 %v365
  %463 = vmatpush1.bf16.msra.mxu0 %v364
  %464 = vmatprep.mubr.bf16.mxu0 %v23
  %465 = vmatmul.mubr.bf16.gmra.mrb[0].mxu0 %v22
  %v466 = vpop.f32.mrb[0].mxu0
  %v467 = vadd.f32 %v95, %v466
  %v468 = vpop.f32.mrb[0].mxu0
  %v469 = vadd.f32 %v99, %v468
  %v470 = vpop.f32.mrb[0].mxu0
  %v471 = vadd.f32 %v95, %v470
  %v472 = vpop.f32.mrb[0].mxu0
  %v473 = vadd.f32 %v99, %v472
  %474 = vmatprep.mubr.bf16.mxu0 %v25
  %475 = vmatmul.mubr.bf16.gmra.mrb[0].mxu0 %v24
  %v476 = vpop.f32.mrb[0].mxu0
  %v477 = vadd.f32 %v95, %v476
  %v478 = vpop.f32.mrb[0].mxu0
  %v479 = vadd.f32 %v99, %v478
  %v480 = vpop.f32.mrb[0].mxu0
  %v481 = vadd.f32 %v95, %v480
  %v482 = vpop.f32.mrb[0].mxu0
  %v483 = vadd.f32 %v99, %v482
  %484 = vdwg.mxu0
  %485 = vmatprep.subr.bf16.mxu0 %v307
  %486 = vmatpush1.bf16.msra.mxu0 %v306
  %487 = vmatprep.subr.bf16.mxu0 %v311
  %488 = vmatpush1.bf16.msra.mxu0 %v310
  %489 = vmatprep.subr.bf16.mxu0 %v315
  %490 = vmatpush1.bf16.msra.mxu0 %v314
  %491 = vmatprep.subr.bf16.mxu0 %v319
  %492 = vmatpush1.bf16.msra.mxu0 %v318
  %493 = vmatprep.subr.bf16.mxu0 %v323
  %494 = vmatpush1.bf16.msra.mxu0 %v322
  %495 = vmatprep.subr.bf16.mxu0 %v327
  %496 = vmatpush1.bf16.msra.mxu0 %v326
  %497 = vmatprep.subr.bf16.mxu0 %v331
  %498 = vmatpush1.bf16.msra.mxu0 %v330
  %499 = vmatprep.subr.bf16.mxu0 %v335
  %500 = vmatpush1.bf16.msra.mxu0 %v334
  %501 = vmatprep.subr.bf16.mxu0 %v339
  %502 = vmatpush1.bf16.msra.mxu0 %v338
  %503 = vmatprep.subr.bf16.mxu0 %v343
  %504 = vmatpush1.bf16.msra.mxu0 %v342
  %505 = vmatprep.subr.bf16.mxu0 %v347
  %506 = vmatpush1.bf16.msra.mxu0 %v346
  %507 = vmatprep.subr.bf16.mxu0 %v351
  %508 = vmatpush1.bf16.msra.mxu0 %v350
  %509 = vmatprep.subr.bf16.mxu0 %v355
  %510 = vmatpush1.bf16.msra.mxu0 %v354
  %511 = vmatprep.subr.bf16.mxu0 %v359
  %512 = vmatpush1.bf16.msra.mxu0 %v358
  %513 = vmatprep.subr.bf16.mxu0 %v363
  %514 = vmatpush1.bf16.msra.mxu0 %v362
  %515 = vmatprep.subr.bf16.mxu0 %v367
  %516 = vmatpush1.bf16.msra.mxu0 %v366
  %517 = vmatprep.mubr.bf16.mxu0 %v23
  %518 = vmatmul.mubr.bf16.gmra.mrb[0].mxu0 %v22
  %v519 = vpop.f32.mrb[0].mxu0
  %v520 = vadd.f32 %v103, %v519
  %v521 = vpop.f32.mrb[0].mxu0
  %v522 = vadd.f32 %v107, %v521
  %v523 = vpop.f32.mrb[0].mxu0
  %v524 = vadd.f32 %v103, %v523
  %v525 = vpop.f32.mrb[0].mxu0
  %v526 = vadd.f32 %v107, %v525
  %527 = vmatprep.mubr.bf16.mxu0 %v25
  %528 = vmatmul.mubr.bf16.gmra.mrb[0].mxu0 %v24
  %v529 = vpop.f32.mrb[0].mxu0
  %v530 = vadd.f32 %v103, %v529
  %v531 = vpop.f32.mrb[0].mxu0
  %v532 = vadd.f32 %v107, %v531
  %v533 = vpop.f32.mrb[0].mxu0
  %v534 = vadd.f32 %v103, %v533
  %v535 = vpop.f32.mrb[0].mxu0
  %v536 = vadd.f32 %v107, %v535
  %537 = vdwg.mxu0
  %538 = vst [vmem:[%s3] sm:$0xff] %v467
  %539 = vst [vmem:[%s3 + $0x8] sm:$0xff] %v469
  %540 = vst [vmem:[%s3 + $0x10] sm:$0xff] %v520
  %541 = vst [vmem:[%s3 + $0x18] sm:$0xff] %v522
  %542 = vst [vmem:[%s3 + $0x20] sm:$0xff] %v471
  %543 = vst [vmem:[%s3 + $0x28] sm:$0xff] %v473
  %544 = vst [vmem:[%s3 + $0x30] sm:$0xff] %v524
  %545 = vst [vmem:[%s3 + $0x38] sm:$0xff] %v526
  %546 = vst [vmem:[%s3 + $0x40] sm:$0xff] %v477
  %547 = vst [vmem:[%s3 + $0x48] sm:$0xff] %v479
  %548 = vst [vmem:[%s3 + $0x50] sm:$0xff] %v530
  %549 = vst [vmem:[%s3 + $0x58] sm:$0xff] %v532
  %550 = vst [vmem:[%s3 + $0x60] sm:$0xff] %v481
  %551 = vst [vmem:[%s3 + $0x68] sm:$0xff] %v483
  %552 = vst [vmem:[%s3 + $0x70] sm:$0xff] %v534
  %553 = vst [vmem:[%s3 + $0x78] sm:$0xff] %v536
  // Predicated region
  $region14: #{deepcl_forward.17} parent=0 // pred_check
    _
  $region15: #{deepcl_forward.17} parent=0 // pred_check_branch
    %555 = sbr.rel (0) target = $region17
  $region16: #{deepcl_forward.17} parent=0 // pred_region
    _
  $region17: #{deepcl_forward.17} parent=0 // pred_fallthru
    _
  // Predicated region
  $region18: #{deepcl_forward.17} parent=0 // pred_check
    _
  $region19: #{deepcl_forward.17} parent=0 // pred_check_branch
    %557 = sbr.rel (0) target = $region21
  $region20: #{deepcl_forward.17} parent=0 // pred_region
    _
  $region21: #{deepcl_forward.17} parent=0 // pred_fallthru
    _

// kernel: deepcl_forward.16
$region0: #{deepcl_forward.16}
  #allocation0 [shape = 'u32[]', space=smem, size = 0x4, offset = 0x4, fixed_abs, tag = 'smem constant byte address 0x4 - core index']
  #allocation1 [shape = 'u32[144,128]{1,0:T(1,128)}', space=vmem, size = 0x12000, scoped, tag = 'internal scratch']
  %s0 = inlined_call_operand.vmem [shape: f32[32,1152], index: 0, kind: input, shape index: {}]
  %s1 = inlined_call_operand.vmem [shape: bf16[1152,256], index: 1, kind: input, shape index: {}]
  %s2 = inlined_call_operand.vmem [shape: f32[1,256], index: 2, kind: input, shape index: {}]
  %s3 = inlined_call_operand.vmem [shape: f32[32,256], index: 3, kind: output, shape index: {}]
  %s4 = sld [smem:[#allocation0]]
  $region22: #{deepcl_forward.16} parent=0
    _
  %s6 = ssub.s32 1, %s4
  %s7 = scalar_select 0, %s6, %s4
  // Predicated region
  $region2: #{deepcl_forward.16} parent=0 // pred_check
    _
  $region3: #{deepcl_forward.16} parent=0 // pred_check_branch
    %9 = sbr.rel (0) target = $region5
  $region4: #{deepcl_forward.16} parent=0 // pred_region
    _
  $region5: #{deepcl_forward.16} parent=0 // pred_fallthru
    _
  // Predicated region
  $region6: #{deepcl_forward.16} parent=0 // pred_check
    _
  $region7: #{deepcl_forward.16} parent=0 // pred_check_branch
    %11 = sbr.rel (0) target = $region9
  $region8: #{deepcl_forward.16} parent=0 // pred_region
    _
  $region9: #{deepcl_forward.16} parent=0 // pred_fallthru
    _
  // Predicated region
  $region10: #{deepcl_forward.16} parent=0 // pred_check
    _
  $region11: #{deepcl_forward.16} parent=0 // pred_check_branch
    %13 = sbr.rel (0) target = $region13
  $region12: #{deepcl_forward.16} parent=0 // pred_region
    _
  $region13: #{deepcl_forward.16} parent=0 // pred_fallthru
    _
  %v15 = vld [vmem:[%s0] sm:$0xff]
  %v16 = vld [vmem:[%s0 + $0x8] sm:$0xff]
  %v17 = vld [vmem:[%s0 + $0x10] sm:$0xff]
  %v18 = vld [vmem:[%s0 + $0x18] sm:$0xff]
  %v19 = vld [vmem:[%s0 + $0x20] sm:$0xff]
  %v20 = vld [vmem:[%s0 + $0x28] sm:$0xff]
  %v21 = vld [vmem:[%s0 + $0x30] sm:$0xff]
  %v22 = vld [vmem:[%s0 + $0x38] sm:$0xff]
  %v23 = vld [vmem:[%s0 + $0x40] sm:$0xff]
  %v24 = vld [vmem:[%s0 + $0x48] sm:$0xff]
  %v25 = vld [vmem:[%s0 + $0x50] sm:$0xff]
  %v26 = vld [vmem:[%s0 + $0x58] sm:$0xff]
  %v27 = vld [vmem:[%s0 + $0x60] sm:$0xff]
  %v28 = vld [vmem:[%s0 + $0x68] sm:$0xff]
  %v29 = vld [vmem:[%s0 + $0x70] sm:$0xff]
  %v30 = vld [vmem:[%s0 + $0x78] sm:$0xff]
  %v31 = vld [vmem:[%s0 + $0x80] sm:$0xff]
  %v32 = vld [vmem:[%s0 + $0x88] sm:$0xff]
  %v33 = vld [vmem:[%s0 + $0x90] sm:$0xff]
  %v34 = vld [vmem:[%s0 + $0x98] sm:$0xff]
  %v35 = vld [vmem:[%s0 + $0xa0] sm:$0xff]
  %v36 = vld [vmem:[%s0 + $0xa8] sm:$0xff]
  %v37 = vld [vmem:[%s0 + $0xb0] sm:$0xff]
  %v38 = vld [vmem:[%s0 + $0xb8] sm:$0xff]
  %v39 = vld [vmem:[%s0 + $0xc0] sm:$0xff]
  %v40 = vld [vmem:[%s0 + $0xc8] sm:$0xff]
  %v41 = vld [vmem:[%s0 + $0xd0] sm:$0xff]
  %v42 = vld [vmem:[%s0 + $0xd8] sm:$0xff]
  %v43 = vld [vmem:[%s0 + $0xe0] sm:$0xff]
  %v44 = vld [vmem:[%s0 + $0xe8] sm:$0xff]
  %v45 = vld [vmem:[%s0 + $0xf0] sm:$0xff]
  %v46 = vld [vmem:[%s0 + $0xf8] sm:$0xff]
  %v47 = vld [vmem:[%s0 + $0x100] sm:$0xff]
  %v48 = vld [vmem:[%s0 + $0x108] sm:$0xff]
  %v49 = vld [vmem:[%s0 + $0x110] sm:$0xff]
  %v50 = vld [vmem:[%s0 + $0x118] sm:$0xff]
  %v51 = vpack.c.bf16 %v24, %v15
  %v52 = vpack.c.bf16 %v25, %v16
  %v53 = vpack.c.bf16 %v26, %v17
  %v54 = vpack.c.bf16 %v27, %v18
  %v55 = vpack.c.bf16 %v28, %v19
  %v56 = vpack.c.bf16 %v29, %v20
  %v57 = vpack.c.bf16 %v30, %v21
  %v58 = vpack.c.bf16 %v31, %v22
  %v59 = vpack.c.bf16 %v32, %v23
  %v60 = vpack.c.bf16 %v42, %v33
  %v61 = vpack.c.bf16 %v43, %v34
  %v62 = vpack.c.bf16 %v44, %v35
  %v63 = vpack.c.bf16 %v45, %v36
  %v64 = vpack.c.bf16 %v46, %v37
  %v65 = vpack.c.bf16 %v47, %v38
  %v66 = vpack.c.bf16 %v48, %v39
  %v67 = vpack.c.bf16 %v49, %v40
  %v68 = vpack.c.bf16 %v50, %v41
  %v69 = vld [vmem:[%s1] sm:$0xff]
  %v70 = vld [vmem:[%s1 + $0x8] sm:$0xff]
  %v71 = vld [vmem:[%s1 + $0x10] sm:$0xff]
  %v72 = vld [vmem:[%s1 + $0x18] sm:$0xff]
  %v73 = vld [vmem:[%s1 + $0x20] sm:$0xff]
  %v74 = vld [vmem:[%s1 + $0x28] sm:$0xff]
  %v75 = vld [vmem:[%s1 + $0x30] sm:$0xff]
  %v76 = vld [vmem:[%s1 + $0x38] sm:$0xff]
  %v77 = vld [vmem:[%s1 + $0x40] sm:$0xff]
  %v78 = vld [vmem:[%s1 + $0x48] sm:$0xff]
  %v79 = vld [vmem:[%s1 + $0x50] sm:$0xff]
  %v80 = vld [vmem:[%s1 + $0x58] sm:$0xff]
  %v81 = vld [vmem:[%s1 + $0x60] sm:$0xff]
  %v82 = vld [vmem:[%s1 + $0x68] sm:$0xff]
  %v83 = vld [vmem:[%s1 + $0x70] sm:$0xff]
  %v84 = vld [vmem:[%s1 + $0x78] sm:$0xff]
  %v85 = vld [vmem:[%s1 + $0x80] sm:$0xff]
  %v86 = vld [vmem:[%s1 + $0x88] sm:$0xff]
  %v87 = vld [vmem:[%s1 + $0x90] sm:$0xff]
  %v88 = vld [vmem:[%s1 + $0x98] sm:$0xff]
  %v89 = vld [vmem:[%s1 + $0xa0] sm:$0xff]
  %v90 = vld [vmem:[%s1 + $0xa8] sm:$0xff]
  %v91 = vld [vmem:[%s1 + $0xb0] sm:$0xff]
  %v92 = vld [vmem:[%s1 + $0xb8] sm:$0xff]
  %v93 = vld [vmem:[%s1 + $0xc0] sm:$0xff]
  %v94 = vld [vmem:[%s1 + $0xc8] sm:$0xff]
  %v95 = vld [vmem:[%s1 + $0xd0] sm:$0xff]
  %v96 = vld [vmem:[%s1 + $0xd8] sm:$0xff]
  %v97 = vld [vmem:[%s1 + $0xe0] sm:$0xff]
  %v98 = vld [vmem:[%s1 + $0xe8] sm:$0xff]
  %v99 = vld [vmem:[%s1 + $0xf0] sm:$0xff]
  %v100 = vld [vmem:[%s1 + $0xf8] sm:$0xff]
  %v101 = vld [vmem:[%s1 + $0x100] sm:$0xff]
  %v102 = vld [vmem:[%s1 + $0x108] sm:$0xff]
  %v103 = vld [vmem:[%s1 + $0x110] sm:$0xff]
  %v104 = vld [vmem:[%s1 + $0x118] sm:$0xff]
  %v105 = vld [vmem:[%s1 + $0x120] sm:$0xff]
  %v106 = vld [vmem:[%s1 + $0x128] sm:$0xff]
  %v107 = vld [vmem:[%s1 + $0x130] sm:$0xff]
  %v108 = vld [vmem:[%s1 + $0x138] sm:$0xff]
  %v109 = vld [vmem:[%s1 + $0x140] sm:$0xff]
  %v110 = vld [vmem:[%s1 + $0x148] sm:$0xff]
  %v111 = vld [vmem:[%s1 + $0x150] sm:$0xff]
  %v112 = vld [vmem:[%s1 + $0x158] sm:$0xff]
  %v113 = vld [vmem:[%s1 + $0x160] sm:$0xff]
  %v114 = vld [vmem:[%s1 + $0x168] sm:$0xff]
  %v115 = vld [vmem:[%s1 + $0x170] sm:$0xff]
  %v116 = vld [vmem:[%s1 + $0x178] sm:$0xff]
  %v117 = vld [vmem:[%s1 + $0x180] sm:$0xff]
  %v118 = vld [vmem:[%s1 + $0x188] sm:$0xff]
  %v119 = vld [vmem:[%s1 + $0x190] sm:$0xff]
  %v120 = vld [vmem:[%s1 + $0x198] sm:$0xff]
  %v121 = vld [vmem:[%s1 + $0x1a0] sm:$0xff]
  %v122 = vld [vmem:[%s1 + $0x1a8] sm:$0xff]
  %v123 = vld [vmem:[%s1 + $0x1b0] sm:$0xff]
  %v124 = vld [vmem:[%s1 + $0x1b8] sm:$0xff]
  %v125 = vld [vmem:[%s1 + $0x1c0] sm:$0xff]
  %v126 = vld [vmem:[%s1 + $0x1c8] sm:$0xff]
  %v127 = vld [vmem:[%s1 + $0x1d0] sm:$0xff]
  %v128 = vld [vmem:[%s1 + $0x1d8] sm:$0xff]
  %v129 = vld [vmem:[%s1 + $0x1e0] sm:$0xff]
  %v130 = vld [vmem:[%s1 + $0x1e8] sm:$0xff]
  %v131 = vld [vmem:[%s1 + $0x1f0] sm:$0xff]
  %v132 = vld [vmem:[%s1 + $0x1f8] sm:$0xff]
  %v133 = vld [vmem:[%s1 + $0x200] sm:$0xff]
  %v134 = vld [vmem:[%s1 + $0x208] sm:$0xff]
  %v135 = vld [vmem:[%s1 + $0x210] sm:$0xff]
  %v136 = vld [vmem:[%s1 + $0x218] sm:$0xff]
  %v137 = vld [vmem:[%s1 + $0x220] sm:$0xff]
  %v138 = vld [vmem:[%s1 + $0x228] sm:$0xff]
  %v139 = vld [vmem:[%s1 + $0x230] sm:$0xff]
  %v140 = vld [vmem:[%s1 + $0x238] sm:$0xff]
  %v141 = vld [vmem:[%s1 + $0x240] sm:$0xff]
  %v142 = vld [vmem:[%s1 + $0x248] sm:$0xff]
  %v143 = vld [vmem:[%s1 + $0x250] sm:$0xff]
  %v144 = vld [vmem:[%s1 + $0x258] sm:$0xff]
  %v145 = vld [vmem:[%s1 + $0x260] sm:$0xff]
  %v146 = vld [vmem:[%s1 + $0x268] sm:$0xff]
  %v147 = vld [vmem:[%s1 + $0x270] sm:$0xff]
  %v148 = vld [vmem:[%s1 + $0x278] sm:$0xff]
  %v149 = vld [vmem:[%s1 + $0x280] sm:$0xff]
  %v150 = vld [vmem:[%s1 + $0x288] sm:$0xff]
  %v151 = vld [vmem:[%s1 + $0x290] sm:$0xff]
  %v152 = vld [vmem:[%s1 + $0x298] sm:$0xff]
  %v153 = vld [vmem:[%s1 + $0x2a0] sm:$0xff]
  %v154 = vld [vmem:[%s1 + $0x2a8] sm:$0xff]
  %v155 = vld [vmem:[%s1 + $0x2b0] sm:$0xff]
  %v156 = vld [vmem:[%s1 + $0x2b8] sm:$0xff]
  %v157 = vld [vmem:[%s1 + $0x2c0] sm:$0xff]
  %v158 = vld [vmem:[%s1 + $0x2c8] sm:$0xff]
  %v159 = vld [vmem:[%s1 + $0x2d0] sm:$0xff]
  %v160 = vld [vmem:[%s1 + $0x2d8] sm:$0xff]
  %v161 = vld [vmem:[%s1 + $0x2e0] sm:$0xff]
  %v162 = vld [vmem:[%s1 + $0x2e8] sm:$0xff]
  %v163 = vld [vmem:[%s1 + $0x2f0] sm:$0xff]
  %v164 = vld [vmem:[%s1 + $0x2f8] sm:$0xff]
  %v165 = vld [vmem:[%s1 + $0x300] sm:$0xff]
  %v166 = vld [vmem:[%s1 + $0x308] sm:$0xff]
  %v167 = vld [vmem:[%s1 + $0x310] sm:$0xff]
  %v168 = vld [vmem:[%s1 + $0x318] sm:$0xff]
  %v169 = vld [vmem:[%s1 + $0x320] sm:$0xff]
  %v170 = vld [vmem:[%s1 + $0x328] sm:$0xff]
  %v171 = vld [vmem:[%s1 + $0x330] sm:$0xff]
  %v172 = vld [vmem:[%s1 + $0x338] sm:$0xff]
  %v173 = vld [vmem:[%s1 + $0x340] sm:$0xff]
  %v174 = vld [vmem:[%s1 + $0x348] sm:$0xff]
  %v175 = vld [vmem:[%s1 + $0x350] sm:$0xff]
  %v176 = vld [vmem:[%s1 + $0x358] sm:$0xff]
  %v177 = vld [vmem:[%s1 + $0x360] sm:$0xff]
  %v178 = vld [vmem:[%s1 + $0x368] sm:$0xff]
  %v179 = vld [vmem:[%s1 + $0x370] sm:$0xff]
  %v180 = vld [vmem:[%s1 + $0x378] sm:$0xff]
  %v181 = vld [vmem:[%s1 + $0x380] sm:$0xff]
  %v182 = vld [vmem:[%s1 + $0x388] sm:$0xff]
  %v183 = vld [vmem:[%s1 + $0x390] sm:$0xff]
  %v184 = vld [vmem:[%s1 + $0x398] sm:$0xff]
  %v185 = vld [vmem:[%s1 + $0x3a0] sm:$0xff]
  %v186 = vld [vmem:[%s1 + $0x3a8] sm:$0xff]
  %v187 = vld [vmem:[%s1 + $0x3b0] sm:$0xff]
  %v188 = vld [vmem:[%s1 + $0x3b8] sm:$0xff]
  %v189 = vld [vmem:[%s1 + $0x3c0] sm:$0xff]
  %v190 = vld [vmem:[%s1 + $0x3c8] sm:$0xff]
  %v191 = vld [vmem:[%s1 + $0x3d0] sm:$0xff]
  %v192 = vld [vmem:[%s1 + $0x3d8] sm:$0xff]
  %v193 = vld [vmem:[%s1 + $0x3e0] sm:$0xff]
  %v194 = vld [vmem:[%s1 + $0x3e8] sm:$0xff]
  %v195 = vld [vmem:[%s1 + $0x3f0] sm:$0xff]
  %v196 = vld [vmem:[%s1 + $0x3f8] sm:$0xff]
  %v197 = vld [vmem:[%s1 + $0x400] sm:$0xff]
  %v198 = vld [vmem:[%s1 + $0x408] sm:$0xff]
  %v199 = vld [vmem:[%s1 + $0x410] sm:$0xff]
  %v200 = vld [vmem:[%s1 + $0x418] sm:$0xff]
  %v201 = vld [vmem:[%s1 + $0x420] sm:$0xff]
  %v202 = vld [vmem:[%s1 + $0x428] sm:$0xff]
  %v203 = vld [vmem:[%s1 + $0x430] sm:$0xff]
  %v204 = vld [vmem:[%s1 + $0x438] sm:$0xff]
  %v205 = vld [vmem:[%s1 + $0x440] sm:$0xff]
  %v206 = vld [vmem:[%s1 + $0x448] sm:$0xff]
  %v207 = vld [vmem:[%s1 + $0x450] sm:$0xff]
  %v208 = vld [vmem:[%s1 + $0x458] sm:$0xff]
  %v209 = vld [vmem:[%s1 + $0x460] sm:$0xff]
  %v210 = vld [vmem:[%s1 + $0x468] sm:$0xff]
  %v211 = vld [vmem:[%s1 + $0x470] sm:$0xff]
  %v212 = vld [vmem:[%s1 + $0x478] sm:$0xff]
  %v213 = vld [vmem:[%s2] sm:$0x3]
  %v215 = vlaneseq
  %v216 = vshrl.u32 %v215, 7
  %v217 = vsub.s32 0, %v216
  %v218 = vrot.slane %v213, %v217
  %v219 = vlaneseq
  %v220 = vshrl.u32 %v219, 7
  %v221 = vsub.s32 1, %v220
  %v222 = vrot.slane %v213, %v221
  %v369 = vunpack.c.l.b16 %v69
  %v370 = vunpack.c.h.b16 %v69
  %v371 = vunpack.c.l.b16 %v70
  %v372 = vunpack.c.h.b16 %v70
  %v373 = vunpack.c.l.b16 %v71
  %v374 = vunpack.c.h.b16 %v71
  %v375 = vunpack.c.l.b16 %v72
  %v376 = vunpack.c.h.b16 %v72
  %v377 = vunpack.c.l.b16 %v73
  %v378 = vunpack.c.h.b16 %v73
  %v379 = vunpack.c.l.b16 %v74
  %v380 = vunpack.c.h.b16 %v74
  %v381 = vunpack.c.l.b16 %v75
  %v382 = vunpack.c.h.b16 %v75
  %v383 = vunpack.c.l.b16 %v76
  %v384 = vunpack.c.h.b16 %v76
  %v385 = vunpack.c.l.b16 %v77
  %v386 = vunpack.c.h.b16 %v77
  %v387 = vunpack.c.l.b16 %v78
  %v388 = vunpack.c.h.b16 %v78
  %v389 = vunpack.c.l.b16 %v79
  %v390 = vunpack.c.h.b16 %v79
  %v391 = vunpack.c.l.b16 %v80
  %v392 = vunpack.c.h.b16 %v80
  %v393 = vunpack.c.l.b16 %v81
  %v394 = vunpack.c.h.b16 %v81
  %v395 = vunpack.c.l.b16 %v82
  %v396 = vunpack.c.h.b16 %v82
  %v397 = vunpack.c.l.b16 %v83
  %v398 = vunpack.c.h.b16 %v83
  %v399 = vunpack.c.l.b16 %v84
  %v400 = vunpack.c.h.b16 %v84
  %v401 = vunpack.c.l.b16 %v85
  %v402 = vunpack.c.h.b16 %v85
  %v403 = vunpack.c.l.b16 %v86
  %v404 = vunpack.c.h.b16 %v86
  %v405 = vunpack.c.l.b16 %v87
  %v406 = vunpack.c.h.b16 %v87
  %v407 = vunpack.c.l.b16 %v88
  %v408 = vunpack.c.h.b16 %v88
  %v409 = vunpack.c.l.b16 %v89
  %v410 = vunpack.c.h.b16 %v89
  %v411 = vunpack.c.l.b16 %v90
  %v412 = vunpack.c.h.b16 %v90
  %v413 = vunpack.c.l.b16 %v91
  %v414 = vunpack.c.h.b16 %v91
  %v415 = vunpack.c.l.b16 %v92
  %v416 = vunpack.c.h.b16 %v92
  %v417 = vunpack.c.l.b16 %v93
  %v418 = vunpack.c.h.b16 %v93
  %v419 = vunpack.c.l.b16 %v94
  %v420 = vunpack.c.h.b16 %v94
  %v421 = vunpack.c.l.b16 %v95
  %v422 = vunpack.c.h.b16 %v95
  %v423 = vunpack.c.l.b16 %v96
  %v424 = vunpack.c.h.b16 %v96
  %v425 = vunpack.c.l.b16 %v97
  %v426 = vunpack.c.h.b16 %v97
  %v427 = vunpack.c.l.b16 %v98
  %v428 = vunpack.c.h.b16 %v98
  %v429 = vunpack.c.l.b16 %v99
  %v430 = vunpack.c.h.b16 %v99
  %v431 = vunpack.c.l.b16 %v100
  %v432 = vunpack.c.h.b16 %v100
  %v433 = vunpack.c.l.b16 %v101
  %v434 = vunpack.c.h.b16 %v101
  %v435 = vunpack.c.l.b16 %v102
  %v436 = vunpack.c.h.b16 %v102
  %v437 = vunpack.c.l.b16 %v103
  %v438 = vunpack.c.h.b16 %v103
  %v439 = vunpack.c.l.b16 %v104
  %v440 = vunpack.c.h.b16 %v104
  %v441 = vunpack.c.l.b16 %v105
  %v442 = vunpack.c.h.b16 %v105
  %v443 = vunpack.c.l.b16 %v106
  %v444 = vunpack.c.h.b16 %v106
  %v445 = vunpack.c.l.b16 %v107
  %v446 = vunpack.c.h.b16 %v107
  %v447 = vunpack.c.l.b16 %v108
  %v448 = vunpack.c.h.b16 %v108
  %v449 = vunpack.c.l.b16 %v109
  %v450 = vunpack.c.h.b16 %v109
  %v451 = vunpack.c.l.b16 %v110
  %v452 = vunpack.c.h.b16 %v110
  %v453 = vunpack.c.l.b16 %v111
  %v454 = vunpack.c.h.b16 %v111
  %v455 = vunpack.c.l.b16 %v112
  %v456 = vunpack.c.h.b16 %v112
  %v457 = vunpack.c.l.b16 %v113
  %v458 = vunpack.c.h.b16 %v113
  %v459 = vunpack.c.l.b16 %v114
  %v460 = vunpack.c.h.b16 %v114
  %v461 = vunpack.c.l.b16 %v115
  %v462 = vunpack.c.h.b16 %v115
  %v463 = vunpack.c.l.b16 %v116
  %v464 = vunpack.c.h.b16 %v116
  %v465 = vunpack.c.l.b16 %v117
  %v466 = vunpack.c.h.b16 %v117
  %v467 = vunpack.c.l.b16 %v118
  %v468 = vunpack.c.h.b16 %v118
  %v469 = vunpack.c.l.b16 %v119
  %v470 = vunpack.c.h.b16 %v119
  %v471 = vunpack.c.l.b16 %v120
  %v472 = vunpack.c.h.b16 %v120
  %v473 = vunpack.c.l.b16 %v121
  %v474 = vunpack.c.h.b16 %v121
  %v475 = vunpack.c.l.b16 %v122
  %v476 = vunpack.c.h.b16 %v122
  %v477 = vunpack.c.l.b16 %v123
  %v478 = vunpack.c.h.b16 %v123
  %v479 = vunpack.c.l.b16 %v124
  %v480 = vunpack.c.h.b16 %v124
  %v481 = vunpack.c.l.b16 %v125
  %v482 = vunpack.c.h.b16 %v125
  %v483 = vunpack.c.l.b16 %v126
  %v484 = vunpack.c.h.b16 %v126
  %v485 = vunpack.c.l.b16 %v127
  %v486 = vunpack.c.h.b16 %v127
  %v487 = vunpack.c.l.b16 %v128
  %v488 = vunpack.c.h.b16 %v128
  %v489 = vunpack.c.l.b16 %v129
  %v490 = vunpack.c.h.b16 %v129
  %v491 = vunpack.c.l.b16 %v130
  %v492 = vunpack.c.h.b16 %v130
  %v493 = vunpack.c.l.b16 %v131
  %v494 = vunpack.c.h.b16 %v131
  %v495 = vunpack.c.l.b16 %v132
  %v496 = vunpack.c.h.b16 %v132
  %v497 = vunpack.c.l.b16 %v133
  %v498 = vunpack.c.h.b16 %v133
  %v499 = vunpack.c.l.b16 %v134
  %v500 = vunpack.c.h.b16 %v134
  %v501 = vunpack.c.l.b16 %v135
  %v502 = vunpack.c.h.b16 %v135
  %v503 = vunpack.c.l.b16 %v136
  %v504 = vunpack.c.h.b16 %v136
  %v505 = vunpack.c.l.b16 %v137
  %v506 = vunpack.c.h.b16 %v137
  %v507 = vunpack.c.l.b16 %v138
  %v508 = vunpack.c.h.b16 %v138
  %v509 = vunpack.c.l.b16 %v139
  %v510 = vunpack.c.h.b16 %v139
  %v511 = vunpack.c.l.b16 %v140
  %v512 = vunpack.c.h.b16 %v140
  %v513 = vunpack.c.l.b16 %v141
  %v514 = vunpack.c.h.b16 %v141
  %v515 = vunpack.c.l.b16 %v142
  %v516 = vunpack.c.h.b16 %v142
  %v517 = vunpack.c.l.b16 %v143
  %v518 = vunpack.c.h.b16 %v143
  %v519 = vunpack.c.l.b16 %v144
  %v520 = vunpack.c.h.b16 %v144
  %v521 = vunpack.c.l.b16 %v145
  %v522 = vunpack.c.h.b16 %v145
  %v523 = vunpack.c.l.b16 %v146
  %v524 = vunpack.c.h.b16 %v146
  %v525 = vunpack.c.l.b16 %v147
  %v526 = vunpack.c.h.b16 %v147
  %v527 = vunpack.c.l.b16 %v148
  %v528 = vunpack.c.h.b16 %v148
  %v529 = vunpack.c.l.b16 %v149
  %v530 = vunpack.c.h.b16 %v149
  %v531 = vunpack.c.l.b16 %v150
  %v532 = vunpack.c.h.b16 %v150
  %v533 = vunpack.c.l.b16 %v151
  %v534 = vunpack.c.h.b16 %v151
  %v535 = vunpack.c.l.b16 %v152
  %v536 = vunpack.c.h.b16 %v152
  %v537 = vunpack.c.l.b16 %v153
  %v538 = vunpack.c.h.b16 %v153
  %v539 = vunpack.c.l.b16 %v154
  %v540 = vunpack.c.h.b16 %v154
  %v541 = vunpack.c.l.b16 %v155
  %v542 = vunpack.c.h.b16 %v155
  %v543 = vunpack.c.l.b16 %v156
  %v544 = vunpack.c.h.b16 %v156
  %v545 = vunpack.c.l.b16 %v157
  %v546 = vunpack.c.h.b16 %v157
  %v547 = vunpack.c.l.b16 %v158
  %v548 = vunpack.c.h.b16 %v158
  %v549 = vunpack.c.l.b16 %v159
  %v550 = vunpack.c.h.b16 %v159
  %v551 = vunpack.c.l.b16 %v160
  %v552 = vunpack.c.h.b16 %v160
  %v553 = vunpack.c.l.b16 %v161
  %v554 = vunpack.c.h.b16 %v161
  %v555 = vunpack.c.l.b16 %v162
  %v556 = vunpack.c.h.b16 %v162
  %v557 = vunpack.c.l.b16 %v163
  %v558 = vunpack.c.h.b16 %v163
  %v559 = vunpack.c.l.b16 %v164
  %v560 = vunpack.c.h.b16 %v164
  %v561 = vunpack.c.l.b16 %v165
  %v562 = vunpack.c.h.b16 %v165
  %v563 = vunpack.c.l.b16 %v166
  %v564 = vunpack.c.h.b16 %v166
  %v565 = vunpack.c.l.b16 %v167
  %v566 = vunpack.c.h.b16 %v167
  %v567 = vunpack.c.l.b16 %v168
  %v568 = vunpack.c.h.b16 %v168
  %v569 = vunpack.c.l.b16 %v169
  %v570 = vunpack.c.h.b16 %v169
  %v571 = vunpack.c.l.b16 %v170
  %v572 = vunpack.c.h.b16 %v170
  %v573 = vunpack.c.l.b16 %v171
  %v574 = vunpack.c.h.b16 %v171
  %v575 = vunpack.c.l.b16 %v172
  %v576 = vunpack.c.h.b16 %v172
  %v577 = vunpack.c.l.b16 %v173
  %v578 = vunpack.c.h.b16 %v173
  %v579 = vunpack.c.l.b16 %v174
  %v580 = vunpack.c.h.b16 %v174
  %v581 = vunpack.c.l.b16 %v175
  %v582 = vunpack.c.h.b16 %v175
  %v583 = vunpack.c.l.b16 %v176
  %v584 = vunpack.c.h.b16 %v176
  %v585 = vunpack.c.l.b16 %v177
  %v586 = vunpack.c.h.b16 %v177
  %v587 = vunpack.c.l.b16 %v178
  %v588 = vunpack.c.h.b16 %v178
  %v589 = vunpack.c.l.b16 %v179
  %v590 = vunpack.c.h.b16 %v179
  %v591 = vunpack.c.l.b16 %v180
  %v592 = vunpack.c.h.b16 %v180
  %v593 = vunpack.c.l.b16 %v181
  %v594 = vunpack.c.h.b16 %v181
  %v595 = vunpack.c.l.b16 %v182
  %v596 = vunpack.c.h.b16 %v182
  %v597 = vunpack.c.l.b16 %v183
  %v598 = vunpack.c.h.b16 %v183
  %v599 = vunpack.c.l.b16 %v184
  %v600 = vunpack.c.h.b16 %v184
  %v601 = vunpack.c.l.b16 %v185
  %v602 = vunpack.c.h.b16 %v185
  %v603 = vunpack.c.l.b16 %v186
  %v604 = vunpack.c.h.b16 %v186
  %v605 = vunpack.c.l.b16 %v187
  %v606 = vunpack.c.h.b16 %v187
  %v607 = vunpack.c.l.b16 %v188
  %v608 = vunpack.c.h.b16 %v188
  %v609 = vunpack.c.l.b16 %v189
  %v610 = vunpack.c.h.b16 %v189
  %v611 = vunpack.c.l.b16 %v190
  %v612 = vunpack.c.h.b16 %v190
  %v613 = vunpack.c.l.b16 %v191
  %v614 = vunpack.c.h.b16 %v191
  %v615 = vunpack.c.l.b16 %v192
  %v616 = vunpack.c.h.b16 %v192
  %v617 = vunpack.c.l.b16 %v193
  %v618 = vunpack.c.h.b16 %v193
  %v619 = vunpack.c.l.b16 %v194
  %v620 = vunpack.c.h.b16 %v194
  %v621 = vunpack.c.l.b16 %v195
  %v622 = vunpack.c.h.b16 %v195
  %v623 = vunpack.c.l.b16 %v196
  %v624 = vunpack.c.h.b16 %v196
  %v625 = vunpack.c.l.b16 %v197
  %v626 = vunpack.c.h.b16 %v197
  %v627 = vunpack.c.l.b16 %v198
  %v628 = vunpack.c.h.b16 %v198
  %v629 = vunpack.c.l.b16 %v199
  %v630 = vunpack.c.h.b16 %v199
  %v631 = vunpack.c.l.b16 %v200
  %v632 = vunpack.c.h.b16 %v200
  %v633 = vunpack.c.l.b16 %v201
  %v634 = vunpack.c.h.b16 %v201
  %v635 = vunpack.c.l.b16 %v202
  %v636 = vunpack.c.h.b16 %v202
  %v637 = vunpack.c.l.b16 %v203
  %v638 = vunpack.c.h.b16 %v203
  %v639 = vunpack.c.l.b16 %v204
  %v640 = vunpack.c.h.b16 %v204
  %v641 = vunpack.c.l.b16 %v205
  %v642 = vunpack.c.h.b16 %v205
  %v643 = vunpack.c.l.b16 %v206
  %v644 = vunpack.c.h.b16 %v206
  %v645 = vunpack.c.l.b16 %v207
  %v646 = vunpack.c.h.b16 %v207
  %v647 = vunpack.c.l.b16 %v208
  %v648 = vunpack.c.h.b16 %v208
  %v649 = vunpack.c.l.b16 %v209
  %v650 = vunpack.c.h.b16 %v209
  %v651 = vunpack.c.l.b16 %v210
  %v652 = vunpack.c.h.b16 %v210
  %v653 = vunpack.c.l.b16 %v211
  %v654 = vunpack.c.h.b16 %v211
  %v655 = vunpack.c.l.b16 %v212
  %v656 = vunpack.c.h.b16 %v212
  %v657 = vpack.c.b16 %v371, %v369
  %v658 = vpack.c.b16 %v372, %v370
  %v659 = vpack.c.b16 %v375, %v373
  %v660 = vpack.c.b16 %v376, %v374
  %v661 = vpack.c.b16 %v379, %v377
  %v662 = vpack.c.b16 %v380, %v378
  %v663 = vpack.c.b16 %v383, %v381
  %v664 = vpack.c.b16 %v384, %v382
  %v665 = vpack.c.b16 %v387, %v385
  %v666 = vpack.c.b16 %v388, %v386
  %v667 = vpack.c.b16 %v391, %v389
  %v668 = vpack.c.b16 %v392, %v390
  %v669 = vpack.c.b16 %v395, %v393
  %v670 = vpack.c.b16 %v396, %v394
  %v671 = vpack.c.b16 %v399, %v397
  %v672 = vpack.c.b16 %v400, %v398
  %v673 = vpack.c.b16 %v403, %v401
  %v674 = vpack.c.b16 %v404, %v402
  %v675 = vpack.c.b16 %v407, %v405
  %v676 = vpack.c.b16 %v408, %v406
  %v677 = vpack.c.b16 %v411, %v409
  %v678 = vpack.c.b16 %v412, %v410
  %v679 = vpack.c.b16 %v415, %v413
  %v680 = vpack.c.b16 %v416, %v414
  %v681 = vpack.c.b16 %v419, %v417
  %v682 = vpack.c.b16 %v420, %v418
  %v683 = vpack.c.b16 %v423, %v421
  %v684 = vpack.c.b16 %v424, %v422
  %v685 = vpack.c.b16 %v427, %v425
  %v686 = vpack.c.b16 %v428, %v426
  %v687 = vpack.c.b16 %v431, %v429
  %v688 = vpack.c.b16 %v432, %v430
  %v689 = vpack.c.b16 %v435, %v433
  %v690 = vpack.c.b16 %v436, %v434
  %v691 = vpack.c.b16 %v439, %v437
  %v692 = vpack.c.b16 %v440, %v438
  %v693 = vpack.c.b16 %v443, %v441
  %v694 = vpack.c.b16 %v444, %v442
  %v695 = vpack.c.b16 %v447, %v445
  %v696 = vpack.c.b16 %v448, %v446
  %v697 = vpack.c.b16 %v451, %v449
  %v698 = vpack.c.b16 %v452, %v450
  %v699 = vpack.c.b16 %v455, %v453
  %v700 = vpack.c.b16 %v456, %v454
  %v701 = vpack.c.b16 %v459, %v457
  %v702 = vpack.c.b16 %v460, %v458
  %v703 = vpack.c.b16 %v463, %v461
  %v704 = vpack.c.b16 %v464, %v462
  %v705 = vpack.c.b16 %v467, %v465
  %v706 = vpack.c.b16 %v468, %v466
  %v707 = vpack.c.b16 %v471, %v469
  %v708 = vpack.c.b16 %v472, %v470
  %v709 = vpack.c.b16 %v475, %v473
  %v710 = vpack.c.b16 %v476, %v474
  %v711 = vpack.c.b16 %v479, %v477
  %v712 = vpack.c.b16 %v480, %v478
  %v713 = vpack.c.b16 %v483, %v481
  %v714 = vpack.c.b16 %v484, %v482
  %v715 = vpack.c.b16 %v487, %v485
  %v716 = vpack.c.b16 %v488, %v486
  %v717 = vpack.c.b16 %v491, %v489
  %v718 = vpack.c.b16 %v492, %v490
  %v719 = vpack.c.b16 %v495, %v493
  %v720 = vpack.c.b16 %v496, %v494
  %v721 = vpack.c.b16 %v499, %v497
  %v722 = vpack.c.b16 %v500, %v498
  %v723 = vpack.c.b16 %v503, %v501
  %v724 = vpack.c.b16 %v504, %v502
  %v725 = vpack.c.b16 %v507, %v505
  %v726 = vpack.c.b16 %v508, %v506
  %v727 = vpack.c.b16 %v511, %v509
  %v728 = vpack.c.b16 %v512, %v510
  %v729 = vpack.c.b16 %v515, %v513
  %v730 = vpack.c.b16 %v516, %v514
  %v731 = vpack.c.b16 %v519, %v517
  %v732 = vpack.c.b16 %v520, %v518
  %v733 = vpack.c.b16 %v523, %v521
  %v734 = vpack.c.b16 %v524, %v522
  %v735 = vpack.c.b16 %v527, %v525
  %v736 = vpack.c.b16 %v528, %v526
  %v737 = vpack.c.b16 %v531, %v529
  %v738 = vpack.c.b16 %v532, %v530
  %v739 = vpack.c.b16 %v535, %v533
  %v740 = vpack.c.b16 %v536, %v534
  %v741 = vpack.c.b16 %v539, %v537
  %v742 = vpack.c.b16 %v540, %v538
  %v743 = vpack.c.b16 %v543, %v541
  %v744 = vpack.c.b16 %v544, %v542
  %v745 = vpack.c.b16 %v547, %v545
  %v746 = vpack.c.b16 %v548, %v546
  %v747 = vpack.c.b16 %v551, %v549
  %v748 = vpack.c.b16 %v552, %v550
  %v749 = vpack.c.b16 %v555, %v553
  %v750 = vpack.c.b16 %v556, %v554
  %v751 = vpack.c.b16 %v559, %v557
  %v752 = vpack.c.b16 %v560, %v558
  %v753 = vpack.c.b16 %v563, %v561
  %v754 = vpack.c.b16 %v564, %v562
  %v755 = vpack.c.b16 %v567, %v565
  %v756 = vpack.c.b16 %v568, %v566
  %v757 = vpack.c.b16 %v571, %v569
  %v758 = vpack.c.b16 %v572, %v570
  %v759 = vpack.c.b16 %v575, %v573
  %v760 = vpack.c.b16 %v576, %v574
  %v761 = vpack.c.b16 %v579, %v577
  %v762 = vpack.c.b16 %v580, %v578
  %v763 = vpack.c.b16 %v583, %v581
  %v764 = vpack.c.b16 %v584, %v582
  %v765 = vpack.c.b16 %v587, %v585
  %v766 = vpack.c.b16 %v588, %v586
  %v767 = vpack.c.b16 %v591, %v589
  %v768 = vpack.c.b16 %v592, %v590
  %v769 = vpack.c.b16 %v595, %v593
  %v770 = vpack.c.b16 %v596, %v594
  %v771 = vpack.c.b16 %v599, %v597
  %v772 = vpack.c.b16 %v600, %v598
  %v773 = vpack.c.b16 %v603, %v601
  %v774 = vpack.c.b16 %v604, %v602
  %v775 = vpack.c.b16 %v607, %v605
  %v776 = vpack.c.b16 %v608, %v606
  %v777 = vpack.c.b16 %v611, %v609
  %v778 = vpack.c.b16 %v612, %v610
  %v779 = vpack.c.b16 %v615, %v613
  %v780 = vpack.c.b16 %v616, %v614
  %v781 = vpack.c.b16 %v619, %v617
  %v782 = vpack.c.b16 %v620, %v618
  %v783 = vpack.c.b16 %v623, %v621
  %v784 = vpack.c.b16 %v624, %v622
  %v785 = vpack.c.b16 %v627, %v625
  %v786 = vpack.c.b16 %v628, %v626
  %v787 = vpack.c.b16 %v631, %v629
  %v788 = vpack.c.b16 %v632, %v630
  %v789 = vpack.c.b16 %v635, %v633
  %v790 = vpack.c.b16 %v636, %v634
  %v791 = vpack.c.b16 %v639, %v637
  %v792 = vpack.c.b16 %v640, %v638
  %v793 = vpack.c.b16 %v643, %v641
  %v794 = vpack.c.b16 %v644, %v642
  %v795 = vpack.c.b16 %v647, %v645
  %v796 = vpack.c.b16 %v648, %v646
  %v797 = vpack.c.b16 %v651, %v649
  %v798 = vpack.c.b16 %v652, %v650
  %v799 = vpack.c.b16 %v655, %v653
  %v800 = vpack.c.b16 %v656, %v654
  %945 = vmatprep.subr.bf16.mxu0 %v658
  %946 = vmatpush1.bf16.msra.mxu0 %v657
  %947 = vmatprep.subr.bf16.mxu0 %v660
  %948 = vmatpush1.bf16.msra.mxu0 %v659
  %949 = vmatprep.subr.bf16.mxu0 %v662
  %950 = vmatpush1.bf16.msra.mxu0 %v661
  %951 = vmatprep.subr.bf16.mxu0 %v664
  %952 = vmatpush1.bf16.msra.mxu0 %v663
  %953 = vmatprep.subr.bf16.mxu0 %v666
  %954 = vmatpush1.bf16.msra.mxu0 %v665
  %955 = vmatprep.subr.bf16.mxu0 %v668
  %956 = vmatpush1.bf16.msra.mxu0 %v667
  %957 = vmatprep.subr.bf16.mxu0 %v670
  %958 = vmatpush1.bf16.msra.mxu0 %v669
  %959 = vmatprep.subr.bf16.mxu0 %v672
  %960 = vmatpush1.bf16.msra.mxu0 %v671
  %961 = vmatprep.subr.bf16.mxu0 %v674
  %962 = vmatpush1.bf16.msra.mxu0 %v673
  %963 = vmatprep.subr.bf16.mxu0 %v676
  %964 = vmatpush1.bf16.msra.mxu0 %v675
  %965 = vmatprep.subr.bf16.mxu0 %v678
  %966 = vmatpush1.bf16.msra.mxu0 %v677
  %967 = vmatprep.subr.bf16.mxu0 %v680
  %968 = vmatpush1.bf16.msra.mxu0 %v679
  %969 = vmatprep.subr.bf16.mxu0 %v682
  %970 = vmatpush1.bf16.msra.mxu0 %v681
  %971 = vmatprep.subr.bf16.mxu0 %v684
  %972 = vmatpush1.bf16.msra.mxu0 %v683
  %973 = vmatprep.subr.bf16.mxu0 %v686
  %974 = vmatpush1.bf16.msra.mxu0 %v685
  %975 = vmatprep.subr.bf16.mxu0 %v688
  %976 = vmatpush1.bf16.msra.mxu0 %v687
  %977 = vmatprep.mubr.bf16.mxu0 %v52
  %978 = vmatmul.mubr.bf16.gmra.mrb[0].mxu0 %v51
  %v979 = vpop.f32.mrb[0].mxu0
  %v980 = vadd.f32 %v218, %v979
  %v981 = vpop.f32.mrb[0].mxu0
  %v982 = vadd.f32 %v222, %v981
  %v983 = vpop.f32.mrb[0].mxu0
  %v984 = vadd.f32 %v218, %v983
  %v985 = vpop.f32.mrb[0].mxu0
  %v986 = vadd.f32 %v222, %v985
  %987 = vmatprep.mubr.bf16.mxu0 %v61
  %988 = vmatmul.mubr.bf16.gmra.mrb[0].mxu0 %v60
  %v989 = vpop.f32.mrb[0].mxu0
  %v990 = vadd.f32 %v218, %v989
  %v991 = vpop.f32.mrb[0].mxu0
  %v992 = vadd.f32 %v222, %v991
  %v993 = vpop.f32.mrb[0].mxu0
  %v994 = vadd.f32 %v218, %v993
  %v995 = vpop.f32.mrb[0].mxu0
  %v996 = vadd.f32 %v222, %v995
  %997 = vdwg.mxu0
  %998 = vmatprep.subr.bf16.mxu0 %v690
  %999 = vmatpush1.bf16.msra.mxu0 %v689
  %1000 = vmatprep.subr.bf16.mxu0 %v692
  %1001 = vmatpush1.bf16.msra.mxu0 %v691
  %1002 = vmatprep.subr.bf16.mxu0 %v694
  %1003 = vmatpush1.bf16.msra.mxu0 %v693
  %1004 = vmatprep.subr.bf16.mxu0 %v696
  %1005 = vmatpush1.bf16.msra.mxu0 %v695
  %1006 = vmatprep.subr.bf16.mxu0 %v698
  %1007 = vmatpush1.bf16.msra.mxu0 %v697
  %1008 = vmatprep.subr.bf16.mxu0 %v700
  %1009 = vmatpush1.bf16.msra.mxu0 %v699
  %1010 = vmatprep.subr.bf16.mxu0 %v702
  %1011 = vmatpush1.bf16.msra.mxu0 %v701
  %1012 = vmatprep.subr.bf16.mxu0 %v704
  %1013 = vmatpush1.bf16.msra.mxu0 %v703
  %1014 = vmatprep.subr.bf16.mxu0 %v706
  %1015 = vmatpush1.bf16.msra.mxu0 %v705
  %1016 = vmatprep.subr.bf16.mxu0 %v708
  %1017 = vmatpush1.bf16.msra.mxu0 %v707
  %1018 = vmatprep.subr.bf16.mxu0 %v710
  %1019 = vmatpush1.bf16.msra.mxu0 %v709
  %1020 = vmatprep.subr.bf16.mxu0 %v712
  %1021 = vmatpush1.bf16.msra.mxu0 %v711
  %1022 = vmatprep.subr.bf16.mxu0 %v714
  %1023 = vmatpush1.bf16.msra.mxu0 %v713
  %1024 = vmatprep.subr.bf16.mxu0 %v716
  %1025 = vmatpush1.bf16.msra.mxu0 %v715
  %1026 = vmatprep.subr.bf16.mxu0 %v718
  %1027 = vmatpush1.bf16.msra.mxu0 %v717
  %1028 = vmatprep.subr.bf16.mxu0 %v720
  %1029 = vmatpush1.bf16.msra.mxu0 %v719
  %1030 = vmatprep.mubr.bf16.mxu0 %v54
  %1031 = vmatmul.mubr.bf16.gmra.mrb[0].mxu0 %v53
  %v1032 = vpop.f32.mrb[0].mxu0
  %v1033 = vadd.f32 %v980, %v1032
  %v1034 = vpop.f32.mrb[0].mxu0
  %v1035 = vadd.f32 %v982, %v1034
  %v1036 = vpop.f32.mrb[0].mxu0
  %v1037 = vadd.f32 %v984, %v1036
  %v1038 = vpop.f32.mrb[0].mxu0
  %v1039 = vadd.f32 %v986, %v1038
  %1040 = vmatprep.mubr.bf16.mxu0 %v63
  %1041 = vmatmul.mubr.bf16.gmra.mrb[0].mxu0 %v62
  %v1042 = vpop.f32.mrb[0].mxu0
  %v1043 = vadd.f32 %v990, %v1042
  %v1044 = vpop.f32.mrb[0].mxu0
  %v1045 = vadd.f32 %v992, %v1044
  %v1046 = vpop.f32.mrb[0].mxu0
  %v1047 = vadd.f32 %v994, %v1046
  %v1048 = vpop.f32.mrb[0].mxu0
  %v1049 = vadd.f32 %v996, %v1048
  %1050 = vdwg.mxu0
  %1051 = vmatprep.subr.bf16.mxu0 %v722
  %1052 = vmatpush1.bf16.msra.mxu0 %v721
  %1053 = vmatprep.subr.bf16.mxu0 %v724
  %1054 = vmatpush1.bf16.msra.mxu0 %v723
  %1055 = vmatprep.subr.bf16.mxu0 %v726
  %1056 = vmatpush1.bf16.msra.mxu0 %v725
  %1057 = vmatprep.subr.bf16.mxu0 %v728
  %1058 = vmatpush1.bf16.msra.mxu0 %v727
  %1059 = vmatprep.subr.bf16.mxu0 %v730
  %1060 = vmatpush1.bf16.msra.mxu0 %v729
  %1061 = vmatprep.subr.bf16.mxu0 %v732
  %1062 = vmatpush1.bf16.msra.mxu0 %v731
  %1063 = vmatprep.subr.bf16.mxu0 %v734
  %1064 = vmatpush1.bf16.msra.mxu0 %v733
  %1065 = vmatprep.subr.bf16.mxu0 %v736
  %1066 = vmatpush1.bf16.msra.mxu0 %v735
  %1067 = vmatprep.subr.bf16.mxu0 %v738
  %1068 = vmatpush1.bf16.msra.mxu0 %v737
  %1069 = vmatprep.subr.bf16.mxu0 %v740
  %1070 = vmatpush1.bf16.msra.mxu0 %v739
  %1071 = vmatprep.subr.bf16.mxu0 %v742
  %1072 = vmatpush1.bf16.msra.mxu0 %v741
  %1073 = vmatprep.subr.bf16.mxu0 %v744
  %1074 = vmatpush1.bf16.msra.mxu0 %v743
  %1075 = vmatprep.subr.bf16.mxu0 %v746
  %1076 = vmatpush1.bf16.msra.mxu0 %v745
  %1077 = vmatprep.subr.bf16.mxu0 %v748
  %1078 = vmatpush1.bf16.msra.mxu0 %v747
  %1079 = vmatprep.subr.bf16.mxu0 %v750
  %1080 = vmatpush1.bf16.msra.mxu0 %v749
  %1081 = vmatprep.subr.bf16.mxu0 %v752
  %1082 = vmatpush1.bf16.msra.mxu0 %v751
  %1083 = vmatprep.mubr.bf16.mxu0 %v56
  %1084 = vmatmul.mubr.bf16.gmra.mrb[0].mxu0 %v55
  %v1085 = vpop.f32.mrb[0].mxu0
  %v1086 = vadd.f32 %v1033, %v1085
  %v1087 = vpop.f32.mrb[0].mxu0
  %v1088 = vadd.f32 %v1035, %v1087
  %v1089 = vpop.f32.mrb[0].mxu0
  %v1090 = vadd.f32 %v1037, %v1089
  %v1091 = vpop.f32.mrb[0].mxu0
  %v1092 = vadd.f32 %v1039, %v1091
  %1093 = vmatprep.mubr.bf16.mxu0 %v65
  %1094 = vmatmul.mubr.bf16.gmra.mrb[0].mxu0 %v64
  %v1095 = vpop.f32.mrb[0].mxu0
  %v1096 = vadd.f32 %v1043, %v1095
  %v1097 = vpop.f32.mrb[0].mxu0
  %v1098 = vadd.f32 %v1045, %v1097
  %v1099 = vpop.f32.mrb[0].mxu0
  %v1100 = vadd.f32 %v1047, %v1099
  %v1101 = vpop.f32.mrb[0].mxu0
  %v1102 = vadd.f32 %v1049, %v1101
  %1103 = vdwg.mxu0
  %1104 = vmatprep.subr.bf16.mxu0 %v754
  %1105 = vmatpush1.bf16.msra.mxu0 %v753
  %1106 = vmatprep.subr.bf16.mxu0 %v756
  %1107 = vmatpush1.bf16.msra.mxu0 %v755
  %1108 = vmatprep.subr.bf16.mxu0 %v758
  %1109 = vmatpush1.bf16.msra.mxu0 %v757
  %1110 = vmatprep.subr.bf16.mxu0 %v760
  %1111 = vmatpush1.bf16.msra.mxu0 %v759
  %1112 = vmatprep.subr.bf16.mxu0 %v762
  %1113 = vmatpush1.bf16.msra.mxu0 %v761
  %1114 = vmatprep.subr.bf16.mxu0 %v764
  %1115 = vmatpush1.bf16.msra.mxu0 %v763
  %1116 = vmatprep.subr.bf16.mxu0 %v766
  %1117 = vmatpush1.bf16.msra.mxu0 %v765
  %1118 = vmatprep.subr.bf16.mxu0 %v768
  %1119 = vmatpush1.bf16.msra.mxu0 %v767
  %1120 = vmatprep.subr.bf16.mxu0 %v770
  %1121 = vmatpush1.bf16.msra.mxu0 %v769
  %1122 = vmatprep.subr.bf16.mxu0 %v772
  %1123 = vmatpush1.bf16.msra.mxu0 %v771
  %1124 = vmatprep.subr.bf16.mxu0 %v774
  %1125 = vmatpush1.bf16.msra.mxu0 %v773
  %1126 = vmatprep.subr.bf16.mxu0 %v776
  %1127 = vmatpush1.bf16.msra.mxu0 %v775
  %1128 = vmatprep.subr.bf16.mxu0 %v778
  %1129 = vmatpush1.bf16.msra.mxu0 %v777
  %1130 = vmatprep.subr.bf16.mxu0 %v780
  %1131 = vmatpush1.bf16.msra.mxu0 %v779
  %1132 = vmatprep.subr.bf16.mxu0 %v782
  %1133 = vmatpush1.bf16.msra.mxu0 %v781
  %1134 = vmatprep.subr.bf16.mxu0 %v784
  %1135 = vmatpush1.bf16.msra.mxu0 %v783
  %1136 = vmatprep.mubr.bf16.mxu0 %v58
  %1137 = vmatmul.mubr.bf16.gmra.mrb[0].mxu0 %v57
  %v1138 = vpop.f32.mrb[0].mxu0
  %v1139 = vadd.f32 %v1086, %v1138
  %v1140 = vpop.f32.mrb[0].mxu0
  %v1141 = vadd.f32 %v1088, %v1140
  %v1142 = vpop.f32.mrb[0].mxu0
  %v1143 = vadd.f32 %v1090, %v1142
  %v1144 = vpop.f32.mrb[0].mxu0
  %v1145 = vadd.f32 %v1092, %v1144
  %1146 = vmatprep.mubr.bf16.mxu0 %v67
  %1147 = vmatmul.mubr.bf16.gmra.mrb[0].mxu0 %v66
  %v1148 = vpop.f32.mrb[0].mxu0
  %v1149 = vadd.f32 %v1096, %v1148
  %v1150 = vpop.f32.mrb[0].mxu0
  %v1151 = vadd.f32 %v1098, %v1150
  %v1152 = vpop.f32.mrb[0].mxu0
  %v1153 = vadd.f32 %v1100, %v1152
  %v1154 = vpop.f32.mrb[0].mxu0
  %v1155 = vadd.f32 %v1102, %v1154
  %1156 = vdwg.mxu0
  %1157 = vmatprep.subr.bf16.mxu0 %v786
  %1158 = vmatpush1.bf16.msra.mxu0 %v785
  %1159 = vmatprep.subr.bf16.mxu0 %v788
  %1160 = vmatpush1.bf16.msra.mxu0 %v787
  %1161 = vmatprep.subr.bf16.mxu0 %v790
  %1162 = vmatpush1.bf16.msra.mxu0 %v789
  %1163 = vmatprep.subr.bf16.mxu0 %v792
  %1164 = vmatpush1.bf16.msra.mxu0 %v791
  %1165 = vmatprep.subr.bf16.mxu0 %v794
  %1166 = vmatpush1.bf16.msra.mxu0 %v793
  %1167 = vmatprep.subr.bf16.mxu0 %v796
  %1168 = vmatpush1.bf16.msra.mxu0 %v795
  %1169 = vmatprep.subr.bf16.mxu0 %v798
  %1170 = vmatpush1.bf16.msra.mxu0 %v797
  %1171 = vmatprep.subr.bf16.mxu0 %v800
  %1172 = vmatpush1.bf16.msra.mxu0 %v799
  %1173 = vmatprep.subr.bf16.mxu0 0
  %1174 = vmatpush1.bf16.msra.mxu0 0
  %1175 = vmatprep.subr.bf16.mxu0 0
  %1176 = vmatpush1.bf16.msra.mxu0 0
  %1177 = vmatprep.subr.bf16.mxu0 0
  %1178 = vmatpush1.bf16.msra.mxu0 0
  %1179 = vmatprep.subr.bf16.mxu0 0
  %1180 = vmatpush1.bf16.msra.mxu0 0
  %1181 = vmatprep.subr.bf16.mxu0 0
  %1182 = vmatpush1.bf16.msra.mxu0 0
  %1183 = vmatprep.subr.bf16.mxu0 0
  %1184 = vmatpush1.bf16.msra.mxu0 0
  %1185 = vmatprep.subr.bf16.mxu0 0
  %1186 = vmatpush1.bf16.msra.mxu0 0
  %1187 = vmatprep.subr.bf16.mxu0 0
  %1188 = vmatpush1.bf16.msra.mxu0 0
  %1189 = vmatprep.mubr.bf16.mxu0 0
  %1190 = vmatmul.mubr.bf16.gmra.mrb[0].mxu0 %v59
  %v1191 = vpop.f32.mrb[0].mxu0
  %v1192 = vadd.f32 %v1139, %v1191
  %v1193 = vpop.f32.mrb[0].mxu0
  %v1194 = vadd.f32 %v1141, %v1193
  %v1195 = vpop.f32.mrb[0].mxu0
  %v1196 = vadd.f32 %v1143, %v1195
  %v1197 = vpop.f32.mrb[0].mxu0
  %v1198 = vadd.f32 %v1145, %v1197
  %1199 = vmatprep.mubr.bf16.mxu0 0
  %1200 = vmatmul.mubr.bf16.gmra.mrb[0].mxu0 %v68
  %v1201 = vpop.f32.mrb[0].mxu0
  %v1202 = vadd.f32 %v1149, %v1201
  %v1203 = vpop.f32.mrb[0].mxu0
  %v1204 = vadd.f32 %v1151, %v1203
  %v1205 = vpop.f32.mrb[0].mxu0
  %v1206 = vadd.f32 %v1153, %v1205
  %v1207 = vpop.f32.mrb[0].mxu0
  %v1208 = vadd.f32 %v1155, %v1207
  %1209 = vdwg.mxu0
  %v1210 = vmax.f32 %v1192, 0.0
  %v1211 = vmax.f32 %v1194, 0.0
  %v1212 = vmax.f32 %v1196, 0.0
  %v1213 = vmax.f32 %v1198, 0.0
  %v1214 = vmax.f32 %v1202, 0.0
  %v1215 = vmax.f32 %v1204, 0.0
  %v1216 = vmax.f32 %v1206, 0.0
  %v1217 = vmax.f32 %v1208, 0.0
  %1218 = vst [vmem:[%s3] sm:$0xff] %v1210
  %1219 = vst [vmem:[%s3 + $0x8] sm:$0xff] %v1211
  %1220 = vst [vmem:[%s3 + $0x10] sm:$0xff] %v1212
  %1221 = vst [vmem:[%s3 + $0x18] sm:$0xff] %v1213
  %1222 = vst [vmem:[%s3 + $0x20] sm:$0xff] %v1214
  %1223 = vst [vmem:[%s3 + $0x28] sm:$0xff] %v1215
  %1224 = vst [vmem:[%s3 + $0x30] sm:$0xff] %v1216
  %1225 = vst [vmem:[%s3 + $0x38] sm:$0xff] %v1217
  // Predicated region
  $region14: #{deepcl_forward.16} parent=0 // pred_check
    _
  $region15: #{deepcl_forward.16} parent=0 // pred_check_branch
    %1227 = sbr.rel (0) target = $region17
  $region16: #{deepcl_forward.16} parent=0 // pred_region
    _
  $region17: #{deepcl_forward.16} parent=0 // pred_fallthru
    _
  // Predicated region
  $region18: #{deepcl_forward.16} parent=0 // pred_check
    _
  $region19: #{deepcl_forward.16} parent=0 // pred_check_branch
    %1229 = sbr.rel (0) target = $region21
  $region20: #{deepcl_forward.16} parent=0 // pred_region
    _
  $region21: #{deepcl_forward.16} parent=0 // pred_fallthru
    _

// kernel: deepcl_forward.19
$region0: #{deepcl_forward.19}
  #allocation0 [shape = 'u32[]', space=smem, size = 0x4, offset = 0x4, fixed_abs, tag = 'smem constant byte address 0x4 - core index']
  #allocation1 [shape = 'u32[144,128]{1,0:T(1,128)}', space=vmem, size = 0x12000, scoped, tag = 'internal scratch']
  %s0 = inlined_call_operand.vmem [shape: f32[128,128], index: 0, kind: input, shape index: {}]
  %s1 = inlined_call_operand.vmem [shape: bf16[128,256], index: 1, kind: input, shape index: {}]
  %s2 = inlined_call_operand.vmem [shape: f32[1,256], index: 2, kind: input, shape index: {}]
  %s3 = inlined_call_operand.vmem [shape: f32[128,256], index: 3, kind: output, shape index: {}]
  %s4 = sld [smem:[#allocation0]]
  $region22: #{deepcl_forward.19} parent=0
    _
  %s6 = ssub.s32 1, %s4
  %s7 = scalar_select 0, %s6, %s4
  // Predicated region
  $region2: #{deepcl_forward.19} parent=0 // pred_check
    _
  $region3: #{deepcl_forward.19} parent=0 // pred_check_branch
    %9 = sbr.rel (0) target = $region5
  $region4: #{deepcl_forward.19} parent=0 // pred_region
    _
  $region5: #{deepcl_forward.19} parent=0 // pred_fallthru
    _
  // Predicated region
  $region6: #{deepcl_forward.19} parent=0 // pred_check
    _
  $region7: #{deepcl_forward.19} parent=0 // pred_check_branch
    %11 = sbr.rel (0) target = $region9
  $region8: #{deepcl_forward.19} parent=0 // pred_region
    _
  $region9: #{deepcl_forward.19} parent=0 // pred_fallthru
    _
  // Predicated region
  $region10: #{deepcl_forward.19} parent=0 // pred_check
    _
  $region11: #{deepcl_forward.19} parent=0 // pred_check_branch
    %13 = sbr.rel (0) target = $region13
  $region12: #{deepcl_forward.19} parent=0 // pred_region
    _
  $region13: #{deepcl_forward.19} parent=0 // pred_fallthru
    _
  %v15 = vld [vmem:[%s0] sm:$0xff]
  %v16 = vld [vmem:[%s0 + $0x8] sm:$0xff]
  %v17 = vld [vmem:[%s0 + $0x10] sm:$0xff]
  %v18 = vld [vmem:[%s0 + $0x18] sm:$0xff]
  %v19 = vld [vmem:[%s0 + $0x20] sm:$0xff]
  %v20 = vld [vmem:[%s0 + $0x28] sm:$0xff]
  %v21 = vld [vmem:[%s0 + $0x30] sm:$0xff]
  %v22 = vld [vmem:[%s0 + $0x38] sm:$0xff]
  %v23 = vld [vmem:[%s0 + $0x40] sm:$0xff]
  %v24 = vld [vmem:[%s0 + $0x48] sm:$0xff]
  %v25 = vld [vmem:[%s0 + $0x50] sm:$0xff]
  %v26 = vld [vmem:[%s0 + $0x58] sm:$0xff]
  %v27 = vld [vmem:[%s0 + $0x60] sm:$0xff]
  %v28 = vld [vmem:[%s0 + $0x68] sm:$0xff]
  %v29 = vld [vmem:[%s0 + $0x70] sm:$0xff]
  %v30 = vld [vmem:[%s0 + $0x78] sm:$0xff]
  %v31 = vpack.c.bf16 %v16, %v15
  %v32 = vpack.c.bf16 %v18, %v17
  %v33 = vpack.c.bf16 %v20, %v19
  %v34 = vpack.c.bf16 %v22, %v21
  %v35 = vpack.c.bf16 %v24, %v23
  %v36 = vpack.c.bf16 %v26, %v25
  %v37 = vpack.c.bf16 %v28, %v27
  %v38 = vpack.c.bf16 %v30, %v29
  %v39 = vld [vmem:[%s1] sm:$0xff]
  %v40 = vld [vmem:[%s1 + $0x8] sm:$0xff]
  %v41 = vld [vmem:[%s1 + $0x10] sm:$0xff]
  %v42 = vld [vmem:[%s1 + $0x18] sm:$0xff]
  %v43 = vld [vmem:[%s1 + $0x20] sm:$0xff]
  %v44 = vld [vmem:[%s1 + $0x28] sm:$0xff]
  %v45 = vld [vmem:[%s1 + $0x30] sm:$0xff]
  %v46 = vld [vmem:[%s1 + $0x38] sm:$0xff]
  %v47 = vld [vmem:[%s1 + $0x40] sm:$0xff]
  %v48 = vld [vmem:[%s1 + $0x48] sm:$0xff]
  %v49 = vld [vmem:[%s1 + $0x50] sm:$0xff]
  %v50 = vld [vmem:[%s1 + $0x58] sm:$0xff]
  %v51 = vld [vmem:[%s1 + $0x60] sm:$0xff]
  %v52 = vld [vmem:[%s1 + $0x68] sm:$0xff]
  %v53 = vld [vmem:[%s1 + $0x70] sm:$0xff]
  %v54 = vld [vmem:[%s1 + $0x78] sm:$0xff]
  %v55 = vld [vmem:[%s2] sm:$0x3]
  %v57 = vlaneseq
  %v58 = vshrl.u32 %v57, 7
  %v59 = vsub.s32 0, %v58
  %v60 = vrot.slane %v55, %v59
  %v61 = vlaneseq
  %v62 = vshrl.u32 %v61, 7
  %v63 = vsub.s32 1, %v62
  %v64 = vrot.slane %v55, %v63
  %v83 = vunpack.c.l.b16 %v39
  %v84 = vunpack.c.h.b16 %v39
  %v85 = vunpack.c.l.b16 %v40
  %v86 = vunpack.c.h.b16 %v40
  %v87 = vunpack.c.l.b16 %v41
  %v88 = vunpack.c.h.b16 %v41
  %v89 = vunpack.c.l.b16 %v42
  %v90 = vunpack.c.h.b16 %v42
  %v91 = vunpack.c.l.b16 %v43
  %v92 = vunpack.c.h.b16 %v43
  %v93 = vunpack.c.l.b16 %v44
  %v94 = vunpack.c.h.b16 %v44
  %v95 = vunpack.c.l.b16 %v45
  %v96 = vunpack.c.h.b16 %v45
  %v97 = vunpack.c.l.b16 %v46
  %v98 = vunpack.c.h.b16 %v46
  %v99 = vunpack.c.l.b16 %v47
  %v100 = vunpack.c.h.b16 %v47
  %v101 = vunpack.c.l.b16 %v48
  %v102 = vunpack.c.h.b16 %v48
  %v103 = vunpack.c.l.b16 %v49
  %v104 = vunpack.c.h.b16 %v49
  %v105 = vunpack.c.l.b16 %v50
  %v106 = vunpack.c.h.b16 %v50
  %v107 = vunpack.c.l.b16 %v51
  %v108 = vunpack.c.h.b16 %v51
  %v109 = vunpack.c.l.b16 %v52
  %v110 = vunpack.c.h.b16 %v52
  %v111 = vunpack.c.l.b16 %v53
  %v112 = vunpack.c.h.b16 %v53
  %v113 = vunpack.c.l.b16 %v54
  %v114 = vunpack.c.h.b16 %v54
  %v115 = vpack.c.b16 %v85, %v83
  %v116 = vpack.c.b16 %v86, %v84
  %v117 = vpack.c.b16 %v89, %v87
  %v118 = vpack.c.b16 %v90, %v88
  %v119 = vpack.c.b16 %v93, %v91
  %v120 = vpack.c.b16 %v94, %v92
  %v121 = vpack.c.b16 %v97, %v95
  %v122 = vpack.c.b16 %v98, %v96
  %v123 = vpack.c.b16 %v101, %v99
  %v124 = vpack.c.b16 %v102, %v100
  %v125 = vpack.c.b16 %v105, %v103
  %v126 = vpack.c.b16 %v106, %v104
  %v127 = vpack.c.b16 %v109, %v107
  %v128 = vpack.c.b16 %v110, %v108
  %v129 = vpack.c.b16 %v113, %v111
  %v130 = vpack.c.b16 %v114, %v112
  %147 = vmatprep.subr.bf16.mxu0 %v116
  %148 = vmatpush1.bf16.msra.mxu0 %v115
  %149 = vmatprep.subr.bf16.mxu0 %v118
  %150 = vmatpush1.bf16.msra.mxu0 %v117
  %151 = vmatprep.subr.bf16.mxu0 %v120
  %152 = vmatpush1.bf16.msra.mxu0 %v119
  %153 = vmatprep.subr.bf16.mxu0 %v122
  %154 = vmatpush1.bf16.msra.mxu0 %v121
  %155 = vmatprep.subr.bf16.mxu0 %v124
  %156 = vmatpush1.bf16.msra.mxu0 %v123
  %157 = vmatprep.subr.bf16.mxu0 %v126
  %158 = vmatpush1.bf16.msra.mxu0 %v125
  %159 = vmatprep.subr.bf16.mxu0 %v128
  %160 = vmatpush1.bf16.msra.mxu0 %v127
  %161 = vmatprep.subr.bf16.mxu0 %v130
  %162 = vmatpush1.bf16.msra.mxu0 %v129
  %163 = vmatprep.subr.bf16.mxu0 0
  %164 = vmatpush1.bf16.msra.mxu0 0
  %165 = vmatprep.subr.bf16.mxu0 0
  %166 = vmatpush1.bf16.msra.mxu0 0
  %167 = vmatprep.subr.bf16.mxu0 0
  %168 = vmatpush1.bf16.msra.mxu0 0
  %169 = vmatprep.subr.bf16.mxu0 0
  %170 = vmatpush1.bf16.msra.mxu0 0
  %171 = vmatprep.subr.bf16.mxu0 0
  %172 = vmatpush1.bf16.msra.mxu0 0
  %173 = vmatprep.subr.bf16.mxu0 0
  %174 = vmatpush1.bf16.msra.mxu0 0
  %175 = vmatprep.subr.bf16.mxu0 0
  %176 = vmatpush1.bf16.msra.mxu0 0
  %177 = vmatprep.subr.bf16.mxu0 0
  %178 = vmatpush1.bf16.msra.mxu0 0
  %179 = vmatprep.mubr.bf16.mxu0 0
  %180 = vmatmul.mubr.bf16.gmra.mrb[0].mxu0 %v31
  %v181 = vpop.f32.mrb[0].mxu0
  %v182 = vadd.f32 %v60, %v181
  %v183 = vpop.f32.mrb[0].mxu0
  %v184 = vadd.f32 %v64, %v183
  %v185 = vpop.f32.mrb[0].mxu0
  %v186 = vadd.f32 %v60, %v185
  %v187 = vpop.f32.mrb[0].mxu0
  %v188 = vadd.f32 %v64, %v187
  %189 = vmatprep.mubr.bf16.mxu0 0
  %190 = vmatmul.mubr.bf16.gmra.mrb[0].mxu0 %v32
  %v191 = vpop.f32.mrb[0].mxu0
  %v192 = vadd.f32 %v60, %v191
  %v193 = vpop.f32.mrb[0].mxu0
  %v194 = vadd.f32 %v64, %v193
  %v195 = vpop.f32.mrb[0].mxu0
  %v196 = vadd.f32 %v60, %v195
  %v197 = vpop.f32.mrb[0].mxu0
  %v198 = vadd.f32 %v64, %v197
  %199 = vmatprep.mubr.bf16.mxu0 0
  %200 = vmatmul.mubr.bf16.gmra.mrb[0].mxu0 %v33
  %v201 = vpop.f32.mrb[0].mxu0
  %v202 = vadd.f32 %v60, %v201
  %v203 = vpop.f32.mrb[0].mxu0
  %v204 = vadd.f32 %v64, %v203
  %v205 = vpop.f32.mrb[0].mxu0
  %v206 = vadd.f32 %v60, %v205
  %v207 = vpop.f32.mrb[0].mxu0
  %v208 = vadd.f32 %v64, %v207
  %209 = vmatprep.mubr.bf16.mxu0 0
  %210 = vmatmul.mubr.bf16.gmra.mrb[0].mxu0 %v34
  %v211 = vpop.f32.mrb[0].mxu0
  %v212 = vadd.f32 %v60, %v211
  %v213 = vpop.f32.mrb[0].mxu0
  %v214 = vadd.f32 %v64, %v213
  %v215 = vpop.f32.mrb[0].mxu0
  %v216 = vadd.f32 %v60, %v215
  %v217 = vpop.f32.mrb[0].mxu0
  %v218 = vadd.f32 %v64, %v217
  %219 = vmatprep.mubr.bf16.mxu0 0
  %220 = vmatmul.mubr.bf16.gmra.mrb[0].mxu0 %v35
  %v221 = vpop.f32.mrb[0].mxu0
  %v222 = vadd.f32 %v60, %v221
  %v223 = vpop.f32.mrb[0].mxu0
  %v224 = vadd.f32 %v64, %v223
  %v225 = vpop.f32.mrb[0].mxu0
  %v226 = vadd.f32 %v60, %v225
  %v227 = vpop.f32.mrb[0].mxu0
  %v228 = vadd.f32 %v64, %v227
  %229 = vmatprep.mubr.bf16.mxu0 0
  %230 = vmatmul.mubr.bf16.gmra.mrb[0].mxu0 %v36
  %v231 = vpop.f32.mrb[0].mxu0
  %v232 = vadd.f32 %v60, %v231
  %v233 = vpop.f32.mrb[0].mxu0
  %v234 = vadd.f32 %v64, %v233
  %v235 = vpop.f32.mrb[0].mxu0
  %v236 = vadd.f32 %v60, %v235
  %v237 = vpop.f32.mrb[0].mxu0
  %v238 = vadd.f32 %v64, %v237
  %239 = vmatprep.mubr.bf16.mxu0 0
  %240 = vmatmul.mubr.bf16.gmra.mrb[0].mxu0 %v37
  %v241 = vpop.f32.mrb[0].mxu0
  %v242 = vadd.f32 %v60, %v241
  %v243 = vpop.f32.mrb[0].mxu0
  %v244 = vadd.f32 %v64, %v243
  %v245 = vpop.f32.mrb[0].mxu0
  %v246 = vadd.f32 %v60, %v245
  %v247 = vpop.f32.mrb[0].mxu0
  %v248 = vadd.f32 %v64, %v247
  %249 = vmatprep.mubr.bf16.mxu0 0
  %250 = vmatmul.mubr.bf16.gmra.mrb[0].mxu0 %v38
  %v251 = vpop.f32.mrb[0].mxu0
  %v252 = vadd.f32 %v60, %v251
  %v253 = vpop.f32.mrb[0].mxu0
  %v254 = vadd.f32 %v64, %v253
  %v255 = vpop.f32.mrb[0].mxu0
  %v256 = vadd.f32 %v60, %v255
  %v257 = vpop.f32.mrb[0].mxu0
  %v258 = vadd.f32 %v64, %v257
  %259 = vdwg.mxu0
  %260 = vst [vmem:[%s3] sm:$0xff] %v182
  %261 = vst [vmem:[%s3 + $0x8] sm:$0xff] %v184
  %262 = vst [vmem:[%s3 + $0x10] sm:$0xff] %v186
  %263 = vst [vmem:[%s3 + $0x18] sm:$0xff] %v188
  %264 = vst [vmem:[%s3 + $0x20] sm:$0xff] %v192
  %265 = vst [vmem:[%s3 + $0x28] sm:$0xff] %v194
  %266 = vst [vmem:[%s3 + $0x30] sm:$0xff] %v196
  %267 = vst [vmem:[%s3 + $0x38] sm:$0xff] %v198
  %268 = vst [vmem:[%s3 + $0x40] sm:$0xff] %v202
  %269 = vst [vmem:[%s3 + $0x48] sm:$0xff] %v204
  %270 = vst [vmem:[%s3 + $0x50] sm:$0xff] %v206
  %271 = vst [vmem:[%s3 + $0x58] sm:$0xff] %v208
  %272 = vst [vmem:[%s3 + $0x60] sm:$0xff] %v212
  %273 = vst [vmem:[%s3 + $0x68] sm:$0xff] %v214
  %274 = vst [vmem:[%s3 + $0x70] sm:$0xff] %v216
  %275 = vst [vmem:[%s3 + $0x78] sm:$0xff] %v218
  %276 = vst [vmem:[%s3 + $0x80] sm:$0xff] %v222
  %277 = vst [vmem:[%s3 + $0x88] sm:$0xff] %v224
  %278 = vst [vmem:[%s3 + $0x90] sm:$0xff] %v226
  %279 = vst [vmem:[%s3 + $0x98] sm:$0xff] %v228
  %280 = vst [vmem:[%s3 + $0xa0] sm:$0xff] %v232
  %281 = vst [vmem:[%s3 + $0xa8] sm:$0xff] %v234
  %282 = vst [vmem:[%s3 + $0xb0] sm:$0xff] %v236
  %283 = vst [vmem:[%s3 + $0xb8] sm:$0xff] %v238
  %284 = vst [vmem:[%s3 + $0xc0] sm:$0xff] %v242
  %285 = vst [vmem:[%s3 + $0xc8] sm:$0xff] %v244
  %286 = vst [vmem:[%s3 + $0xd0] sm:$0xff] %v246
  %287 = vst [vmem:[%s3 + $0xd8] sm:$0xff] %v248
  %288 = vst [vmem:[%s3 + $0xe0] sm:$0xff] %v252
  %289 = vst [vmem:[%s3 + $0xe8] sm:$0xff] %v254
  %290 = vst [vmem:[%s3 + $0xf0] sm:$0xff] %v256
  %291 = vst [vmem:[%s3 + $0xf8] sm:$0xff] %v258
  // Predicated region
  $region14: #{deepcl_forward.19} parent=0 // pred_check
    _
  $region15: #{deepcl_forward.19} parent=0 // pred_check_branch
    %293 = sbr.rel (0) target = $region17
  $region16: #{deepcl_forward.19} parent=0 // pred_region
    _
  $region17: #{deepcl_forward.19} parent=0 // pred_fallthru
    _
  // Predicated region
  $region18: #{deepcl_forward.19} parent=0 // pred_check
    _
  $region19: #{deepcl_forward.19} parent=0 // pred_check_branch
    %295 = sbr.rel (0) target = $region21
  $region20: #{deepcl_forward.19} parent=0 // pred_region
    _
  $region21: #{deepcl_forward.19} parent=0 // pred_fallthru
    _

// kernel: deepcl_forward.21
$region0: #{deepcl_forward.21}
  #allocation0 [shape = 'u32[]', space=smem, size = 0x4, offset = 0x4, fixed_abs, tag = 'smem constant byte address 0x4 - core index']
  #allocation1 [shape = 'u32[144,128]{1,0:T(1,128)}', space=vmem, size = 0x12000, scoped, tag = 'internal scratch']
  %s0 = inlined_call_operand.vmem [shape: f32[2,256,128], index: 0, kind: input, shape index: {}]
  %s1 = inlined_call_operand.vmem [shape: f32[128,128], index: 1, kind: input, shape index: {}]
  %s2 = inlined_call_operand.vmem [shape: f32[128,128], index: 2, kind: input, shape index: {}]
  %s3 = inlined_call_operand.vmem [shape: f32[2,256,128], index: 3, kind: output, shape index: {0}]
  %s4 = inlined_call_operand.vmem [shape: f32[2,256,2], index: 4, kind: output, shape index: {1}]
  %5 = xla_tuple %s3, %s4
  %s6 = sld [smem:[#allocation0]]
  $region30: #{deepcl_forward.21} parent=0
    _
  %s8 = ssub.s32 1, %s6
  %s9 = scalar_select 0, %s8, %s6
  // Predicated region
  $region2: #{deepcl_forward.21} parent=0 // pred_check
    _
  $region3: #{deepcl_forward.21} parent=0 // pred_check_branch
    %11 = sbr.rel (0) target = $region5
  $region4: #{deepcl_forward.21} parent=0 // pred_region
    _
  $region5: #{deepcl_forward.21} parent=0 // pred_fallthru
    _
  // Predicated region
  $region6: #{deepcl_forward.21} parent=0 // pred_check
    _
  $region7: #{deepcl_forward.21} parent=0 // pred_check_branch
    %13 = sbr.rel (0) target = $region9
  $region8: #{deepcl_forward.21} parent=0 // pred_region
    _
  $region9: #{deepcl_forward.21} parent=0 // pred_fallthru
    _
  // Predicated region
  $region10: #{deepcl_forward.21} parent=0 // pred_check
    _
  $region11: #{deepcl_forward.21} parent=0 // pred_check_branch
    %15 = sbr.rel (0) target = $region13
  $region12: #{deepcl_forward.21} parent=0 // pred_region
    _
  $region13: #{deepcl_forward.21} parent=0 // pred_fallthru
    _
  %v16 = vld [vmem:[%s0] sm:$0xff]
  %v17 = vld [vmem:[%s0 + $0x8] sm:$0xff]
  %v18 = vld [vmem:[%s0 + $0x10] sm:$0xff]
  %v19 = vld [vmem:[%s0 + $0x18] sm:$0xff]
  %v20 = vld [vmem:[%s0 + $0x20] sm:$0xff]
  %v21 = vld [vmem:[%s0 + $0x28] sm:$0xff]
  %v22 = vld [vmem:[%s0 + $0x30] sm:$0xff]
  %v23 = vld [vmem:[%s0 + $0x38] sm:$0xff]
  %v24 = vld [vmem:[%s0 + $0x40] sm:$0xff]
  %v25 = vld [vmem:[%s0 + $0x48] sm:$0xff]
  %v26 = vld [vmem:[%s0 + $0x50] sm:$0xff]
  %v27 = vld [vmem:[%s0 + $0x58] sm:$0xff]
  %v28 = vld [vmem:[%s0 + $0x60] sm:$0xff]
  %v29 = vld [vmem:[%s0 + $0x68] sm:$0xff]
  %v30 = vld [vmem:[%s0 + $0x70] sm:$0xff]
  %v31 = vld [vmem:[%s0 + $0x78] sm:$0xff]
  %v32 = vld [vmem:[%s0 + $0x80] sm:$0xff]
  %v33 = vld [vmem:[%s0 + $0x88] sm:$0xff]
  %v34 = vld [vmem:[%s0 + $0x90] sm:$0xff]
  %v35 = vld [vmem:[%s0 + $0x98] sm:$0xff]
  %v36 = vld [vmem:[%s0 + $0xa0] sm:$0xff]
  %v37 = vld [vmem:[%s0 + $0xa8] sm:$0xff]
  %v38 = vld [vmem:[%s0 + $0xb0] sm:$0xff]
  %v39 = vld [vmem:[%s0 + $0xb8] sm:$0xff]
  %v40 = vld [vmem:[%s0 + $0xc0] sm:$0xff]
  %v41 = vld [vmem:[%s0 + $0xc8] sm:$0xff]
  %v42 = vld [vmem:[%s0 + $0xd0] sm:$0xff]
  %v43 = vld [vmem:[%s0 + $0xd8] sm:$0xff]
  %v44 = vld [vmem:[%s0 + $0xe0] sm:$0xff]
  %v45 = vld [vmem:[%s0 + $0xe8] sm:$0xff]
  %v46 = vld [vmem:[%s0 + $0xf0] sm:$0xff]
  %v47 = vld [vmem:[%s0 + $0xf8] sm:$0xff]
  %v48 = vld [vmem:[%s0 + $0x100] sm:$0xff]
  %v49 = vld [vmem:[%s0 + $0x108] sm:$0xff]
  %v50 = vld [vmem:[%s0 + $0x110] sm:$0xff]
  %v51 = vld [vmem:[%s0 + $0x118] sm:$0xff]
  %v52 = vld [vmem:[%s0 + $0x120] sm:$0xff]
  %v53 = vld [vmem:[%s0 + $0x128] sm:$0xff]
  %v54 = vld [vmem:[%s0 + $0x130] sm:$0xff]
  %v55 = vld [vmem:[%s0 + $0x138] sm:$0xff]
  %v56 = vld [vmem:[%s0 + $0x140] sm:$0xff]
  %v57 = vld [vmem:[%s0 + $0x148] sm:$0xff]
  %v58 = vld [vmem:[%s0 + $0x150] sm:$0xff]
  %v59 = vld [vmem:[%s0 + $0x158] sm:$0xff]
  %v60 = vld [vmem:[%s0 + $0x160] sm:$0xff]
  %v61 = vld [vmem:[%s0 + $0x168] sm:$0xff]
  %v62 = vld [vmem:[%s0 + $0x170] sm:$0xff]
  %v63 = vld [vmem:[%s0 + $0x178] sm:$0xff]
  %v64 = vld [vmem:[%s0 + $0x180] sm:$0xff]
  %v65 = vld [vmem:[%s0 + $0x188] sm:$0xff]
  %v66 = vld [vmem:[%s0 + $0x190] sm:$0xff]
  %v67 = vld [vmem:[%s0 + $0x198] sm:$0xff]
  %v68 = vld [vmem:[%s0 + $0x1a0] sm:$0xff]
  %v69 = vld [vmem:[%s0 + $0x1a8] sm:$0xff]
  %v70 = vld [vmem:[%s0 + $0x1b0] sm:$0xff]
  %v71 = vld [vmem:[%s0 + $0x1b8] sm:$0xff]
  %v72 = vld [vmem:[%s0 + $0x1c0] sm:$0xff]
  %v73 = vld [vmem:[%s0 + $0x1c8] sm:$0xff]
  %v74 = vld [vmem:[%s0 + $0x1d0] sm:$0xff]
  %v75 = vld [vmem:[%s0 + $0x1d8] sm:$0xff]
  %v76 = vld [vmem:[%s0 + $0x1e0] sm:$0xff]
  %v77 = vld [vmem:[%s0 + $0x1e8] sm:$0xff]
  %v78 = vld [vmem:[%s0 + $0x1f0] sm:$0xff]
  %v79 = vld [vmem:[%s0 + $0x1f8] sm:$0xff]
  %v80 = vadd.f32 %v16, %v17
  %v81 = vadd.f32 %v80, %v18
  %v82 = vadd.f32 %v81, %v19
  %v83 = vadd.f32 %v82, %v20
  %v84 = vadd.f32 %v83, %v21
  %v85 = vadd.f32 %v84, %v22
  %v86 = vadd.f32 %v85, %v23
  %v87 = vadd.f32 %v86, %v24
  %v88 = vadd.f32 %v87, %v25
  %v89 = vadd.f32 %v88, %v26
  %v90 = vadd.f32 %v89, %v27
  %v91 = vadd.f32 %v90, %v28
  %v92 = vadd.f32 %v91, %v29
  %v93 = vadd.f32 %v92, %v30
  %v94 = vadd.f32 %v93, %v31
  %v95 = vadd.f32 %v94, %v32
  %v96 = vadd.f32 %v95, %v33
  %v97 = vadd.f32 %v96, %v34
  %v98 = vadd.f32 %v97, %v35
  %v99 = vadd.f32 %v98, %v36
  %v100 = vadd.f32 %v99, %v37
  %v101 = vadd.f32 %v100, %v38
  %v102 = vadd.f32 %v101, %v39
  %v103 = vadd.f32 %v102, %v40
  %v104 = vadd.f32 %v103, %v41
  %v105 = vadd.f32 %v104, %v42
  %v106 = vadd.f32 %v105, %v43
  %v107 = vadd.f32 %v106, %v44
  %v108 = vadd.f32 %v107, %v45
  %v109 = vadd.f32 %v108, %v46
  %v110 = vadd.f32 %v109, %v47
  %v111 = vrot.slane %v110, 4
  %v112 = vadd.f32 %v110, %v111
  %v113 = vrot.slane %v112, 2
  %v114 = vadd.f32 %v112, %v113
  %v115 = vrot.slane %v114, 1
  %v116 = vadd.f32 %v114, %v115
  %v117 = vadd.f32 %v48, %v49
  %v118 = vadd.f32 %v117, %v50
  %v119 = vadd.f32 %v118, %v51
  %v120 = vadd.f32 %v119, %v52
  %v121 = vadd.f32 %v120, %v53
  %v122 = vadd.f32 %v121, %v54
  %v123 = vadd.f32 %v122, %v55
  %v124 = vadd.f32 %v123, %v56
  %v125 = vadd.f32 %v124, %v57
  %v126 = vadd.f32 %v125, %v58
  %v127 = vadd.f32 %v126, %v59
  %v128 = vadd.f32 %v127, %v60
  %v129 = vadd.f32 %v128, %v61
  %v130 = vadd.f32 %v129, %v62
  %v131 = vadd.f32 %v130, %v63
  %v132 = vadd.f32 %v131, %v64
  %v133 = vadd.f32 %v132, %v65
  %v134 = vadd.f32 %v133, %v66
  %v135 = vadd.f32 %v134, %v67
  %v136 = vadd.f32 %v135, %v68
  %v137 = vadd.f32 %v136, %v69
  %v138 = vadd.f32 %v137, %v70
  %v139 = vadd.f32 %v138, %v71
  %v140 = vadd.f32 %v139, %v72
  %v141 = vadd.f32 %v140, %v73
  %v142 = vadd.f32 %v141, %v74
  %v143 = vadd.f32 %v142, %v75
  %v144 = vadd.f32 %v143, %v76
  %v145 = vadd.f32 %v144, %v77
  %v146 = vadd.f32 %v145, %v78
  %v147 = vadd.f32 %v146, %v79
  %v148 = vrot.slane %v147, 4
  %v149 = vadd.f32 %v147, %v148
  %v150 = vrot.slane %v149, 2
  %v151 = vadd.f32 %v149, %v150
  %v152 = vrot.slane %v151, 1
  %v153 = vadd.f32 %v151, %v152
  %v154 = vrcp.pop 256.0
  %v155 = vmul.f32 %v116, %v154
  %v156 = vmul.f32 %v153, %v154
  %vm159 = vcmask 1041409
  %v160 = vsel %vm159, %v156, %v155
  %vm162 = vcmask 1041408
  %v163 = vsel %vm162, %v160, 0.0
  %v164 = vld [vmem:[%s1] sm:$0xff]
  %v165 = vld [vmem:[%s1 + $0x8] sm:$0xff]
  %v166 = vld [vmem:[%s1 + $0x10] sm:$0xff]
  %v167 = vld [vmem:[%s1 + $0x18] sm:$0xff]
  %v168 = vld [vmem:[%s1 + $0x20] sm:$0xff]
  %v169 = vld [vmem:[%s1 + $0x28] sm:$0xff]
  %v170 = vld [vmem:[%s1 + $0x30] sm:$0xff]
  %v171 = vld [vmem:[%s1 + $0x38] sm:$0xff]
  %v172 = vld [vmem:[%s1 + $0x40] sm:$0xff]
  %v173 = vld [vmem:[%s1 + $0x48] sm:$0xff]
  %v174 = vld [vmem:[%s1 + $0x50] sm:$0xff]
  %v175 = vld [vmem:[%s1 + $0x58] sm:$0xff]
  %v176 = vld [vmem:[%s1 + $0x60] sm:$0xff]
  %v177 = vld [vmem:[%s1 + $0x68] sm:$0xff]
  %v178 = vld [vmem:[%s1 + $0x70] sm:$0xff]
  %v179 = vld [vmem:[%s1 + $0x78] sm:$0xff]
  %180 = vmatprep.subr.mxu0 0.0
  %181 = vmatpush1.msra.mxu0 %v164
  %182 = vmatprep.subr.mxu0 0.0
  %183 = vmatpush1.msra.mxu0 %v165
  %184 = vmatprep.subr.mxu0 0.0
  %185 = vmatpush1.msra.mxu0 %v166
  %186 = vmatprep.subr.mxu0 0.0
  %187 = vmatpush1.msra.mxu0 %v167
  %188 = vmatprep.subr.mxu0 0.0
  %189 = vmatpush1.msra.mxu0 %v168
  %190 = vmatprep.subr.mxu0 0.0
  %191 = vmatpush1.msra.mxu0 %v169
  %192 = vmatprep.subr.mxu0 0.0
  %193 = vmatpush1.msra.mxu0 %v170
  %194 = vmatprep.subr.mxu0 0.0
  %195 = vmatpush1.msra.mxu0 %v171
  %196 = vmatprep.subr.mxu0 0.0
  %197 = vmatpush1.msra.mxu0 %v172
  %198 = vmatprep.subr.mxu0 0.0
  %199 = vmatpush1.msra.mxu0 %v173
  %200 = vmatprep.subr.mxu0 0.0
  %201 = vmatpush1.msra.mxu0 %v174
  %202 = vmatprep.subr.mxu0 0.0
  %203 = vmatpush1.msra.mxu0 %v175
  %204 = vmatprep.subr.mxu0 0.0
  %205 = vmatpush1.msra.mxu0 %v176
  %206 = vmatprep.subr.mxu0 0.0
  %207 = vmatpush1.msra.mxu0 %v177
  %208 = vmatprep.subr.mxu0 0.0
  %209 = vmatpush1.msra.mxu0 %v178
  %210 = vmatprep.subr.mxu0 0.0
  %211 = vmatpush1.msra.mxu0 %v179
  %212 = vmatprep.subr.mxu0 0.0
  %213 = vmatpush1.msra.mxu0 0.0
  %214 = vmatprep.subr.mxu0 0.0
  %215 = vmatpush1.msra.mxu0 0.0
  %216 = vmatprep.subr.mxu0 0.0
  %217 = vmatpush1.msra.mxu0 0.0
  %218 = vmatprep.subr.mxu0 0.0
  %219 = vmatpush1.msra.mxu0 0.0
  %220 = vmatprep.subr.mxu0 0.0
  %221 = vmatpush1.msra.mxu0 0.0
  %222 = vmatprep.subr.mxu0 0.0
  %223 = vmatpush1.msra.mxu0 0.0
  %224 = vmatprep.subr.mxu0 0.0
  %225 = vmatpush1.msra.mxu0 0.0
  %226 = vmatprep.subr.mxu0 0.0
  %227 = vmatpush1.msra.mxu0 0.0
  %228 = vmatprep.subr.mxu0 0.0
  %229 = vmatpush1.msra.mxu0 0.0
  %230 = vmatprep.subr.mxu0 0.0
  %231 = vmatpush1.msra.mxu0 0.0
  %232 = vmatprep.subr.mxu0 0.0
  %233 = vmatpush1.msra.mxu0 0.0
  %234 = vmatprep.subr.mxu0 0.0
  %235 = vmatpush1.msra.mxu0 0.0
  %236 = vmatprep.subr.mxu0 0.0
  %237 = vmatpush1.msra.mxu0 0.0
  %238 = vmatprep.subr.mxu0 0.0
  %239 = vmatpush1.msra.mxu0 0.0
  %240 = vmatprep.subr.mxu0 0.0
  %241 = vmatpush1.msra.mxu0 0.0
  %242 = vmatprep.subr.mxu0 0.0
  %243 = vmatpush1.msra.mxu0 0.0
  %244 = vmatprep.mubr.f32.mxu0 0.0
  %245 = vmatmul.mubr.f32.gmra.mrb[0].mxu0 %v163
  %v246 = vpop.f32.mrb[0].mxu0
  %v247 = vadd.f32 0.0, %v246
  %v248 = vpop.f32.mrb[0].mxu0
  %249 = vdwg.mxu0
  %v250 = vmax.f32 %v247, 0.0
  %v251 = vld [vmem:[%s2] sm:$0xff]
  %v252 = vld [vmem:[%s2 + $0x8] sm:$0xff]
  %v253 = vld [vmem:[%s2 + $0x10] sm:$0xff]
  %v254 = vld [vmem:[%s2 + $0x18] sm:$0xff]
  %v255 = vld [vmem:[%s2 + $0x20] sm:$0xff]
  %v256 = vld [vmem:[%s2 + $0x28] sm:$0xff]
  %v257 = vld [vmem:[%s2 + $0x30] sm:$0xff]
  %v258 = vld [vmem:[%s2 + $0x38] sm:$0xff]
  %v259 = vld [vmem:[%s2 + $0x40] sm:$0xff]
  %v260 = vld [vmem:[%s2 + $0x48] sm:$0xff]
  %v261 = vld [vmem:[%s2 + $0x50] sm:$0xff]
  %v262 = vld [vmem:[%s2 + $0x58] sm:$0xff]
  %v263 = vld [vmem:[%s2 + $0x60] sm:$0xff]
  %v264 = vld [vmem:[%s2 + $0x68] sm:$0xff]
  %v265 = vld [vmem:[%s2 + $0x70] sm:$0xff]
  %v266 = vld [vmem:[%s2 + $0x78] sm:$0xff]
  %267 = vmatprep.subr.mxu0 0.0
  %268 = vmatpush1.msra.mxu0 %v251
  %269 = vmatprep.subr.mxu0 0.0
  %270 = vmatpush1.msra.mxu0 %v252
  %271 = vmatprep.subr.mxu0 0.0
  %272 = vmatpush1.msra.mxu0 %v253
  %273 = vmatprep.subr.mxu0 0.0
  %274 = vmatpush1.msra.mxu0 %v254
  %275 = vmatprep.subr.mxu0 0.0
  %276 = vmatpush1.msra.mxu0 %v255
  %277 = vmatprep.subr.mxu0 0.0
  %278 = vmatpush1.msra.mxu0 %v256
  %279 = vmatprep.subr.mxu0 0.0
  %280 = vmatpush1.msra.mxu0 %v257
  %281 = vmatprep.subr.mxu0 0.0
  %282 = vmatpush1.msra.mxu0 %v258
  %283 = vmatprep.subr.mxu0 0.0
  %284 = vmatpush1.msra.mxu0 %v259
  %285 = vmatprep.subr.mxu0 0.0
  %286 = vmatpush1.msra.mxu0 %v260
  %287 = vmatprep.subr.mxu0 0.0
  %288 = vmatpush1.msra.mxu0 %v261
  %289 = vmatprep.subr.mxu0 0.0
  %290 = vmatpush1.msra.mxu0 %v262
  %291 = vmatprep.subr.mxu0 0.0
  %292 = vmatpush1.msra.mxu0 %v263
  %293 = vmatprep.subr.mxu0 0.0
  %294 = vmatpush1.msra.mxu0 %v264
  %295 = vmatprep.subr.mxu0 0.0
  %296 = vmatpush1.msra.mxu0 %v265
  %297 = vmatprep.subr.mxu0 0.0
  %298 = vmatpush1.msra.mxu0 %v266
  %299 = vmatprep.subr.mxu0 0.0
  %300 = vmatpush1.msra.mxu0 0.0
  %301 = vmatprep.subr.mxu0 0.0
  %302 = vmatpush1.msra.mxu0 0.0
  %303 = vmatprep.subr.mxu0 0.0
  %304 = vmatpush1.msra.mxu0 0.0
  %305 = vmatprep.subr.mxu0 0.0
  %306 = vmatpush1.msra.mxu0 0.0
  %307 = vmatprep.subr.mxu0 0.0
  %308 = vmatpush1.msra.mxu0 0.0
  %309 = vmatprep.subr.mxu0 0.0
  %310 = vmatpush1.msra.mxu0 0.0
  %311 = vmatprep.subr.mxu0 0.0
  %312 = vmatpush1.msra.mxu0 0.0
  %313 = vmatprep.subr.mxu0 0.0
  %314 = vmatpush1.msra.mxu0 0.0
  %315 = vmatprep.subr.mxu0 0.0
  %316 = vmatpush1.msra.mxu0 0.0
  %317 = vmatprep.subr.mxu0 0.0
  %318 = vmatpush1.msra.mxu0 0.0
  %319 = vmatprep.subr.mxu0 0.0
  %320 = vmatpush1.msra.mxu0 0.0
  %321 = vmatprep.subr.mxu0 0.0
  %322 = vmatpush1.msra.mxu0 0.0
  %323 = vmatprep.subr.mxu0 0.0
  %324 = vmatpush1.msra.mxu0 0.0
  %325 = vmatprep.subr.mxu0 0.0
  %326 = vmatpush1.msra.mxu0 0.0
  %327 = vmatprep.subr.mxu0 0.0
  %328 = vmatpush1.msra.mxu0 0.0
  %329 = vmatprep.subr.mxu0 0.0
  %330 = vmatpush1.msra.mxu0 0.0
  %331 = vmatprep.mubr.f32.mxu0 0.0
  %332 = vmatmul.mubr.f32.gmra.mrb[0].mxu0 %v250
  %v333 = vpop.f32.mrb[0].mxu0
  %v334 = vadd.f32 0.0, %v333
  %v335 = vpop.f32.mrb[0].mxu0
  %336 = vdwg.mxu0
  %v337 = vxor.u32 %v334, 2147483648
  %v338 = vmul.f32 %v337, 1.442695
  %v339 = vpow.pop %v338
  %v340 = vadd.f32 %v339, 1.0
  %v341 = vrcp.pop %v340
  %v342 = vmul.f32 1.0, %v341
  %v345 = vunpack.c.l.s4 1966171168
  %v346 = vunpack.c.0.s8 %v345
  %v347 = vlaneseq
  %v348 = vshrl.u32 %v347, 7
  %v349 = vsub.s32 %v346, %v348
  %v350 = vrot.slane %v342, %v349
  %v351 = vcombine.high %v350, %v350
  %v353 = vunpack.c.l.s4 1966171168
  %v354 = vunpack.c.0.s8 %v353
  %v355 = vlaneseq
  %v356 = vshrl.u32 %v355, 7
  %v357 = vsub.s32 %v354, %v356
  %v358 = vrot.slane %v350, %v357
  %v360 = vunpack.c.l.s4 1966171168
  %v361 = vunpack.c.0.s8 %v360
  %v362 = vlaneseq
  %v363 = vshrl.u32 %v362, 7
  %v364 = vsub.s32 %v361, %v363
  %v365 = vrot.slane %v351, %v364
  %v366 = vlaneseq
  %v367 = vshrl.u32 %v366, 7
  %v368 = vsub.s32 0, %v367
  %v369 = vrot.slane %v358, %v368
  %v370 = vlaneseq
  %v371 = vshrl.u32 %v370, 7
  %v372 = vsub.s32 0, %v371
  %v373 = vrot.slane %v365, %v372
  %v376 = vmul.f32 %v16, %v369
  %v377 = vmul.f32 %v17, %v369
  %v378 = vmul.f32 %v18, %v369
  %v379 = vmul.f32 %v19, %v369
  %v380 = vmul.f32 %v20, %v369
  %v381 = vmul.f32 %v21, %v369
  %v382 = vmul.f32 %v22, %v369
  %v383 = vmul.f32 %v23, %v369
  %v384 = vmul.f32 %v24, %v369
  %v385 = vmul.f32 %v25, %v369
  %v386 = vmul.f32 %v26, %v369
  %v387 = vmul.f32 %v27, %v369
  %v388 = vmul.f32 %v28, %v369
  %v389 = vmul.f32 %v29, %v369
  %v390 = vmul.f32 %v30, %v369
  %v391 = vmul.f32 %v31, %v369
  %v392 = vmul.f32 %v32, %v369
  %v393 = vmul.f32 %v33, %v369
  %v394 = vmul.f32 %v34, %v369
  %v395 = vmul.f32 %v35, %v369
  %v396 = vmul.f32 %v36, %v369
  %v397 = vmul.f32 %v37, %v369
  %v398 = vmul.f32 %v38, %v369
  %v399 = vmul.f32 %v39, %v369
  %v400 = vmul.f32 %v40, %v369
  %v401 = vmul.f32 %v41, %v369
  %v402 = vmul.f32 %v42, %v369
  %v403 = vmul.f32 %v43, %v369
  %v404 = vmul.f32 %v44, %v369
  %v405 = vmul.f32 %v45, %v369
  %v406 = vmul.f32 %v46, %v369
  %v407 = vmul.f32 %v47, %v369
  %v408 = vmul.f32 %v48, %v373
  %v409 = vmul.f32 %v49, %v373
  %v410 = vmul.f32 %v50, %v373
  %v411 = vmul.f32 %v51, %v373
  %v412 = vmul.f32 %v52, %v373
  %v413 = vmul.f32 %v53, %v373
  %v414 = vmul.f32 %v54, %v373
  %v415 = vmul.f32 %v55, %v373
  %v416 = vmul.f32 %v56, %v373
  %v417 = vmul.f32 %v57, %v373
  %v418 = vmul.f32 %v58, %v373
  %v419 = vmul.f32 %v59, %v373
  %v420 = vmul.f32 %v60, %v373
  %v421 = vmul.f32 %v61, %v373
  %v422 = vmul.f32 %v62, %v373
  %v423 = vmul.f32 %v63, %v373
  %v424 = vmul.f32 %v64, %v373
  %v425 = vmul.f32 %v65, %v373
  %v426 = vmul.f32 %v66, %v373
  %v427 = vmul.f32 %v67, %v373
  %v428 = vmul.f32 %v68, %v373
  %v429 = vmul.f32 %v69, %v373
  %v430 = vmul.f32 %v70, %v373
  %v431 = vmul.f32 %v71, %v373
  %v432 = vmul.f32 %v72, %v373
  %v433 = vmul.f32 %v73, %v373
  %v434 = vmul.f32 %v74, %v373
  %v435 = vmul.f32 %v75, %v373
  %v436 = vmul.f32 %v76, %v373
  %v437 = vmul.f32 %v77, %v373
  %v438 = vmul.f32 %v78, %v373
  %v439 = vmul.f32 %v79, %v373
  %440 = vst [vmem:[%s3] sm:$0xff] %v376
  %441 = vst [vmem:[%s3 + $0x8] sm:$0xff] %v377
  %442 = vst [vmem:[%s3 + $0x10] sm:$0xff] %v378
  %443 = vst [vmem:[%s3 + $0x18] sm:$0xff] %v379
  %444 = vst [vmem:[%s3 + $0x20] sm:$0xff] %v380
  %445 = vst [vmem:[%s3 + $0x28] sm:$0xff] %v381
  %446 = vst [vmem:[%s3 + $0x30] sm:$0xff] %v382
  %447 = vst [vmem:[%s3 + $0x38] sm:$0xff] %v383
  %448 = vst [vmem:[%s3 + $0x40] sm:$0xff] %v384
  %449 = vst [vmem:[%s3 + $0x48] sm:$0xff] %v385
  %450 = vst [vmem:[%s3 + $0x50] sm:$0xff] %v386
  %451 = vst [vmem:[%s3 + $0x58] sm:$0xff] %v387
  %452 = vst [vmem:[%s3 + $0x60] sm:$0xff] %v388
  %453 = vst [vmem:[%s3 + $0x68] sm:$0xff] %v389
  %454 = vst [vmem:[%s3 + $0x70] sm:$0xff] %v390
  %455 = vst [vmem:[%s3 + $0x78] sm:$0xff] %v391
  %456 = vst [vmem:[%s3 + $0x80] sm:$0xff] %v392
  %457 = vst [vmem:[%s3 + $0x88] sm:$0xff] %v393
  %458 = vst [vmem:[%s3 + $0x90] sm:$0xff] %v394
  %459 = vst [vmem:[%s3 + $0x98] sm:$0xff] %v395
  %460 = vst [vmem:[%s3 + $0xa0] sm:$0xff] %v396
  %461 = vst [vmem:[%s3 + $0xa8] sm:$0xff] %v397
  %462 = vst [vmem:[%s3 + $0xb0] sm:$0xff] %v398
  %463 = vst [vmem:[%s3 + $0xb8] sm:$0xff] %v399
  %464 = vst [vmem:[%s3 + $0xc0] sm:$0xff] %v400
  %465 = vst [vmem:[%s3 + $0xc8] sm:$0xff] %v401
  %466 = vst [vmem:[%s3 + $0xd0] sm:$0xff] %v402
  %467 = vst [vmem:[%s3 + $0xd8] sm:$0xff] %v403
  %468 = vst [vmem:[%s3 + $0xe0] sm:$0xff] %v404
  %469 = vst [vmem:[%s3 + $0xe8] sm:$0xff] %v405
  %470 = vst [vmem:[%s3 + $0xf0] sm:$0xff] %v406
  %471 = vst [vmem:[%s3 + $0xf8] sm:$0xff] %v407
  %472 = vst [vmem:[%s3 + $0x100] sm:$0xff] %v408
  %473 = vst [vmem:[%s3 + $0x108] sm:$0xff] %v409
  %474 = vst [vmem:[%s3 + $0x110] sm:$0xff] %v410
  %475 = vst [vmem:[%s3 + $0x118] sm:$0xff] %v411
  %476 = vst [vmem:[%s3 + $0x120] sm:$0xff] %v412
  %477 = vst [vmem:[%s3 + $0x128] sm:$0xff] %v413
  %478 = vst [vmem:[%s3 + $0x130] sm:$0xff] %v414
  %479 = vst [vmem:[%s3 + $0x138] sm:$0xff] %v415
  %480 = vst [vmem:[%s3 + $0x140] sm:$0xff] %v416
  %481 = vst [vmem:[%s3 + $0x148] sm:$0xff] %v417
  %482 = vst [vmem:[%s3 + $0x150] sm:$0xff] %v418
  %483 = vst [vmem:[%s3 + $0x158] sm:$0xff] %v419
  %484 = vst [vmem:[%s3 + $0x160] sm:$0xff] %v420
  %485 = vst [vmem:[%s3 + $0x168] sm:$0xff] %v421
  %486 = vst [vmem:[%s3 + $0x170] sm:$0xff] %v422
  %487 = vst [vmem:[%s3 + $0x178] sm:$0xff] %v423
  %488 = vst [vmem:[%s3 + $0x180] sm:$0xff] %v424
  %489 = vst [vmem:[%s3 + $0x188] sm:$0xff] %v425
  %490 = vst [vmem:[%s3 + $0x190] sm:$0xff] %v426
  %491 = vst [vmem:[%s3 + $0x198] sm:$0xff] %v427
  %492 = vst [vmem:[%s3 + $0x1a0] sm:$0xff] %v428
  %493 = vst [vmem:[%s3 + $0x1a8] sm:$0xff] %v429
  %494 = vst [vmem:[%s3 + $0x1b0] sm:$0xff] %v430
  %495 = vst [vmem:[%s3 + $0x1b8] sm:$0xff] %v431
  %496 = vst [vmem:[%s3 + $0x1c0] sm:$0xff] %v432
  %497 = vst [vmem:[%s3 + $0x1c8] sm:$0xff] %v433
  %498 = vst [vmem:[%s3 + $0x1d0] sm:$0xff] %v434
  %499 = vst [vmem:[%s3 + $0x1d8] sm:$0xff] %v435
  %500 = vst [vmem:[%s3 + $0x1e0] sm:$0xff] %v436
  %501 = vst [vmem:[%s3 + $0x1e8] sm:$0xff] %v437
  %502 = vst [vmem:[%s3 + $0x1f0] sm:$0xff] %v438
  %503 = vst [vmem:[%s3 + $0x1f8] sm:$0xff] %v439
  %504 = vadd.xlane.f32.xlu0 %v376
  %v505 = vpop.xlane.xlu0 %504
  %506 = vadd.xlane.f32.xlu0 %v377
  %v507 = vpop.xlane.xlu0 %506
  %508 = vadd.xlane.f32.xlu0 %v378
  %v509 = vpop.xlane.xlu0 %508
  %510 = vadd.xlane.f32.xlu0 %v379
  %v511 = vpop.xlane.xlu0 %510
  %512 = vadd.xlane.f32.xlu0 %v380
  %v513 = vpop.xlane.xlu0 %512
  %514 = vadd.xlane.f32.xlu0 %v381
  %v515 = vpop.xlane.xlu0 %514
  %516 = vadd.xlane.f32.xlu0 %v382
  %v517 = vpop.xlane.xlu0 %516
  %518 = vadd.xlane.f32.xlu0 %v383
  %v519 = vpop.xlane.xlu0 %518
  %520 = vadd.xlane.f32.xlu0 %v384
  %v521 = vpop.xlane.xlu0 %520
  %522 = vadd.xlane.f32.xlu0 %v385
  %v523 = vpop.xlane.xlu0 %522
  %524 = vadd.xlane.f32.xlu0 %v386
  %v525 = vpop.xlane.xlu0 %524
  %526 = vadd.xlane.f32.xlu0 %v387
  %v527 = vpop.xlane.xlu0 %526
  %528 = vadd.xlane.f32.xlu0 %v388
  %v529 = vpop.xlane.xlu0 %528
  %530 = vadd.xlane.f32.xlu0 %v389
  %v531 = vpop.xlane.xlu0 %530
  %532 = vadd.xlane.f32.xlu0 %v390
  %v533 = vpop.xlane.xlu0 %532
  %534 = vadd.xlane.f32.xlu0 %v391
  %v535 = vpop.xlane.xlu0 %534
  %536 = vadd.xlane.f32.xlu0 %v392
  %v537 = vpop.xlane.xlu0 %536
  %538 = vadd.xlane.f32.xlu0 %v393
  %v539 = vpop.xlane.xlu0 %538
  %540 = vadd.xlane.f32.xlu0 %v394
  %v541 = vpop.xlane.xlu0 %540
  %542 = vadd.xlane.f32.xlu0 %v395
  %v543 = vpop.xlane.xlu0 %542
  %544 = vadd.xlane.f32.xlu0 %v396
  %v545 = vpop.xlane.xlu0 %544
  %546 = vadd.xlane.f32.xlu0 %v397
  %v547 = vpop.xlane.xlu0 %546
  %548 = vadd.xlane.f32.xlu0 %v398
  %v549 = vpop.xlane.xlu0 %548
  %550 = vadd.xlane.f32.xlu0 %v399
  %v551 = vpop.xlane.xlu0 %550
  %552 = vadd.xlane.f32.xlu0 %v400
  %v553 = vpop.xlane.xlu0 %552
  %554 = vadd.xlane.f32.xlu0 %v401
  %v555 = vpop.xlane.xlu0 %554
  %556 = vadd.xlane.f32.xlu0 %v402
  %v557 = vpop.xlane.xlu0 %556
  %558 = vadd.xlane.f32.xlu0 %v403
  %v559 = vpop.xlane.xlu0 %558
  %560 = vadd.xlane.f32.xlu0 %v404
  %v561 = vpop.xlane.xlu0 %560
  %562 = vadd.xlane.f32.xlu0 %v405
  %v563 = vpop.xlane.xlu0 %562
  %564 = vadd.xlane.f32.xlu0 %v406
  %v565 = vpop.xlane.xlu0 %564
  %566 = vadd.xlane.f32.xlu0 %v407
  %v567 = vpop.xlane.xlu0 %566
  %568 = vadd.xlane.f32.xlu0 %v408
  %v569 = vpop.xlane.xlu0 %568
  %570 = vadd.xlane.f32.xlu0 %v409
  %v571 = vpop.xlane.xlu0 %570
  %572 = vadd.xlane.f32.xlu0 %v410
  %v573 = vpop.xlane.xlu0 %572
  %574 = vadd.xlane.f32.xlu0 %v411
  %v575 = vpop.xlane.xlu0 %574
  %576 = vadd.xlane.f32.xlu0 %v412
  %v577 = vpop.xlane.xlu0 %576
  %578 = vadd.xlane.f32.xlu0 %v413
  %v579 = vpop.xlane.xlu0 %578
  %580 = vadd.xlane.f32.xlu0 %v414
  %v581 = vpop.xlane.xlu0 %580
  %582 = vadd.xlane.f32.xlu0 %v415
  %v583 = vpop.xlane.xlu0 %582
  %584 = vadd.xlane.f32.xlu0 %v416
  %v585 = vpop.xlane.xlu0 %584
  %586 = vadd.xlane.f32.xlu0 %v417
  %v587 = vpop.xlane.xlu0 %586
  %588 = vadd.xlane.f32.xlu0 %v418
  %v589 = vpop.xlane.xlu0 %588
  %590 = vadd.xlane.f32.xlu0 %v419
  %v591 = vpop.xlane.xlu0 %590
  %592 = vadd.xlane.f32.xlu0 %v420
  %v593 = vpop.xlane.xlu0 %592
  %594 = vadd.xlane.f32.xlu0 %v421
  %v595 = vpop.xlane.xlu0 %594
  %596 = vadd.xlane.f32.xlu0 %v422
  %v597 = vpop.xlane.xlu0 %596
  %598 = vadd.xlane.f32.xlu0 %v423
  %v599 = vpop.xlane.xlu0 %598
  %600 = vadd.xlane.f32.xlu0 %v424
  %v601 = vpop.xlane.xlu0 %600
  %602 = vadd.xlane.f32.xlu0 %v425
  %v603 = vpop.xlane.xlu0 %602
  %604 = vadd.xlane.f32.xlu0 %v426
  %v605 = vpop.xlane.xlu0 %604
  %606 = vadd.xlane.f32.xlu0 %v427
  %v607 = vpop.xlane.xlu0 %606
  %608 = vadd.xlane.f32.xlu0 %v428
  %v609 = vpop.xlane.xlu0 %608
  %610 = vadd.xlane.f32.xlu0 %v429
  %v611 = vpop.xlane.xlu0 %610
  %612 = vadd.xlane.f32.xlu0 %v430
  %v613 = vpop.xlane.xlu0 %612
  %614 = vadd.xlane.f32.xlu0 %v431
  %v615 = vpop.xlane.xlu0 %614
  %616 = vadd.xlane.f32.xlu0 %v432
  %v617 = vpop.xlane.xlu0 %616
  %618 = vadd.xlane.f32.xlu0 %v433
  %v619 = vpop.xlane.xlu0 %618
  %620 = vadd.xlane.f32.xlu0 %v434
  %v621 = vpop.xlane.xlu0 %620
  %622 = vadd.xlane.f32.xlu0 %v435
  %v623 = vpop.xlane.xlu0 %622
  %624 = vadd.xlane.f32.xlu0 %v436
  %v625 = vpop.xlane.xlu0 %624
  %626 = vadd.xlane.f32.xlu0 %v437
  %v627 = vpop.xlane.xlu0 %626
  %628 = vadd.xlane.f32.xlu0 %v438
  %v629 = vpop.xlane.xlu0 %628
  %630 = vadd.xlane.f32.xlu0 %v439
  %v631 = vpop.xlane.xlu0 %630
  %v632 = vrcp.pop 128.0
  %v633 = vmul.f32 %v505, %v632
  %v634 = vmul.f32 %v507, %v632
  %v635 = vmul.f32 %v509, %v632
  %v636 = vmul.f32 %v511, %v632
  %v637 = vmul.f32 %v513, %v632
  %v638 = vmul.f32 %v515, %v632
  %v639 = vmul.f32 %v517, %v632
  %v640 = vmul.f32 %v519, %v632
  %v641 = vmul.f32 %v521, %v632
  %v642 = vmul.f32 %v523, %v632
  %v643 = vmul.f32 %v525, %v632
  %v644 = vmul.f32 %v527, %v632
  %v645 = vmul.f32 %v529, %v632
  %v646 = vmul.f32 %v531, %v632
  %v647 = vmul.f32 %v533, %v632
  %v648 = vmul.f32 %v535, %v632
  %v649 = vmul.f32 %v537, %v632
  %v650 = vmul.f32 %v539, %v632
  %v651 = vmul.f32 %v541, %v632
  %v652 = vmul.f32 %v543, %v632
  %v653 = vmul.f32 %v545, %v632
  %v654 = vmul.f32 %v547, %v632
  %v655 = vmul.f32 %v549, %v632
  %v656 = vmul.f32 %v551, %v632
  %v657 = vmul.f32 %v553, %v632
  %v658 = vmul.f32 %v555, %v632
  %v659 = vmul.f32 %v557, %v632
  %v660 = vmul.f32 %v559, %v632
  %v661 = vmul.f32 %v561, %v632
  %v662 = vmul.f32 %v563, %v632
  %v663 = vmul.f32 %v565, %v632
  %v664 = vmul.f32 %v567, %v632
  %v665 = vmul.f32 %v569, %v632
  %v666 = vmul.f32 %v571, %v632
  %v667 = vmul.f32 %v573, %v632
  %v668 = vmul.f32 %v575, %v632
  %v669 = vmul.f32 %v577, %v632
  %v670 = vmul.f32 %v579, %v632
  %v671 = vmul.f32 %v581, %v632
  %v672 = vmul.f32 %v583, %v632
  %v673 = vmul.f32 %v585, %v632
  %v674 = vmul.f32 %v587, %v632
  %v675 = vmul.f32 %v589, %v632
  %v676 = vmul.f32 %v591, %v632
  %v677 = vmul.f32 %v593, %v632
  %v678 = vmul.f32 %v595, %v632
  %v679 = vmul.f32 %v597, %v632
  %v680 = vmul.f32 %v599, %v632
  %v681 = vmul.f32 %v601, %v632
  %v682 = vmul.f32 %v603, %v632
  %v683 = vmul.f32 %v605, %v632
  %v684 = vmul.f32 %v607, %v632
  %v685 = vmul.f32 %v609, %v632
  %v686 = vmul.f32 %v611, %v632
  %v687 = vmul.f32 %v613, %v632
  %v688 = vmul.f32 %v615, %v632
  %v689 = vmul.f32 %v617, %v632
  %v690 = vmul.f32 %v619, %v632
  %v691 = vmul.f32 %v621, %v632
  %v692 = vmul.f32 %v623, %v632
  %v693 = vmul.f32 %v625, %v632
  %v694 = vmul.f32 %v627, %v632
  %v695 = vmul.f32 %v629, %v632
  %v696 = vmul.f32 %v631, %v632
  %697 = vmax.xlane.f32.xlu0 %v376
  %v698 = vpop.xlane.xlu0 %697
  %699 = vmax.xlane.f32.xlu0 %v377
  %v700 = vpop.xlane.xlu0 %699
  %701 = vmax.xlane.f32.xlu0 %v378
  %v702 = vpop.xlane.xlu0 %701
  %703 = vmax.xlane.f32.xlu0 %v379
  %v704 = vpop.xlane.xlu0 %703
  %705 = vmax.xlane.f32.xlu0 %v380
  %v706 = vpop.xlane.xlu0 %705
  %707 = vmax.xlane.f32.xlu0 %v381
  %v708 = vpop.xlane.xlu0 %707
  %709 = vmax.xlane.f32.xlu0 %v382
  %v710 = vpop.xlane.xlu0 %709
  %711 = vmax.xlane.f32.xlu0 %v383
  %v712 = vpop.xlane.xlu0 %711
  %713 = vmax.xlane.f32.xlu0 %v384
  %v714 = vpop.xlane.xlu0 %713
  %715 = vmax.xlane.f32.xlu0 %v385
  %v716 = vpop.xlane.xlu0 %715
  %717 = vmax.xlane.f32.xlu0 %v386
  %v718 = vpop.xlane.xlu0 %717
  %719 = vmax.xlane.f32.xlu0 %v387
  %v720 = vpop.xlane.xlu0 %719
  %721 = vmax.xlane.f32.xlu0 %v388
  %v722 = vpop.xlane.xlu0 %721
  %723 = vmax.xlane.f32.xlu0 %v389
  %v724 = vpop.xlane.xlu0 %723
  %725 = vmax.xlane.f32.xlu0 %v390
  %v726 = vpop.xlane.xlu0 %725
  %727 = vmax.xlane.f32.xlu0 %v391
  %v728 = vpop.xlane.xlu0 %727
  %729 = vmax.xlane.f32.xlu0 %v392
  %v730 = vpop.xlane.xlu0 %729
  %731 = vmax.xlane.f32.xlu0 %v393
  %v732 = vpop.xlane.xlu0 %731
  %733 = vmax.xlane.f32.xlu0 %v394
  %v734 = vpop.xlane.xlu0 %733
  %735 = vmax.xlane.f32.xlu0 %v395
  %v736 = vpop.xlane.xlu0 %735
  %737 = vmax.xlane.f32.xlu0 %v396
  %v738 = vpop.xlane.xlu0 %737
  %739 = vmax.xlane.f32.xlu0 %v397
  %v740 = vpop.xlane.xlu0 %739
  %741 = vmax.xlane.f32.xlu0 %v398
  %v742 = vpop.xlane.xlu0 %741
  %743 = vmax.xlane.f32.xlu0 %v399
  %v744 = vpop.xlane.xlu0 %743
  %745 = vmax.xlane.f32.xlu0 %v400
  %v746 = vpop.xlane.xlu0 %745
  %747 = vmax.xlane.f32.xlu0 %v401
  %v748 = vpop.xlane.xlu0 %747
  %749 = vmax.xlane.f32.xlu0 %v402
  %v750 = vpop.xlane.xlu0 %749
  %751 = vmax.xlane.f32.xlu0 %v403
  %v752 = vpop.xlane.xlu0 %751
  %753 = vmax.xlane.f32.xlu0 %v404
  %v754 = vpop.xlane.xlu0 %753
  %755 = vmax.xlane.f32.xlu0 %v405
  %v756 = vpop.xlane.xlu0 %755
  %757 = vmax.xlane.f32.xlu0 %v406
  %v758 = vpop.xlane.xlu0 %757
  %759 = vmax.xlane.f32.xlu0 %v407
  %v760 = vpop.xlane.xlu0 %759
  %761 = vmax.xlane.f32.xlu0 %v408
  %v762 = vpop.xlane.xlu0 %761
  %763 = vmax.xlane.f32.xlu0 %v409
  %v764 = vpop.xlane.xlu0 %763
  %765 = vmax.xlane.f32.xlu0 %v410
  %v766 = vpop.xlane.xlu0 %765
  %767 = vmax.xlane.f32.xlu0 %v411
  %v768 = vpop.xlane.xlu0 %767
  %769 = vmax.xlane.f32.xlu0 %v412
  %v770 = vpop.xlane.xlu0 %769
  %771 = vmax.xlane.f32.xlu0 %v413
  %v772 = vpop.xlane.xlu0 %771
  %773 = vmax.xlane.f32.xlu0 %v414
  %v774 = vpop.xlane.xlu0 %773
  %775 = vmax.xlane.f32.xlu0 %v415
  %v776 = vpop.xlane.xlu0 %775
  %777 = vmax.xlane.f32.xlu0 %v416
  %v778 = vpop.xlane.xlu0 %777
  %779 = vmax.xlane.f32.xlu0 %v417
  %v780 = vpop.xlane.xlu0 %779
  %781 = vmax.xlane.f32.xlu0 %v418
  %v782 = vpop.xlane.xlu0 %781
  %783 = vmax.xlane.f32.xlu0 %v419
  %v784 = vpop.xlane.xlu0 %783
  %785 = vmax.xlane.f32.xlu0 %v420
  %v786 = vpop.xlane.xlu0 %785
  %787 = vmax.xlane.f32.xlu0 %v421
  %v788 = vpop.xlane.xlu0 %787
  %789 = vmax.xlane.f32.xlu0 %v422
  %v790 = vpop.xlane.xlu0 %789
  %791 = vmax.xlane.f32.xlu0 %v423
  %v792 = vpop.xlane.xlu0 %791
  %793 = vmax.xlane.f32.xlu0 %v424
  %v794 = vpop.xlane.xlu0 %793
  %795 = vmax.xlane.f32.xlu0 %v425
  %v796 = vpop.xlane.xlu0 %795
  %797 = vmax.xlane.f32.xlu0 %v426
  %v798 = vpop.xlane.xlu0 %797
  %799 = vmax.xlane.f32.xlu0 %v427
  %v800 = vpop.xlane.xlu0 %799
  %801 = vmax.xlane.f32.xlu0 %v428
  %v802 = vpop.xlane.xlu0 %801
  %803 = vmax.xlane.f32.xlu0 %v429
  %v804 = vpop.xlane.xlu0 %803
  %805 = vmax.xlane.f32.xlu0 %v430
  %v806 = vpop.xlane.xlu0 %805
  %807 = vmax.xlane.f32.xlu0 %v431
  %v808 = vpop.xlane.xlu0 %807
  %809 = vmax.xlane.f32.xlu0 %v432
  %v810 = vpop.xlane.xlu0 %809
  %811 = vmax.xlane.f32.xlu0 %v433
  %v812 = vpop.xlane.xlu0 %811
  %813 = vmax.xlane.f32.xlu0 %v434
  %v814 = vpop.xlane.xlu0 %813
  %815 = vmax.xlane.f32.xlu0 %v435
  %v816 = vpop.xlane.xlu0 %815
  %817 = vmax.xlane.f32.xlu0 %v436
  %v818 = vpop.xlane.xlu0 %817
  %819 = vmax.xlane.f32.xlu0 %v437
  %v820 = vpop.xlane.xlu0 %819
  %821 = vmax.xlane.f32.xlu0 %v438
  %v822 = vpop.xlane.xlu0 %821
  %823 = vmax.xlane.f32.xlu0 %v439
  %v824 = vpop.xlane.xlu0 %823
  %vm825 = vcmask 7168
  %v826 = vsel %vm825, %v633, %v698
  %v827 = vsel %vm825, %v634, %v700
  %v828 = vsel %vm825, %v635, %v702
  %v829 = vsel %vm825, %v636, %v704
  %v830 = vsel %vm825, %v637, %v706
  %v831 = vsel %vm825, %v638, %v708
  %v832 = vsel %vm825, %v639, %v710
  %v833 = vsel %vm825, %v640, %v712
  %v834 = vsel %vm825, %v641, %v714
  %v835 = vsel %vm825, %v642, %v716
  %v836 = vsel %vm825, %v643, %v718
  %v837 = vsel %vm825, %v644, %v720
  %v838 = vsel %vm825, %v645, %v722
  %v839 = vsel %vm825, %v646, %v724
  %v840 = vsel %vm825, %v647, %v726
  %v841 = vsel %vm825, %v648, %v728
  %v842 = vsel %vm825, %v649, %v730
  %v843 = vsel %vm825, %v650, %v732
  %v844 = vsel %vm825, %v651, %v734
  %v845 = vsel %vm825, %v652, %v736
  %v846 = vsel %vm825, %v653, %v738
  %v847 = vsel %vm825, %v654, %v740
  %v848 = vsel %vm825, %v655, %v742
  %v849 = vsel %vm825, %v656, %v744
  %v850 = vsel %vm825, %v657, %v746
  %v851 = vsel %vm825, %v658, %v748
  %v852 = vsel %vm825, %v659, %v750
  %v853 = vsel %vm825, %v660, %v752
  %v854 = vsel %vm825, %v661, %v754
  %v855 = vsel %vm825, %v662, %v756
  %v856 = vsel %vm825, %v663, %v758
  %v857 = vsel %vm825, %v664, %v760
  %v858 = vsel %vm825, %v665, %v762
  %v859 = vsel %vm825, %v666, %v764
  %v860 = vsel %vm825, %v667, %v766
  %v861 = vsel %vm825, %v668, %v768
  %v862 = vsel %vm825, %v669, %v770
  %v863 = vsel %vm825, %v670, %v772
  %v864 = vsel %vm825, %v671, %v774
  %v865 = vsel %vm825, %v672, %v776
  %v866 = vsel %vm825, %v673, %v778
  %v867 = vsel %vm825, %v674, %v780
  %v868 = vsel %vm825, %v675, %v782
  %v869 = vsel %vm825, %v676, %v784
  %v870 = vsel %vm825, %v677, %v786
  %v871 = vsel %vm825, %v678, %v788
  %v872 = vsel %vm825, %v679, %v790
  %v873 = vsel %vm825, %v680, %v792
  %v874 = vsel %vm825, %v681, %v794
  %v875 = vsel %vm825, %v682, %v796
  %v876 = vsel %vm825, %v683, %v798
  %v877 = vsel %vm825, %v684, %v800
  %v878 = vsel %vm825, %v685, %v802
  %v879 = vsel %vm825, %v686, %v804
  %v880 = vsel %vm825, %v687, %v806
  %v881 = vsel %vm825, %v688, %v808
  %v882 = vsel %vm825, %v689, %v810
  %v883 = vsel %vm825, %v690, %v812
  %v884 = vsel %vm825, %v691, %v814
  %v885 = vsel %vm825, %v692, %v816
  %v886 = vsel %vm825, %v693, %v818
  %v887 = vsel %vm825, %v694, %v820
  %v888 = vsel %vm825, %v695, %v822
  %v889 = vsel %vm825, %v696, %v824
  %vm890 = vcmask 15360
  %891 = vst.msk [vmem:[%s4] sm:$0xff] %vm890, %v826
  %892 = vst.msk [vmem:[%s4 + $0x8] sm:$0xff] %vm890, %v827
  %893 = vst.msk [vmem:[%s4 + $0x10] sm:$0xff] %vm890, %v828
  %894 = vst.msk [vmem:[%s4 + $0x18] sm:$0xff] %vm890, %v829
  %895 = vst.msk [vmem:[%s4 + $0x20] sm:$0xff] %vm890, %v830
  %896 = vst.msk [vmem:[%s4 + $0x28] sm:$0xff] %vm890, %v831
  %897 = vst.msk [vmem:[%s4 + $0x30] sm:$0xff] %vm890, %v832
  %898 = vst.msk [vmem:[%s4 + $0x38] sm:$0xff] %vm890, %v833
  %899 = vst.msk [vmem:[%s4 + $0x40] sm:$0xff] %vm890, %v834
  %900 = vst.msk [vmem:[%s4 + $0x48] sm:$0xff] %vm890, %v835
  %901 = vst.msk [vmem:[%s4 + $0x50] sm:$0xff] %vm890, %v836
  %902 = vst.msk [vmem:[%s4 + $0x58] sm:$0xff] %vm890, %v837
  %903 = vst.msk [vmem:[%s4 + $0x60] sm:$0xff] %vm890, %v838
  %904 = vst.msk [vmem:[%s4 + $0x68] sm:$0xff] %vm890, %v839
  %905 = vst.msk [vmem:[%s4 + $0x70] sm:$0xff] %vm890, %v840
  %906 = vst.msk [vmem:[%s4 + $0x78] sm:$0xff] %vm890, %v841
  %907 = vst.msk [vmem:[%s4 + $0x80] sm:$0xff] %vm890, %v842
  %908 = vst.msk [vmem:[%s4 + $0x88] sm:$0xff] %vm890, %v843
  %909 = vst.msk [vmem:[%s4 + $0x90] sm:$0xff] %vm890, %v844
  %910 = vst.msk [vmem:[%s4 + $0x98] sm:$0xff] %vm890, %v845
  %911 = vst.msk [vmem:[%s4 + $0xa0] sm:$0xff] %vm890, %v846
  %912 = vst.msk [vmem:[%s4 + $0xa8] sm:$0xff] %vm890, %v847
  %913 = vst.msk [vmem:[%s4 + $0xb0] sm:$0xff] %vm890, %v848
  %914 = vst.msk [vmem:[%s4 + $0xb8] sm:$0xff] %vm890, %v849
  %915 = vst.msk [vmem:[%s4 + $0xc0] sm:$0xff] %vm890, %v850
  %916 = vst.msk [vmem:[%s4 + $0xc8] sm:$0xff] %vm890, %v851
  %917 = vst.msk [vmem:[%s4 + $0xd0] sm:$0xff] %vm890, %v852
  %918 = vst.msk [vmem:[%s4 + $0xd8] sm:$0xff] %vm890, %v853
  %919 = vst.msk [vmem:[%s4 + $0xe0] sm:$0xff] %vm890, %v854
  %920 = vst.msk [vmem:[%s4 + $0xe8] sm:$0xff] %vm890, %v855
  %921 = vst.msk [vmem:[%s4 + $0xf0] sm:$0xff] %vm890, %v856
  %922 = vst.msk [vmem:[%s4 + $0xf8] sm:$0xff] %vm890, %v857
  %923 = vst.msk [vmem:[%s4 + $0x100] sm:$0xff] %vm890, %v858
  %924 = vst.msk [vmem:[%s4 + $0x108] sm:$0xff] %vm890, %v859
  %925 = vst.msk [vmem:[%s4 + $0x110] sm:$0xff] %vm890, %v860
  %926 = vst.msk [vmem:[%s4 + $0x118] sm:$0xff] %vm890, %v861
  %927 = vst.msk [vmem:[%s4 + $0x120] sm:$0xff] %vm890, %v862
  %928 = vst.msk [vmem:[%s4 + $0x128] sm:$0xff] %vm890, %v863
  %929 = vst.msk [vmem:[%s4 + $0x130] sm:$0xff] %vm890, %v864
  %930 = vst.msk [vmem:[%s4 + $0x138] sm:$0xff] %vm890, %v865
  %931 = vst.msk [vmem:[%s4 + $0x140] sm:$0xff] %vm890, %v866
  %932 = vst.msk [vmem:[%s4 + $0x148] sm:$0xff] %vm890, %v867
  %933 = vst.msk [vmem:[%s4 + $0x150] sm:$0xff] %vm890, %v868
  %934 = vst.msk [vmem:[%s4 + $0x158] sm:$0xff] %vm890, %v869
  %935 = vst.msk [vmem:[%s4 + $0x160] sm:$0xff] %vm890, %v870
  %936 = vst.msk [vmem:[%s4 + $0x168] sm:$0xff] %vm890, %v871
  %937 = vst.msk [vmem:[%s4 + $0x170] sm:$0xff] %vm890, %v872
  %938 = vst.msk [vmem:[%s4 + $0x178] sm:$0xff] %vm890, %v873
  %939 = vst.msk [vmem:[%s4 + $0x180] sm:$0xff] %vm890, %v874
  %940 = vst.msk [vmem:[%s4 + $0x188] sm:$0xff] %vm890, %v875
  %941 = vst.msk [vmem:[%s4 + $0x190] sm:$0xff] %vm890, %v876
  %942 = vst.msk [vmem:[%s4 + $0x198] sm:$0xff] %vm890, %v877
  %943 = vst.msk [vmem:[%s4 + $0x1a0] sm:$0xff] %vm890, %v878
  %944 = vst.msk [vmem:[%s4 + $0x1a8] sm:$0xff] %vm890, %v879
  %945 = vst.msk [vmem:[%s4 + $0x1b0] sm:$0xff] %vm890, %v880
  %946 = vst.msk [vmem:[%s4 + $0x1b8] sm:$0xff] %vm890, %v881
  %947 = vst.msk [vmem:[%s4 + $0x1c0] sm:$0xff] %vm890, %v882
  %948 = vst.msk [vmem:[%s4 + $0x1c8] sm:$0xff] %vm890, %v883
  %949 = vst.msk [vmem:[%s4 + $0x1d0] sm:$0xff] %vm890, %v884
  %950 = vst.msk [vmem:[%s4 + $0x1d8] sm:$0xff] %vm890, %v885
  %951 = vst.msk [vmem:[%s4 + $0x1e0] sm:$0xff] %vm890, %v886
  %952 = vst.msk [vmem:[%s4 + $0x1e8] sm:$0xff] %vm890, %v887
  %953 = vst.msk [vmem:[%s4 + $0x1f0] sm:$0xff] %vm890, %v888
  %954 = vst.msk [vmem:[%s4 + $0x1f8] sm:$0xff] %vm890, %v889
  // Predicated region
  $region14: #{deepcl_forward.21} parent=0 // pred_check
    _
  $region15: #{deepcl_forward.21} parent=0 // pred_check_branch
    %956 = sbr.rel (0) target = $region17
  $region16: #{deepcl_forward.21} parent=0 // pred_region
    _
  $region17: #{deepcl_forward.21} parent=0 // pred_fallthru
    _
  // Predicated region
  $region18: #{deepcl_forward.21} parent=0 // pred_check
    _
  $region19: #{deepcl_forward.21} parent=0 // pred_check_branch
    %958 = sbr.rel (0) target = $region21
  $region20: #{deepcl_forward.21} parent=0 // pred_region
    _
  $region21: #{deepcl_forward.21} parent=0 // pred_fallthru
    _
  // Predicated region
  $region22: #{deepcl_forward.21} parent=0 // pred_check
    _
  $region23: #{deepcl_forward.21} parent=0 // pred_check_branch
    %960 = sbr.rel (0) target = $region25
  $region24: #{deepcl_forward.21} parent=0 // pred_region
    _
  $region25: #{deepcl_forward.21} parent=0 // pred_fallthru
    _
  // Predicated region
  $region26: #{deepcl_forward.21} parent=0 // pred_check
    _
  $region27: #{deepcl_forward.21} parent=0 // pred_check_branch
    %962 = sbr.rel (0) target = $region29
  $region28: #{deepcl_forward.21} parent=0 // pred_region
    _
  $region29: #{deepcl_forward.21} parent=0 // pred_fallthru
    _

// kernel: deepcl_forward.18
$region0: #{deepcl_forward.18}
  #allocation0 [shape = 'u32[]', space=smem, size = 0x4, offset = 0x4, fixed_abs, tag = 'smem constant byte address 0x4 - core index']
  #allocation1 [shape = 'u32[144,128]{1,0:T(1,128)}', space=vmem, size = 0x12000, scoped, tag = 'internal scratch']
  %s0 = inlined_call_operand.vmem [shape: f32[128,2304], index: 0, kind: input, shape index: {}]
  %s1 = inlined_call_operand.vmem [shape: bf16[2304,128], index: 1, kind: input, shape index: {}]
  %s2 = inlined_call_operand.vmem [shape: f32[1,128], index: 2, kind: input, shape index: {}]
  %s3 = inlined_call_operand.vmem [shape: f32[128,128], index: 3, kind: output, shape index: {}]
  %s4 = sld [smem:[#allocation0]]
  $region22: #{deepcl_forward.18} parent=0
    _
  %s6 = ssub.s32 1, %s4
  %s7 = scalar_select 0, %s6, %s4
  // Predicated region
  $region2: #{deepcl_forward.18} parent=0 // pred_check
    _
  $region3: #{deepcl_forward.18} parent=0 // pred_check_branch
    %9 = sbr.rel (0) target = $region5
  $region4: #{deepcl_forward.18} parent=0 // pred_region
    _
  $region5: #{deepcl_forward.18} parent=0 // pred_fallthru
    _
  // Predicated region
  $region6: #{deepcl_forward.18} parent=0 // pred_check
    _
  $region7: #{deepcl_forward.18} parent=0 // pred_check_branch
    %11 = sbr.rel (0) target = $region9
  $region8: #{deepcl_forward.18} parent=0 // pred_region
    _
  $region9: #{deepcl_forward.18} parent=0 // pred_fallthru
    _
  // Predicated region
  $region10: #{deepcl_forward.18} parent=0 // pred_check
    _
  $region11: #{deepcl_forward.18} parent=0 // pred_check_branch
    %13 = sbr.rel (0) target = $region13
  $region12: #{deepcl_forward.18} parent=0 // pred_region
    _
  $region13: #{deepcl_forward.18} parent=0 // pred_fallthru
    _
  %v15 = vld [vmem:[%s0] sm:$0xff]
  %v16 = vld [vmem:[%s0 + $0x8] sm:$0xff]
  %v17 = vld [vmem:[%s0 + $0x10] sm:$0xff]
  %v18 = vld [vmem:[%s0 + $0x18] sm:$0xff]
  %v19 = vld [vmem:[%s0 + $0x20] sm:$0xff]
  %v20 = vld [vmem:[%s0 + $0x28] sm:$0xff]
  %v21 = vld [vmem:[%s0 + $0x30] sm:$0xff]
  %v22 = vld [vmem:[%s0 + $0x38] sm:$0xff]
  %v23 = vld [vmem:[%s0 + $0x40] sm:$0xff]
  %v24 = vld [vmem:[%s0 + $0x48] sm:$0xff]
  %v25 = vld [vmem:[%s0 + $0x50] sm:$0xff]
  %v26 = vld [vmem:[%s0 + $0x58] sm:$0xff]
  %v27 = vld [vmem:[%s0 + $0x60] sm:$0xff]
  %v28 = vld [vmem:[%s0 + $0x68] sm:$0xff]
  %v29 = vld [vmem:[%s0 + $0x70] sm:$0xff]
  %v30 = vld [vmem:[%s0 + $0x78] sm:$0xff]
  %v31 = vld [vmem:[%s0 + $0x80] sm:$0xff]
  %v32 = vld [vmem:[%s0 + $0x88] sm:$0xff]
  %v33 = vld [vmem:[%s0 + $0x90] sm:$0xff]
  %v34 = vld [vmem:[%s0 + $0x98] sm:$0xff]
  %v35 = vld [vmem:[%s0 + $0xa0] sm:$0xff]
  %v36 = vld [vmem:[%s0 + $0xa8] sm:$0xff]
  %v37 = vld [vmem:[%s0 + $0xb0] sm:$0xff]
  %v38 = vld [vmem:[%s0 + $0xb8] sm:$0xff]
  %v39 = vld [vmem:[%s0 + $0xc0] sm:$0xff]
  %v40 = vld [vmem:[%s0 + $0xc8] sm:$0xff]
  %v41 = vld [vmem:[%s0 + $0xd0] sm:$0xff]
  %v42 = vld [vmem:[%s0 + $0xd8] sm:$0xff]
  %v43 = vld [vmem:[%s0 + $0xe0] sm:$0xff]
  %v44 = vld [vmem:[%s0 + $0xe8] sm:$0xff]
  %v45 = vld [vmem:[%s0 + $0xf0] sm:$0xff]
  %v46 = vld [vmem:[%s0 + $0xf8] sm:$0xff]
  %v47 = vld [vmem:[%s0 + $0x100] sm:$0xff]
  %v48 = vld [vmem:[%s0 + $0x108] sm:$0xff]
  %v49 = vld [vmem:[%s0 + $0x110] sm:$0xff]
  %v50 = vld [vmem:[%s0 + $0x118] sm:$0xff]
  %v51 = vld [vmem:[%s0 + $0x120] sm:$0xff]
  %v52 = vld [vmem:[%s0 + $0x128] sm:$0xff]
  %v53 = vld [vmem:[%s0 + $0x130] sm:$0xff]
  %v54 = vld [vmem:[%s0 + $0x138] sm:$0xff]
  %v55 = vld [vmem:[%s0 + $0x140] sm:$0xff]
  %v56 = vld [vmem:[%s0 + $0x148] sm:$0xff]
  %v57 = vld [vmem:[%s0 + $0x150] sm:$0xff]
  %v58 = vld [vmem:[%s0 + $0x158] sm:$0xff]
  %v59 = vld [vmem:[%s0 + $0x160] sm:$0xff]
  %v60 = vld [vmem:[%s0 + $0x168] sm:$0xff]
  %v61 = vld [vmem:[%s0 + $0x170] sm:$0xff]
  %v62 = vld [vmem:[%s0 + $0x178] sm:$0xff]
  %v63 = vld [vmem:[%s0 + $0x180] sm:$0xff]
  %v64 = vld [vmem:[%s0 + $0x188] sm:$0xff]
  %v65 = vld [vmem:[%s0 + $0x190] sm:$0xff]
  %v66 = vld [vmem:[%s0 + $0x198] sm:$0xff]
  %v67 = vld [vmem:[%s0 + $0x1a0] sm:$0xff]
  %v68 = vld [vmem:[%s0 + $0x1a8] sm:$0xff]
  %v69 = vld [vmem:[%s0 + $0x1b0] sm:$0xff]
  %v70 = vld [vmem:[%s0 + $0x1b8] sm:$0xff]
  %v71 = vld [vmem:[%s0 + $0x1c0] sm:$0xff]
  %v72 = vld [vmem:[%s0 + $0x1c8] sm:$0xff]
  %v73 = vld [vmem:[%s0 + $0x1d0] sm:$0xff]
  %v74 = vld [vmem:[%s0 + $0x1d8] sm:$0xff]
  %v75 = vld [vmem:[%s0 + $0x1e0] sm:$0xff]
  %v76 = vld [vmem:[%s0 + $0x1e8] sm:$0xff]
  %v77 = vld [vmem:[%s0 + $0x1f0] sm:$0xff]
  %v78 = vld [vmem:[%s0 + $0x1f8] sm:$0xff]
  %v79 = vld [vmem:[%s0 + $0x200] sm:$0xff]
  %v80 = vld [vmem:[%s0 + $0x208] sm:$0xff]
  %v81 = vld [vmem:[%s0 + $0x210] sm:$0xff]
  %v82 = vld [vmem:[%s0 + $0x218] sm:$0xff]
  %v83 = vld [vmem:[%s0 + $0x220] sm:$0xff]
  %v84 = vld [vmem:[%s0 + $0x228] sm:$0xff]
  %v85 = vld [vmem:[%s0 + $0x230] sm:$0xff]
  %v86 = vld [vmem:[%s0 + $0x238] sm:$0xff]
  %v87 = vld [vmem:[%s0 + $0x240] sm:$0xff]
  %v88 = vld [vmem:[%s0 + $0x248] sm:$0xff]
  %v89 = vld [vmem:[%s0 + $0x250] sm:$0xff]
  %v90 = vld [vmem:[%s0 + $0x258] sm:$0xff]
  %v91 = vld [vmem:[%s0 + $0x260] sm:$0xff]
  %v92 = vld [vmem:[%s0 + $0x268] sm:$0xff]
  %v93 = vld [vmem:[%s0 + $0x270] sm:$0xff]
  %v94 = vld [vmem:[%s0 + $0x278] sm:$0xff]
  %v95 = vld [vmem:[%s0 + $0x280] sm:$0xff]
  %v96 = vld [vmem:[%s0 + $0x288] sm:$0xff]
  %v97 = vld [vmem:[%s0 + $0x290] sm:$0xff]
  %v98 = vld [vmem:[%s0 + $0x298] sm:$0xff]
  %v99 = vld [vmem:[%s0 + $0x2a0] sm:$0xff]
  %v100 = vld [vmem:[%s0 + $0x2a8] sm:$0xff]
  %v101 = vld [vmem:[%s0 + $0x2b0] sm:$0xff]
  %v102 = vld [vmem:[%s0 + $0x2b8] sm:$0xff]
  %v103 = vld [vmem:[%s0 + $0x2c0] sm:$0xff]
  %v104 = vld [vmem:[%s0 + $0x2c8] sm:$0xff]
  %v105 = vld [vmem:[%s0 + $0x2d0] sm:$0xff]
  %v106 = vld [vmem:[%s0 + $0x2d8] sm:$0xff]
  %v107 = vld [vmem:[%s0 + $0x2e0] sm:$0xff]
  %v108 = vld [vmem:[%s0 + $0x2e8] sm:$0xff]
  %v109 = vld [vmem:[%s0 + $0x2f0] sm:$0xff]
  %v110 = vld [vmem:[%s0 + $0x2f8] sm:$0xff]
  %v111 = vld [vmem:[%s0 + $0x300] sm:$0xff]
  %v112 = vld [vmem:[%s0 + $0x308] sm:$0xff]
  %v113 = vld [vmem:[%s0 + $0x310] sm:$0xff]
  %v114 = vld [vmem:[%s0 + $0x318] sm:$0xff]
  %v115 = vld [vmem:[%s0 + $0x320] sm:$0xff]
  %v116 = vld [vmem:[%s0 + $0x328] sm:$0xff]
  %v117 = vld [vmem:[%s0 + $0x330] sm:$0xff]
  %v118 = vld [vmem:[%s0 + $0x338] sm:$0xff]
  %v119 = vld [vmem:[%s0 + $0x340] sm:$0xff]
  %v120 = vld [vmem:[%s0 + $0x348] sm:$0xff]
  %v121 = vld [vmem:[%s0 + $0x350] sm:$0xff]
  %v122 = vld [vmem:[%s0 + $0x358] sm:$0xff]
  %v123 = vld [vmem:[%s0 + $0x360] sm:$0xff]
  %v124 = vld [vmem:[%s0 + $0x368] sm:$0xff]
  %v125 = vld [vmem:[%s0 + $0x370] sm:$0xff]
  %v126 = vld [vmem:[%s0 + $0x378] sm:$0xff]
  %v127 = vld [vmem:[%s0 + $0x380] sm:$0xff]
  %v128 = vld [vmem:[%s0 + $0x388] sm:$0xff]
  %v129 = vld [vmem:[%s0 + $0x390] sm:$0xff]
  %v130 = vld [vmem:[%s0 + $0x398] sm:$0xff]
  %v131 = vld [vmem:[%s0 + $0x3a0] sm:$0xff]
  %v132 = vld [vmem:[%s0 + $0x3a8] sm:$0xff]
  %v133 = vld [vmem:[%s0 + $0x3b0] sm:$0xff]
  %v134 = vld [vmem:[%s0 + $0x3b8] sm:$0xff]
  %v135 = vld [vmem:[%s0 + $0x3c0] sm:$0xff]
  %v136 = vld [vmem:[%s0 + $0x3c8] sm:$0xff]
  %v137 = vld [vmem:[%s0 + $0x3d0] sm:$0xff]
  %v138 = vld [vmem:[%s0 + $0x3d8] sm:$0xff]
  %v139 = vld [vmem:[%s0 + $0x3e0] sm:$0xff]
  %v140 = vld [vmem:[%s0 + $0x3e8] sm:$0xff]
  %v141 = vld [vmem:[%s0 + $0x3f0] sm:$0xff]
  %v142 = vld [vmem:[%s0 + $0x3f8] sm:$0xff]
  %v143 = vld [vmem:[%s0 + $0x400] sm:$0xff]
  %v144 = vld [vmem:[%s0 + $0x408] sm:$0xff]
  %v145 = vld [vmem:[%s0 + $0x410] sm:$0xff]
  %v146 = vld [vmem:[%s0 + $0x418] sm:$0xff]
  %v147 = vld [vmem:[%s0 + $0x420] sm:$0xff]
  %v148 = vld [vmem:[%s0 + $0x428] sm:$0xff]
  %v149 = vld [vmem:[%s0 + $0x430] sm:$0xff]
  %v150 = vld [vmem:[%s0 + $0x438] sm:$0xff]
  %v151 = vld [vmem:[%s0 + $0x440] sm:$0xff]
  %v152 = vld [vmem:[%s0 + $0x448] sm:$0xff]
  %v153 = vld [vmem:[%s0 + $0x450] sm:$0xff]
  %v154 = vld [vmem:[%s0 + $0x458] sm:$0xff]
  %v155 = vld [vmem:[%s0 + $0x460] sm:$0xff]
  %v156 = vld [vmem:[%s0 + $0x468] sm:$0xff]
  %v157 = vld [vmem:[%s0 + $0x470] sm:$0xff]
  %v158 = vld [vmem:[%s0 + $0x478] sm:$0xff]
  %v159 = vld [vmem:[%s0 + $0x480] sm:$0xff]
  %v160 = vld [vmem:[%s0 + $0x488] sm:$0xff]
  %v161 = vld [vmem:[%s0 + $0x490] sm:$0xff]
  %v162 = vld [vmem:[%s0 + $0x498] sm:$0xff]
  %v163 = vld [vmem:[%s0 + $0x4a0] sm:$0xff]
  %v164 = vld [vmem:[%s0 + $0x4a8] sm:$0xff]
  %v165 = vld [vmem:[%s0 + $0x4b0] sm:$0xff]
  %v166 = vld [vmem:[%s0 + $0x4b8] sm:$0xff]
  %v167 = vld [vmem:[%s0 + $0x4c0] sm:$0xff]
  %v168 = vld [vmem:[%s0 + $0x4c8] sm:$0xff]
  %v169 = vld [vmem:[%s0 + $0x4d0] sm:$0xff]
  %v170 = vld [vmem:[%s0 + $0x4d8] sm:$0xff]
  %v171 = vld [vmem:[%s0 + $0x4e0] sm:$0xff]
  %v172 = vld [vmem:[%s0 + $0x4e8] sm:$0xff]
  %v173 = vld [vmem:[%s0 + $0x4f0] sm:$0xff]
  %v174 = vld [vmem:[%s0 + $0x4f8] sm:$0xff]
  %v175 = vld [vmem:[%s0 + $0x500] sm:$0xff]
  %v176 = vld [vmem:[%s0 + $0x508] sm:$0xff]
  %v177 = vld [vmem:[%s0 + $0x510] sm:$0xff]
  %v178 = vld [vmem:[%s0 + $0x518] sm:$0xff]
  %v179 = vld [vmem:[%s0 + $0x520] sm:$0xff]
  %v180 = vld [vmem:[%s0 + $0x528] sm:$0xff]
  %v181 = vld [vmem:[%s0 + $0x530] sm:$0xff]
  %v182 = vld [vmem:[%s0 + $0x538] sm:$0xff]
  %v183 = vld [vmem:[%s0 + $0x540] sm:$0xff]
  %v184 = vld [vmem:[%s0 + $0x548] sm:$0xff]
  %v185 = vld [vmem:[%s0 + $0x550] sm:$0xff]
  %v186 = vld [vmem:[%s0 + $0x558] sm:$0xff]
  %v187 = vld [vmem:[%s0 + $0x560] sm:$0xff]
  %v188 = vld [vmem:[%s0 + $0x568] sm:$0xff]
  %v189 = vld [vmem:[%s0 + $0x570] sm:$0xff]
  %v190 = vld [vmem:[%s0 + $0x578] sm:$0xff]
  %v191 = vld [vmem:[%s0 + $0x580] sm:$0xff]
  %v192 = vld [vmem:[%s0 + $0x588] sm:$0xff]
  %v193 = vld [vmem:[%s0 + $0x590] sm:$0xff]
  %v194 = vld [vmem:[%s0 + $0x598] sm:$0xff]
  %v195 = vld [vmem:[%s0 + $0x5a0] sm:$0xff]
  %v196 = vld [vmem:[%s0 + $0x5a8] sm:$0xff]
  %v197 = vld [vmem:[%s0 + $0x5b0] sm:$0xff]
  %v198 = vld [vmem:[%s0 + $0x5b8] sm:$0xff]
  %v199 = vld [vmem:[%s0 + $0x5c0] sm:$0xff]
  %v200 = vld [vmem:[%s0 + $0x5c8] sm:$0xff]
  %v201 = vld [vmem:[%s0 + $0x5d0] sm:$0xff]
  %v202 = vld [vmem:[%s0 + $0x5d8] sm:$0xff]
  %v203 = vld [vmem:[%s0 + $0x5e0] sm:$0xff]
  %v204 = vld [vmem:[%s0 + $0x5e8] sm:$0xff]
  %v205 = vld [vmem:[%s0 + $0x5f0] sm:$0xff]
  %v206 = vld [vmem:[%s0 + $0x5f8] sm:$0xff]
  %v207 = vld [vmem:[%s0 + $0x600] sm:$0xff]
  %v208 = vld [vmem:[%s0 + $0x608] sm:$0xff]
  %v209 = vld [vmem:[%s0 + $0x610] sm:$0xff]
  %v210 = vld [vmem:[%s0 + $0x618] sm:$0xff]
  %v211 = vld [vmem:[%s0 + $0x620] sm:$0xff]
  %v212 = vld [vmem:[%s0 + $0x628] sm:$0xff]
  %v213 = vld [vmem:[%s0 + $0x630] sm:$0xff]
  %v214 = vld [vmem:[%s0 + $0x638] sm:$0xff]
  %v215 = vld [vmem:[%s0 + $0x640] sm:$0xff]
  %v216 = vld [vmem:[%s0 + $0x648] sm:$0xff]
  %v217 = vld [vmem:[%s0 + $0x650] sm:$0xff]
  %v218 = vld [vmem:[%s0 + $0x658] sm:$0xff]
  %v219 = vld [vmem:[%s0 + $0x660] sm:$0xff]
  %v220 = vld [vmem:[%s0 + $0x668] sm:$0xff]
  %v221 = vld [vmem:[%s0 + $0x670] sm:$0xff]
  %v222 = vld [vmem:[%s0 + $0x678] sm:$0xff]
  %v223 = vld [vmem:[%s0 + $0x680] sm:$0xff]
  %v224 = vld [vmem:[%s0 + $0x688] sm:$0xff]
  %v225 = vld [vmem:[%s0 + $0x690] sm:$0xff]
  %v226 = vld [vmem:[%s0 + $0x698] sm:$0xff]
  %v227 = vld [vmem:[%s0 + $0x6a0] sm:$0xff]
  %v228 = vld [vmem:[%s0 + $0x6a8] sm:$0xff]
  %v229 = vld [vmem:[%s0 + $0x6b0] sm:$0xff]
  %v230 = vld [vmem:[%s0 + $0x6b8] sm:$0xff]
  %v231 = vld [vmem:[%s0 + $0x6c0] sm:$0xff]
  %v232 = vld [vmem:[%s0 + $0x6c8] sm:$0xff]
  %v233 = vld [vmem:[%s0 + $0x6d0] sm:$0xff]
  %v234 = vld [vmem:[%s0 + $0x6d8] sm:$0xff]
  %v235 = vld [vmem:[%s0 + $0x6e0] sm:$0xff]
  %v236 = vld [vmem:[%s0 + $0x6e8] sm:$0xff]
  %v237 = vld [vmem:[%s0 + $0x6f0] sm:$0xff]
  %v238 = vld [vmem:[%s0 + $0x6f8] sm:$0xff]
  %v239 = vld [vmem:[%s0 + $0x700] sm:$0xff]
  %v240 = vld [vmem:[%s0 + $0x708] sm:$0xff]
  %v241 = vld [vmem:[%s0 + $0x710] sm:$0xff]
  %v242 = vld [vmem:[%s0 + $0x718] sm:$0xff]
  %v243 = vld [vmem:[%s0 + $0x720] sm:$0xff]
  %v244 = vld [vmem:[%s0 + $0x728] sm:$0xff]
  %v245 = vld [vmem:[%s0 + $0x730] sm:$0xff]
  %v246 = vld [vmem:[%s0 + $0x738] sm:$0xff]
  %v247 = vld [vmem:[%s0 + $0x740] sm:$0xff]
  %v248 = vld [vmem:[%s0 + $0x748] sm:$0xff]
  %v249 = vld [vmem:[%s0 + $0x750] sm:$0xff]
  %v250 = vld [vmem:[%s0 + $0x758] sm:$0xff]
  %v251 = vld [vmem:[%s0 + $0x760] sm:$0xff]
  %v252 = vld [vmem:[%s0 + $0x768] sm:$0xff]
  %v253 = vld [vmem:[%s0 + $0x770] sm:$0xff]
  %v254 = vld [vmem:[%s0 + $0x778] sm:$0xff]
  %v255 = vld [vmem:[%s0 + $0x780] sm:$0xff]
  %v256 = vld [vmem:[%s0 + $0x788] sm:$0xff]
  %v257 = vld [vmem:[%s0 + $0x790] sm:$0xff]
  %v258 = vld [vmem:[%s0 + $0x798] sm:$0xff]
  %v259 = vld [vmem:[%s0 + $0x7a0] sm:$0xff]
  %v260 = vld [vmem:[%s0 + $0x7a8] sm:$0xff]
  %v261 = vld [vmem:[%s0 + $0x7b0] sm:$0xff]
  %v262 = vld [vmem:[%s0 + $0x7b8] sm:$0xff]
  %v263 = vld [vmem:[%s0 + $0x7c0] sm:$0xff]
  %v264 = vld [vmem:[%s0 + $0x7c8] sm:$0xff]
  %v265 = vld [vmem:[%s0 + $0x7d0] sm:$0xff]
  %v266 = vld [vmem:[%s0 + $0x7d8] sm:$0xff]
  %v267 = vld [vmem:[%s0 + $0x7e0] sm:$0xff]
  %v268 = vld [vmem:[%s0 + $0x7e8] sm:$0xff]
  %v269 = vld [vmem:[%s0 + $0x7f0] sm:$0xff]
  %v270 = vld [vmem:[%s0 + $0x7f8] sm:$0xff]
  %v271 = vld [vmem:[%s0 + $0x800] sm:$0xff]
  %v272 = vld [vmem:[%s0 + $0x808] sm:$0xff]
  %v273 = vld [vmem:[%s0 + $0x810] sm:$0xff]
  %v274 = vld [vmem:[%s0 + $0x818] sm:$0xff]
  %v275 = vld [vmem:[%s0 + $0x820] sm:$0xff]
  %v276 = vld [vmem:[%s0 + $0x828] sm:$0xff]
  %v277 = vld [vmem:[%s0 + $0x830] sm:$0xff]
  %v278 = vld [vmem:[%s0 + $0x838] sm:$0xff]
  %v279 = vld [vmem:[%s0 + $0x840] sm:$0xff]
  %v280 = vld [vmem:[%s0 + $0x848] sm:$0xff]
  %v281 = vld [vmem:[%s0 + $0x850] sm:$0xff]
  %v282 = vld [vmem:[%s0 + $0x858] sm:$0xff]
  %v283 = vld [vmem:[%s0 + $0x860] sm:$0xff]
  %v284 = vld [vmem:[%s0 + $0x868] sm:$0xff]
  %v285 = vld [vmem:[%s0 + $0x870] sm:$0xff]
  %v286 = vld [vmem:[%s0 + $0x878] sm:$0xff]
  %v287 = vld [vmem:[%s0 + $0x880] sm:$0xff]
  %v288 = vld [vmem:[%s0 + $0x888] sm:$0xff]
  %v289 = vld [vmem:[%s0 + $0x890] sm:$0xff]
  %v290 = vld [vmem:[%s0 + $0x898] sm:$0xff]
  %v291 = vld [vmem:[%s0 + $0x8a0] sm:$0xff]
  %v292 = vld [vmem:[%s0 + $0x8a8] sm:$0xff]
  %v293 = vld [vmem:[%s0 + $0x8b0] sm:$0xff]
  %v294 = vld [vmem:[%s0 + $0x8b8] sm:$0xff]
  %v295 = vld [vmem:[%s0 + $0x8c0] sm:$0xff]
  %v296 = vld [vmem:[%s0 + $0x8c8] sm:$0xff]
  %v297 = vld [vmem:[%s0 + $0x8d0] sm:$0xff]
  %v298 = vld [vmem:[%s0 + $0x8d8] sm:$0xff]
  %v299 = vld [vmem:[%s0 + $0x8e0] sm:$0xff]
  %v300 = vld [vmem:[%s0 + $0x8e8] sm:$0xff]
  %v301 = vld [vmem:[%s0 + $0x8f0] sm:$0xff]
  %v302 = vld [vmem:[%s0 + $0x8f8] sm:$0xff]
  %v303 = vpack.c.bf16 %v33, %v15
  %v304 = vpack.c.bf16 %v34, %v16
  %v305 = vpack.c.bf16 %v35, %v17
  %v306 = vpack.c.bf16 %v36, %v18
  %v307 = vpack.c.bf16 %v37, %v19
  %v308 = vpack.c.bf16 %v38, %v20
  %v309 = vpack.c.bf16 %v39, %v21
  %v310 = vpack.c.bf16 %v40, %v22
  %v311 = vpack.c.bf16 %v41, %v23
  %v312 = vpack.c.bf16 %v42, %v24
  %v313 = vpack.c.bf16 %v43, %v25
  %v314 = vpack.c.bf16 %v44, %v26
  %v315 = vpack.c.bf16 %v45, %v27
  %v316 = vpack.c.bf16 %v46, %v28
  %v317 = vpack.c.bf16 %v47, %v29
  %v318 = vpack.c.bf16 %v48, %v30
  %v319 = vpack.c.bf16 %v49, %v31
  %v320 = vpack.c.bf16 %v50, %v32
  %v321 = vpack.c.bf16 %v69, %v51
  %v322 = vpack.c.bf16 %v70, %v52
  %v323 = vpack.c.bf16 %v71, %v53
  %v324 = vpack.c.bf16 %v72, %v54
  %v325 = vpack.c.bf16 %v73, %v55
  %v326 = vpack.c.bf16 %v74, %v56
  %v327 = vpack.c.bf16 %v75, %v57
  %v328 = vpack.c.bf16 %v76, %v58
  %v329 = vpack.c.bf16 %v77, %v59
  %v330 = vpack.c.bf16 %v78, %v60
  %v331 = vpack.c.bf16 %v79, %v61
  %v332 = vpack.c.bf16 %v80, %v62
  %v333 = vpack.c.bf16 %v81, %v63
  %v334 = vpack.c.bf16 %v82, %v64
  %v335 = vpack.c.bf16 %v83, %v65
  %v336 = vpack.c.bf16 %v84, %v66
  %v337 = vpack.c.bf16 %v85, %v67
  %v338 = vpack.c.bf16 %v86, %v68
  %v339 = vpack.c.bf16 %v105, %v87
  %v340 = vpack.c.bf16 %v106, %v88
  %v341 = vpack.c.bf16 %v107, %v89
  %v342 = vpack.c.bf16 %v108, %v90
  %v343 = vpack.c.bf16 %v109, %v91
  %v344 = vpack.c.bf16 %v110, %v92
  %v345 = vpack.c.bf16 %v111, %v93
  %v346 = vpack.c.bf16 %v112, %v94
  %v347 = vpack.c.bf16 %v113, %v95
  %v348 = vpack.c.bf16 %v114, %v96
  %v349 = vpack.c.bf16 %v115, %v97
  %v350 = vpack.c.bf16 %v116, %v98
  %v351 = vpack.c.bf16 %v117, %v99
  %v352 = vpack.c.bf16 %v118, %v100
  %v353 = vpack.c.bf16 %v119, %v101
  %v354 = vpack.c.bf16 %v120, %v102
  %v355 = vpack.c.bf16 %v121, %v103
  %v356 = vpack.c.bf16 %v122, %v104
  %v357 = vpack.c.bf16 %v141, %v123
  %v358 = vpack.c.bf16 %v142, %v124
  %v359 = vpack.c.bf16 %v143, %v125
  %v360 = vpack.c.bf16 %v144, %v126
  %v361 = vpack.c.bf16 %v145, %v127
  %v362 = vpack.c.bf16 %v146, %v128
  %v363 = vpack.c.bf16 %v147, %v129
  %v364 = vpack.c.bf16 %v148, %v130
  %v365 = vpack.c.bf16 %v149, %v131
  %v366 = vpack.c.bf16 %v150, %v132
  %v367 = vpack.c.bf16 %v151, %v133
  %v368 = vpack.c.bf16 %v152, %v134
  %v369 = vpack.c.bf16 %v153, %v135
  %v370 = vpack.c.bf16 %v154, %v136
  %v371 = vpack.c.bf16 %v155, %v137
  %v372 = vpack.c.bf16 %v156, %v138
  %v373 = vpack.c.bf16 %v157, %v139
  %v374 = vpack.c.bf16 %v158, %v140
  %v375 = vpack.c.bf16 %v177, %v159
  %v376 = vpack.c.bf16 %v178, %v160
  %v377 = vpack.c.bf16 %v179, %v161
  %v378 = vpack.c.bf16 %v180, %v162
  %v379 = vpack.c.bf16 %v181, %v163
  %v380 = vpack.c.bf16 %v182, %v164
  %v381 = vpack.c.bf16 %v183, %v165
  %v382 = vpack.c.bf16 %v184, %v166
  %v383 = vpack.c.bf16 %v185, %v167
  %v384 = vpack.c.bf16 %v186, %v168
  %v385 = vpack.c.bf16 %v187, %v169
  %v386 = vpack.c.bf16 %v188, %v170
  %v387 = vpack.c.bf16 %v189, %v171
  %v388 = vpack.c.bf16 %v190, %v172
  %v389 = vpack.c.bf16 %v191, %v173
  %v390 = vpack.c.bf16 %v192, %v174
  %v391 = vpack.c.bf16 %v193, %v175
  %v392 = vpack.c.bf16 %v194, %v176
  %v393 = vpack.c.bf16 %v213, %v195
  %v394 = vpack.c.bf16 %v214, %v196
  %v395 = vpack.c.bf16 %v215, %v197
  %v396 = vpack.c.bf16 %v216, %v198
  %v397 = vpack.c.bf16 %v217, %v199
  %v398 = vpack.c.bf16 %v218, %v200
  %v399 = vpack.c.bf16 %v219, %v201
  %v400 = vpack.c.bf16 %v220, %v202
  %v401 = vpack.c.bf16 %v221, %v203
  %v402 = vpack.c.bf16 %v222, %v204
  %v403 = vpack.c.bf16 %v223, %v205
  %v404 = vpack.c.bf16 %v224, %v206
  %v405 = vpack.c.bf16 %v225, %v207
  %v406 = vpack.c.bf16 %v226, %v208
  %v407 = vpack.c.bf16 %v227, %v209
  %v408 = vpack.c.bf16 %v228, %v210
  %v409 = vpack.c.bf16 %v229, %v211
  %v410 = vpack.c.bf16 %v230, %v212
  %v411 = vpack.c.bf16 %v249, %v231
  %v412 = vpack.c.bf16 %v250, %v232
  %v413 = vpack.c.bf16 %v251, %v233
  %v414 = vpack.c.bf16 %v252, %v234
  %v415 = vpack.c.bf16 %v253, %v235
  %v416 = vpack.c.bf16 %v254, %v236
  %v417 = vpack.c.bf16 %v255, %v237
  %v418 = vpack.c.bf16 %v256, %v238
  %v419 = vpack.c.bf16 %v257, %v239
  %v420 = vpack.c.bf16 %v258, %v240
  %v421 = vpack.c.bf16 %v259, %v241
  %v422 = vpack.c.bf16 %v260, %v242
  %v423 = vpack.c.bf16 %v261, %v243
  %v424 = vpack.c.bf16 %v262, %v244
  %v425 = vpack.c.bf16 %v263, %v245
  %v426 = vpack.c.bf16 %v264, %v246
  %v427 = vpack.c.bf16 %v265, %v247
  %v428 = vpack.c.bf16 %v266, %v248
  %v429 = vpack.c.bf16 %v285, %v267
  %v430 = vpack.c.bf16 %v286, %v268
  %v431 = vpack.c.bf16 %v287, %v269
  %v432 = vpack.c.bf16 %v288, %v270
  %v433 = vpack.c.bf16 %v289, %v271
  %v434 = vpack.c.bf16 %v290, %v272
  %v435 = vpack.c.bf16 %v291, %v273
  %v436 = vpack.c.bf16 %v292, %v274
  %v437 = vpack.c.bf16 %v293, %v275
  %v438 = vpack.c.bf16 %v294, %v276
  %v439 = vpack.c.bf16 %v295, %v277
  %v440 = vpack.c.bf16 %v296, %v278
  %v441 = vpack.c.bf16 %v297, %v279
  %v442 = vpack.c.bf16 %v298, %v280
  %v443 = vpack.c.bf16 %v299, %v281
  %v444 = vpack.c.bf16 %v300, %v282
  %v445 = vpack.c.bf16 %v301, %v283
  %v446 = vpack.c.bf16 %v302, %v284
  %v447 = vld [vmem:[%s1] sm:$0xf]
  %v448 = vld [vmem:[%s1 + $0x4] sm:$0xf]
  %v449 = vld [vmem:[%s1 + $0x8] sm:$0xf]
  %v450 = vld [vmem:[%s1 + $0xc] sm:$0xf]
  %v451 = vld [vmem:[%s1 + $0x10] sm:$0xf]
  %v452 = vld [vmem:[%s1 + $0x14] sm:$0xf]
  %v453 = vld [vmem:[%s1 + $0x18] sm:$0xf]
  %v454 = vld [vmem:[%s1 + $0x1c] sm:$0xf]
  %v455 = vld [vmem:[%s1 + $0x20] sm:$0xf]
  %v456 = vld [vmem:[%s1 + $0x24] sm:$0xf]
  %v457 = vld [vmem:[%s1 + $0x28] sm:$0xf]
  %v458 = vld [vmem:[%s1 + $0x2c] sm:$0xf]
  %v459 = vld [vmem:[%s1 + $0x30] sm:$0xf]
  %v460 = vld [vmem:[%s1 + $0x34] sm:$0xf]
  %v461 = vld [vmem:[%s1 + $0x38] sm:$0xf]
  %v462 = vld [vmem:[%s1 + $0x3c] sm:$0xf]
  %v463 = vld [vmem:[%s1 + $0x40] sm:$0xf]
  %v464 = vld [vmem:[%s1 + $0x44] sm:$0xf]
  %v465 = vld [vmem:[%s1 + $0x48] sm:$0xf]
  %v466 = vld [vmem:[%s1 + $0x4c] sm:$0xf]
  %v467 = vld [vmem:[%s1 + $0x50] sm:$0xf]
  %v468 = vld [vmem:[%s1 + $0x54] sm:$0xf]
  %v469 = vld [vmem:[%s1 + $0x58] sm:$0xf]
  %v470 = vld [vmem:[%s1 + $0x5c] sm:$0xf]
  %v471 = vld [vmem:[%s1 + $0x60] sm:$0xf]
  %v472 = vld [vmem:[%s1 + $0x64] sm:$0xf]
  %v473 = vld [vmem:[%s1 + $0x68] sm:$0xf]
  %v474 = vld [vmem:[%s1 + $0x6c] sm:$0xf]
  %v475 = vld [vmem:[%s1 + $0x70] sm:$0xf]
  %v476 = vld [vmem:[%s1 + $0x74] sm:$0xf]
  %v477 = vld [vmem:[%s1 + $0x78] sm:$0xf]
  %v478 = vld [vmem:[%s1 + $0x7c] sm:$0xf]
  %v479 = vld [vmem:[%s1 + $0x80] sm:$0xf]
  %v480 = vld [vmem:[%s1 + $0x84] sm:$0xf]
  %v481 = vld [vmem:[%s1 + $0x88] sm:$0xf]
  %v482 = vld [vmem:[%s1 + $0x8c] sm:$0xf]
  %v483 = vld [vmem:[%s1 + $0x90] sm:$0xf]
  %v484 = vld [vmem:[%s1 + $0x94] sm:$0xf]
  %v485 = vld [vmem:[%s1 + $0x98] sm:$0xf]
  %v486 = vld [vmem:[%s1 + $0x9c] sm:$0xf]
  %v487 = vld [vmem:[%s1 + $0xa0] sm:$0xf]
  %v488 = vld [vmem:[%s1 + $0xa4] sm:$0xf]
  %v489 = vld [vmem:[%s1 + $0xa8] sm:$0xf]
  %v490 = vld [vmem:[%s1 + $0xac] sm:$0xf]
  %v491 = vld [vmem:[%s1 + $0xb0] sm:$0xf]
  %v492 = vld [vmem:[%s1 + $0xb4] sm:$0xf]
  %v493 = vld [vmem:[%s1 + $0xb8] sm:$0xf]
  %v494 = vld [vmem:[%s1 + $0xbc] sm:$0xf]
  %v495 = vld [vmem:[%s1 + $0xc0] sm:$0xf]
  %v496 = vld [vmem:[%s1 + $0xc4] sm:$0xf]
  %v497 = vld [vmem:[%s1 + $0xc8] sm:$0xf]
  %v498 = vld [vmem:[%s1 + $0xcc] sm:$0xf]
  %v499 = vld [vmem:[%s1 + $0xd0] sm:$0xf]
  %v500 = vld [vmem:[%s1 + $0xd4] sm:$0xf]
  %v501 = vld [vmem:[%s1 + $0xd8] sm:$0xf]
  %v502 = vld [vmem:[%s1 + $0xdc] sm:$0xf]
  %v503 = vld [vmem:[%s1 + $0xe0] sm:$0xf]
  %v504 = vld [vmem:[%s1 + $0xe4] sm:$0xf]
  %v505 = vld [vmem:[%s1 + $0xe8] sm:$0xf]
  %v506 = vld [vmem:[%s1 + $0xec] sm:$0xf]
  %v507 = vld [vmem:[%s1 + $0xf0] sm:$0xf]
  %v508 = vld [vmem:[%s1 + $0xf4] sm:$0xf]
  %v509 = vld [vmem:[%s1 + $0xf8] sm:$0xf]
  %v510 = vld [vmem:[%s1 + $0xfc] sm:$0xf]
  %v511 = vld [vmem:[%s1 + $0x100] sm:$0xf]
  %v512 = vld [vmem:[%s1 + $0x104] sm:$0xf]
  %v513 = vld [vmem:[%s1 + $0x108] sm:$0xf]
  %v514 = vld [vmem:[%s1 + $0x10c] sm:$0xf]
  %v515 = vld [vmem:[%s1 + $0x110] sm:$0xf]
  %v516 = vld [vmem:[%s1 + $0x114] sm:$0xf]
  %v517 = vld [vmem:[%s1 + $0x118] sm:$0xf]
  %v518 = vld [vmem:[%s1 + $0x11c] sm:$0xf]
  %v519 = vld [vmem:[%s1 + $0x120] sm:$0xf]
  %v520 = vld [vmem:[%s1 + $0x124] sm:$0xf]
  %v521 = vld [vmem:[%s1 + $0x128] sm:$0xf]
  %v522 = vld [vmem:[%s1 + $0x12c] sm:$0xf]
  %v523 = vld [vmem:[%s1 + $0x130] sm:$0xf]
  %v524 = vld [vmem:[%s1 + $0x134] sm:$0xf]
  %v525 = vld [vmem:[%s1 + $0x138] sm:$0xf]
  %v526 = vld [vmem:[%s1 + $0x13c] sm:$0xf]
  %v527 = vld [vmem:[%s1 + $0x140] sm:$0xf]
  %v528 = vld [vmem:[%s1 + $0x144] sm:$0xf]
  %v529 = vld [vmem:[%s1 + $0x148] sm:$0xf]
  %v530 = vld [vmem:[%s1 + $0x14c] sm:$0xf]
  %v531 = vld [vmem:[%s1 + $0x150] sm:$0xf]
  %v532 = vld [vmem:[%s1 + $0x154] sm:$0xf]
  %v533 = vld [vmem:[%s1 + $0x158] sm:$0xf]
  %v534 = vld [vmem:[%s1 + $0x15c] sm:$0xf]
  %v535 = vld [vmem:[%s1 + $0x160] sm:$0xf]
  %v536 = vld [vmem:[%s1 + $0x164] sm:$0xf]
  %v537 = vld [vmem:[%s1 + $0x168] sm:$0xf]
  %v538 = vld [vmem:[%s1 + $0x16c] sm:$0xf]
  %v539 = vld [vmem:[%s1 + $0x170] sm:$0xf]
  %v540 = vld [vmem:[%s1 + $0x174] sm:$0xf]
  %v541 = vld [vmem:[%s1 + $0x178] sm:$0xf]
  %v542 = vld [vmem:[%s1 + $0x17c] sm:$0xf]
  %v543 = vld [vmem:[%s1 + $0x180] sm:$0xf]
  %v544 = vld [vmem:[%s1 + $0x184] sm:$0xf]
  %v545 = vld [vmem:[%s1 + $0x188] sm:$0xf]
  %v546 = vld [vmem:[%s1 + $0x18c] sm:$0xf]
  %v547 = vld [vmem:[%s1 + $0x190] sm:$0xf]
  %v548 = vld [vmem:[%s1 + $0x194] sm:$0xf]
  %v549 = vld [vmem:[%s1 + $0x198] sm:$0xf]
  %v550 = vld [vmem:[%s1 + $0x19c] sm:$0xf]
  %v551 = vld [vmem:[%s1 + $0x1a0] sm:$0xf]
  %v552 = vld [vmem:[%s1 + $0x1a4] sm:$0xf]
  %v553 = vld [vmem:[%s1 + $0x1a8] sm:$0xf]
  %v554 = vld [vmem:[%s1 + $0x1ac] sm:$0xf]
  %v555 = vld [vmem:[%s1 + $0x1b0] sm:$0xf]
  %v556 = vld [vmem:[%s1 + $0x1b4] sm:$0xf]
  %v557 = vld [vmem:[%s1 + $0x1b8] sm:$0xf]
  %v558 = vld [vmem:[%s1 + $0x1bc] sm:$0xf]
  %v559 = vld [vmem:[%s1 + $0x1c0] sm:$0xf]
  %v560 = vld [vmem:[%s1 + $0x1c4] sm:$0xf]
  %v561 = vld [vmem:[%s1 + $0x1c8] sm:$0xf]
  %v562 = vld [vmem:[%s1 + $0x1cc] sm:$0xf]
  %v563 = vld [vmem:[%s1 + $0x1d0] sm:$0xf]
  %v564 = vld [vmem:[%s1 + $0x1d4] sm:$0xf]
  %v565 = vld [vmem:[%s1 + $0x1d8] sm:$0xf]
  %v566 = vld [vmem:[%s1 + $0x1dc] sm:$0xf]
  %v567 = vld [vmem:[%s1 + $0x1e0] sm:$0xf]
  %v568 = vld [vmem:[%s1 + $0x1e4] sm:$0xf]
  %v569 = vld [vmem:[%s1 + $0x1e8] sm:$0xf]
  %v570 = vld [vmem:[%s1 + $0x1ec] sm:$0xf]
  %v571 = vld [vmem:[%s1 + $0x1f0] sm:$0xf]
  %v572 = vld [vmem:[%s1 + $0x1f4] sm:$0xf]
  %v573 = vld [vmem:[%s1 + $0x1f8] sm:$0xf]
  %v574 = vld [vmem:[%s1 + $0x1fc] sm:$0xf]
  %v575 = vld [vmem:[%s1 + $0x200] sm:$0xf]
  %v576 = vld [vmem:[%s1 + $0x204] sm:$0xf]
  %v577 = vld [vmem:[%s1 + $0x208] sm:$0xf]
  %v578 = vld [vmem:[%s1 + $0x20c] sm:$0xf]
  %v579 = vld [vmem:[%s1 + $0x210] sm:$0xf]
  %v580 = vld [vmem:[%s1 + $0x214] sm:$0xf]
  %v581 = vld [vmem:[%s1 + $0x218] sm:$0xf]
  %v582 = vld [vmem:[%s1 + $0x21c] sm:$0xf]
  %v583 = vld [vmem:[%s1 + $0x220] sm:$0xf]
  %v584 = vld [vmem:[%s1 + $0x224] sm:$0xf]
  %v585 = vld [vmem:[%s1 + $0x228] sm:$0xf]
  %v586 = vld [vmem:[%s1 + $0x22c] sm:$0xf]
  %v587 = vld [vmem:[%s1 + $0x230] sm:$0xf]
  %v588 = vld [vmem:[%s1 + $0x234] sm:$0xf]
  %v589 = vld [vmem:[%s1 + $0x238] sm:$0xf]
  %v590 = vld [vmem:[%s1 + $0x23c] sm:$0xf]
  %v591 = vld [vmem:[%s1 + $0x240] sm:$0xf]
  %v592 = vld [vmem:[%s1 + $0x244] sm:$0xf]
  %v593 = vld [vmem:[%s1 + $0x248] sm:$0xf]
  %v594 = vld [vmem:[%s1 + $0x24c] sm:$0xf]
  %v595 = vld [vmem:[%s1 + $0x250] sm:$0xf]
  %v596 = vld [vmem:[%s1 + $0x254] sm:$0xf]
  %v597 = vld [vmem:[%s1 + $0x258] sm:$0xf]
  %v598 = vld [vmem:[%s1 + $0x25c] sm:$0xf]
  %v599 = vld [vmem:[%s1 + $0x260] sm:$0xf]
  %v600 = vld [vmem:[%s1 + $0x264] sm:$0xf]
  %v601 = vld [vmem:[%s1 + $0x268] sm:$0xf]
  %v602 = vld [vmem:[%s1 + $0x26c] sm:$0xf]
  %v603 = vld [vmem:[%s1 + $0x270] sm:$0xf]
  %v604 = vld [vmem:[%s1 + $0x274] sm:$0xf]
  %v605 = vld [vmem:[%s1 + $0x278] sm:$0xf]
  %v606 = vld [vmem:[%s1 + $0x27c] sm:$0xf]
  %v607 = vld [vmem:[%s1 + $0x280] sm:$0xf]
  %v608 = vld [vmem:[%s1 + $0x284] sm:$0xf]
  %v609 = vld [vmem:[%s1 + $0x288] sm:$0xf]
  %v610 = vld [vmem:[%s1 + $0x28c] sm:$0xf]
  %v611 = vld [vmem:[%s1 + $0x290] sm:$0xf]
  %v612 = vld [vmem:[%s1 + $0x294] sm:$0xf]
  %v613 = vld [vmem:[%s1 + $0x298] sm:$0xf]
  %v614 = vld [vmem:[%s1 + $0x29c] sm:$0xf]
  %v615 = vld [vmem:[%s1 + $0x2a0] sm:$0xf]
  %v616 = vld [vmem:[%s1 + $0x2a4] sm:$0xf]
  %v617 = vld [vmem:[%s1 + $0x2a8] sm:$0xf]
  %v618 = vld [vmem:[%s1 + $0x2ac] sm:$0xf]
  %v619 = vld [vmem:[%s1 + $0x2b0] sm:$0xf]
  %v620 = vld [vmem:[%s1 + $0x2b4] sm:$0xf]
  %v621 = vld [vmem:[%s1 + $0x2b8] sm:$0xf]
  %v622 = vld [vmem:[%s1 + $0x2bc] sm:$0xf]
  %v623 = vld [vmem:[%s1 + $0x2c0] sm:$0xf]
  %v624 = vld [vmem:[%s1 + $0x2c4] sm:$0xf]
  %v625 = vld [vmem:[%s1 + $0x2c8] sm:$0xf]
  %v626 = vld [vmem:[%s1 + $0x2cc] sm:$0xf]
  %v627 = vld [vmem:[%s1 + $0x2d0] sm:$0xf]
  %v628 = vld [vmem:[%s1 + $0x2d4] sm:$0xf]
  %v629 = vld [vmem:[%s1 + $0x2d8] sm:$0xf]
  %v630 = vld [vmem:[%s1 + $0x2dc] sm:$0xf]
  %v631 = vld [vmem:[%s1 + $0x2e0] sm:$0xf]
  %v632 = vld [vmem:[%s1 + $0x2e4] sm:$0xf]
  %v633 = vld [vmem:[%s1 + $0x2e8] sm:$0xf]
  %v634 = vld [vmem:[%s1 + $0x2ec] sm:$0xf]
  %v635 = vld [vmem:[%s1 + $0x2f0] sm:$0xf]
  %v636 = vld [vmem:[%s1 + $0x2f4] sm:$0xf]
  %v637 = vld [vmem:[%s1 + $0x2f8] sm:$0xf]
  %v638 = vld [vmem:[%s1 + $0x2fc] sm:$0xf]
  %v639 = vld [vmem:[%s1 + $0x300] sm:$0xf]
  %v640 = vld [vmem:[%s1 + $0x304] sm:$0xf]
  %v641 = vld [vmem:[%s1 + $0x308] sm:$0xf]
  %v642 = vld [vmem:[%s1 + $0x30c] sm:$0xf]
  %v643 = vld [vmem:[%s1 + $0x310] sm:$0xf]
  %v644 = vld [vmem:[%s1 + $0x314] sm:$0xf]
  %v645 = vld [vmem:[%s1 + $0x318] sm:$0xf]
  %v646 = vld [vmem:[%s1 + $0x31c] sm:$0xf]
  %v647 = vld [vmem:[%s1 + $0x320] sm:$0xf]
  %v648 = vld [vmem:[%s1 + $0x324] sm:$0xf]
  %v649 = vld [vmem:[%s1 + $0x328] sm:$0xf]
  %v650 = vld [vmem:[%s1 + $0x32c] sm:$0xf]
  %v651 = vld [vmem:[%s1 + $0x330] sm:$0xf]
  %v652 = vld [vmem:[%s1 + $0x334] sm:$0xf]
  %v653 = vld [vmem:[%s1 + $0x338] sm:$0xf]
  %v654 = vld [vmem:[%s1 + $0x33c] sm:$0xf]
  %v655 = vld [vmem:[%s1 + $0x340] sm:$0xf]
  %v656 = vld [vmem:[%s1 + $0x344] sm:$0xf]
  %v657 = vld [vmem:[%s1 + $0x348] sm:$0xf]
  %v658 = vld [vmem:[%s1 + $0x34c] sm:$0xf]
  %v659 = vld [vmem:[%s1 + $0x350] sm:$0xf]
  %v660 = vld [vmem:[%s1 + $0x354] sm:$0xf]
  %v661 = vld [vmem:[%s1 + $0x358] sm:$0xf]
  %v662 = vld [vmem:[%s1 + $0x35c] sm:$0xf]
  %v663 = vld [vmem:[%s1 + $0x360] sm:$0xf]
  %v664 = vld [vmem:[%s1 + $0x364] sm:$0xf]
  %v665 = vld [vmem:[%s1 + $0x368] sm:$0xf]
  %v666 = vld [vmem:[%s1 + $0x36c] sm:$0xf]
  %v667 = vld [vmem:[%s1 + $0x370] sm:$0xf]
  %v668 = vld [vmem:[%s1 + $0x374] sm:$0xf]
  %v669 = vld [vmem:[%s1 + $0x378] sm:$0xf]
  %v670 = vld [vmem:[%s1 + $0x37c] sm:$0xf]
  %v671 = vld [vmem:[%s1 + $0x380] sm:$0xf]
  %v672 = vld [vmem:[%s1 + $0x384] sm:$0xf]
  %v673 = vld [vmem:[%s1 + $0x388] sm:$0xf]
  %v674 = vld [vmem:[%s1 + $0x38c] sm:$0xf]
  %v675 = vld [vmem:[%s1 + $0x390] sm:$0xf]
  %v676 = vld [vmem:[%s1 + $0x394] sm:$0xf]
  %v677 = vld [vmem:[%s1 + $0x398] sm:$0xf]
  %v678 = vld [vmem:[%s1 + $0x39c] sm:$0xf]
  %v679 = vld [vmem:[%s1 + $0x3a0] sm:$0xf]
  %v680 = vld [vmem:[%s1 + $0x3a4] sm:$0xf]
  %v681 = vld [vmem:[%s1 + $0x3a8] sm:$0xf]
  %v682 = vld [vmem:[%s1 + $0x3ac] sm:$0xf]
  %v683 = vld [vmem:[%s1 + $0x3b0] sm:$0xf]
  %v684 = vld [vmem:[%s1 + $0x3b4] sm:$0xf]
  %v685 = vld [vmem:[%s1 + $0x3b8] sm:$0xf]
  %v686 = vld [vmem:[%s1 + $0x3bc] sm:$0xf]
  %v687 = vld [vmem:[%s1 + $0x3c0] sm:$0xf]
  %v688 = vld [vmem:[%s1 + $0x3c4] sm:$0xf]
  %v689 = vld [vmem:[%s1 + $0x3c8] sm:$0xf]
  %v690 = vld [vmem:[%s1 + $0x3cc] sm:$0xf]
  %v691 = vld [vmem:[%s1 + $0x3d0] sm:$0xf]
  %v692 = vld [vmem:[%s1 + $0x3d4] sm:$0xf]
  %v693 = vld [vmem:[%s1 + $0x3d8] sm:$0xf]
  %v694 = vld [vmem:[%s1 + $0x3dc] sm:$0xf]
  %v695 = vld [vmem:[%s1 + $0x3e0] sm:$0xf]
  %v696 = vld [vmem:[%s1 + $0x3e4] sm:$0xf]
  %v697 = vld [vmem:[%s1 + $0x3e8] sm:$0xf]
  %v698 = vld [vmem:[%s1 + $0x3ec] sm:$0xf]
  %v699 = vld [vmem:[%s1 + $0x3f0] sm:$0xf]
  %v700 = vld [vmem:[%s1 + $0x3f4] sm:$0xf]
  %v701 = vld [vmem:[%s1 + $0x3f8] sm:$0xf]
  %v702 = vld [vmem:[%s1 + $0x3fc] sm:$0xf]
  %v703 = vld [vmem:[%s1 + $0x400] sm:$0xf]
  %v704 = vld [vmem:[%s1 + $0x404] sm:$0xf]
  %v705 = vld [vmem:[%s1 + $0x408] sm:$0xf]
  %v706 = vld [vmem:[%s1 + $0x40c] sm:$0xf]
  %v707 = vld [vmem:[%s1 + $0x410] sm:$0xf]
  %v708 = vld [vmem:[%s1 + $0x414] sm:$0xf]
  %v709 = vld [vmem:[%s1 + $0x418] sm:$0xf]
  %v710 = vld [vmem:[%s1 + $0x41c] sm:$0xf]
  %v711 = vld [vmem:[%s1 + $0x420] sm:$0xf]
  %v712 = vld [vmem:[%s1 + $0x424] sm:$0xf]
  %v713 = vld [vmem:[%s1 + $0x428] sm:$0xf]
  %v714 = vld [vmem:[%s1 + $0x42c] sm:$0xf]
  %v715 = vld [vmem:[%s1 + $0x430] sm:$0xf]
  %v716 = vld [vmem:[%s1 + $0x434] sm:$0xf]
  %v717 = vld [vmem:[%s1 + $0x438] sm:$0xf]
  %v718 = vld [vmem:[%s1 + $0x43c] sm:$0xf]
  %v719 = vld [vmem:[%s1 + $0x440] sm:$0xf]
  %v720 = vld [vmem:[%s1 + $0x444] sm:$0xf]
  %v721 = vld [vmem:[%s1 + $0x448] sm:$0xf]
  %v722 = vld [vmem:[%s1 + $0x44c] sm:$0xf]
  %v723 = vld [vmem:[%s1 + $0x450] sm:$0xf]
  %v724 = vld [vmem:[%s1 + $0x454] sm:$0xf]
  %v725 = vld [vmem:[%s1 + $0x458] sm:$0xf]
  %v726 = vld [vmem:[%s1 + $0x45c] sm:$0xf]
  %v727 = vld [vmem:[%s1 + $0x460] sm:$0xf]
  %v728 = vld [vmem:[%s1 + $0x464] sm:$0xf]
  %v729 = vld [vmem:[%s1 + $0x468] sm:$0xf]
  %v730 = vld [vmem:[%s1 + $0x46c] sm:$0xf]
  %v731 = vld [vmem:[%s1 + $0x470] sm:$0xf]
  %v732 = vld [vmem:[%s1 + $0x474] sm:$0xf]
  %v733 = vld [vmem:[%s1 + $0x478] sm:$0xf]
  %v734 = vld [vmem:[%s1 + $0x47c] sm:$0xf]
  %v735 = vld [vmem:[%s2] sm:$0x1]
  %v737 = vlaneseq
  %v738 = vshrl.u32 %v737, 7
  %v739 = vsub.s32 0, %v738
  %v740 = vrot.slane %v735, %v739
  %v1030 = vunpack.c.l.b16 %v447
  %v1031 = vunpack.c.l.b16 %v448
  %v1032 = vunpack.c.l.b16 %v449
  %v1033 = vunpack.c.l.b16 %v450
  %v1034 = vunpack.c.l.b16 %v451
  %v1035 = vunpack.c.l.b16 %v452
  %v1036 = vunpack.c.l.b16 %v453
  %v1037 = vunpack.c.l.b16 %v454
  %v1038 = vunpack.c.l.b16 %v455
  %v1039 = vunpack.c.l.b16 %v456
  %v1040 = vunpack.c.l.b16 %v457
  %v1041 = vunpack.c.l.b16 %v458
  %v1042 = vunpack.c.l.b16 %v459
  %v1043 = vunpack.c.l.b16 %v460
  %v1044 = vunpack.c.l.b16 %v461
  %v1045 = vunpack.c.l.b16 %v462
  %v1046 = vunpack.c.l.b16 %v463
  %v1047 = vunpack.c.l.b16 %v464
  %v1048 = vunpack.c.l.b16 %v465
  %v1049 = vunpack.c.l.b16 %v466
  %v1050 = vunpack.c.l.b16 %v467
  %v1051 = vunpack.c.l.b16 %v468
  %v1052 = vunpack.c.l.b16 %v469
  %v1053 = vunpack.c.l.b16 %v470
  %v1054 = vunpack.c.l.b16 %v471
  %v1055 = vunpack.c.l.b16 %v472
  %v1056 = vunpack.c.l.b16 %v473
  %v1057 = vunpack.c.l.b16 %v474
  %v1058 = vunpack.c.l.b16 %v475
  %v1059 = vunpack.c.l.b16 %v476
  %v1060 = vunpack.c.l.b16 %v477
  %v1061 = vunpack.c.l.b16 %v478
  %v1062 = vunpack.c.l.b16 %v479
  %v1063 = vunpack.c.l.b16 %v480
  %v1064 = vunpack.c.l.b16 %v481
  %v1065 = vunpack.c.l.b16 %v482
  %v1066 = vunpack.c.l.b16 %v483
  %v1067 = vunpack.c.l.b16 %v484
  %v1068 = vunpack.c.l.b16 %v485
  %v1069 = vunpack.c.l.b16 %v486
  %v1070 = vunpack.c.l.b16 %v487
  %v1071 = vunpack.c.l.b16 %v488
  %v1072 = vunpack.c.l.b16 %v489
  %v1073 = vunpack.c.l.b16 %v490
  %v1074 = vunpack.c.l.b16 %v491
  %v1075 = vunpack.c.l.b16 %v492
  %v1076 = vunpack.c.l.b16 %v493
  %v1077 = vunpack.c.l.b16 %v494
  %v1078 = vunpack.c.l.b16 %v495
  %v1079 = vunpack.c.l.b16 %v496
  %v1080 = vunpack.c.l.b16 %v497
  %v1081 = vunpack.c.l.b16 %v498
  %v1082 = vunpack.c.l.b16 %v499
  %v1083 = vunpack.c.l.b16 %v500
  %v1084 = vunpack.c.l.b16 %v501
  %v1085 = vunpack.c.l.b16 %v502
  %v1086 = vunpack.c.l.b16 %v503
  %v1087 = vunpack.c.l.b16 %v504
  %v1088 = vunpack.c.l.b16 %v505
  %v1089 = vunpack.c.l.b16 %v506
  %v1090 = vunpack.c.l.b16 %v507
  %v1091 = vunpack.c.l.b16 %v508
  %v1092 = vunpack.c.l.b16 %v509
  %v1093 = vunpack.c.l.b16 %v510
  %v1094 = vunpack.c.l.b16 %v511
  %v1095 = vunpack.c.l.b16 %v512
  %v1096 = vunpack.c.l.b16 %v513
  %v1097 = vunpack.c.l.b16 %v514
  %v1098 = vunpack.c.l.b16 %v515
  %v1099 = vunpack.c.l.b16 %v516
  %v1100 = vunpack.c.l.b16 %v517
  %v1101 = vunpack.c.l.b16 %v518
  %v1102 = vunpack.c.l.b16 %v519
  %v1103 = vunpack.c.l.b16 %v520
  %v1104 = vunpack.c.l.b16 %v521
  %v1105 = vunpack.c.l.b16 %v522
  %v1106 = vunpack.c.l.b16 %v523
  %v1107 = vunpack.c.l.b16 %v524
  %v1108 = vunpack.c.l.b16 %v525
  %v1109 = vunpack.c.l.b16 %v526
  %v1110 = vunpack.c.l.b16 %v527
  %v1111 = vunpack.c.l.b16 %v528
  %v1112 = vunpack.c.l.b16 %v529
  %v1113 = vunpack.c.l.b16 %v530
  %v1114 = vunpack.c.l.b16 %v531
  %v1115 = vunpack.c.l.b16 %v532
  %v1116 = vunpack.c.l.b16 %v533
  %v1117 = vunpack.c.l.b16 %v534
  %v1118 = vunpack.c.l.b16 %v535
  %v1119 = vunpack.c.l.b16 %v536
  %v1120 = vunpack.c.l.b16 %v537
  %v1121 = vunpack.c.l.b16 %v538
  %v1122 = vunpack.c.l.b16 %v539
  %v1123 = vunpack.c.l.b16 %v540
  %v1124 = vunpack.c.l.b16 %v541
  %v1125 = vunpack.c.l.b16 %v542
  %v1126 = vunpack.c.l.b16 %v543
  %v1127 = vunpack.c.l.b16 %v544
  %v1128 = vunpack.c.l.b16 %v545
  %v1129 = vunpack.c.l.b16 %v546
  %v1130 = vunpack.c.l.b16 %v547
  %v1131 = vunpack.c.l.b16 %v548
  %v1132 = vunpack.c.l.b16 %v549
  %v1133 = vunpack.c.l.b16 %v550
  %v1134 = vunpack.c.l.b16 %v551
  %v1135 = vunpack.c.l.b16 %v552
  %v1136 = vunpack.c.l.b16 %v553
  %v1137 = vunpack.c.l.b16 %v554
  %v1138 = vunpack.c.l.b16 %v555
  %v1139 = vunpack.c.l.b16 %v556
  %v1140 = vunpack.c.l.b16 %v557
  %v1141 = vunpack.c.l.b16 %v558
  %v1142 = vunpack.c.l.b16 %v559
  %v1143 = vunpack.c.l.b16 %v560
  %v1144 = vunpack.c.l.b16 %v561
  %v1145 = vunpack.c.l.b16 %v562
  %v1146 = vunpack.c.l.b16 %v563
  %v1147 = vunpack.c.l.b16 %v564
  %v1148 = vunpack.c.l.b16 %v565
  %v1149 = vunpack.c.l.b16 %v566
  %v1150 = vunpack.c.l.b16 %v567
  %v1151 = vunpack.c.l.b16 %v568
  %v1152 = vunpack.c.l.b16 %v569
  %v1153 = vunpack.c.l.b16 %v570
  %v1154 = vunpack.c.l.b16 %v571
  %v1155 = vunpack.c.l.b16 %v572
  %v1156 = vunpack.c.l.b16 %v573
  %v1157 = vunpack.c.l.b16 %v574
  %v1158 = vunpack.c.l.b16 %v575
  %v1159 = vunpack.c.l.b16 %v576
  %v1160 = vunpack.c.l.b16 %v577
  %v1161 = vunpack.c.l.b16 %v578
  %v1162 = vunpack.c.l.b16 %v579
  %v1163 = vunpack.c.l.b16 %v580
  %v1164 = vunpack.c.l.b16 %v581
  %v1165 = vunpack.c.l.b16 %v582
  %v1166 = vunpack.c.l.b16 %v583
  %v1167 = vunpack.c.l.b16 %v584
  %v1168 = vunpack.c.l.b16 %v585
  %v1169 = vunpack.c.l.b16 %v586
  %v1170 = vunpack.c.l.b16 %v587
  %v1171 = vunpack.c.l.b16 %v588
  %v1172 = vunpack.c.l.b16 %v589
  %v1173 = vunpack.c.l.b16 %v590
  %v1174 = vunpack.c.l.b16 %v591
  %v1175 = vunpack.c.l.b16 %v592
  %v1176 = vunpack.c.l.b16 %v593
  %v1177 = vunpack.c.l.b16 %v594
  %v1178 = vunpack.c.l.b16 %v595
  %v1179 = vunpack.c.l.b16 %v596
  %v1180 = vunpack.c.l.b16 %v597
  %v1181 = vunpack.c.l.b16 %v598
  %v1182 = vunpack.c.l.b16 %v599
  %v1183 = vunpack.c.l.b16 %v600
  %v1184 = vunpack.c.l.b16 %v601
  %v1185 = vunpack.c.l.b16 %v602
  %v1186 = vunpack.c.l.b16 %v603
  %v1187 = vunpack.c.l.b16 %v604
  %v1188 = vunpack.c.l.b16 %v605
  %v1189 = vunpack.c.l.b16 %v606
  %v1190 = vunpack.c.l.b16 %v607
  %v1191 = vunpack.c.l.b16 %v608
  %v1192 = vunpack.c.l.b16 %v609
  %v1193 = vunpack.c.l.b16 %v610
  %v1194 = vunpack.c.l.b16 %v611
  %v1195 = vunpack.c.l.b16 %v612
  %v1196 = vunpack.c.l.b16 %v613
  %v1197 = vunpack.c.l.b16 %v614
  %v1198 = vunpack.c.l.b16 %v615
  %v1199 = vunpack.c.l.b16 %v616
  %v1200 = vunpack.c.l.b16 %v617
  %v1201 = vunpack.c.l.b16 %v618
  %v1202 = vunpack.c.l.b16 %v619
  %v1203 = vunpack.c.l.b16 %v620
  %v1204 = vunpack.c.l.b16 %v621
  %v1205 = vunpack.c.l.b16 %v622
  %v1206 = vunpack.c.l.b16 %v623
  %v1207 = vunpack.c.l.b16 %v624
  %v1208 = vunpack.c.l.b16 %v625
  %v1209 = vunpack.c.l.b16 %v626
  %v1210 = vunpack.c.l.b16 %v627
  %v1211 = vunpack.c.l.b16 %v628
  %v1212 = vunpack.c.l.b16 %v629
  %v1213 = vunpack.c.l.b16 %v630
  %v1214 = vunpack.c.l.b16 %v631
  %v1215 = vunpack.c.l.b16 %v632
  %v1216 = vunpack.c.l.b16 %v633
  %v1217 = vunpack.c.l.b16 %v634
  %v1218 = vunpack.c.l.b16 %v635
  %v1219 = vunpack.c.l.b16 %v636
  %v1220 = vunpack.c.l.b16 %v637
  %v1221 = vunpack.c.l.b16 %v638
  %v1222 = vunpack.c.l.b16 %v639
  %v1223 = vunpack.c.l.b16 %v640
  %v1224 = vunpack.c.l.b16 %v641
  %v1225 = vunpack.c.l.b16 %v642
  %v1226 = vunpack.c.l.b16 %v643
  %v1227 = vunpack.c.l.b16 %v644
  %v1228 = vunpack.c.l.b16 %v645
  %v1229 = vunpack.c.l.b16 %v646
  %v1230 = vunpack.c.l.b16 %v647
  %v1231 = vunpack.c.l.b16 %v648
  %v1232 = vunpack.c.l.b16 %v649
  %v1233 = vunpack.c.l.b16 %v650
  %v1234 = vunpack.c.l.b16 %v651
  %v1235 = vunpack.c.l.b16 %v652
  %v1236 = vunpack.c.l.b16 %v653
  %v1237 = vunpack.c.l.b16 %v654
  %v1238 = vunpack.c.l.b16 %v655
  %v1239 = vunpack.c.l.b16 %v656
  %v1240 = vunpack.c.l.b16 %v657
  %v1241 = vunpack.c.l.b16 %v658
  %v1242 = vunpack.c.l.b16 %v659
  %v1243 = vunpack.c.l.b16 %v660
  %v1244 = vunpack.c.l.b16 %v661
  %v1245 = vunpack.c.l.b16 %v662
  %v1246 = vunpack.c.l.b16 %v663
  %v1247 = vunpack.c.l.b16 %v664
  %v1248 = vunpack.c.l.b16 %v665
  %v1249 = vunpack.c.l.b16 %v666
  %v1250 = vunpack.c.l.b16 %v667
  %v1251 = vunpack.c.l.b16 %v668
  %v1252 = vunpack.c.l.b16 %v669
  %v1253 = vunpack.c.l.b16 %v670
  %v1254 = vunpack.c.l.b16 %v671
  %v1255 = vunpack.c.l.b16 %v672
  %v1256 = vunpack.c.l.b16 %v673
  %v1257 = vunpack.c.l.b16 %v674
  %v1258 = vunpack.c.l.b16 %v675
  %v1259 = vunpack.c.l.b16 %v676
  %v1260 = vunpack.c.l.b16 %v677
  %v1261 = vunpack.c.l.b16 %v678
  %v1262 = vunpack.c.l.b16 %v679
  %v1263 = vunpack.c.l.b16 %v680
  %v1264 = vunpack.c.l.b16 %v681
  %v1265 = vunpack.c.l.b16 %v682
  %v1266 = vunpack.c.l.b16 %v683
  %v1267 = vunpack.c.l.b16 %v684
  %v1268 = vunpack.c.l.b16 %v685
  %v1269 = vunpack.c.l.b16 %v686
  %v1270 = vunpack.c.l.b16 %v687
  %v1271 = vunpack.c.l.b16 %v688
  %v1272 = vunpack.c.l.b16 %v689
  %v1273 = vunpack.c.l.b16 %v690
  %v1274 = vunpack.c.l.b16 %v691
  %v1275 = vunpack.c.l.b16 %v692
  %v1276 = vunpack.c.l.b16 %v693
  %v1277 = vunpack.c.l.b16 %v694
  %v1278 = vunpack.c.l.b16 %v695
  %v1279 = vunpack.c.l.b16 %v696
  %v1280 = vunpack.c.l.b16 %v697
  %v1281 = vunpack.c.l.b16 %v698
  %v1282 = vunpack.c.l.b16 %v699
  %v1283 = vunpack.c.l.b16 %v700
  %v1284 = vunpack.c.l.b16 %v701
  %v1285 = vunpack.c.l.b16 %v702
  %v1286 = vunpack.c.l.b16 %v703
  %v1287 = vunpack.c.l.b16 %v704
  %v1288 = vunpack.c.l.b16 %v705
  %v1289 = vunpack.c.l.b16 %v706
  %v1290 = vunpack.c.l.b16 %v707
  %v1291 = vunpack.c.l.b16 %v708
  %v1292 = vunpack.c.l.b16 %v709
  %v1293 = vunpack.c.l.b16 %v710
  %v1294 = vunpack.c.l.b16 %v711
  %v1295 = vunpack.c.l.b16 %v712
  %v1296 = vunpack.c.l.b16 %v713
  %v1297 = vunpack.c.l.b16 %v714
  %v1298 = vunpack.c.l.b16 %v715
  %v1299 = vunpack.c.l.b16 %v716
  %v1300 = vunpack.c.l.b16 %v717
  %v1301 = vunpack.c.l.b16 %v718
  %v1302 = vunpack.c.l.b16 %v719
  %v1303 = vunpack.c.l.b16 %v720
  %v1304 = vunpack.c.l.b16 %v721
  %v1305 = vunpack.c.l.b16 %v722
  %v1306 = vunpack.c.l.b16 %v723
  %v1307 = vunpack.c.l.b16 %v724
  %v1308 = vunpack.c.l.b16 %v725
  %v1309 = vunpack.c.l.b16 %v726
  %v1310 = vunpack.c.l.b16 %v727
  %v1311 = vunpack.c.l.b16 %v728
  %v1312 = vunpack.c.l.b16 %v729
  %v1313 = vunpack.c.l.b16 %v730
  %v1314 = vunpack.c.l.b16 %v731
  %v1315 = vunpack.c.l.b16 %v732
  %v1316 = vunpack.c.l.b16 %v733
  %v1317 = vunpack.c.l.b16 %v734
  %v1318 = vpack.c.b16 %v1031, %v1030
  %v1319 = vpack.c.b16 %v1033, %v1032
  %v1320 = vpack.c.b16 %v1035, %v1034
  %v1321 = vpack.c.b16 %v1037, %v1036
  %v1322 = vpack.c.b16 %v1039, %v1038
  %v1323 = vpack.c.b16 %v1041, %v1040
  %v1324 = vpack.c.b16 %v1043, %v1042
  %v1325 = vpack.c.b16 %v1045, %v1044
  %v1326 = vpack.c.b16 %v1047, %v1046
  %v1327 = vpack.c.b16 %v1049, %v1048
  %v1328 = vpack.c.b16 %v1051, %v1050
  %v1329 = vpack.c.b16 %v1053, %v1052
  %v1330 = vpack.c.b16 %v1055, %v1054
  %v1331 = vpack.c.b16 %v1057, %v1056
  %v1332 = vpack.c.b16 %v1059, %v1058
  %v1333 = vpack.c.b16 %v1061, %v1060
  %v1334 = vpack.c.b16 %v1063, %v1062
  %v1335 = vpack.c.b16 %v1065, %v1064
  %v1336 = vpack.c.b16 %v1067, %v1066
  %v1337 = vpack.c.b16 %v1069, %v1068
  %v1338 = vpack.c.b16 %v1071, %v1070
  %v1339 = vpack.c.b16 %v1073, %v1072
  %v1340 = vpack.c.b16 %v1075, %v1074
  %v1341 = vpack.c.b16 %v1077, %v1076
  %v1342 = vpack.c.b16 %v1079, %v1078
  %v1343 = vpack.c.b16 %v1081, %v1080
  %v1344 = vpack.c.b16 %v1083, %v1082
  %v1345 = vpack.c.b16 %v1085, %v1084
  %v1346 = vpack.c.b16 %v1087, %v1086
  %v1347 = vpack.c.b16 %v1089, %v1088
  %v1348 = vpack.c.b16 %v1091, %v1090
  %v1349 = vpack.c.b16 %v1093, %v1092
  %v1350 = vpack.c.b16 %v1095, %v1094
  %v1351 = vpack.c.b16 %v1097, %v1096
  %v1352 = vpack.c.b16 %v1099, %v1098
  %v1353 = vpack.c.b16 %v1101, %v1100
  %v1354 = vpack.c.b16 %v1103, %v1102
  %v1355 = vpack.c.b16 %v1105, %v1104
  %v1356 = vpack.c.b16 %v1107, %v1106
  %v1357 = vpack.c.b16 %v1109, %v1108
  %v1358 = vpack.c.b16 %v1111, %v1110
  %v1359 = vpack.c.b16 %v1113, %v1112
  %v1360 = vpack.c.b16 %v1115, %v1114
  %v1361 = vpack.c.b16 %v1117, %v1116
  %v1362 = vpack.c.b16 %v1119, %v1118
  %v1363 = vpack.c.b16 %v1121, %v1120
  %v1364 = vpack.c.b16 %v1123, %v1122
  %v1365 = vpack.c.b16 %v1125, %v1124
  %v1366 = vpack.c.b16 %v1127, %v1126
  %v1367 = vpack.c.b16 %v1129, %v1128
  %v1368 = vpack.c.b16 %v1131, %v1130
  %v1369 = vpack.c.b16 %v1133, %v1132
  %v1370 = vpack.c.b16 %v1135, %v1134
  %v1371 = vpack.c.b16 %v1137, %v1136
  %v1372 = vpack.c.b16 %v1139, %v1138
  %v1373 = vpack.c.b16 %v1141, %v1140
  %v1374 = vpack.c.b16 %v1143, %v1142
  %v1375 = vpack.c.b16 %v1145, %v1144
  %v1376 = vpack.c.b16 %v1147, %v1146
  %v1377 = vpack.c.b16 %v1149, %v1148
  %v1378 = vpack.c.b16 %v1151, %v1150
  %v1379 = vpack.c.b16 %v1153, %v1152
  %v1380 = vpack.c.b16 %v1155, %v1154
  %v1381 = vpack.c.b16 %v1157, %v1156
  %v1382 = vpack.c.b16 %v1159, %v1158
  %v1383 = vpack.c.b16 %v1161, %v1160
  %v1384 = vpack.c.b16 %v1163, %v1162
  %v1385 = vpack.c.b16 %v1165, %v1164
  %v1386 = vpack.c.b16 %v1167, %v1166
  %v1387 = vpack.c.b16 %v1169, %v1168
  %v1388 = vpack.c.b16 %v1171, %v1170
  %v1389 = vpack.c.b16 %v1173, %v1172
  %v1390 = vpack.c.b16 %v1175, %v1174
  %v1391 = vpack.c.b16 %v1177, %v1176
  %v1392 = vpack.c.b16 %v1179, %v1178
  %v1393 = vpack.c.b16 %v1181, %v1180
  %v1394 = vpack.c.b16 %v1183, %v1182
  %v1395 = vpack.c.b16 %v1185, %v1184
  %v1396 = vpack.c.b16 %v1187, %v1186
  %v1397 = vpack.c.b16 %v1189, %v1188
  %v1398 = vpack.c.b16 %v1191, %v1190
  %v1399 = vpack.c.b16 %v1193, %v1192
  %v1400 = vpack.c.b16 %v1195, %v1194
  %v1401 = vpack.c.b16 %v1197, %v1196
  %v1402 = vpack.c.b16 %v1199, %v1198
  %v1403 = vpack.c.b16 %v1201, %v1200
  %v1404 = vpack.c.b16 %v1203, %v1202
  %v1405 = vpack.c.b16 %v1205, %v1204
  %v1406 = vpack.c.b16 %v1207, %v1206
  %v1407 = vpack.c.b16 %v1209, %v1208
  %v1408 = vpack.c.b16 %v1211, %v1210
  %v1409 = vpack.c.b16 %v1213, %v1212
  %v1410 = vpack.c.b16 %v1215, %v1214
  %v1411 = vpack.c.b16 %v1217, %v1216
  %v1412 = vpack.c.b16 %v1219, %v1218
  %v1413 = vpack.c.b16 %v1221, %v1220
  %v1414 = vpack.c.b16 %v1223, %v1222
  %v1415 = vpack.c.b16 %v1225, %v1224
  %v1416 = vpack.c.b16 %v1227, %v1226
  %v1417 = vpack.c.b16 %v1229, %v1228
  %v1418 = vpack.c.b16 %v1231, %v1230
  %v1419 = vpack.c.b16 %v1233, %v1232
  %v1420 = vpack.c.b16 %v1235, %v1234
  %v1421 = vpack.c.b16 %v1237, %v1236
  %v1422 = vpack.c.b16 %v1239, %v1238
  %v1423 = vpack.c.b16 %v1241, %v1240
  %v1424 = vpack.c.b16 %v1243, %v1242
  %v1425 = vpack.c.b16 %v1245, %v1244
  %v1426 = vpack.c.b16 %v1247, %v1246
  %v1427 = vpack.c.b16 %v1249, %v1248
  %v1428 = vpack.c.b16 %v1251, %v1250
  %v1429 = vpack.c.b16 %v1253, %v1252
  %v1430 = vpack.c.b16 %v1255, %v1254
  %v1431 = vpack.c.b16 %v1257, %v1256
  %v1432 = vpack.c.b16 %v1259, %v1258
  %v1433 = vpack.c.b16 %v1261, %v1260
  %v1434 = vpack.c.b16 %v1263, %v1262
  %v1435 = vpack.c.b16 %v1265, %v1264
  %v1436 = vpack.c.b16 %v1267, %v1266
  %v1437 = vpack.c.b16 %v1269, %v1268
  %v1438 = vpack.c.b16 %v1271, %v1270
  %v1439 = vpack.c.b16 %v1273, %v1272
  %v1440 = vpack.c.b16 %v1275, %v1274
  %v1441 = vpack.c.b16 %v1277, %v1276
  %v1442 = vpack.c.b16 %v1279, %v1278
  %v1443 = vpack.c.b16 %v1281, %v1280
  %v1444 = vpack.c.b16 %v1283, %v1282
  %v1445 = vpack.c.b16 %v1285, %v1284
  %v1446 = vpack.c.b16 %v1287, %v1286
  %v1447 = vpack.c.b16 %v1289, %v1288
  %v1448 = vpack.c.b16 %v1291, %v1290
  %v1449 = vpack.c.b16 %v1293, %v1292
  %v1450 = vpack.c.b16 %v1295, %v1294
  %v1451 = vpack.c.b16 %v1297, %v1296
  %v1452 = vpack.c.b16 %v1299, %v1298
  %v1453 = vpack.c.b16 %v1301, %v1300
  %v1454 = vpack.c.b16 %v1303, %v1302
  %v1455 = vpack.c.b16 %v1305, %v1304
  %v1456 = vpack.c.b16 %v1307, %v1306
  %v1457 = vpack.c.b16 %v1309, %v1308
  %v1458 = vpack.c.b16 %v1311, %v1310
  %v1459 = vpack.c.b16 %v1313, %v1312
  %v1460 = vpack.c.b16 %v1315, %v1314
  %v1461 = vpack.c.b16 %v1317, %v1316
  %1606 = vmatprep.subr.bf16.mxu0 0
  %1607 = vmatpush1.bf16.msra.mxu0 %v1318
  %1608 = vmatprep.subr.bf16.mxu0 0
  %1609 = vmatpush1.bf16.msra.mxu0 %v1319
  %1610 = vmatprep.subr.bf16.mxu0 0
  %1611 = vmatpush1.bf16.msra.mxu0 %v1320
  %1612 = vmatprep.subr.bf16.mxu0 0
  %1613 = vmatpush1.bf16.msra.mxu0 %v1321
  %1614 = vmatprep.subr.bf16.mxu0 0
  %1615 = vmatpush1.bf16.msra.mxu0 %v1322
  %1616 = vmatprep.subr.bf16.mxu0 0
  %1617 = vmatpush1.bf16.msra.mxu0 %v1323
  %1618 = vmatprep.subr.bf16.mxu0 0
  %1619 = vmatpush1.bf16.msra.mxu0 %v1324
  %1620 = vmatprep.subr.bf16.mxu0 0
  %1621 = vmatpush1.bf16.msra.mxu0 %v1325
  %1622 = vmatprep.subr.bf16.mxu0 0
  %1623 = vmatpush1.bf16.msra.mxu0 %v1326
  %1624 = vmatprep.subr.bf16.mxu0 0
  %1625 = vmatpush1.bf16.msra.mxu0 %v1327
  %1626 = vmatprep.subr.bf16.mxu0 0
  %1627 = vmatpush1.bf16.msra.mxu0 %v1328
  %1628 = vmatprep.subr.bf16.mxu0 0
  %1629 = vmatpush1.bf16.msra.mxu0 %v1329
  %1630 = vmatprep.subr.bf16.mxu0 0
  %1631 = vmatpush1.bf16.msra.mxu0 %v1330
  %1632 = vmatprep.subr.bf16.mxu0 0
  %1633 = vmatpush1.bf16.msra.mxu0 %v1331
  %1634 = vmatprep.subr.bf16.mxu0 0
  %1635 = vmatpush1.bf16.msra.mxu0 %v1332
  %1636 = vmatprep.subr.bf16.mxu0 0
  %1637 = vmatpush1.bf16.msra.mxu0 %v1333
  %1638 = vmatprep.mubr.bf16.mxu0 %v304
  %1639 = vmatmul.mubr.bf16.gmra.mrb[0].mxu0 %v303
  %v1640 = vpop.f32.mrb[0].mxu0
  %v1641 = vadd.f32 %v740, %v1640
  %v1642 = vpop.f32.mrb[0].mxu0
  %v1643 = vpop.f32.mrb[0].mxu0
  %v1644 = vadd.f32 %v740, %v1643
  %v1645 = vpop.f32.mrb[0].mxu0
  %1646 = vmatprep.mubr.bf16.mxu0 %v322
  %1647 = vmatmul.mubr.bf16.gmra.mrb[0].mxu0 %v321
  %v1648 = vpop.f32.mrb[0].mxu0
  %v1649 = vadd.f32 %v740, %v1648
  %v1650 = vpop.f32.mrb[0].mxu0
  %v1651 = vpop.f32.mrb[0].mxu0
  %v1652 = vadd.f32 %v740, %v1651
  %v1653 = vpop.f32.mrb[0].mxu0
  %1654 = vmatprep.mubr.bf16.mxu0 %v340
  %1655 = vmatmul.mubr.bf16.gmra.mrb[0].mxu0 %v339
  %v1656 = vpop.f32.mrb[0].mxu0
  %v1657 = vadd.f32 %v740, %v1656
  %v1658 = vpop.f32.mrb[0].mxu0
  %v1659 = vpop.f32.mrb[0].mxu0
  %v1660 = vadd.f32 %v740, %v1659
  %v1661 = vpop.f32.mrb[0].mxu0
  %1662 = vmatprep.mubr.bf16.mxu0 %v358
  %1663 = vmatmul.mubr.bf16.gmra.mrb[0].mxu0 %v357
  %v1664 = vpop.f32.mrb[0].mxu0
  %v1665 = vadd.f32 %v740, %v1664
  %v1666 = vpop.f32.mrb[0].mxu0
  %v1667 = vpop.f32.mrb[0].mxu0
  %v1668 = vadd.f32 %v740, %v1667
  %v1669 = vpop.f32.mrb[0].mxu0
  %1670 = vmatprep.mubr.bf16.mxu0 %v376
  %1671 = vmatmul.mubr.bf16.gmra.mrb[0].mxu0 %v375
  %v1672 = vpop.f32.mrb[0].mxu0
  %v1673 = vadd.f32 %v740, %v1672
  %v1674 = vpop.f32.mrb[0].mxu0
  %v1675 = vpop.f32.mrb[0].mxu0
  %v1676 = vadd.f32 %v740, %v1675
  %v1677 = vpop.f32.mrb[0].mxu0
  %1678 = vmatprep.mubr.bf16.mxu0 %v394
  %1679 = vmatmul.mubr.bf16.gmra.mrb[0].mxu0 %v393
  %v1680 = vpop.f32.mrb[0].mxu0
  %v1681 = vadd.f32 %v740, %v1680
  %v1682 = vpop.f32.mrb[0].mxu0
  %v1683 = vpop.f32.mrb[0].mxu0
  %v1684 = vadd.f32 %v740, %v1683
  %v1685 = vpop.f32.mrb[0].mxu0
  %1686 = vmatprep.mubr.bf16.mxu0 %v412
  %1687 = vmatmul.mubr.bf16.gmra.mrb[0].mxu0 %v411
  %v1688 = vpop.f32.mrb[0].mxu0
  %v1689 = vadd.f32 %v740, %v1688
  %v1690 = vpop.f32.mrb[0].mxu0
  %v1691 = vpop.f32.mrb[0].mxu0
  %v1692 = vadd.f32 %v740, %v1691
  %v1693 = vpop.f32.mrb[0].mxu0
  %1694 = vmatprep.mubr.bf16.mxu0 %v430
  %1695 = vmatmul.mubr.bf16.gmra.mrb[0].mxu0 %v429
  %v1696 = vpop.f32.mrb[0].mxu0
  %v1697 = vadd.f32 %v740, %v1696
  %v1698 = vpop.f32.mrb[0].mxu0
  %v1699 = vpop.f32.mrb[0].mxu0
  %v1700 = vadd.f32 %v740, %v1699
  %v1701 = vpop.f32.mrb[0].mxu0
  %1702 = vdwg.mxu0
  %1703 = vmatprep.subr.bf16.mxu0 0
  %1704 = vmatpush1.bf16.msra.mxu0 %v1334
  %1705 = vmatprep.subr.bf16.mxu0 0
  %1706 = vmatpush1.bf16.msra.mxu0 %v1335
  %1707 = vmatprep.subr.bf16.mxu0 0
  %1708 = vmatpush1.bf16.msra.mxu0 %v1336
  %1709 = vmatprep.subr.bf16.mxu0 0
  %1710 = vmatpush1.bf16.msra.mxu0 %v1337
  %1711 = vmatprep.subr.bf16.mxu0 0
  %1712 = vmatpush1.bf16.msra.mxu0 %v1338
  %1713 = vmatprep.subr.bf16.mxu0 0
  %1714 = vmatpush1.bf16.msra.mxu0 %v1339
  %1715 = vmatprep.subr.bf16.mxu0 0
  %1716 = vmatpush1.bf16.msra.mxu0 %v1340
  %1717 = vmatprep.subr.bf16.mxu0 0
  %1718 = vmatpush1.bf16.msra.mxu0 %v1341
  %1719 = vmatprep.subr.bf16.mxu0 0
  %1720 = vmatpush1.bf16.msra.mxu0 %v1342
  %1721 = vmatprep.subr.bf16.mxu0 0
  %1722 = vmatpush1.bf16.msra.mxu0 %v1343
  %1723 = vmatprep.subr.bf16.mxu0 0
  %1724 = vmatpush1.bf16.msra.mxu0 %v1344
  %1725 = vmatprep.subr.bf16.mxu0 0
  %1726 = vmatpush1.bf16.msra.mxu0 %v1345
  %1727 = vmatprep.subr.bf16.mxu0 0
  %1728 = vmatpush1.bf16.msra.mxu0 %v1346
  %1729 = vmatprep.subr.bf16.mxu0 0
  %1730 = vmatpush1.bf16.msra.mxu0 %v1347
  %1731 = vmatprep.subr.bf16.mxu0 0
  %1732 = vmatpush1.bf16.msra.mxu0 %v1348
  %1733 = vmatprep.subr.bf16.mxu0 0
  %1734 = vmatpush1.bf16.msra.mxu0 %v1349
  %1735 = vmatprep.mubr.bf16.mxu0 %v306
  %1736 = vmatmul.mubr.bf16.gmra.mrb[0].mxu0 %v305
  %v1737 = vpop.f32.mrb[0].mxu0
  %v1738 = vadd.f32 %v1641, %v1737
  %v1739 = vpop.f32.mrb[0].mxu0
  %v1740 = vpop.f32.mrb[0].mxu0
  %v1741 = vadd.f32 %v1644, %v1740
  %v1742 = vpop.f32.mrb[0].mxu0
  %1743 = vmatprep.mubr.bf16.mxu0 %v324
  %1744 = vmatmul.mubr.bf16.gmra.mrb[0].mxu0 %v323
  %v1745 = vpop.f32.mrb[0].mxu0
  %v1746 = vadd.f32 %v1649, %v1745
  %v1747 = vpop.f32.mrb[0].mxu0
  %v1748 = vpop.f32.mrb[0].mxu0
  %v1749 = vadd.f32 %v1652, %v1748
  %v1750 = vpop.f32.mrb[0].mxu0
  %1751 = vmatprep.mubr.bf16.mxu0 %v342
  %1752 = vmatmul.mubr.bf16.gmra.mrb[0].mxu0 %v341
  %v1753 = vpop.f32.mrb[0].mxu0
  %v1754 = vadd.f32 %v1657, %v1753
  %v1755 = vpop.f32.mrb[0].mxu0
  %v1756 = vpop.f32.mrb[0].mxu0
  %v1757 = vadd.f32 %v1660, %v1756
  %v1758 = vpop.f32.mrb[0].mxu0
  %1759 = vmatprep.mubr.bf16.mxu0 %v360
  %1760 = vmatmul.mubr.bf16.gmra.mrb[0].mxu0 %v359
  %v1761 = vpop.f32.mrb[0].mxu0
  %v1762 = vadd.f32 %v1665, %v1761
  %v1763 = vpop.f32.mrb[0].mxu0
  %v1764 = vpop.f32.mrb[0].mxu0
  %v1765 = vadd.f32 %v1668, %v1764
  %v1766 = vpop.f32.mrb[0].mxu0
  %1767 = vmatprep.mubr.bf16.mxu0 %v378
  %1768 = vmatmul.mubr.bf16.gmra.mrb[0].mxu0 %v377
  %v1769 = vpop.f32.mrb[0].mxu0
  %v1770 = vadd.f32 %v1673, %v1769
  %v1771 = vpop.f32.mrb[0].mxu0
  %v1772 = vpop.f32.mrb[0].mxu0
  %v1773 = vadd.f32 %v1676, %v1772
  %v1774 = vpop.f32.mrb[0].mxu0
  %1775 = vmatprep.mubr.bf16.mxu0 %v396
  %1776 = vmatmul.mubr.bf16.gmra.mrb[0].mxu0 %v395
  %v1777 = vpop.f32.mrb[0].mxu0
  %v1778 = vadd.f32 %v1681, %v1777
  %v1779 = vpop.f32.mrb[0].mxu0
  %v1780 = vpop.f32.mrb[0].mxu0
  %v1781 = vadd.f32 %v1684, %v1780
  %v1782 = vpop.f32.mrb[0].mxu0
  %1783 = vmatprep.mubr.bf16.mxu0 %v414
  %1784 = vmatmul.mubr.bf16.gmra.mrb[0].mxu0 %v413
  %v1785 = vpop.f32.mrb[0].mxu0
  %v1786 = vadd.f32 %v1689, %v1785
  %v1787 = vpop.f32.mrb[0].mxu0
  %v1788 = vpop.f32.mrb[0].mxu0
  %v1789 = vadd.f32 %v1692, %v1788
  %v1790 = vpop.f32.mrb[0].mxu0
  %1791 = vmatprep.mubr.bf16.mxu0 %v432
  %1792 = vmatmul.mubr.bf16.gmra.mrb[0].mxu0 %v431
  %v1793 = vpop.f32.mrb[0].mxu0
  %v1794 = vadd.f32 %v1697, %v1793
  %v1795 = vpop.f32.mrb[0].mxu0
  %v1796 = vpop.f32.mrb[0].mxu0
  %v1797 = vadd.f32 %v1700, %v1796
  %v1798 = vpop.f32.mrb[0].mxu0
  %1799 = vdwg.mxu0
  %1800 = vmatprep.subr.bf16.mxu0 0
  %1801 = vmatpush1.bf16.msra.mxu0 %v1350
  %1802 = vmatprep.subr.bf16.mxu0 0
  %1803 = vmatpush1.bf16.msra.mxu0 %v1351
  %1804 = vmatprep.subr.bf16.mxu0 0
  %1805 = vmatpush1.bf16.msra.mxu0 %v1352
  %1806 = vmatprep.subr.bf16.mxu0 0
  %1807 = vmatpush1.bf16.msra.mxu0 %v1353
  %1808 = vmatprep.subr.bf16.mxu0 0
  %1809 = vmatpush1.bf16.msra.mxu0 %v1354
  %1810 = vmatprep.subr.bf16.mxu0 0
  %1811 = vmatpush1.bf16.msra.mxu0 %v1355
  %1812 = vmatprep.subr.bf16.mxu0 0
  %1813 = vmatpush1.bf16.msra.mxu0 %v1356
  %1814 = vmatprep.subr.bf16.mxu0 0
  %1815 = vmatpush1.bf16.msra.mxu0 %v1357
  %1816 = vmatprep.subr.bf16.mxu0 0
  %1817 = vmatpush1.bf16.msra.mxu0 %v1358
  %1818 = vmatprep.subr.bf16.mxu0 0
  %1819 = vmatpush1.bf16.msra.mxu0 %v1359
  %1820 = vmatprep.subr.bf16.mxu0 0
  %1821 = vmatpush1.bf16.msra.mxu0 %v1360
  %1822 = vmatprep.subr.bf16.mxu0 0
  %1823 = vmatpush1.bf16.msra.mxu0 %v1361
  %1824 = vmatprep.subr.bf16.mxu0 0
  %1825 = vmatpush1.bf16.msra.mxu0 %v1362
  %1826 = vmatprep.subr.bf16.mxu0 0
  %1827 = vmatpush1.bf16.msra.mxu0 %v1363
  %1828 = vmatprep.subr.bf16.mxu0 0
  %1829 = vmatpush1.bf16.msra.mxu0 %v1364
  %1830 = vmatprep.subr.bf16.mxu0 0
  %1831 = vmatpush1.bf16.msra.mxu0 %v1365
  %1832 = vmatprep.mubr.bf16.mxu0 %v308
  %1833 = vmatmul.mubr.bf16.gmra.mrb[0].mxu0 %v307
  %v1834 = vpop.f32.mrb[0].mxu0
  %v1835 = vadd.f32 %v1738, %v1834
  %v1836 = vpop.f32.mrb[0].mxu0
  %v1837 = vpop.f32.mrb[0].mxu0
  %v1838 = vadd.f32 %v1741, %v1837
  %v1839 = vpop.f32.mrb[0].mxu0
  %1840 = vmatprep.mubr.bf16.mxu0 %v326
  %1841 = vmatmul.mubr.bf16.gmra.mrb[0].mxu0 %v325
  %v1842 = vpop.f32.mrb[0].mxu0
  %v1843 = vadd.f32 %v1746, %v1842
  %v1844 = vpop.f32.mrb[0].mxu0
  %v1845 = vpop.f32.mrb[0].mxu0
  %v1846 = vadd.f32 %v1749, %v1845
  %v1847 = vpop.f32.mrb[0].mxu0
  %1848 = vmatprep.mubr.bf16.mxu0 %v344
  %1849 = vmatmul.mubr.bf16.gmra.mrb[0].mxu0 %v343
  %v1850 = vpop.f32.mrb[0].mxu0
  %v1851 = vadd.f32 %v1754, %v1850
  %v1852 = vpop.f32.mrb[0].mxu0
  %v1853 = vpop.f32.mrb[0].mxu0
  %v1854 = vadd.f32 %v1757, %v1853
  %v1855 = vpop.f32.mrb[0].mxu0
  %1856 = vmatprep.mubr.bf16.mxu0 %v362
  %1857 = vmatmul.mubr.bf16.gmra.mrb[0].mxu0 %v361
  %v1858 = vpop.f32.mrb[0].mxu0
  %v1859 = vadd.f32 %v1762, %v1858
  %v1860 = vpop.f32.mrb[0].mxu0
  %v1861 = vpop.f32.mrb[0].mxu0
  %v1862 = vadd.f32 %v1765, %v1861
  %v1863 = vpop.f32.mrb[0].mxu0
  %1864 = vmatprep.mubr.bf16.mxu0 %v380
  %1865 = vmatmul.mubr.bf16.gmra.mrb[0].mxu0 %v379
  %v1866 = vpop.f32.mrb[0].mxu0
  %v1867 = vadd.f32 %v1770, %v1866
  %v1868 = vpop.f32.mrb[0].mxu0
  %v1869 = vpop.f32.mrb[0].mxu0
  %v1870 = vadd.f32 %v1773, %v1869
  %v1871 = vpop.f32.mrb[0].mxu0
  %1872 = vmatprep.mubr.bf16.mxu0 %v398
  %1873 = vmatmul.mubr.bf16.gmra.mrb[0].mxu0 %v397
  %v1874 = vpop.f32.mrb[0].mxu0
  %v1875 = vadd.f32 %v1778, %v1874
  %v1876 = vpop.f32.mrb[0].mxu0
  %v1877 = vpop.f32.mrb[0].mxu0
  %v1878 = vadd.f32 %v1781, %v1877
  %v1879 = vpop.f32.mrb[0].mxu0
  %1880 = vmatprep.mubr.bf16.mxu0 %v416
  %1881 = vmatmul.mubr.bf16.gmra.mrb[0].mxu0 %v415
  %v1882 = vpop.f32.mrb[0].mxu0
  %v1883 = vadd.f32 %v1786, %v1882
  %v1884 = vpop.f32.mrb[0].mxu0
  %v1885 = vpop.f32.mrb[0].mxu0
  %v1886 = vadd.f32 %v1789, %v1885
  %v1887 = vpop.f32.mrb[0].mxu0
  %1888 = vmatprep.mubr.bf16.mxu0 %v434
  %1889 = vmatmul.mubr.bf16.gmra.mrb[0].mxu0 %v433
  %v1890 = vpop.f32.mrb[0].mxu0
  %v1891 = vadd.f32 %v1794, %v1890
  %v1892 = vpop.f32.mrb[0].mxu0
  %v1893 = vpop.f32.mrb[0].mxu0
  %v1894 = vadd.f32 %v1797, %v1893
  %v1895 = vpop.f32.mrb[0].mxu0
  %1896 = vdwg.mxu0
  %1897 = vmatprep.subr.bf16.mxu0 0
  %1898 = vmatpush1.bf16.msra.mxu0 %v1366
  %1899 = vmatprep.subr.bf16.mxu0 0
  %1900 = vmatpush1.bf16.msra.mxu0 %v1367
  %1901 = vmatprep.subr.bf16.mxu0 0
  %1902 = vmatpush1.bf16.msra.mxu0 %v1368
  %1903 = vmatprep.subr.bf16.mxu0 0
  %1904 = vmatpush1.bf16.msra.mxu0 %v1369
  %1905 = vmatprep.subr.bf16.mxu0 0
  %1906 = vmatpush1.bf16.msra.mxu0 %v1370
  %1907 = vmatprep.subr.bf16.mxu0 0
  %1908 = vmatpush1.bf16.msra.mxu0 %v1371
  %1909 = vmatprep.subr.bf16.mxu0 0
  %1910 = vmatpush1.bf16.msra.mxu0 %v1372
  %1911 = vmatprep.subr.bf16.mxu0 0
  %1912 = vmatpush1.bf16.msra.mxu0 %v1373
  %1913 = vmatprep.subr.bf16.mxu0 0
  %1914 = vmatpush1.bf16.msra.mxu0 %v1374
  %1915 = vmatprep.subr.bf16.mxu0 0
  %1916 = vmatpush1.bf16.msra.mxu0 %v1375
  %1917 = vmatprep.subr.bf16.mxu0 0
  %1918 = vmatpush1.bf16.msra.mxu0 %v1376
  %1919 = vmatprep.subr.bf16.mxu0 0
  %1920 = vmatpush1.bf16.msra.mxu0 %v1377
  %1921 = vmatprep.subr.bf16.mxu0 0
  %1922 = vmatpush1.bf16.msra.mxu0 %v1378
  %1923 = vmatprep.subr.bf16.mxu0 0
  %1924 = vmatpush1.bf16.msra.mxu0 %v1379
  %1925 = vmatprep.subr.bf16.mxu0 0
  %1926 = vmatpush1.bf16.msra.mxu0 %v1380
  %1927 = vmatprep.subr.bf16.mxu0 0
  %1928 = vmatpush1.bf16.msra.mxu0 %v1381
  %1929 = vmatprep.mubr.bf16.mxu0 %v310
  %1930 = vmatmul.mubr.bf16.gmra.mrb[0].mxu0 %v309
  %v1931 = vpop.f32.mrb[0].mxu0
  %v1932 = vadd.f32 %v1835, %v1931
  %v1933 = vpop.f32.mrb[0].mxu0
  %v1934 = vpop.f32.mrb[0].mxu0
  %v1935 = vadd.f32 %v1838, %v1934
  %v1936 = vpop.f32.mrb[0].mxu0
  %1937 = vmatprep.mubr.bf16.mxu0 %v328
  %1938 = vmatmul.mubr.bf16.gmra.mrb[0].mxu0 %v327
  %v1939 = vpop.f32.mrb[0].mxu0
  %v1940 = vadd.f32 %v1843, %v1939
  %v1941 = vpop.f32.mrb[0].mxu0
  %v1942 = vpop.f32.mrb[0].mxu0
  %v1943 = vadd.f32 %v1846, %v1942
  %v1944 = vpop.f32.mrb[0].mxu0
  %1945 = vmatprep.mubr.bf16.mxu0 %v346
  %1946 = vmatmul.mubr.bf16.gmra.mrb[0].mxu0 %v345
  %v1947 = vpop.f32.mrb[0].mxu0
  %v1948 = vadd.f32 %v1851, %v1947
  %v1949 = vpop.f32.mrb[0].mxu0
  %v1950 = vpop.f32.mrb[0].mxu0
  %v1951 = vadd.f32 %v1854, %v1950
  %v1952 = vpop.f32.mrb[0].mxu0
  %1953 = vmatprep.mubr.bf16.mxu0 %v364
  %1954 = vmatmul.mubr.bf16.gmra.mrb[0].mxu0 %v363
  %v1955 = vpop.f32.mrb[0].mxu0
  %v1956 = vadd.f32 %v1859, %v1955
  %v1957 = vpop.f32.mrb[0].mxu0
  %v1958 = vpop.f32.mrb[0].mxu0
  %v1959 = vadd.f32 %v1862, %v1958
  %v1960 = vpop.f32.mrb[0].mxu0
  %1961 = vmatprep.mubr.bf16.mxu0 %v382
  %1962 = vmatmul.mubr.bf16.gmra.mrb[0].mxu0 %v381
  %v1963 = vpop.f32.mrb[0].mxu0
  %v1964 = vadd.f32 %v1867, %v1963
  %v1965 = vpop.f32.mrb[0].mxu0
  %v1966 = vpop.f32.mrb[0].mxu0
  %v1967 = vadd.f32 %v1870, %v1966
  %v1968 = vpop.f32.mrb[0].mxu0
  %1969 = vmatprep.mubr.bf16.mxu0 %v400
  %1970 = vmatmul.mubr.bf16.gmra.mrb[0].mxu0 %v399
  %v1971 = vpop.f32.mrb[0].mxu0
  %v1972 = vadd.f32 %v1875, %v1971
  %v1973 = vpop.f32.mrb[0].mxu0
  %v1974 = vpop.f32.mrb[0].mxu0
  %v1975 = vadd.f32 %v1878, %v1974
  %v1976 = vpop.f32.mrb[0].mxu0
  %1977 = vmatprep.mubr.bf16.mxu0 %v418
  %1978 = vmatmul.mubr.bf16.gmra.mrb[0].mxu0 %v417
  %v1979 = vpop.f32.mrb[0].mxu0
  %v1980 = vadd.f32 %v1883, %v1979
  %v1981 = vpop.f32.mrb[0].mxu0
  %v1982 = vpop.f32.mrb[0].mxu0
  %v1983 = vadd.f32 %v1886, %v1982
  %v1984 = vpop.f32.mrb[0].mxu0
  %1985 = vmatprep.mubr.bf16.mxu0 %v436
  %1986 = vmatmul.mubr.bf16.gmra.mrb[0].mxu0 %v435
  %v1987 = vpop.f32.mrb[0].mxu0
  %v1988 = vadd.f32 %v1891, %v1987
  %v1989 = vpop.f32.mrb[0].mxu0
  %v1990 = vpop.f32.mrb[0].mxu0
  %v1991 = vadd.f32 %v1894, %v1990
  %v1992 = vpop.f32.mrb[0].mxu0
  %1993 = vdwg.mxu0
  %1994 = vmatprep.subr.bf16.mxu0 0
  %1995 = vmatpush1.bf16.msra.mxu0 %v1382
  %1996 = vmatprep.subr.bf16.mxu0 0
  %1997 = vmatpush1.bf16.msra.mxu0 %v1383
  %1998 = vmatprep.subr.bf16.mxu0 0
  %1999 = vmatpush1.bf16.msra.mxu0 %v1384
  %2000 = vmatprep.subr.bf16.mxu0 0
  %2001 = vmatpush1.bf16.msra.mxu0 %v1385
  %2002 = vmatprep.subr.bf16.mxu0 0
  %2003 = vmatpush1.bf16.msra.mxu0 %v1386
  %2004 = vmatprep.subr.bf16.mxu0 0
  %2005 = vmatpush1.bf16.msra.mxu0 %v1387
  %2006 = vmatprep.subr.bf16.mxu0 0
  %2007 = vmatpush1.bf16.msra.mxu0 %v1388
  %2008 = vmatprep.subr.bf16.mxu0 0
  %2009 = vmatpush1.bf16.msra.mxu0 %v1389
  %2010 = vmatprep.subr.bf16.mxu0 0
  %2011 = vmatpush1.bf16.msra.mxu0 %v1390
  %2012 = vmatprep.subr.bf16.mxu0 0
  %2013 = vmatpush1.bf16.msra.mxu0 %v1391
  %2014 = vmatprep.subr.bf16.mxu0 0
  %2015 = vmatpush1.bf16.msra.mxu0 %v1392
  %2016 = vmatprep.subr.bf16.mxu0 0
  %2017 = vmatpush1.bf16.msra.mxu0 %v1393
  %2018 = vmatprep.subr.bf16.mxu0 0
  %2019 = vmatpush1.bf16.msra.mxu0 %v1394
  %2020 = vmatprep.subr.bf16.mxu0 0
  %2021 = vmatpush1.bf16.msra.mxu0 %v1395
  %2022 = vmatprep.subr.bf16.mxu0 0
  %2023 = vmatpush1.bf16.msra.mxu0 %v1396
  %2024 = vmatprep.subr.bf16.mxu0 0
  %2025 = vmatpush1.bf16.msra.mxu0 %v1397
  %2026 = vmatprep.mubr.bf16.mxu0 %v312
  %2027 = vmatmul.mubr.bf16.gmra.mrb[0].mxu0 %v311
  %v2028 = vpop.f32.mrb[0].mxu0
  %v2029 = vadd.f32 %v1932, %v2028
  %v2030 = vpop.f32.mrb[0].mxu0
  %v2031 = vpop.f32.mrb[0].mxu0
  %v2032 = vadd.f32 %v1935, %v2031
  %v2033 = vpop.f32.mrb[0].mxu0
  %2034 = vmatprep.mubr.bf16.mxu0 %v330
  %2035 = vmatmul.mubr.bf16.gmra.mrb[0].mxu0 %v329
  %v2036 = vpop.f32.mrb[0].mxu0
  %v2037 = vadd.f32 %v1940, %v2036
  %v2038 = vpop.f32.mrb[0].mxu0
  %v2039 = vpop.f32.mrb[0].mxu0
  %v2040 = vadd.f32 %v1943, %v2039
  %v2041 = vpop.f32.mrb[0].mxu0
  %2042 = vmatprep.mubr.bf16.mxu0 %v348
  %2043 = vmatmul.mubr.bf16.gmra.mrb[0].mxu0 %v347
  %v2044 = vpop.f32.mrb[0].mxu0
  %v2045 = vadd.f32 %v1948, %v2044
  %v2046 = vpop.f32.mrb[0].mxu0
  %v2047 = vpop.f32.mrb[0].mxu0
  %v2048 = vadd.f32 %v1951, %v2047
  %v2049 = vpop.f32.mrb[0].mxu0
  %2050 = vmatprep.mubr.bf16.mxu0 %v366
  %2051 = vmatmul.mubr.bf16.gmra.mrb[0].mxu0 %v365
  %v2052 = vpop.f32.mrb[0].mxu0
  %v2053 = vadd.f32 %v1956, %v2052
  %v2054 = vpop.f32.mrb[0].mxu0
  %v2055 = vpop.f32.mrb[0].mxu0
  %v2056 = vadd.f32 %v1959, %v2055
  %v2057 = vpop.f32.mrb[0].mxu0
  %2058 = vmatprep.mubr.bf16.mxu0 %v384
  %2059 = vmatmul.mubr.bf16.gmra.mrb[0].mxu0 %v383
  %v2060 = vpop.f32.mrb[0].mxu0
  %v2061 = vadd.f32 %v1964, %v2060
  %v2062 = vpop.f32.mrb[0].mxu0
  %v2063 = vpop.f32.mrb[0].mxu0
  %v2064 = vadd.f32 %v1967, %v2063
  %v2065 = vpop.f32.mrb[0].mxu0
  %2066 = vmatprep.mubr.bf16.mxu0 %v402
  %2067 = vmatmul.mubr.bf16.gmra.mrb[0].mxu0 %v401
  %v2068 = vpop.f32.mrb[0].mxu0
  %v2069 = vadd.f32 %v1972, %v2068
  %v2070 = vpop.f32.mrb[0].mxu0
  %v2071 = vpop.f32.mrb[0].mxu0
  %v2072 = vadd.f32 %v1975, %v2071
  %v2073 = vpop.f32.mrb[0].mxu0
  %2074 = vmatprep.mubr.bf16.mxu0 %v420
  %2075 = vmatmul.mubr.bf16.gmra.mrb[0].mxu0 %v419
  %v2076 = vpop.f32.mrb[0].mxu0
  %v2077 = vadd.f32 %v1980, %v2076
  %v2078 = vpop.f32.mrb[0].mxu0
  %v2079 = vpop.f32.mrb[0].mxu0
  %v2080 = vadd.f32 %v1983, %v2079
  %v2081 = vpop.f32.mrb[0].mxu0
  %2082 = vmatprep.mubr.bf16.mxu0 %v438
  %2083 = vmatmul.mubr.bf16.gmra.mrb[0].mxu0 %v437
  %v2084 = vpop.f32.mrb[0].mxu0
  %v2085 = vadd.f32 %v1988, %v2084
  %v2086 = vpop.f32.mrb[0].mxu0
  %v2087 = vpop.f32.mrb[0].mxu0
  %v2088 = vadd.f32 %v1991, %v2087
  %v2089 = vpop.f32.mrb[0].mxu0
  %2090 = vdwg.mxu0
  %2091 = vmatprep.subr.bf16.mxu0 0
  %2092 = vmatpush1.bf16.msra.mxu0 %v1398
  %2093 = vmatprep.subr.bf16.mxu0 0
  %2094 = vmatpush1.bf16.msra.mxu0 %v1399
  %2095 = vmatprep.subr.bf16.mxu0 0
  %2096 = vmatpush1.bf16.msra.mxu0 %v1400
  %2097 = vmatprep.subr.bf16.mxu0 0
  %2098 = vmatpush1.bf16.msra.mxu0 %v1401
  %2099 = vmatprep.subr.bf16.mxu0 0
  %2100 = vmatpush1.bf16.msra.mxu0 %v1402
  %2101 = vmatprep.subr.bf16.mxu0 0
  %2102 = vmatpush1.bf16.msra.mxu0 %v1403
  %2103 = vmatprep.subr.bf16.mxu0 0
  %2104 = vmatpush1.bf16.msra.mxu0 %v1404
  %2105 = vmatprep.subr.bf16.mxu0 0
  %2106 = vmatpush1.bf16.msra.mxu0 %v1405
  %2107 = vmatprep.subr.bf16.mxu0 0
  %2108 = vmatpush1.bf16.msra.mxu0 %v1406
  %2109 = vmatprep.subr.bf16.mxu0 0
  %2110 = vmatpush1.bf16.msra.mxu0 %v1407
  %2111 = vmatprep.subr.bf16.mxu0 0
  %2112 = vmatpush1.bf16.msra.mxu0 %v1408
  %2113 = vmatprep.subr.bf16.mxu0 0
  %2114 = vmatpush1.bf16.msra.mxu0 %v1409
  %2115 = vmatprep.subr.bf16.mxu0 0
  %2116 = vmatpush1.bf16.msra.mxu0 %v1410
  %2117 = vmatprep.subr.bf16.mxu0 0
  %2118 = vmatpush1.bf16.msra.mxu0 %v1411
  %2119 = vmatprep.subr.bf16.mxu0 0
  %2120 = vmatpush1.bf16.msra.mxu0 %v1412
  %2121 = vmatprep.subr.bf16.mxu0 0
  %2122 = vmatpush1.bf16.msra.mxu0 %v1413
  %2123 = vmatprep.mubr.bf16.mxu0 %v314
  %2124 = vmatmul.mubr.bf16.gmra.mrb[0].mxu0 %v313
  %v2125 = vpop.f32.mrb[0].mxu0
  %v2126 = vadd.f32 %v2029, %v2125
  %v2127 = vpop.f32.mrb[0].mxu0
  %v2128 = vpop.f32.mrb[0].mxu0
  %v2129 = vadd.f32 %v2032, %v2128
  %v2130 = vpop.f32.mrb[0].mxu0
  %2131 = vmatprep.mubr.bf16.mxu0 %v332
  %2132 = vmatmul.mubr.bf16.gmra.mrb[0].mxu0 %v331
  %v2133 = vpop.f32.mrb[0].mxu0
  %v2134 = vadd.f32 %v2037, %v2133
  %v2135 = vpop.f32.mrb[0].mxu0
  %v2136 = vpop.f32.mrb[0].mxu0
  %v2137 = vadd.f32 %v2040, %v2136
  %v2138 = vpop.f32.mrb[0].mxu0
  %2139 = vmatprep.mubr.bf16.mxu0 %v350
  %2140 = vmatmul.mubr.bf16.gmra.mrb[0].mxu0 %v349
  %v2141 = vpop.f32.mrb[0].mxu0
  %v2142 = vadd.f32 %v2045, %v2141
  %v2143 = vpop.f32.mrb[0].mxu0
  %v2144 = vpop.f32.mrb[0].mxu0
  %v2145 = vadd.f32 %v2048, %v2144
  %v2146 = vpop.f32.mrb[0].mxu0
  %2147 = vmatprep.mubr.bf16.mxu0 %v368
  %2148 = vmatmul.mubr.bf16.gmra.mrb[0].mxu0 %v367
  %v2149 = vpop.f32.mrb[0].mxu0
  %v2150 = vadd.f32 %v2053, %v2149
  %v2151 = vpop.f32.mrb[0].mxu0
  %v2152 = vpop.f32.mrb[0].mxu0
  %v2153 = vadd.f32 %v2056, %v2152
  %v2154 = vpop.f32.mrb[0].mxu0
  %2155 = vmatprep.mubr.bf16.mxu0 %v386
  %2156 = vmatmul.mubr.bf16.gmra.mrb[0].mxu0 %v385
  %v2157 = vpop.f32.mrb[0].mxu0
  %v2158 = vadd.f32 %v2061, %v2157
  %v2159 = vpop.f32.mrb[0].mxu0
  %v2160 = vpop.f32.mrb[0].mxu0
  %v2161 = vadd.f32 %v2064, %v2160
  %v2162 = vpop.f32.mrb[0].mxu0
  %2163 = vmatprep.mubr.bf16.mxu0 %v404
  %2164 = vmatmul.mubr.bf16.gmra.mrb[0].mxu0 %v403
  %v2165 = vpop.f32.mrb[0].mxu0
  %v2166 = vadd.f32 %v2069, %v2165
  %v2167 = vpop.f32.mrb[0].mxu0
  %v2168 = vpop.f32.mrb[0].mxu0
  %v2169 = vadd.f32 %v2072, %v2168
  %v2170 = vpop.f32.mrb[0].mxu0
  %2171 = vmatprep.mubr.bf16.mxu0 %v422
  %2172 = vmatmul.mubr.bf16.gmra.mrb[0].mxu0 %v421
  %v2173 = vpop.f32.mrb[0].mxu0
  %v2174 = vadd.f32 %v2077, %v2173
  %v2175 = vpop.f32.mrb[0].mxu0
  %v2176 = vpop.f32.mrb[0].mxu0
  %v2177 = vadd.f32 %v2080, %v2176
  %v2178 = vpop.f32.mrb[0].mxu0
  %2179 = vmatprep.mubr.bf16.mxu0 %v440
  %2180 = vmatmul.mubr.bf16.gmra.mrb[0].mxu0 %v439
  %v2181 = vpop.f32.mrb[0].mxu0
  %v2182 = vadd.f32 %v2085, %v2181
  %v2183 = vpop.f32.mrb[0].mxu0
  %v2184 = vpop.f32.mrb[0].mxu0
  %v2185 = vadd.f32 %v2088, %v2184
  %v2186 = vpop.f32.mrb[0].mxu0
  %2187 = vdwg.mxu0
  %2188 = vmatprep.subr.bf16.mxu0 0
  %2189 = vmatpush1.bf16.msra.mxu0 %v1414
  %2190 = vmatprep.subr.bf16.mxu0 0
  %2191 = vmatpush1.bf16.msra.mxu0 %v1415
  %2192 = vmatprep.subr.bf16.mxu0 0
  %2193 = vmatpush1.bf16.msra.mxu0 %v1416
  %2194 = vmatprep.subr.bf16.mxu0 0
  %2195 = vmatpush1.bf16.msra.mxu0 %v1417
  %2196 = vmatprep.subr.bf16.mxu0 0
  %2197 = vmatpush1.bf16.msra.mxu0 %v1418
  %2198 = vmatprep.subr.bf16.mxu0 0
  %2199 = vmatpush1.bf16.msra.mxu0 %v1419
  %2200 = vmatprep.subr.bf16.mxu0 0
  %2201 = vmatpush1.bf16.msra.mxu0 %v1420
  %2202 = vmatprep.subr.bf16.mxu0 0
  %2203 = vmatpush1.bf16.msra.mxu0 %v1421
  %2204 = vmatprep.subr.bf16.mxu0 0
  %2205 = vmatpush1.bf16.msra.mxu0 %v1422
  %2206 = vmatprep.subr.bf16.mxu0 0
  %2207 = vmatpush1.bf16.msra.mxu0 %v1423
  %2208 = vmatprep.subr.bf16.mxu0 0
  %2209 = vmatpush1.bf16.msra.mxu0 %v1424
  %2210 = vmatprep.subr.bf16.mxu0 0
  %2211 = vmatpush1.bf16.msra.mxu0 %v1425
  %2212 = vmatprep.subr.bf16.mxu0 0
  %2213 = vmatpush1.bf16.msra.mxu0 %v1426
  %2214 = vmatprep.subr.bf16.mxu0 0
  %2215 = vmatpush1.bf16.msra.mxu0 %v1427
  %2216 = vmatprep.subr.bf16.mxu0 0
  %2217 = vmatpush1.bf16.msra.mxu0 %v1428
  %2218 = vmatprep.subr.bf16.mxu0 0
  %2219 = vmatpush1.bf16.msra.mxu0 %v1429
  %2220 = vmatprep.mubr.bf16.mxu0 %v316
  %2221 = vmatmul.mubr.bf16.gmra.mrb[0].mxu0 %v315
  %v2222 = vpop.f32.mrb[0].mxu0
  %v2223 = vadd.f32 %v2126, %v2222
  %v2224 = vpop.f32.mrb[0].mxu0
  %v2225 = vpop.f32.mrb[0].mxu0
  %v2226 = vadd.f32 %v2129, %v2225
  %v2227 = vpop.f32.mrb[0].mxu0
  %2228 = vmatprep.mubr.bf16.mxu0 %v334
  %2229 = vmatmul.mubr.bf16.gmra.mrb[0].mxu0 %v333
  %v2230 = vpop.f32.mrb[0].mxu0
  %v2231 = vadd.f32 %v2134, %v2230
  %v2232 = vpop.f32.mrb[0].mxu0
  %v2233 = vpop.f32.mrb[0].mxu0
  %v2234 = vadd.f32 %v2137, %v2233
  %v2235 = vpop.f32.mrb[0].mxu0
  %2236 = vmatprep.mubr.bf16.mxu0 %v352
  %2237 = vmatmul.mubr.bf16.gmra.mrb[0].mxu0 %v351
  %v2238 = vpop.f32.mrb[0].mxu0
  %v2239 = vadd.f32 %v2142, %v2238
  %v2240 = vpop.f32.mrb[0].mxu0
  %v2241 = vpop.f32.mrb[0].mxu0
  %v2242 = vadd.f32 %v2145, %v2241
  %v2243 = vpop.f32.mrb[0].mxu0
  %2244 = vmatprep.mubr.bf16.mxu0 %v370
  %2245 = vmatmul.mubr.bf16.gmra.mrb[0].mxu0 %v369
  %v2246 = vpop.f32.mrb[0].mxu0
  %v2247 = vadd.f32 %v2150, %v2246
  %v2248 = vpop.f32.mrb[0].mxu0
  %v2249 = vpop.f32.mrb[0].mxu0
  %v2250 = vadd.f32 %v2153, %v2249
  %v2251 = vpop.f32.mrb[0].mxu0
  %2252 = vmatprep.mubr.bf16.mxu0 %v388
  %2253 = vmatmul.mubr.bf16.gmra.mrb[0].mxu0 %v387
  %v2254 = vpop.f32.mrb[0].mxu0
  %v2255 = vadd.f32 %v2158, %v2254
  %v2256 = vpop.f32.mrb[0].mxu0
  %v2257 = vpop.f32.mrb[0].mxu0
  %v2258 = vadd.f32 %v2161, %v2257
  %v2259 = vpop.f32.mrb[0].mxu0
  %2260 = vmatprep.mubr.bf16.mxu0 %v406
  %2261 = vmatmul.mubr.bf16.gmra.mrb[0].mxu0 %v405
  %v2262 = vpop.f32.mrb[0].mxu0
  %v2263 = vadd.f32 %v2166, %v2262
  %v2264 = vpop.f32.mrb[0].mxu0
  %v2265 = vpop.f32.mrb[0].mxu0
  %v2266 = vadd.f32 %v2169, %v2265
  %v2267 = vpop.f32.mrb[0].mxu0
  %2268 = vmatprep.mubr.bf16.mxu0 %v424
  %2269 = vmatmul.mubr.bf16.gmra.mrb[0].mxu0 %v423
  %v2270 = vpop.f32.mrb[0].mxu0
  %v2271 = vadd.f32 %v2174, %v2270
  %v2272 = vpop.f32.mrb[0].mxu0
  %v2273 = vpop.f32.mrb[0].mxu0
  %v2274 = vadd.f32 %v2177, %v2273
  %v2275 = vpop.f32.mrb[0].mxu0
  %2276 = vmatprep.mubr.bf16.mxu0 %v442
  %2277 = vmatmul.mubr.bf16.gmra.mrb[0].mxu0 %v441
  %v2278 = vpop.f32.mrb[0].mxu0
  %v2279 = vadd.f32 %v2182, %v2278
  %v2280 = vpop.f32.mrb[0].mxu0
  %v2281 = vpop.f32.mrb[0].mxu0
  %v2282 = vadd.f32 %v2185, %v2281
  %v2283 = vpop.f32.mrb[0].mxu0
  %2284 = vdwg.mxu0
  %2285 = vmatprep.subr.bf16.mxu0 0
  %2286 = vmatpush1.bf16.msra.mxu0 %v1430
  %2287 = vmatprep.subr.bf16.mxu0 0
  %2288 = vmatpush1.bf16.msra.mxu0 %v1431
  %2289 = vmatprep.subr.bf16.mxu0 0
  %2290 = vmatpush1.bf16.msra.mxu0 %v1432
  %2291 = vmatprep.subr.bf16.mxu0 0
  %2292 = vmatpush1.bf16.msra.mxu0 %v1433
  %2293 = vmatprep.subr.bf16.mxu0 0
  %2294 = vmatpush1.bf16.msra.mxu0 %v1434
  %2295 = vmatprep.subr.bf16.mxu0 0
  %2296 = vmatpush1.bf16.msra.mxu0 %v1435
  %2297 = vmatprep.subr.bf16.mxu0 0
  %2298 = vmatpush1.bf16.msra.mxu0 %v1436
  %2299 = vmatprep.subr.bf16.mxu0 0
  %2300 = vmatpush1.bf16.msra.mxu0 %v1437
  %2301 = vmatprep.subr.bf16.mxu0 0
  %2302 = vmatpush1.bf16.msra.mxu0 %v1438
  %2303 = vmatprep.subr.bf16.mxu0 0
  %2304 = vmatpush1.bf16.msra.mxu0 %v1439
  %2305 = vmatprep.subr.bf16.mxu0 0
  %2306 = vmatpush1.bf16.msra.mxu0 %v1440
  %2307 = vmatprep.subr.bf16.mxu0 0
  %2308 = vmatpush1.bf16.msra.mxu0 %v1441
  %2309 = vmatprep.subr.bf16.mxu0 0
  %2310 = vmatpush1.bf16.msra.mxu0 %v1442
  %2311 = vmatprep.subr.bf16.mxu0 0
  %2312 = vmatpush1.bf16.msra.mxu0 %v1443
  %2313 = vmatprep.subr.bf16.mxu0 0
  %2314 = vmatpush1.bf16.msra.mxu0 %v1444
  %2315 = vmatprep.subr.bf16.mxu0 0
  %2316 = vmatpush1.bf16.msra.mxu0 %v1445
  %2317 = vmatprep.mubr.bf16.mxu0 %v318
  %2318 = vmatmul.mubr.bf16.gmra.mrb[0].mxu0 %v317
  %v2319 = vpop.f32.mrb[0].mxu0
  %v2320 = vadd.f32 %v2223, %v2319
  %v2321 = vpop.f32.mrb[0].mxu0
  %v2322 = vpop.f32.mrb[0].mxu0
  %v2323 = vadd.f32 %v2226, %v2322
  %v2324 = vpop.f32.mrb[0].mxu0
  %2325 = vmatprep.mubr.bf16.mxu0 %v336
  %2326 = vmatmul.mubr.bf16.gmra.mrb[0].mxu0 %v335
  %v2327 = vpop.f32.mrb[0].mxu0
  %v2328 = vadd.f32 %v2231, %v2327
  %v2329 = vpop.f32.mrb[0].mxu0
  %v2330 = vpop.f32.mrb[0].mxu0
  %v2331 = vadd.f32 %v2234, %v2330
  %v2332 = vpop.f32.mrb[0].mxu0
  %2333 = vmatprep.mubr.bf16.mxu0 %v354
  %2334 = vmatmul.mubr.bf16.gmra.mrb[0].mxu0 %v353
  %v2335 = vpop.f32.mrb[0].mxu0
  %v2336 = vadd.f32 %v2239, %v2335
  %v2337 = vpop.f32.mrb[0].mxu0
  %v2338 = vpop.f32.mrb[0].mxu0
  %v2339 = vadd.f32 %v2242, %v2338
  %v2340 = vpop.f32.mrb[0].mxu0
  %2341 = vmatprep.mubr.bf16.mxu0 %v372
  %2342 = vmatmul.mubr.bf16.gmra.mrb[0].mxu0 %v371
  %v2343 = vpop.f32.mrb[0].mxu0
  %v2344 = vadd.f32 %v2247, %v2343
  %v2345 = vpop.f32.mrb[0].mxu0
  %v2346 = vpop.f32.mrb[0].mxu0
  %v2347 = vadd.f32 %v2250, %v2346
  %v2348 = vpop.f32.mrb[0].mxu0
  %2349 = vmatprep.mubr.bf16.mxu0 %v390
  %2350 = vmatmul.mubr.bf16.gmra.mrb[0].mxu0 %v389
  %v2351 = vpop.f32.mrb[0].mxu0
  %v2352 = vadd.f32 %v2255, %v2351
  %v2353 = vpop.f32.mrb[0].mxu0
  %v2354 = vpop.f32.mrb[0].mxu0
  %v2355 = vadd.f32 %v2258, %v2354
  %v2356 = vpop.f32.mrb[0].mxu0
  %2357 = vmatprep.mubr.bf16.mxu0 %v408
  %2358 = vmatmul.mubr.bf16.gmra.mrb[0].mxu0 %v407
  %v2359 = vpop.f32.mrb[0].mxu0
  %v2360 = vadd.f32 %v2263, %v2359
  %v2361 = vpop.f32.mrb[0].mxu0
  %v2362 = vpop.f32.mrb[0].mxu0
  %v2363 = vadd.f32 %v2266, %v2362
  %v2364 = vpop.f32.mrb[0].mxu0
  %2365 = vmatprep.mubr.bf16.mxu0 %v426
  %2366 = vmatmul.mubr.bf16.gmra.mrb[0].mxu0 %v425
  %v2367 = vpop.f32.mrb[0].mxu0
  %v2368 = vadd.f32 %v2271, %v2367
  %v2369 = vpop.f32.mrb[0].mxu0
  %v2370 = vpop.f32.mrb[0].mxu0
  %v2371 = vadd.f32 %v2274, %v2370
  %v2372 = vpop.f32.mrb[0].mxu0
  %2373 = vmatprep.mubr.bf16.mxu0 %v444
  %2374 = vmatmul.mubr.bf16.gmra.mrb[0].mxu0 %v443
  %v2375 = vpop.f32.mrb[0].mxu0
  %v2376 = vadd.f32 %v2279, %v2375
  %v2377 = vpop.f32.mrb[0].mxu0
  %v2378 = vpop.f32.mrb[0].mxu0
  %v2379 = vadd.f32 %v2282, %v2378
  %v2380 = vpop.f32.mrb[0].mxu0
  %2381 = vdwg.mxu0
  %2382 = vmatprep.subr.bf16.mxu0 0
  %2383 = vmatpush1.bf16.msra.mxu0 %v1446
  %2384 = vmatprep.subr.bf16.mxu0 0
  %2385 = vmatpush1.bf16.msra.mxu0 %v1447
  %2386 = vmatprep.subr.bf16.mxu0 0
  %2387 = vmatpush1.bf16.msra.mxu0 %v1448
  %2388 = vmatprep.subr.bf16.mxu0 0
  %2389 = vmatpush1.bf16.msra.mxu0 %v1449
  %2390 = vmatprep.subr.bf16.mxu0 0
  %2391 = vmatpush1.bf16.msra.mxu0 %v1450
  %2392 = vmatprep.subr.bf16.mxu0 0
  %2393 = vmatpush1.bf16.msra.mxu0 %v1451
  %2394 = vmatprep.subr.bf16.mxu0 0
  %2395 = vmatpush1.bf16.msra.mxu0 %v1452
  %2396 = vmatprep.subr.bf16.mxu0 0
  %2397 = vmatpush1.bf16.msra.mxu0 %v1453
  %2398 = vmatprep.subr.bf16.mxu0 0
  %2399 = vmatpush1.bf16.msra.mxu0 %v1454
  %2400 = vmatprep.subr.bf16.mxu0 0
  %2401 = vmatpush1.bf16.msra.mxu0 %v1455
  %2402 = vmatprep.subr.bf16.mxu0 0
  %2403 = vmatpush1.bf16.msra.mxu0 %v1456
  %2404 = vmatprep.subr.bf16.mxu0 0
  %2405 = vmatpush1.bf16.msra.mxu0 %v1457
  %2406 = vmatprep.subr.bf16.mxu0 0
  %2407 = vmatpush1.bf16.msra.mxu0 %v1458
  %2408 = vmatprep.subr.bf16.mxu0 0
  %2409 = vmatpush1.bf16.msra.mxu0 %v1459
  %2410 = vmatprep.subr.bf16.mxu0 0
  %2411 = vmatpush1.bf16.msra.mxu0 %v1460
  %2412 = vmatprep.subr.bf16.mxu0 0
  %2413 = vmatpush1.bf16.msra.mxu0 %v1461
  %2414 = vmatprep.mubr.bf16.mxu0 %v320
  %2415 = vmatmul.mubr.bf16.gmra.mrb[0].mxu0 %v319
  %v2416 = vpop.f32.mrb[0].mxu0
  %v2417 = vadd.f32 %v2320, %v2416
  %v2418 = vpop.f32.mrb[0].mxu0
  %v2419 = vpop.f32.mrb[0].mxu0
  %v2420 = vadd.f32 %v2323, %v2419
  %v2421 = vpop.f32.mrb[0].mxu0
  %2422 = vmatprep.mubr.bf16.mxu0 %v338
  %2423 = vmatmul.mubr.bf16.gmra.mrb[0].mxu0 %v337
  %v2424 = vpop.f32.mrb[0].mxu0
  %v2425 = vadd.f32 %v2328, %v2424
  %v2426 = vpop.f32.mrb[0].mxu0
  %v2427 = vpop.f32.mrb[0].mxu0
  %v2428 = vadd.f32 %v2331, %v2427
  %v2429 = vpop.f32.mrb[0].mxu0
  %2430 = vmatprep.mubr.bf16.mxu0 %v356
  %2431 = vmatmul.mubr.bf16.gmra.mrb[0].mxu0 %v355
  %v2432 = vpop.f32.mrb[0].mxu0
  %v2433 = vadd.f32 %v2336, %v2432
  %v2434 = vpop.f32.mrb[0].mxu0
  %v2435 = vpop.f32.mrb[0].mxu0
  %v2436 = vadd.f32 %v2339, %v2435
  %v2437 = vpop.f32.mrb[0].mxu0
  %2438 = vmatprep.mubr.bf16.mxu0 %v374
  %2439 = vmatmul.mubr.bf16.gmra.mrb[0].mxu0 %v373
  %v2440 = vpop.f32.mrb[0].mxu0
  %v2441 = vadd.f32 %v2344, %v2440
  %v2442 = vpop.f32.mrb[0].mxu0
  %v2443 = vpop.f32.mrb[0].mxu0
  %v2444 = vadd.f32 %v2347, %v2443
  %v2445 = vpop.f32.mrb[0].mxu0
  %2446 = vmatprep.mubr.bf16.mxu0 %v392
  %2447 = vmatmul.mubr.bf16.gmra.mrb[0].mxu0 %v391
  %v2448 = vpop.f32.mrb[0].mxu0
  %v2449 = vadd.f32 %v2352, %v2448
  %v2450 = vpop.f32.mrb[0].mxu0
  %v2451 = vpop.f32.mrb[0].mxu0
  %v2452 = vadd.f32 %v2355, %v2451
  %v2453 = vpop.f32.mrb[0].mxu0
  %2454 = vmatprep.mubr.bf16.mxu0 %v410
  %2455 = vmatmul.mubr.bf16.gmra.mrb[0].mxu0 %v409
  %v2456 = vpop.f32.mrb[0].mxu0
  %v2457 = vadd.f32 %v2360, %v2456
  %v2458 = vpop.f32.mrb[0].mxu0
  %v2459 = vpop.f32.mrb[0].mxu0
  %v2460 = vadd.f32 %v2363, %v2459
  %v2461 = vpop.f32.mrb[0].mxu0
  %2462 = vmatprep.mubr.bf16.mxu0 %v428
  %2463 = vmatmul.mubr.bf16.gmra.mrb[0].mxu0 %v427
  %v2464 = vpop.f32.mrb[0].mxu0
  %v2465 = vadd.f32 %v2368, %v2464
  %v2466 = vpop.f32.mrb[0].mxu0
  %v2467 = vpop.f32.mrb[0].mxu0
  %v2468 = vadd.f32 %v2371, %v2467
  %v2469 = vpop.f32.mrb[0].mxu0
  %2470 = vmatprep.mubr.bf16.mxu0 %v446
  %2471 = vmatmul.mubr.bf16.gmra.mrb[0].mxu0 %v445
  %v2472 = vpop.f32.mrb[0].mxu0
  %v2473 = vadd.f32 %v2376, %v2472
  %v2474 = vpop.f32.mrb[0].mxu0
  %v2475 = vpop.f32.mrb[0].mxu0
  %v2476 = vadd.f32 %v2379, %v2475
  %v2477 = vpop.f32.mrb[0].mxu0
  %2478 = vdwg.mxu0
  %v2479 = vmax.f32 %v2417, 0.0
  %v2480 = vmax.f32 %v2420, 0.0
  %v2481 = vmax.f32 %v2425, 0.0
  %v2482 = vmax.f32 %v2428, 0.0
  %v2483 = vmax.f32 %v2433, 0.0
  %v2484 = vmax.f32 %v2436, 0.0
  %v2485 = vmax.f32 %v2441, 0.0
  %v2486 = vmax.f32 %v2444, 0.0
  %v2487 = vmax.f32 %v2449, 0.0
  %v2488 = vmax.f32 %v2452, 0.0
  %v2489 = vmax.f32 %v2457, 0.0
  %v2490 = vmax.f32 %v2460, 0.0
  %v2491 = vmax.f32 %v2465, 0.0
  %v2492 = vmax.f32 %v2468, 0.0
  %v2493 = vmax.f32 %v2473, 0.0
  %v2494 = vmax.f32 %v2476, 0.0
  %2495 = vst [vmem:[%s3] sm:$0xff] %v2479
  %2496 = vst [vmem:[%s3 + $0x8] sm:$0xff] %v2480
  %2497 = vst [vmem:[%s3 + $0x10] sm:$0xff] %v2481
  %2498 = vst [vmem:[%s3 + $0x18] sm:$0xff] %v2482
  %2499 = vst [vmem:[%s3 + $0x20] sm:$0xff] %v2483
  %2500 = vst [vmem:[%s3 + $0x28] sm:$0xff] %v2484
  %2501 = vst [vmem:[%s3 + $0x30] sm:$0xff] %v2485
  %2502 = vst [vmem:[%s3 + $0x38] sm:$0xff] %v2486
  %2503 = vst [vmem:[%s3 + $0x40] sm:$0xff] %v2487
  %2504 = vst [vmem:[%s3 + $0x48] sm:$0xff] %v2488
  %2505 = vst [vmem:[%s3 + $0x50] sm:$0xff] %v2489
  %2506 = vst [vmem:[%s3 + $0x58] sm:$0xff] %v2490
  %2507 = vst [vmem:[%s3 + $0x60] sm:$0xff] %v2491
  %2508 = vst [vmem:[%s3 + $0x68] sm:$0xff] %v2492
  %2509 = vst [vmem:[%s3 + $0x70] sm:$0xff] %v2493
  %2510 = vst [vmem:[%s3 + $0x78] sm:$0xff] %v2494
  // Predicated region
  $region14: #{deepcl_forward.18} parent=0 // pred_check
    _
  $region15: #{deepcl_forward.18} parent=0 // pred_check_branch
    %2512 = sbr.rel (0) target = $region17
  $region16: #{deepcl_forward.18} parent=0 // pred_region
    _
  $region17: #{deepcl_forward.18} parent=0 // pred_fallthru
    _
  // Predicated region
  $region18: #{deepcl_forward.18} parent=0 // pred_check
    _
  $region19: #{deepcl_forward.18} parent=0 // pred_check_branch
    %2514 = sbr.rel (0) target = $region21
  $region20: #{deepcl_forward.18} parent=0 // pred_region
    _
  $region21: #{deepcl_forward.18} parent=0 // pred_fallthru
    _

// kernel: deepcl_forward.20
$region0: #{deepcl_forward.20}
  #allocation0 [shape = 'u32[]', space=smem, size = 0x4, offset = 0x4, fixed_abs, tag = 'smem constant byte address 0x4 - core index']
  #allocation1 [shape = 'u32[144,128]{1,0:T(1,128)}', space=vmem, size = 0x12000, scoped, tag = 'internal scratch']
  %s0 = inlined_call_operand.vmem [shape: f32[512,1152], index: 0, kind: input, shape index: {}]
  %s1 = inlined_call_operand.vmem [shape: bf16[1152,128], index: 1, kind: input, shape index: {}]
  %s2 = inlined_call_operand.vmem [shape: f32[1,128], index: 2, kind: input, shape index: {}]
  %s3 = inlined_call_operand.vmem [shape: bf16[128,128], index: 3, kind: input, shape index: {}]
  %s4 = inlined_call_operand.vmem [shape: f32[1,128], index: 4, kind: input, shape index: {}]
  %s5 = inlined_call_operand.vmem [shape: f32[512,128], index: 5, kind: output, shape index: {}]
  %s6 = sld [smem:[#allocation0]]
  $region53: #{deepcl_forward.20} parent=0
    _
  %s8 = ssub.s32 1, %s6
  %s9 = scalar_select 0, %s8, %s6
  loop: start=0, step=1, limit=4
  $region2: #{deepcl_forward.20} parent=0 // loop_pre_header
    _
  $region3: #{deepcl_forward.20} parent=0 // loop_header
    %s11 = sphi 0, %s15
    %p12 = scmp.ge.s32.totalorder %s11, 4
    %s21 = sphi 0, %s23
    %s24 = sphi 0, %s21
    %s25 = sphi 0, %s24
    %s41 = sphi 0, %s25
    %s45 = sphi 0, %s45
    %s47 = sphi 0, %s45
    %s48 = sphi 0, %s47
    %s62 = sphi 0, %s48
    %s66 = sphi 0, %s66
    %s68 = sphi 0, %s66
    %s69 = sphi 0, %s68
    %s83 = sphi 0, %s69
    %s87 = sphi 0, %s87
    %s89 = sphi 0, %s87
    %s90 = sphi 0, %s89
    %s104 = sphi 0, %s90
    %s108 = sphi 0, %s108
    %s110 = sphi 0, %s108
    %s111 = sphi 0, %s110
    %s125 = sphi 0, %s111
    %s131 = sphi 0, %s133
    %s134 = sphi 0, %s131
    %s135 = sphi 0, %s134
    %s151 = sphi 0, %s135
  $region4: #{deepcl_forward.20} parent=0 // loop_header_branch
    %14 = sbr.rel (%p12) target = $region8
  $region5: #{deepcl_forward.20} parent=0 // loop_body
    %s16 = ssub.s32 %s11, 1
    %s17 = ssub.s32 %s11, 2
    %s18 = sadd.s32 %s11, 1
    %s19 = ssub.s32 %s11, %s18
    %p20 = scmp.eq.s32.totalorder %s19, 0
    %s22 = sadd.s32 %s21, 1
    %s23 = scalar_select %p20, %s21, %s22
    %p26 = pneg %p20
    %p27 = scmp.eq.s32.totalorder %s11, 1
    %p28 = por %p26, %p27
    %p29 = scmp.ne.s32.totalorder %s21, %s24
    %p30 = scmp.eq.s32.totalorder %s11, 0
    %p31 = por %p29, %p30
    %p32 = scmp.ne.s32.totalorder %s21, %s24
    %p33 = scmp.eq.s32.totalorder %s16, 1
    %p34 = por %p32, %p33
    %p35 = scmp.ne.s32.totalorder %s24, %s25
    %p36 = scmp.eq.s32.totalorder %s16, 0
    %p37 = por %p35, %p36
    %p38 = scmp.ne.s32.totalorder %s24, %s25
    %p39 = scmp.eq.s32.totalorder %s17, 1
    %p40 = por %p38, %p39
    %p42 = scmp.ne.s32.totalorder %s25, %s41
    %p43 = scmp.eq.s32.totalorder %s17, 0
    %p44 = por %p42, %p43
    %s46 = sadd.s32 %s45, 1
    %p49 = scmp.eq.s32.totalorder %s11, 1
    %p50 = scmp.ne.s32.totalorder %s45, %s47
    %p51 = scmp.eq.s32.totalorder %s11, 0
    %p52 = por %p50, %p51
    %p53 = scmp.ne.s32.totalorder %s45, %s47
    %p54 = scmp.eq.s32.totalorder %s16, 1
    %p55 = por %p53, %p54
    %p56 = scmp.ne.s32.totalorder %s47, %s48
    %p57 = scmp.eq.s32.totalorder %s16, 0
    %p58 = por %p56, %p57
    %p59 = scmp.ne.s32.totalorder %s47, %s48
    %p60 = scmp.eq.s32.totalorder %s17, 1
    %p61 = por %p59, %p60
    %p63 = scmp.ne.s32.totalorder %s48, %s62
    %p64 = scmp.eq.s32.totalorder %s17, 0
    %p65 = por %p63, %p64
    %s67 = sadd.s32 %s66, 1
    %p70 = scmp.eq.s32.totalorder %s11, 1
    %p71 = scmp.ne.s32.totalorder %s66, %s68
    %p72 = scmp.eq.s32.totalorder %s11, 0
    %p73 = por %p71, %p72
    %p74 = scmp.ne.s32.totalorder %s66, %s68
    %p75 = scmp.eq.s32.totalorder %s16, 1
    %p76 = por %p74, %p75
    %p77 = scmp.ne.s32.totalorder %s68, %s69
    %p78 = scmp.eq.s32.totalorder %s16, 0
    %p79 = por %p77, %p78
    %p80 = scmp.ne.s32.totalorder %s68, %s69
    %p81 = scmp.eq.s32.totalorder %s17, 1
    %p82 = por %p80, %p81
    %p84 = scmp.ne.s32.totalorder %s69, %s83
    %p85 = scmp.eq.s32.totalorder %s17, 0
    %p86 = por %p84, %p85
    %s88 = sadd.s32 %s87, 1
    %p91 = scmp.eq.s32.totalorder %s11, 1
    %p92 = scmp.ne.s32.totalorder %s87, %s89
    %p93 = scmp.eq.s32.totalorder %s11, 0
    %p94 = por %p92, %p93
    %p95 = scmp.ne.s32.totalorder %s87, %s89
    %p96 = scmp.eq.s32.totalorder %s16, 1
    %p97 = por %p95, %p96
    %p98 = scmp.ne.s32.totalorder %s89, %s90
    %p99 = scmp.eq.s32.totalorder %s16, 0
    %p100 = por %p98, %p99
    %p101 = scmp.ne.s32.totalorder %s89, %s90
    %p102 = scmp.eq.s32.totalorder %s17, 1
    %p103 = por %p101, %p102
    %p105 = scmp.ne.s32.totalorder %s90, %s104
    %p106 = scmp.eq.s32.totalorder %s17, 0
    %p107 = por %p105, %p106
    %s109 = sadd.s32 %s108, 1
    %p112 = scmp.eq.s32.totalorder %s11, 1
    %p113 = scmp.ne.s32.totalorder %s108, %s110
    %p114 = scmp.eq.s32.totalorder %s11, 0
    %p115 = por %p113, %p114
    %p116 = scmp.ne.s32.totalorder %s108, %s110
    %p117 = scmp.eq.s32.totalorder %s16, 1
    %p118 = por %p116, %p117
    %p119 = scmp.ne.s32.totalorder %s110, %s111
    %p120 = scmp.eq.s32.totalorder %s16, 0
    %p121 = por %p119, %p120
    %p122 = scmp.ne.s32.totalorder %s110, %s111
    %p123 = scmp.eq.s32.totalorder %s17, 1
    %p124 = por %p122, %p123
    %p126 = scmp.ne.s32.totalorder %s111, %s125
    %p127 = scmp.eq.s32.totalorder %s17, 0
    %p128 = por %p126, %p127
    %s129 = ssub.s32 %s11, %s18
    %p130 = scmp.eq.s32.totalorder %s129, 0
    %s132 = sadd.s32 %s131, 1
    %s133 = scalar_select %p130, %s131, %s132
    %p136 = pneg %p130
    %p137 = scmp.eq.s32.totalorder %s11, 1
    %p138 = por %p136, %p137
    %p139 = scmp.ne.s32.totalorder %s131, %s134
    %p140 = scmp.eq.s32.totalorder %s11, 0
    %p141 = por %p139, %p140
    %p142 = scmp.ne.s32.totalorder %s131, %s134
    %p143 = scmp.eq.s32.totalorder %s16, 1
    %p144 = por %p142, %p143
    %p145 = scmp.ne.s32.totalorder %s134, %s135
    %p146 = scmp.eq.s32.totalorder %s16, 0
    %p147 = por %p145, %p146
    %p148 = scmp.ne.s32.totalorder %s134, %s135
    %p149 = scmp.eq.s32.totalorder %s17, 1
    %p150 = por %p148, %p149
    %p152 = scmp.ne.s32.totalorder %s135, %s151
    %p153 = scmp.eq.s32.totalorder %s17, 0
    %p154 = por %p152, %p153
    %p155 = scmp.le.s32.totalorder 1, %s11
    %p156 = scmp.lt.s32.totalorder %s11, 3
    %p157 = pnand %p155, %p156
    %p158 = pneg %p157
    // Predicated region
    $region9: #{deepcl_forward.20} parent=5 // pred_check
      _
    $region10: #{deepcl_forward.20} parent=5 // pred_check_branch
      %160 = sbr.rel (%p157) target = $region12
    $region11: #{deepcl_forward.20} parent=5 // pred_region
      %s161 = ssub.s32 %s11, 1
      // Predicated region
      $region13: #{deepcl_forward.20} parent=11 // pred_check
        %p162 = pneg %p58
      $region14: #{deepcl_forward.20} parent=11 // pred_check_branch
        %164 = sbr.rel (%p162) target = $region16
      $region15: #{deepcl_forward.20} parent=11 // pred_region
        _
      $region16: #{deepcl_forward.20} parent=11 // pred_fallthru
        _
      // Predicated region
      $region17: #{deepcl_forward.20} parent=11 // pred_check
        %p165 = pneg %p79
      $region18: #{deepcl_forward.20} parent=11 // pred_check_branch
        %167 = sbr.rel (%p165) target = $region20
      $region19: #{deepcl_forward.20} parent=11 // pred_region
        _
      $region20: #{deepcl_forward.20} parent=11 // pred_fallthru
        _
      // Predicated region
      $region21: #{deepcl_forward.20} parent=11 // pred_check
        %p168 = pneg %p100
      $region22: #{deepcl_forward.20} parent=11 // pred_check_branch
        %170 = sbr.rel (%p168) target = $region24
      $region23: #{deepcl_forward.20} parent=11 // pred_region
        _
      $region24: #{deepcl_forward.20} parent=11 // pred_fallthru
        _
      // Predicated region
      $region25: #{deepcl_forward.20} parent=11 // pred_check
        %p171 = pneg %p121
      $region26: #{deepcl_forward.20} parent=11 // pred_check_branch
        %173 = sbr.rel (%p171) target = $region28
      $region27: #{deepcl_forward.20} parent=11 // pred_region
        _
      $region28: #{deepcl_forward.20} parent=11 // pred_fallthru
        _
    $region12: #{deepcl_forward.20} parent=5 // pred_fallthru
      _
    %p174 = scmp.lt.s32.totalorder %s11, 2
    // Predicated region
    $region29: #{deepcl_forward.20} parent=5 // pred_check
      %p175 = pneg %p174
    $region30: #{deepcl_forward.20} parent=5 // pred_check_branch
      %177 = sbr.rel (%p175) target = $region32
    $region31: #{deepcl_forward.20} parent=5 // pred_region
      // Predicated region
      $region33: #{deepcl_forward.20} parent=31 // pred_check
        %p178 = pneg %p31
      $region34: #{deepcl_forward.20} parent=31 // pred_check_branch
        %180 = sbr.rel (%p178) target = $region36
      $region35: #{deepcl_forward.20} parent=31 // pred_region
        %s181 = smul.u32 32, %s11
        %p182 = scmp.lt.s32.totalorder %s181, 63
        %s183 = scalar_select %p182, %s181, 63
        %s184 = smul.addr %s183, 9
        %s185 = smul.addr %s184, 8
        %s186 = scalar_lea.vmem %s0, %s185
        %s187 = smul.u32 32, %s11
      $region36: #{deepcl_forward.20} parent=31 // pred_fallthru
        _
    $region32: #{deepcl_forward.20} parent=5 // pred_fallthru
      _
    %p188 = scmp.le.s32.totalorder 1, %s11
    %p189 = scmp.lt.s32.totalorder %s11, 3
    %p190 = pnand %p188, %p189
    %p191 = pneg %p190
    // Predicated region
    $region37: #{deepcl_forward.20} parent=5 // pred_check
      _
    $region38: #{deepcl_forward.20} parent=5 // pred_check_branch
      %193 = sbr.rel (%p190) target = $region40
    $region39: #{deepcl_forward.20} parent=5 // pred_region
      %s194 = ssub.s32 %s11, 1
      %s195 = smul.u32 32, %s16
      %p196 = scmp.lt.s32.totalorder %s195, 63
      %s197 = scalar_select %p196, %s195, 63
      %s198 = smul.addr %s197, 9
      %s199 = smul.addr %s198, 8
      %s200 = scalar_lea.vmem %s0, %s199
      %p201 = pneg %p37
      %p202 = pneg %p34
      %p203 = pneg %p58
      %p204 = pneg %p55
      %p205 = pneg %p79
      %p206 = pneg %p76
      %p207 = pneg %p100
      %p208 = pneg %p97
      %p209 = pneg %p121
      %p210 = pneg %p118
      %p211 = pneg %p147
      %p212 = pneg %p144
      %s213 = smul.u32 32, %s16
      %p214 = scmp.lt.s32.totalorder %s213, 63
      %s215 = scalar_select %p214, %s213, 63
      %s216 = smul.addr %s215, 8
      %s217 = scalar_lea.vmem %s5, %s216
      %s218 = smul.u32 32, %s16
      %p219 = scmp.lt.s32.totalorder %s218, 63
      %s220 = scalar_select %p219, %s218, 63
      %s221 = smul.addr %s220, 9
      %s222 = smul.addr %s221, 8
      %s223 = scalar_lea.vmem %s0, %s222
      %s224 = smul.u32 32, %s16
      %s225 = smul.u32 32, %s16
      %p226 = scmp.lt.s32.totalorder %s225, 63
      %s227 = scalar_select %p226, %s225, 63
      %s228 = smul.addr %s227, 8
      %s229 = scalar_lea.vmem %s5, %s228
      %s230 = smul.u32 32, %s16
      %v232 = vld [vmem:[%s223] sm:$0xff]
      %v233 = vld [vmem:[%s223 + $0x8] sm:$0xff]
      %v234 = vld [vmem:[%s223 + $0x10] sm:$0xff]
      %v235 = vld [vmem:[%s223 + $0x18] sm:$0xff]
      %v236 = vld [vmem:[%s223 + $0x20] sm:$0xff]
      %v237 = vld [vmem:[%s223 + $0x28] sm:$0xff]
      %v238 = vld [vmem:[%s223 + $0x30] sm:$0xff]
      %v239 = vld [vmem:[%s223 + $0x38] sm:$0xff]
      %v240 = vld [vmem:[%s223 + $0x40] sm:$0xff]
      %v241 = vld [vmem:[%s223 + $0x48] sm:$0xff]
      %v242 = vld [vmem:[%s223 + $0x50] sm:$0xff]
      %v243 = vld [vmem:[%s223 + $0x58] sm:$0xff]
      %v244 = vld [vmem:[%s223 + $0x60] sm:$0xff]
      %v245 = vld [vmem:[%s223 + $0x68] sm:$0xff]
      %v246 = vld [vmem:[%s223 + $0x70] sm:$0xff]
      %v247 = vld [vmem:[%s223 + $0x78] sm:$0xff]
      %v248 = vld [vmem:[%s223 + $0x80] sm:$0xff]
      %v249 = vld [vmem:[%s223 + $0x88] sm:$0xff]
      %v250 = vld [vmem:[%s223 + $0x90] sm:$0xff]
      %v251 = vld [vmem:[%s223 + $0x98] sm:$0xff]
      %v252 = vld [vmem:[%s223 + $0xa0] sm:$0xff]
      %v253 = vld [vmem:[%s223 + $0xa8] sm:$0xff]
      %v254 = vld [vmem:[%s223 + $0xb0] sm:$0xff]
      %v255 = vld [vmem:[%s223 + $0xb8] sm:$0xff]
      %v256 = vld [vmem:[%s223 + $0xc0] sm:$0xff]
      %v257 = vld [vmem:[%s223 + $0xc8] sm:$0xff]
      %v258 = vld [vmem:[%s223 + $0xd0] sm:$0xff]
      %v259 = vld [vmem:[%s223 + $0xd8] sm:$0xff]
      %v260 = vld [vmem:[%s223 + $0xe0] sm:$0xff]
      %v261 = vld [vmem:[%s223 + $0xe8] sm:$0xff]
      %v262 = vld [vmem:[%s223 + $0xf0] sm:$0xff]
      %v263 = vld [vmem:[%s223 + $0xf8] sm:$0xff]
      %v264 = vld [vmem:[%s223 + $0x100] sm:$0xff]
      %v265 = vld [vmem:[%s223 + $0x108] sm:$0xff]
      %v266 = vld [vmem:[%s223 + $0x110] sm:$0xff]
      %v267 = vld [vmem:[%s223 + $0x118] sm:$0xff]
      %v268 = vld [vmem:[%s223 + $0x120] sm:$0xff]
      %v269 = vld [vmem:[%s223 + $0x128] sm:$0xff]
      %v270 = vld [vmem:[%s223 + $0x130] sm:$0xff]
      %v271 = vld [vmem:[%s223 + $0x138] sm:$0xff]
      %v272 = vld [vmem:[%s223 + $0x140] sm:$0xff]
      %v273 = vld [vmem:[%s223 + $0x148] sm:$0xff]
      %v274 = vld [vmem:[%s223 + $0x150] sm:$0xff]
      %v275 = vld [vmem:[%s223 + $0x158] sm:$0xff]
      %v276 = vld [vmem:[%s223 + $0x160] sm:$0xff]
      %v277 = vld [vmem:[%s223 + $0x168] sm:$0xff]
      %v278 = vld [vmem:[%s223 + $0x170] sm:$0xff]
      %v279 = vld [vmem:[%s223 + $0x178] sm:$0xff]
      %v280 = vld [vmem:[%s223 + $0x180] sm:$0xff]
      %v281 = vld [vmem:[%s223 + $0x188] sm:$0xff]
      %v282 = vld [vmem:[%s223 + $0x190] sm:$0xff]
      %v283 = vld [vmem:[%s223 + $0x198] sm:$0xff]
      %v284 = vld [vmem:[%s223 + $0x1a0] sm:$0xff]
      %v285 = vld [vmem:[%s223 + $0x1a8] sm:$0xff]
      %v286 = vld [vmem:[%s223 + $0x1b0] sm:$0xff]
      %v287 = vld [vmem:[%s223 + $0x1b8] sm:$0xff]
      %v288 = vld [vmem:[%s223 + $0x1c0] sm:$0xff]
      %v289 = vld [vmem:[%s223 + $0x1c8] sm:$0xff]
      %v290 = vld [vmem:[%s223 + $0x1d0] sm:$0xff]
      %v291 = vld [vmem:[%s223 + $0x1d8] sm:$0xff]
      %v292 = vld [vmem:[%s223 + $0x1e0] sm:$0xff]
      %v293 = vld [vmem:[%s223 + $0x1e8] sm:$0xff]
      %v294 = vld [vmem:[%s223 + $0x1f0] sm:$0xff]
      %v295 = vld [vmem:[%s223 + $0x1f8] sm:$0xff]
      %v296 = vld [vmem:[%s223 + $0x200] sm:$0xff]
      %v297 = vld [vmem:[%s223 + $0x208] sm:$0xff]
      %v298 = vld [vmem:[%s223 + $0x210] sm:$0xff]
      %v299 = vld [vmem:[%s223 + $0x218] sm:$0xff]
      %v300 = vld [vmem:[%s223 + $0x220] sm:$0xff]
      %v301 = vld [vmem:[%s223 + $0x228] sm:$0xff]
      %v302 = vld [vmem:[%s223 + $0x230] sm:$0xff]
      %v303 = vld [vmem:[%s223 + $0x238] sm:$0xff]
      %v304 = vld [vmem:[%s223 + $0x240] sm:$0xff]
      %v305 = vld [vmem:[%s223 + $0x248] sm:$0xff]
      %v306 = vld [vmem:[%s223 + $0x250] sm:$0xff]
      %v307 = vld [vmem:[%s223 + $0x258] sm:$0xff]
      %v308 = vld [vmem:[%s223 + $0x260] sm:$0xff]
      %v309 = vld [vmem:[%s223 + $0x268] sm:$0xff]
      %v310 = vld [vmem:[%s223 + $0x270] sm:$0xff]
      %v311 = vld [vmem:[%s223 + $0x278] sm:$0xff]
      %v312 = vld [vmem:[%s223 + $0x280] sm:$0xff]
      %v313 = vld [vmem:[%s223 + $0x288] sm:$0xff]
      %v314 = vld [vmem:[%s223 + $0x290] sm:$0xff]
      %v315 = vld [vmem:[%s223 + $0x298] sm:$0xff]
      %v316 = vld [vmem:[%s223 + $0x2a0] sm:$0xff]
      %v317 = vld [vmem:[%s223 + $0x2a8] sm:$0xff]
      %v318 = vld [vmem:[%s223 + $0x2b0] sm:$0xff]
      %v319 = vld [vmem:[%s223 + $0x2b8] sm:$0xff]
      %v320 = vld [vmem:[%s223 + $0x2c0] sm:$0xff]
      %v321 = vld [vmem:[%s223 + $0x2c8] sm:$0xff]
      %v322 = vld [vmem:[%s223 + $0x2d0] sm:$0xff]
      %v323 = vld [vmem:[%s223 + $0x2d8] sm:$0xff]
      %v324 = vld [vmem:[%s223 + $0x2e0] sm:$0xff]
      %v325 = vld [vmem:[%s223 + $0x2e8] sm:$0xff]
      %v326 = vld [vmem:[%s223 + $0x2f0] sm:$0xff]
      %v327 = vld [vmem:[%s223 + $0x2f8] sm:$0xff]
      %v328 = vld [vmem:[%s223 + $0x300] sm:$0xff]
      %v329 = vld [vmem:[%s223 + $0x308] sm:$0xff]
      %v330 = vld [vmem:[%s223 + $0x310] sm:$0xff]
      %v331 = vld [vmem:[%s223 + $0x318] sm:$0xff]
      %v332 = vld [vmem:[%s223 + $0x320] sm:$0xff]
      %v333 = vld [vmem:[%s223 + $0x328] sm:$0xff]
      %v334 = vld [vmem:[%s223 + $0x330] sm:$0xff]
      %v335 = vld [vmem:[%s223 + $0x338] sm:$0xff]
      %v336 = vld [vmem:[%s223 + $0x340] sm:$0xff]
      %v337 = vld [vmem:[%s223 + $0x348] sm:$0xff]
      %v338 = vld [vmem:[%s223 + $0x350] sm:$0xff]
      %v339 = vld [vmem:[%s223 + $0x358] sm:$0xff]
      %v340 = vld [vmem:[%s223 + $0x360] sm:$0xff]
      %v341 = vld [vmem:[%s223 + $0x368] sm:$0xff]
      %v342 = vld [vmem:[%s223 + $0x370] sm:$0xff]
      %v343 = vld [vmem:[%s223 + $0x378] sm:$0xff]
      %v344 = vld [vmem:[%s223 + $0x380] sm:$0xff]
      %v345 = vld [vmem:[%s223 + $0x388] sm:$0xff]
      %v346 = vld [vmem:[%s223 + $0x390] sm:$0xff]
      %v347 = vld [vmem:[%s223 + $0x398] sm:$0xff]
      %v348 = vld [vmem:[%s223 + $0x3a0] sm:$0xff]
      %v349 = vld [vmem:[%s223 + $0x3a8] sm:$0xff]
      %v350 = vld [vmem:[%s223 + $0x3b0] sm:$0xff]
      %v351 = vld [vmem:[%s223 + $0x3b8] sm:$0xff]
      %v352 = vld [vmem:[%s223 + $0x3c0] sm:$0xff]
      %v353 = vld [vmem:[%s223 + $0x3c8] sm:$0xff]
      %v354 = vld [vmem:[%s223 + $0x3d0] sm:$0xff]
      %v355 = vld [vmem:[%s223 + $0x3d8] sm:$0xff]
      %v356 = vld [vmem:[%s223 + $0x3e0] sm:$0xff]
      %v357 = vld [vmem:[%s223 + $0x3e8] sm:$0xff]
      %v358 = vld [vmem:[%s223 + $0x3f0] sm:$0xff]
      %v359 = vld [vmem:[%s223 + $0x3f8] sm:$0xff]
      %v360 = vld [vmem:[%s223 + $0x400] sm:$0xff]
      %v361 = vld [vmem:[%s223 + $0x408] sm:$0xff]
      %v362 = vld [vmem:[%s223 + $0x410] sm:$0xff]
      %v363 = vld [vmem:[%s223 + $0x418] sm:$0xff]
      %v364 = vld [vmem:[%s223 + $0x420] sm:$0xff]
      %v365 = vld [vmem:[%s223 + $0x428] sm:$0xff]
      %v366 = vld [vmem:[%s223 + $0x430] sm:$0xff]
      %v367 = vld [vmem:[%s223 + $0x438] sm:$0xff]
      %v368 = vld [vmem:[%s223 + $0x440] sm:$0xff]
      %v369 = vld [vmem:[%s223 + $0x448] sm:$0xff]
      %v370 = vld [vmem:[%s223 + $0x450] sm:$0xff]
      %v371 = vld [vmem:[%s223 + $0x458] sm:$0xff]
      %v372 = vld [vmem:[%s223 + $0x460] sm:$0xff]
      %v373 = vld [vmem:[%s223 + $0x468] sm:$0xff]
      %v374 = vld [vmem:[%s223 + $0x470] sm:$0xff]
      %v375 = vld [vmem:[%s223 + $0x478] sm:$0xff]
      %v376 = vld [vmem:[%s223 + $0x480] sm:$0xff]
      %v377 = vld [vmem:[%s223 + $0x488] sm:$0xff]
      %v378 = vld [vmem:[%s223 + $0x490] sm:$0xff]
      %v379 = vld [vmem:[%s223 + $0x498] sm:$0xff]
      %v380 = vld [vmem:[%s223 + $0x4a0] sm:$0xff]
      %v381 = vld [vmem:[%s223 + $0x4a8] sm:$0xff]
      %v382 = vld [vmem:[%s223 + $0x4b0] sm:$0xff]
      %v383 = vld [vmem:[%s223 + $0x4b8] sm:$0xff]
      %v384 = vld [vmem:[%s223 + $0x4c0] sm:$0xff]
      %v385 = vld [vmem:[%s223 + $0x4c8] sm:$0xff]
      %v386 = vld [vmem:[%s223 + $0x4d0] sm:$0xff]
      %v387 = vld [vmem:[%s223 + $0x4d8] sm:$0xff]
      %v388 = vld [vmem:[%s223 + $0x4e0] sm:$0xff]
      %v389 = vld [vmem:[%s223 + $0x4e8] sm:$0xff]
      %v390 = vld [vmem:[%s223 + $0x4f0] sm:$0xff]
      %v391 = vld [vmem:[%s223 + $0x4f8] sm:$0xff]
      %v392 = vld [vmem:[%s223 + $0x500] sm:$0xff]
      %v393 = vld [vmem:[%s223 + $0x508] sm:$0xff]
      %v394 = vld [vmem:[%s223 + $0x510] sm:$0xff]
      %v395 = vld [vmem:[%s223 + $0x518] sm:$0xff]
      %v396 = vld [vmem:[%s223 + $0x520] sm:$0xff]
      %v397 = vld [vmem:[%s223 + $0x528] sm:$0xff]
      %v398 = vld [vmem:[%s223 + $0x530] sm:$0xff]
      %v399 = vld [vmem:[%s223 + $0x538] sm:$0xff]
      %v400 = vld [vmem:[%s223 + $0x540] sm:$0xff]
      %v401 = vld [vmem:[%s223 + $0x548] sm:$0xff]
      %v402 = vld [vmem:[%s223 + $0x550] sm:$0xff]
      %v403 = vld [vmem:[%s223 + $0x558] sm:$0xff]
      %v404 = vld [vmem:[%s223 + $0x560] sm:$0xff]
      %v405 = vld [vmem:[%s223 + $0x568] sm:$0xff]
      %v406 = vld [vmem:[%s223 + $0x570] sm:$0xff]
      %v407 = vld [vmem:[%s223 + $0x578] sm:$0xff]
      %v408 = vld [vmem:[%s223 + $0x580] sm:$0xff]
      %v409 = vld [vmem:[%s223 + $0x588] sm:$0xff]
      %v410 = vld [vmem:[%s223 + $0x590] sm:$0xff]
      %v411 = vld [vmem:[%s223 + $0x598] sm:$0xff]
      %v412 = vld [vmem:[%s223 + $0x5a0] sm:$0xff]
      %v413 = vld [vmem:[%s223 + $0x5a8] sm:$0xff]
      %v414 = vld [vmem:[%s223 + $0x5b0] sm:$0xff]
      %v415 = vld [vmem:[%s223 + $0x5b8] sm:$0xff]
      %v416 = vld [vmem:[%s223 + $0x5c0] sm:$0xff]
      %v417 = vld [vmem:[%s223 + $0x5c8] sm:$0xff]
      %v418 = vld [vmem:[%s223 + $0x5d0] sm:$0xff]
      %v419 = vld [vmem:[%s223 + $0x5d8] sm:$0xff]
      %v420 = vld [vmem:[%s223 + $0x5e0] sm:$0xff]
      %v421 = vld [vmem:[%s223 + $0x5e8] sm:$0xff]
      %v422 = vld [vmem:[%s223 + $0x5f0] sm:$0xff]
      %v423 = vld [vmem:[%s223 + $0x5f8] sm:$0xff]
      %v424 = vld [vmem:[%s223 + $0x600] sm:$0xff]
      %v425 = vld [vmem:[%s223 + $0x608] sm:$0xff]
      %v426 = vld [vmem:[%s223 + $0x610] sm:$0xff]
      %v427 = vld [vmem:[%s223 + $0x618] sm:$0xff]
      %v428 = vld [vmem:[%s223 + $0x620] sm:$0xff]
      %v429 = vld [vmem:[%s223 + $0x628] sm:$0xff]
      %v430 = vld [vmem:[%s223 + $0x630] sm:$0xff]
      %v431 = vld [vmem:[%s223 + $0x638] sm:$0xff]
      %v432 = vld [vmem:[%s223 + $0x640] sm:$0xff]
      %v433 = vld [vmem:[%s223 + $0x648] sm:$0xff]
      %v434 = vld [vmem:[%s223 + $0x650] sm:$0xff]
      %v435 = vld [vmem:[%s223 + $0x658] sm:$0xff]
      %v436 = vld [vmem:[%s223 + $0x660] sm:$0xff]
      %v437 = vld [vmem:[%s223 + $0x668] sm:$0xff]
      %v438 = vld [vmem:[%s223 + $0x670] sm:$0xff]
      %v439 = vld [vmem:[%s223 + $0x678] sm:$0xff]
      %v440 = vld [vmem:[%s223 + $0x680] sm:$0xff]
      %v441 = vld [vmem:[%s223 + $0x688] sm:$0xff]
      %v442 = vld [vmem:[%s223 + $0x690] sm:$0xff]
      %v443 = vld [vmem:[%s223 + $0x698] sm:$0xff]
      %v444 = vld [vmem:[%s223 + $0x6a0] sm:$0xff]
      %v445 = vld [vmem:[%s223 + $0x6a8] sm:$0xff]
      %v446 = vld [vmem:[%s223 + $0x6b0] sm:$0xff]
      %v447 = vld [vmem:[%s223 + $0x6b8] sm:$0xff]
      %v448 = vld [vmem:[%s223 + $0x6c0] sm:$0xff]
      %v449 = vld [vmem:[%s223 + $0x6c8] sm:$0xff]
      %v450 = vld [vmem:[%s223 + $0x6d0] sm:$0xff]
      %v451 = vld [vmem:[%s223 + $0x6d8] sm:$0xff]
      %v452 = vld [vmem:[%s223 + $0x6e0] sm:$0xff]
      %v453 = vld [vmem:[%s223 + $0x6e8] sm:$0xff]
      %v454 = vld [vmem:[%s223 + $0x6f0] sm:$0xff]
      %v455 = vld [vmem:[%s223 + $0x6f8] sm:$0xff]
      %v456 = vld [vmem:[%s223 + $0x700] sm:$0xff]
      %v457 = vld [vmem:[%s223 + $0x708] sm:$0xff]
      %v458 = vld [vmem:[%s223 + $0x710] sm:$0xff]
      %v459 = vld [vmem:[%s223 + $0x718] sm:$0xff]
      %v460 = vld [vmem:[%s223 + $0x720] sm:$0xff]
      %v461 = vld [vmem:[%s223 + $0x728] sm:$0xff]
      %v462 = vld [vmem:[%s223 + $0x730] sm:$0xff]
      %v463 = vld [vmem:[%s223 + $0x738] sm:$0xff]
      %v464 = vld [vmem:[%s223 + $0x740] sm:$0xff]
      %v465 = vld [vmem:[%s223 + $0x748] sm:$0xff]
      %v466 = vld [vmem:[%s223 + $0x750] sm:$0xff]
      %v467 = vld [vmem:[%s223 + $0x758] sm:$0xff]
      %v468 = vld [vmem:[%s223 + $0x760] sm:$0xff]
      %v469 = vld [vmem:[%s223 + $0x768] sm:$0xff]
      %v470 = vld [vmem:[%s223 + $0x770] sm:$0xff]
      %v471 = vld [vmem:[%s223 + $0x778] sm:$0xff]
      %v472 = vld [vmem:[%s223 + $0x780] sm:$0xff]
      %v473 = vld [vmem:[%s223 + $0x788] sm:$0xff]
      %v474 = vld [vmem:[%s223 + $0x790] sm:$0xff]
      %v475 = vld [vmem:[%s223 + $0x798] sm:$0xff]
      %v476 = vld [vmem:[%s223 + $0x7a0] sm:$0xff]
      %v477 = vld [vmem:[%s223 + $0x7a8] sm:$0xff]
      %v478 = vld [vmem:[%s223 + $0x7b0] sm:$0xff]
      %v479 = vld [vmem:[%s223 + $0x7b8] sm:$0xff]
      %v480 = vld [vmem:[%s223 + $0x7c0] sm:$0xff]
      %v481 = vld [vmem:[%s223 + $0x7c8] sm:$0xff]
      %v482 = vld [vmem:[%s223 + $0x7d0] sm:$0xff]
      %v483 = vld [vmem:[%s223 + $0x7d8] sm:$0xff]
      %v484 = vld [vmem:[%s223 + $0x7e0] sm:$0xff]
      %v485 = vld [vmem:[%s223 + $0x7e8] sm:$0xff]
      %v486 = vld [vmem:[%s223 + $0x7f0] sm:$0xff]
      %v487 = vld [vmem:[%s223 + $0x7f8] sm:$0xff]
      %v488 = vld [vmem:[%s223 + $0x800] sm:$0xff]
      %v489 = vld [vmem:[%s223 + $0x808] sm:$0xff]
      %v490 = vld [vmem:[%s223 + $0x810] sm:$0xff]
      %v491 = vld [vmem:[%s223 + $0x818] sm:$0xff]
      %v492 = vld [vmem:[%s223 + $0x820] sm:$0xff]
      %v493 = vld [vmem:[%s223 + $0x828] sm:$0xff]
      %v494 = vld [vmem:[%s223 + $0x830] sm:$0xff]
      %v495 = vld [vmem:[%s223 + $0x838] sm:$0xff]
      %v496 = vld [vmem:[%s223 + $0x840] sm:$0xff]
      %v497 = vld [vmem:[%s223 + $0x848] sm:$0xff]
      %v498 = vld [vmem:[%s223 + $0x850] sm:$0xff]
      %v499 = vld [vmem:[%s223 + $0x858] sm:$0xff]
      %v500 = vld [vmem:[%s223 + $0x860] sm:$0xff]
      %v501 = vld [vmem:[%s223 + $0x868] sm:$0xff]
      %v502 = vld [vmem:[%s223 + $0x870] sm:$0xff]
      %v503 = vld [vmem:[%s223 + $0x878] sm:$0xff]
      %v504 = vld [vmem:[%s223 + $0x880] sm:$0xff]
      %v505 = vld [vmem:[%s223 + $0x888] sm:$0xff]
      %v506 = vld [vmem:[%s223 + $0x890] sm:$0xff]
      %v507 = vld [vmem:[%s223 + $0x898] sm:$0xff]
      %v508 = vld [vmem:[%s223 + $0x8a0] sm:$0xff]
      %v509 = vld [vmem:[%s223 + $0x8a8] sm:$0xff]
      %v510 = vld [vmem:[%s223 + $0x8b0] sm:$0xff]
      %v511 = vld [vmem:[%s223 + $0x8b8] sm:$0xff]
      %v512 = vld [vmem:[%s223 + $0x8c0] sm:$0xff]
      %v513 = vld [vmem:[%s223 + $0x8c8] sm:$0xff]
      %v514 = vld [vmem:[%s223 + $0x8d0] sm:$0xff]
      %v515 = vld [vmem:[%s223 + $0x8d8] sm:$0xff]
      %v516 = vld [vmem:[%s223 + $0x8e0] sm:$0xff]
      %v517 = vld [vmem:[%s223 + $0x8e8] sm:$0xff]
      %v518 = vld [vmem:[%s223 + $0x8f0] sm:$0xff]
      %v519 = vld [vmem:[%s223 + $0x8f8] sm:$0xff]
      %v520 = vpack.c.bf16 %v241, %v232
      %v521 = vpack.c.bf16 %v242, %v233
      %v522 = vpack.c.bf16 %v243, %v234
      %v523 = vpack.c.bf16 %v244, %v235
      %v524 = vpack.c.bf16 %v245, %v236
      %v525 = vpack.c.bf16 %v246, %v237
      %v526 = vpack.c.bf16 %v247, %v238
      %v527 = vpack.c.bf16 %v248, %v239
      %v528 = vpack.c.bf16 %v249, %v240
      %v529 = vpack.c.bf16 %v259, %v250
      %v530 = vpack.c.bf16 %v260, %v251
      %v531 = vpack.c.bf16 %v261, %v252
      %v532 = vpack.c.bf16 %v262, %v253
      %v533 = vpack.c.bf16 %v263, %v254
      %v534 = vpack.c.bf16 %v264, %v255
      %v535 = vpack.c.bf16 %v265, %v256
      %v536 = vpack.c.bf16 %v266, %v257
      %v537 = vpack.c.bf16 %v267, %v258
      %v538 = vpack.c.bf16 %v277, %v268
      %v539 = vpack.c.bf16 %v278, %v269
      %v540 = vpack.c.bf16 %v279, %v270
      %v541 = vpack.c.bf16 %v280, %v271
      %v542 = vpack.c.bf16 %v281, %v272
      %v543 = vpack.c.bf16 %v282, %v273
      %v544 = vpack.c.bf16 %v283, %v274
      %v545 = vpack.c.bf16 %v284, %v275
      %v546 = vpack.c.bf16 %v285, %v276
      %v547 = vpack.c.bf16 %v295, %v286
      %v548 = vpack.c.bf16 %v296, %v287
      %v549 = vpack.c.bf16 %v297, %v288
      %v550 = vpack.c.bf16 %v298, %v289
      %v551 = vpack.c.bf16 %v299, %v290
      %v552 = vpack.c.bf16 %v300, %v291
      %v553 = vpack.c.bf16 %v301, %v292
      %v554 = vpack.c.bf16 %v302, %v293
      %v555 = vpack.c.bf16 %v303, %v294
      %v556 = vpack.c.bf16 %v313, %v304
      %v557 = vpack.c.bf16 %v314, %v305
      %v558 = vpack.c.bf16 %v315, %v306
      %v559 = vpack.c.bf16 %v316, %v307
      %v560 = vpack.c.bf16 %v317, %v308
      %v561 = vpack.c.bf16 %v318, %v309
      %v562 = vpack.c.bf16 %v319, %v310
      %v563 = vpack.c.bf16 %v320, %v311
      %v564 = vpack.c.bf16 %v321, %v312
      %v565 = vpack.c.bf16 %v331, %v322
      %v566 = vpack.c.bf16 %v332, %v323
      %v567 = vpack.c.bf16 %v333, %v324
      %v568 = vpack.c.bf16 %v334, %v325
      %v569 = vpack.c.bf16 %v335, %v326
      %v570 = vpack.c.bf16 %v336, %v327
      %v571 = vpack.c.bf16 %v337, %v328
      %v572 = vpack.c.bf16 %v338, %v329
      %v573 = vpack.c.bf16 %v339, %v330
      %v574 = vpack.c.bf16 %v349, %v340
      %v575 = vpack.c.bf16 %v350, %v341
      %v576 = vpack.c.bf16 %v351, %v342
      %v577 = vpack.c.bf16 %v352, %v343
      %v578 = vpack.c.bf16 %v353, %v344
      %v579 = vpack.c.bf16 %v354, %v345
      %v580 = vpack.c.bf16 %v355, %v346
      %v581 = vpack.c.bf16 %v356, %v347
      %v582 = vpack.c.bf16 %v357, %v348
      %v583 = vpack.c.bf16 %v367, %v358
      %v584 = vpack.c.bf16 %v368, %v359
      %v585 = vpack.c.bf16 %v369, %v360
      %v586 = vpack.c.bf16 %v370, %v361
      %v587 = vpack.c.bf16 %v371, %v362
      %v588 = vpack.c.bf16 %v372, %v363
      %v589 = vpack.c.bf16 %v373, %v364
      %v590 = vpack.c.bf16 %v374, %v365
      %v591 = vpack.c.bf16 %v375, %v366
      %v592 = vpack.c.bf16 %v385, %v376
      %v593 = vpack.c.bf16 %v386, %v377
      %v594 = vpack.c.bf16 %v387, %v378
      %v595 = vpack.c.bf16 %v388, %v379
      %v596 = vpack.c.bf16 %v389, %v380
      %v597 = vpack.c.bf16 %v390, %v381
      %v598 = vpack.c.bf16 %v391, %v382
      %v599 = vpack.c.bf16 %v392, %v383
      %v600 = vpack.c.bf16 %v393, %v384
      %v601 = vpack.c.bf16 %v403, %v394
      %v602 = vpack.c.bf16 %v404, %v395
      %v603 = vpack.c.bf16 %v405, %v396
      %v604 = vpack.c.bf16 %v406, %v397
      %v605 = vpack.c.bf16 %v407, %v398
      %v606 = vpack.c.bf16 %v408, %v399
      %v607 = vpack.c.bf16 %v409, %v400
      %v608 = vpack.c.bf16 %v410, %v401
      %v609 = vpack.c.bf16 %v411, %v402
      %v610 = vpack.c.bf16 %v421, %v412
      %v611 = vpack.c.bf16 %v422, %v413
      %v612 = vpack.c.bf16 %v423, %v414
      %v613 = vpack.c.bf16 %v424, %v415
      %v614 = vpack.c.bf16 %v425, %v416
      %v615 = vpack.c.bf16 %v426, %v417
      %v616 = vpack.c.bf16 %v427, %v418
      %v617 = vpack.c.bf16 %v428, %v419
      %v618 = vpack.c.bf16 %v429, %v420
      %v619 = vpack.c.bf16 %v439, %v430
      %v620 = vpack.c.bf16 %v440, %v431
      %v621 = vpack.c.bf16 %v441, %v432
      %v622 = vpack.c.bf16 %v442, %v433
      %v623 = vpack.c.bf16 %v443, %v434
      %v624 = vpack.c.bf16 %v444, %v435
      %v625 = vpack.c.bf16 %v445, %v436
      %v626 = vpack.c.bf16 %v446, %v437
      %v627 = vpack.c.bf16 %v447, %v438
      %v628 = vpack.c.bf16 %v457, %v448
      %v629 = vpack.c.bf16 %v458, %v449
      %v630 = vpack.c.bf16 %v459, %v450
      %v631 = vpack.c.bf16 %v460, %v451
      %v632 = vpack.c.bf16 %v461, %v452
      %v633 = vpack.c.bf16 %v462, %v453
      %v634 = vpack.c.bf16 %v463, %v454
      %v635 = vpack.c.bf16 %v464, %v455
      %v636 = vpack.c.bf16 %v465, %v456
      %v637 = vpack.c.bf16 %v475, %v466
      %v638 = vpack.c.bf16 %v476, %v467
      %v639 = vpack.c.bf16 %v477, %v468
      %v640 = vpack.c.bf16 %v478, %v469
      %v641 = vpack.c.bf16 %v479, %v470
      %v642 = vpack.c.bf16 %v480, %v471
      %v643 = vpack.c.bf16 %v481, %v472
      %v644 = vpack.c.bf16 %v482, %v473
      %v645 = vpack.c.bf16 %v483, %v474
      %v646 = vpack.c.bf16 %v493, %v484
      %v647 = vpack.c.bf16 %v494, %v485
      %v648 = vpack.c.bf16 %v495, %v486
      %v649 = vpack.c.bf16 %v496, %v487
      %v650 = vpack.c.bf16 %v497, %v488
      %v651 = vpack.c.bf16 %v498, %v489
      %v652 = vpack.c.bf16 %v499, %v490
      %v653 = vpack.c.bf16 %v500, %v491
      %v654 = vpack.c.bf16 %v501, %v492
      %v655 = vpack.c.bf16 %v511, %v502
      %v656 = vpack.c.bf16 %v512, %v503
      %v657 = vpack.c.bf16 %v513, %v504
      %v658 = vpack.c.bf16 %v514, %v505
      %v659 = vpack.c.bf16 %v515, %v506
      %v660 = vpack.c.bf16 %v516, %v507
      %v661 = vpack.c.bf16 %v517, %v508
      %v662 = vpack.c.bf16 %v518, %v509
      %v663 = vpack.c.bf16 %v519, %v510
      %v664 = vld [vmem:[%s1] sm:$0xf]
      %v665 = vld [vmem:[%s1 + $0x4] sm:$0xf]
      %v666 = vld [vmem:[%s1 + $0x8] sm:$0xf]
      %v667 = vld [vmem:[%s1 + $0xc] sm:$0xf]
      %v668 = vld [vmem:[%s1 + $0x10] sm:$0xf]
      %v669 = vld [vmem:[%s1 + $0x14] sm:$0xf]
      %v670 = vld [vmem:[%s1 + $0x18] sm:$0xf]
      %v671 = vld [vmem:[%s1 + $0x1c] sm:$0xf]
      %v672 = vld [vmem:[%s1 + $0x20] sm:$0xf]
      %v673 = vld [vmem:[%s1 + $0x24] sm:$0xf]
      %v674 = vld [vmem:[%s1 + $0x28] sm:$0xf]
      %v675 = vld [vmem:[%s1 + $0x2c] sm:$0xf]
      %v676 = vld [vmem:[%s1 + $0x30] sm:$0xf]
      %v677 = vld [vmem:[%s1 + $0x34] sm:$0xf]
      %v678 = vld [vmem:[%s1 + $0x38] sm:$0xf]
      %v679 = vld [vmem:[%s1 + $0x3c] sm:$0xf]
      %v680 = vld [vmem:[%s1 + $0x40] sm:$0xf]
      %v681 = vld [vmem:[%s1 + $0x44] sm:$0xf]
      %v682 = vld [vmem:[%s1 + $0x48] sm:$0xf]
      %v683 = vld [vmem:[%s1 + $0x4c] sm:$0xf]
      %v684 = vld [vmem:[%s1 + $0x50] sm:$0xf]
      %v685 = vld [vmem:[%s1 + $0x54] sm:$0xf]
      %v686 = vld [vmem:[%s1 + $0x58] sm:$0xf]
      %v687 = vld [vmem:[%s1 + $0x5c] sm:$0xf]
      %v688 = vld [vmem:[%s1 + $0x60] sm:$0xf]
      %v689 = vld [vmem:[%s1 + $0x64] sm:$0xf]
      %v690 = vld [vmem:[%s1 + $0x68] sm:$0xf]
      %v691 = vld [vmem:[%s1 + $0x6c] sm:$0xf]
      %v692 = vld [vmem:[%s1 + $0x70] sm:$0xf]
      %v693 = vld [vmem:[%s1 + $0x74] sm:$0xf]
      %v694 = vld [vmem:[%s1 + $0x78] sm:$0xf]
      %v695 = vld [vmem:[%s1 + $0x7c] sm:$0xf]
      %v696 = vld [vmem:[%s1 + $0x80] sm:$0xf]
      %v697 = vld [vmem:[%s1 + $0x84] sm:$0xf]
      %v698 = vld [vmem:[%s1 + $0x88] sm:$0xf]
      %v699 = vld [vmem:[%s1 + $0x8c] sm:$0xf]
      %v700 = vld [vmem:[%s1 + $0x90] sm:$0xf]
      %v701 = vld [vmem:[%s1 + $0x94] sm:$0xf]
      %v702 = vld [vmem:[%s1 + $0x98] sm:$0xf]
      %v703 = vld [vmem:[%s1 + $0x9c] sm:$0xf]
      %v704 = vld [vmem:[%s1 + $0xa0] sm:$0xf]
      %v705 = vld [vmem:[%s1 + $0xa4] sm:$0xf]
      %v706 = vld [vmem:[%s1 + $0xa8] sm:$0xf]
      %v707 = vld [vmem:[%s1 + $0xac] sm:$0xf]
      %v708 = vld [vmem:[%s1 + $0xb0] sm:$0xf]
      %v709 = vld [vmem:[%s1 + $0xb4] sm:$0xf]
      %v710 = vld [vmem:[%s1 + $0xb8] sm:$0xf]
      %v711 = vld [vmem:[%s1 + $0xbc] sm:$0xf]
      %v712 = vld [vmem:[%s1 + $0xc0] sm:$0xf]
      %v713 = vld [vmem:[%s1 + $0xc4] sm:$0xf]
      %v714 = vld [vmem:[%s1 + $0xc8] sm:$0xf]
      %v715 = vld [vmem:[%s1 + $0xcc] sm:$0xf]
      %v716 = vld [vmem:[%s1 + $0xd0] sm:$0xf]
      %v717 = vld [vmem:[%s1 + $0xd4] sm:$0xf]
      %v718 = vld [vmem:[%s1 + $0xd8] sm:$0xf]
      %v719 = vld [vmem:[%s1 + $0xdc] sm:$0xf]
      %v720 = vld [vmem:[%s1 + $0xe0] sm:$0xf]
      %v721 = vld [vmem:[%s1 + $0xe4] sm:$0xf]
      %v722 = vld [vmem:[%s1 + $0xe8] sm:$0xf]
      %v723 = vld [vmem:[%s1 + $0xec] sm:$0xf]
      %v724 = vld [vmem:[%s1 + $0xf0] sm:$0xf]
      %v725 = vld [vmem:[%s1 + $0xf4] sm:$0xf]
      %v726 = vld [vmem:[%s1 + $0xf8] sm:$0xf]
      %v727 = vld [vmem:[%s1 + $0xfc] sm:$0xf]
      %v728 = vld [vmem:[%s1 + $0x100] sm:$0xf]
      %v729 = vld [vmem:[%s1 + $0x104] sm:$0xf]
      %v730 = vld [vmem:[%s1 + $0x108] sm:$0xf]
      %v731 = vld [vmem:[%s1 + $0x10c] sm:$0xf]
      %v732 = vld [vmem:[%s1 + $0x110] sm:$0xf]
      %v733 = vld [vmem:[%s1 + $0x114] sm:$0xf]
      %v734 = vld [vmem:[%s1 + $0x118] sm:$0xf]
      %v735 = vld [vmem:[%s1 + $0x11c] sm:$0xf]
      %v736 = vld [vmem:[%s1 + $0x120] sm:$0xf]
      %v737 = vld [vmem:[%s1 + $0x124] sm:$0xf]
      %v738 = vld [vmem:[%s1 + $0x128] sm:$0xf]
      %v739 = vld [vmem:[%s1 + $0x12c] sm:$0xf]
      %v740 = vld [vmem:[%s1 + $0x130] sm:$0xf]
      %v741 = vld [vmem:[%s1 + $0x134] sm:$0xf]
      %v742 = vld [vmem:[%s1 + $0x138] sm:$0xf]
      %v743 = vld [vmem:[%s1 + $0x13c] sm:$0xf]
      %v744 = vld [vmem:[%s1 + $0x140] sm:$0xf]
      %v745 = vld [vmem:[%s1 + $0x144] sm:$0xf]
      %v746 = vld [vmem:[%s1 + $0x148] sm:$0xf]
      %v747 = vld [vmem:[%s1 + $0x14c] sm:$0xf]
      %v748 = vld [vmem:[%s1 + $0x150] sm:$0xf]
      %v749 = vld [vmem:[%s1 + $0x154] sm:$0xf]
      %v750 = vld [vmem:[%s1 + $0x158] sm:$0xf]
      %v751 = vld [vmem:[%s1 + $0x15c] sm:$0xf]
      %v752 = vld [vmem:[%s1 + $0x160] sm:$0xf]
      %v753 = vld [vmem:[%s1 + $0x164] sm:$0xf]
      %v754 = vld [vmem:[%s1 + $0x168] sm:$0xf]
      %v755 = vld [vmem:[%s1 + $0x16c] sm:$0xf]
      %v756 = vld [vmem:[%s1 + $0x170] sm:$0xf]
      %v757 = vld [vmem:[%s1 + $0x174] sm:$0xf]
      %v758 = vld [vmem:[%s1 + $0x178] sm:$0xf]
      %v759 = vld [vmem:[%s1 + $0x17c] sm:$0xf]
      %v760 = vld [vmem:[%s1 + $0x180] sm:$0xf]
      %v761 = vld [vmem:[%s1 + $0x184] sm:$0xf]
      %v762 = vld [vmem:[%s1 + $0x188] sm:$0xf]
      %v763 = vld [vmem:[%s1 + $0x18c] sm:$0xf]
      %v764 = vld [vmem:[%s1 + $0x190] sm:$0xf]
      %v765 = vld [vmem:[%s1 + $0x194] sm:$0xf]
      %v766 = vld [vmem:[%s1 + $0x198] sm:$0xf]
      %v767 = vld [vmem:[%s1 + $0x19c] sm:$0xf]
      %v768 = vld [vmem:[%s1 + $0x1a0] sm:$0xf]
      %v769 = vld [vmem:[%s1 + $0x1a4] sm:$0xf]
      %v770 = vld [vmem:[%s1 + $0x1a8] sm:$0xf]
      %v771 = vld [vmem:[%s1 + $0x1ac] sm:$0xf]
      %v772 = vld [vmem:[%s1 + $0x1b0] sm:$0xf]
      %v773 = vld [vmem:[%s1 + $0x1b4] sm:$0xf]
      %v774 = vld [vmem:[%s1 + $0x1b8] sm:$0xf]
      %v775 = vld [vmem:[%s1 + $0x1bc] sm:$0xf]
      %v776 = vld [vmem:[%s1 + $0x1c0] sm:$0xf]
      %v777 = vld [vmem:[%s1 + $0x1c4] sm:$0xf]
      %v778 = vld [vmem:[%s1 + $0x1c8] sm:$0xf]
      %v779 = vld [vmem:[%s1 + $0x1cc] sm:$0xf]
      %v780 = vld [vmem:[%s1 + $0x1d0] sm:$0xf]
      %v781 = vld [vmem:[%s1 + $0x1d4] sm:$0xf]
      %v782 = vld [vmem:[%s1 + $0x1d8] sm:$0xf]
      %v783 = vld [vmem:[%s1 + $0x1dc] sm:$0xf]
      %v784 = vld [vmem:[%s1 + $0x1e0] sm:$0xf]
      %v785 = vld [vmem:[%s1 + $0x1e4] sm:$0xf]
      %v786 = vld [vmem:[%s1 + $0x1e8] sm:$0xf]
      %v787 = vld [vmem:[%s1 + $0x1ec] sm:$0xf]
      %v788 = vld [vmem:[%s1 + $0x1f0] sm:$0xf]
      %v789 = vld [vmem:[%s1 + $0x1f4] sm:$0xf]
      %v790 = vld [vmem:[%s1 + $0x1f8] sm:$0xf]
      %v791 = vld [vmem:[%s1 + $0x1fc] sm:$0xf]
      %v792 = vld [vmem:[%s1 + $0x200] sm:$0xf]
      %v793 = vld [vmem:[%s1 + $0x204] sm:$0xf]
      %v794 = vld [vmem:[%s1 + $0x208] sm:$0xf]
      %v795 = vld [vmem:[%s1 + $0x20c] sm:$0xf]
      %v796 = vld [vmem:[%s1 + $0x210] sm:$0xf]
      %v797 = vld [vmem:[%s1 + $0x214] sm:$0xf]
      %v798 = vld [vmem:[%s1 + $0x218] sm:$0xf]
      %v799 = vld [vmem:[%s1 + $0x21c] sm:$0xf]
      %v800 = vld [vmem:[%s1 + $0x220] sm:$0xf]
      %v801 = vld [vmem:[%s1 + $0x224] sm:$0xf]
      %v802 = vld [vmem:[%s1 + $0x228] sm:$0xf]
      %v803 = vld [vmem:[%s1 + $0x22c] sm:$0xf]
      %v804 = vld [vmem:[%s1 + $0x230] sm:$0xf]
      %v805 = vld [vmem:[%s1 + $0x234] sm:$0xf]
      %v806 = vld [vmem:[%s1 + $0x238] sm:$0xf]
      %v807 = vld [vmem:[%s1 + $0x23c] sm:$0xf]
      %v808 = vld [vmem:[%s2] sm:$0x1]
      %v810 = vlaneseq
      %v811 = vshrl.u32 %v810, 7
      %v812 = vsub.s32 0, %v811
      %v813 = vrot.slane %v808, %v812
      %v959 = vunpack.c.l.b16 %v664
      %v960 = vunpack.c.l.b16 %v665
      %v961 = vunpack.c.l.b16 %v666
      %v962 = vunpack.c.l.b16 %v667
      %v963 = vunpack.c.l.b16 %v668
      %v964 = vunpack.c.l.b16 %v669
      %v965 = vunpack.c.l.b16 %v670
      %v966 = vunpack.c.l.b16 %v671
      %v967 = vunpack.c.l.b16 %v672
      %v968 = vunpack.c.l.b16 %v673
      %v969 = vunpack.c.l.b16 %v674
      %v970 = vunpack.c.l.b16 %v675
      %v971 = vunpack.c.l.b16 %v676
      %v972 = vunpack.c.l.b16 %v677
      %v973 = vunpack.c.l.b16 %v678
      %v974 = vunpack.c.l.b16 %v679
      %v975 = vunpack.c.l.b16 %v680
      %v976 = vunpack.c.l.b16 %v681
      %v977 = vunpack.c.l.b16 %v682
      %v978 = vunpack.c.l.b16 %v683
      %v979 = vunpack.c.l.b16 %v684
      %v980 = vunpack.c.l.b16 %v685
      %v981 = vunpack.c.l.b16 %v686
      %v982 = vunpack.c.l.b16 %v687
      %v983 = vunpack.c.l.b16 %v688
      %v984 = vunpack.c.l.b16 %v689
      %v985 = vunpack.c.l.b16 %v690
      %v986 = vunpack.c.l.b16 %v691
      %v987 = vunpack.c.l.b16 %v692
      %v988 = vunpack.c.l.b16 %v693
      %v989 = vunpack.c.l.b16 %v694
      %v990 = vunpack.c.l.b16 %v695
      %v991 = vunpack.c.l.b16 %v696
      %v992 = vunpack.c.l.b16 %v697
      %v993 = vunpack.c.l.b16 %v698
      %v994 = vunpack.c.l.b16 %v699
      %v995 = vunpack.c.l.b16 %v700
      %v996 = vunpack.c.l.b16 %v701
      %v997 = vunpack.c.l.b16 %v702
      %v998 = vunpack.c.l.b16 %v703
      %v999 = vunpack.c.l.b16 %v704
      %v1000 = vunpack.c.l.b16 %v705
      %v1001 = vunpack.c.l.b16 %v706
      %v1002 = vunpack.c.l.b16 %v707
      %v1003 = vunpack.c.l.b16 %v708
      %v1004 = vunpack.c.l.b16 %v709
      %v1005 = vunpack.c.l.b16 %v710
      %v1006 = vunpack.c.l.b16 %v711
      %v1007 = vunpack.c.l.b16 %v712
      %v1008 = vunpack.c.l.b16 %v713
      %v1009 = vunpack.c.l.b16 %v714
      %v1010 = vunpack.c.l.b16 %v715
      %v1011 = vunpack.c.l.b16 %v716
      %v1012 = vunpack.c.l.b16 %v717
      %v1013 = vunpack.c.l.b16 %v718
      %v1014 = vunpack.c.l.b16 %v719
      %v1015 = vunpack.c.l.b16 %v720
      %v1016 = vunpack.c.l.b16 %v721
      %v1017 = vunpack.c.l.b16 %v722
      %v1018 = vunpack.c.l.b16 %v723
      %v1019 = vunpack.c.l.b16 %v724
      %v1020 = vunpack.c.l.b16 %v725
      %v1021 = vunpack.c.l.b16 %v726
      %v1022 = vunpack.c.l.b16 %v727
      %v1023 = vunpack.c.l.b16 %v728
      %v1024 = vunpack.c.l.b16 %v729
      %v1025 = vunpack.c.l.b16 %v730
      %v1026 = vunpack.c.l.b16 %v731
      %v1027 = vunpack.c.l.b16 %v732
      %v1028 = vunpack.c.l.b16 %v733
      %v1029 = vunpack.c.l.b16 %v734
      %v1030 = vunpack.c.l.b16 %v735
      %v1031 = vunpack.c.l.b16 %v736
      %v1032 = vunpack.c.l.b16 %v737
      %v1033 = vunpack.c.l.b16 %v738
      %v1034 = vunpack.c.l.b16 %v739
      %v1035 = vunpack.c.l.b16 %v740
      %v1036 = vunpack.c.l.b16 %v741
      %v1037 = vunpack.c.l.b16 %v742
      %v1038 = vunpack.c.l.b16 %v743
      %v1039 = vunpack.c.l.b16 %v744
      %v1040 = vunpack.c.l.b16 %v745
      %v1041 = vunpack.c.l.b16 %v746
      %v1042 = vunpack.c.l.b16 %v747
      %v1043 = vunpack.c.l.b16 %v748
      %v1044 = vunpack.c.l.b16 %v749
      %v1045 = vunpack.c.l.b16 %v750
      %v1046 = vunpack.c.l.b16 %v751
      %v1047 = vunpack.c.l.b16 %v752
      %v1048 = vunpack.c.l.b16 %v753
      %v1049 = vunpack.c.l.b16 %v754
      %v1050 = vunpack.c.l.b16 %v755
      %v1051 = vunpack.c.l.b16 %v756
      %v1052 = vunpack.c.l.b16 %v757
      %v1053 = vunpack.c.l.b16 %v758
      %v1054 = vunpack.c.l.b16 %v759
      %v1055 = vunpack.c.l.b16 %v760
      %v1056 = vunpack.c.l.b16 %v761
      %v1057 = vunpack.c.l.b16 %v762
      %v1058 = vunpack.c.l.b16 %v763
      %v1059 = vunpack.c.l.b16 %v764
      %v1060 = vunpack.c.l.b16 %v765
      %v1061 = vunpack.c.l.b16 %v766
      %v1062 = vunpack.c.l.b16 %v767
      %v1063 = vunpack.c.l.b16 %v768
      %v1064 = vunpack.c.l.b16 %v769
      %v1065 = vunpack.c.l.b16 %v770
      %v1066 = vunpack.c.l.b16 %v771
      %v1067 = vunpack.c.l.b16 %v772
      %v1068 = vunpack.c.l.b16 %v773
      %v1069 = vunpack.c.l.b16 %v774
      %v1070 = vunpack.c.l.b16 %v775
      %v1071 = vunpack.c.l.b16 %v776
      %v1072 = vunpack.c.l.b16 %v777
      %v1073 = vunpack.c.l.b16 %v778
      %v1074 = vunpack.c.l.b16 %v779
      %v1075 = vunpack.c.l.b16 %v780
      %v1076 = vunpack.c.l.b16 %v781
      %v1077 = vunpack.c.l.b16 %v782
      %v1078 = vunpack.c.l.b16 %v783
      %v1079 = vunpack.c.l.b16 %v784
      %v1080 = vunpack.c.l.b16 %v785
      %v1081 = vunpack.c.l.b16 %v786
      %v1082 = vunpack.c.l.b16 %v787
      %v1083 = vunpack.c.l.b16 %v788
      %v1084 = vunpack.c.l.b16 %v789
      %v1085 = vunpack.c.l.b16 %v790
      %v1086 = vunpack.c.l.b16 %v791
      %v1087 = vunpack.c.l.b16 %v792
      %v1088 = vunpack.c.l.b16 %v793
      %v1089 = vunpack.c.l.b16 %v794
      %v1090 = vunpack.c.l.b16 %v795
      %v1091 = vunpack.c.l.b16 %v796
      %v1092 = vunpack.c.l.b16 %v797
      %v1093 = vunpack.c.l.b16 %v798
      %v1094 = vunpack.c.l.b16 %v799
      %v1095 = vunpack.c.l.b16 %v800
      %v1096 = vunpack.c.l.b16 %v801
      %v1097 = vunpack.c.l.b16 %v802
      %v1098 = vunpack.c.l.b16 %v803
      %v1099 = vunpack.c.l.b16 %v804
      %v1100 = vunpack.c.l.b16 %v805
      %v1101 = vunpack.c.l.b16 %v806
      %v1102 = vunpack.c.l.b16 %v807
      %v1103 = vpack.c.b16 %v960, %v959
      %v1104 = vpack.c.b16 %v962, %v961
      %v1105 = vpack.c.b16 %v964, %v963
      %v1106 = vpack.c.b16 %v966, %v965
      %v1107 = vpack.c.b16 %v968, %v967
      %v1108 = vpack.c.b16 %v970, %v969
      %v1109 = vpack.c.b16 %v972, %v971
      %v1110 = vpack.c.b16 %v974, %v973
      %v1111 = vpack.c.b16 %v976, %v975
      %v1112 = vpack.c.b16 %v978, %v977
      %v1113 = vpack.c.b16 %v980, %v979
      %v1114 = vpack.c.b16 %v982, %v981
      %v1115 = vpack.c.b16 %v984, %v983
      %v1116 = vpack.c.b16 %v986, %v985
      %v1117 = vpack.c.b16 %v988, %v987
      %v1118 = vpack.c.b16 %v990, %v989
      %v1119 = vpack.c.b16 %v992, %v991
      %v1120 = vpack.c.b16 %v994, %v993
      %v1121 = vpack.c.b16 %v996, %v995
      %v1122 = vpack.c.b16 %v998, %v997
      %v1123 = vpack.c.b16 %v1000, %v999
      %v1124 = vpack.c.b16 %v1002, %v1001
      %v1125 = vpack.c.b16 %v1004, %v1003
      %v1126 = vpack.c.b16 %v1006, %v1005
      %v1127 = vpack.c.b16 %v1008, %v1007
      %v1128 = vpack.c.b16 %v1010, %v1009
      %v1129 = vpack.c.b16 %v1012, %v1011
      %v1130 = vpack.c.b16 %v1014, %v1013
      %v1131 = vpack.c.b16 %v1016, %v1015
      %v1132 = vpack.c.b16 %v1018, %v1017
      %v1133 = vpack.c.b16 %v1020, %v1019
      %v1134 = vpack.c.b16 %v1022, %v1021
      %v1135 = vpack.c.b16 %v1024, %v1023
      %v1136 = vpack.c.b16 %v1026, %v1025
      %v1137 = vpack.c.b16 %v1028, %v1027
      %v1138 = vpack.c.b16 %v1030, %v1029
      %v1139 = vpack.c.b16 %v1032, %v1031
      %v1140 = vpack.c.b16 %v1034, %v1033
      %v1141 = vpack.c.b16 %v1036, %v1035
      %v1142 = vpack.c.b16 %v1038, %v1037
      %v1143 = vpack.c.b16 %v1040, %v1039
      %v1144 = vpack.c.b16 %v1042, %v1041
      %v1145 = vpack.c.b16 %v1044, %v1043
      %v1146 = vpack.c.b16 %v1046, %v1045
      %v1147 = vpack.c.b16 %v1048, %v1047
      %v1148 = vpack.c.b16 %v1050, %v1049
      %v1149 = vpack.c.b16 %v1052, %v1051
      %v1150 = vpack.c.b16 %v1054, %v1053
      %v1151 = vpack.c.b16 %v1056, %v1055
      %v1152 = vpack.c.b16 %v1058, %v1057
      %v1153 = vpack.c.b16 %v1060, %v1059
      %v1154 = vpack.c.b16 %v1062, %v1061
      %v1155 = vpack.c.b16 %v1064, %v1063
      %v1156 = vpack.c.b16 %v1066, %v1065
      %v1157 = vpack.c.b16 %v1068, %v1067
      %v1158 = vpack.c.b16 %v1070, %v1069
      %v1159 = vpack.c.b16 %v1072, %v1071
      %v1160 = vpack.c.b16 %v1074, %v1073
      %v1161 = vpack.c.b16 %v1076, %v1075
      %v1162 = vpack.c.b16 %v1078, %v1077
      %v1163 = vpack.c.b16 %v1080, %v1079
      %v1164 = vpack.c.b16 %v1082, %v1081
      %v1165 = vpack.c.b16 %v1084, %v1083
      %v1166 = vpack.c.b16 %v1086, %v1085
      %v1167 = vpack.c.b16 %v1088, %v1087
      %v1168 = vpack.c.b16 %v1090, %v1089
      %v1169 = vpack.c.b16 %v1092, %v1091
      %v1170 = vpack.c.b16 %v1094, %v1093
      %v1171 = vpack.c.b16 %v1096, %v1095
      %v1172 = vpack.c.b16 %v1098, %v1097
      %v1173 = vpack.c.b16 %v1100, %v1099
      %v1174 = vpack.c.b16 %v1102, %v1101
      %1247 = vmatprep.subr.bf16.mxu0 0
      %1248 = vmatpush1.bf16.msra.mxu0 %v1103
      %1249 = vmatprep.subr.bf16.mxu0 0
      %1250 = vmatpush1.bf16.msra.mxu0 %v1104
      %1251 = vmatprep.subr.bf16.mxu0 0
      %1252 = vmatpush1.bf16.msra.mxu0 %v1105
      %1253 = vmatprep.subr.bf16.mxu0 0
      %1254 = vmatpush1.bf16.msra.mxu0 %v1106
      %1255 = vmatprep.subr.bf16.mxu0 0
      %1256 = vmatpush1.bf16.msra.mxu0 %v1107
      %1257 = vmatprep.subr.bf16.mxu0 0
      %1258 = vmatpush1.bf16.msra.mxu0 %v1108
      %1259 = vmatprep.subr.bf16.mxu0 0
      %1260 = vmatpush1.bf16.msra.mxu0 %v1109
      %1261 = vmatprep.subr.bf16.mxu0 0
      %1262 = vmatpush1.bf16.msra.mxu0 %v1110
      %1263 = vmatprep.subr.bf16.mxu0 0
      %1264 = vmatpush1.bf16.msra.mxu0 %v1111
      %1265 = vmatprep.subr.bf16.mxu0 0
      %1266 = vmatpush1.bf16.msra.mxu0 %v1112
      %1267 = vmatprep.subr.bf16.mxu0 0
      %1268 = vmatpush1.bf16.msra.mxu0 %v1113
      %1269 = vmatprep.subr.bf16.mxu0 0
      %1270 = vmatpush1.bf16.msra.mxu0 %v1114
      %1271 = vmatprep.subr.bf16.mxu0 0
      %1272 = vmatpush1.bf16.msra.mxu0 %v1115
      %1273 = vmatprep.subr.bf16.mxu0 0
      %1274 = vmatpush1.bf16.msra.mxu0 %v1116
      %1275 = vmatprep.subr.bf16.mxu0 0
      %1276 = vmatpush1.bf16.msra.mxu0 %v1117
      %1277 = vmatprep.subr.bf16.mxu0 0
      %1278 = vmatpush1.bf16.msra.mxu0 %v1118
      %1279 = vmatprep.mubr.bf16.mxu0 %v521
      %1280 = vmatmul.mubr.bf16.gmra.mrb[0].mxu0 %v520
      %v1281 = vpop.f32.mrb[0].mxu0
      %v1282 = vadd.f32 %v813, %v1281
      %v1283 = vpop.f32.mrb[0].mxu0
      %v1284 = vpop.f32.mrb[0].mxu0
      %v1285 = vadd.f32 %v813, %v1284
      %v1286 = vpop.f32.mrb[0].mxu0
      %1287 = vmatprep.mubr.bf16.mxu0 %v530
      %1288 = vmatmul.mubr.bf16.gmra.mrb[0].mxu0 %v529
      %v1289 = vpop.f32.mrb[0].mxu0
      %v1290 = vadd.f32 %v813, %v1289
      %v1291 = vpop.f32.mrb[0].mxu0
      %v1292 = vpop.f32.mrb[0].mxu0
      %v1293 = vadd.f32 %v813, %v1292
      %v1294 = vpop.f32.mrb[0].mxu0
      %1295 = vmatprep.mubr.bf16.mxu0 %v539
      %1296 = vmatmul.mubr.bf16.gmra.mrb[0].mxu0 %v538
      %v1297 = vpop.f32.mrb[0].mxu0
      %v1298 = vadd.f32 %v813, %v1297
      %v1299 = vpop.f32.mrb[0].mxu0
      %v1300 = vpop.f32.mrb[0].mxu0
      %v1301 = vadd.f32 %v813, %v1300
      %v1302 = vpop.f32.mrb[0].mxu0
      %1303 = vmatprep.mubr.bf16.mxu0 %v548
      %1304 = vmatmul.mubr.bf16.gmra.mrb[0].mxu0 %v547
      %v1305 = vpop.f32.mrb[0].mxu0
      %v1306 = vadd.f32 %v813, %v1305
      %v1307 = vpop.f32.mrb[0].mxu0
      %v1308 = vpop.f32.mrb[0].mxu0
      %v1309 = vadd.f32 %v813, %v1308
      %v1310 = vpop.f32.mrb[0].mxu0
      %1311 = vmatprep.mubr.bf16.mxu0 %v557
      %1312 = vmatmul.mubr.bf16.gmra.mrb[0].mxu0 %v556
      %v1313 = vpop.f32.mrb[0].mxu0
      %v1314 = vadd.f32 %v813, %v1313
      %v1315 = vpop.f32.mrb[0].mxu0
      %v1316 = vpop.f32.mrb[0].mxu0
      %v1317 = vadd.f32 %v813, %v1316
      %v1318 = vpop.f32.mrb[0].mxu0
      %1319 = vmatprep.mubr.bf16.mxu0 %v566
      %1320 = vmatmul.mubr.bf16.gmra.mrb[0].mxu0 %v565
      %v1321 = vpop.f32.mrb[0].mxu0
      %v1322 = vadd.f32 %v813, %v1321
      %v1323 = vpop.f32.mrb[0].mxu0
      %v1324 = vpop.f32.mrb[0].mxu0
      %v1325 = vadd.f32 %v813, %v1324
      %v1326 = vpop.f32.mrb[0].mxu0
      %1327 = vmatprep.mubr.bf16.mxu0 %v575
      %1328 = vmatmul.mubr.bf16.gmra.mrb[0].mxu0 %v574
      %v1329 = vpop.f32.mrb[0].mxu0
      %v1330 = vadd.f32 %v813, %v1329
      %v1331 = vpop.f32.mrb[0].mxu0
      %v1332 = vpop.f32.mrb[0].mxu0
      %v1333 = vadd.f32 %v813, %v1332
      %v1334 = vpop.f32.mrb[0].mxu0
      %1335 = vmatprep.mubr.bf16.mxu0 %v584
      %1336 = vmatmul.mubr.bf16.gmra.mrb[0].mxu0 %v583
      %v1337 = vpop.f32.mrb[0].mxu0
      %v1338 = vadd.f32 %v813, %v1337
      %v1339 = vpop.f32.mrb[0].mxu0
      %v1340 = vpop.f32.mrb[0].mxu0
      %v1341 = vadd.f32 %v813, %v1340
      %v1342 = vpop.f32.mrb[0].mxu0
      %1343 = vmatprep.mubr.bf16.mxu0 %v593
      %1344 = vmatmul.mubr.bf16.gmra.mrb[0].mxu0 %v592
      %v1345 = vpop.f32.mrb[0].mxu0
      %v1346 = vadd.f32 %v813, %v1345
      %v1347 = vpop.f32.mrb[0].mxu0
      %v1348 = vpop.f32.mrb[0].mxu0
      %v1349 = vadd.f32 %v813, %v1348
      %v1350 = vpop.f32.mrb[0].mxu0
      %1351 = vmatprep.mubr.bf16.mxu0 %v602
      %1352 = vmatmul.mubr.bf16.gmra.mrb[0].mxu0 %v601
      %v1353 = vpop.f32.mrb[0].mxu0
      %v1354 = vadd.f32 %v813, %v1353
      %v1355 = vpop.f32.mrb[0].mxu0
      %v1356 = vpop.f32.mrb[0].mxu0
      %v1357 = vadd.f32 %v813, %v1356
      %v1358 = vpop.f32.mrb[0].mxu0
      %1359 = vmatprep.mubr.bf16.mxu0 %v611
      %1360 = vmatmul.mubr.bf16.gmra.mrb[0].mxu0 %v610
      %v1361 = vpop.f32.mrb[0].mxu0
      %v1362 = vadd.f32 %v813, %v1361
      %v1363 = vpop.f32.mrb[0].mxu0
      %v1364 = vpop.f32.mrb[0].mxu0
      %v1365 = vadd.f32 %v813, %v1364
      %v1366 = vpop.f32.mrb[0].mxu0
      %1367 = vmatprep.mubr.bf16.mxu0 %v620
      %1368 = vmatmul.mubr.bf16.gmra.mrb[0].mxu0 %v619
      %v1369 = vpop.f32.mrb[0].mxu0
      %v1370 = vadd.f32 %v813, %v1369
      %v1371 = vpop.f32.mrb[0].mxu0
      %v1372 = vpop.f32.mrb[0].mxu0
      %v1373 = vadd.f32 %v813, %v1372
      %v1374 = vpop.f32.mrb[0].mxu0
      %1375 = vmatprep.mubr.bf16.mxu0 %v629
      %1376 = vmatmul.mubr.bf16.gmra.mrb[0].mxu0 %v628
      %v1377 = vpop.f32.mrb[0].mxu0
      %v1378 = vadd.f32 %v813, %v1377
      %v1379 = vpop.f32.mrb[0].mxu0
      %v1380 = vpop.f32.mrb[0].mxu0
      %v1381 = vadd.f32 %v813, %v1380
      %v1382 = vpop.f32.mrb[0].mxu0
      %1383 = vmatprep.mubr.bf16.mxu0 %v638
      %1384 = vmatmul.mubr.bf16.gmra.mrb[0].mxu0 %v637
      %v1385 = vpop.f32.mrb[0].mxu0
      %v1386 = vadd.f32 %v813, %v1385
      %v1387 = vpop.f32.mrb[0].mxu0
      %v1388 = vpop.f32.mrb[0].mxu0
      %v1389 = vadd.f32 %v813, %v1388
      %v1390 = vpop.f32.mrb[0].mxu0
      %1391 = vmatprep.mubr.bf16.mxu0 %v647
      %1392 = vmatmul.mubr.bf16.gmra.mrb[0].mxu0 %v646
      %v1393 = vpop.f32.mrb[0].mxu0
      %v1394 = vadd.f32 %v813, %v1393
      %v1395 = vpop.f32.mrb[0].mxu0
      %v1396 = vpop.f32.mrb[0].mxu0
      %v1397 = vadd.f32 %v813, %v1396
      %v1398 = vpop.f32.mrb[0].mxu0
      %1399 = vmatprep.mubr.bf16.mxu0 %v656
      %1400 = vmatmul.mubr.bf16.gmra.mrb[0].mxu0 %v655
      %v1401 = vpop.f32.mrb[0].mxu0
      %v1402 = vadd.f32 %v813, %v1401
      %v1403 = vpop.f32.mrb[0].mxu0
      %v1404 = vpop.f32.mrb[0].mxu0
      %v1405 = vadd.f32 %v813, %v1404
      %v1406 = vpop.f32.mrb[0].mxu0
      %1407 = vdwg.mxu0
      %1408 = vmatprep.subr.bf16.mxu0 0
      %1409 = vmatpush1.bf16.msra.mxu0 %v1119
      %1410 = vmatprep.subr.bf16.mxu0 0
      %1411 = vmatpush1.bf16.msra.mxu0 %v1120
      %1412 = vmatprep.subr.bf16.mxu0 0
      %1413 = vmatpush1.bf16.msra.mxu0 %v1121
      %1414 = vmatprep.subr.bf16.mxu0 0
      %1415 = vmatpush1.bf16.msra.mxu0 %v1122
      %1416 = vmatprep.subr.bf16.mxu0 0
      %1417 = vmatpush1.bf16.msra.mxu0 %v1123
      %1418 = vmatprep.subr.bf16.mxu0 0
      %1419 = vmatpush1.bf16.msra.mxu0 %v1124
      %1420 = vmatprep.subr.bf16.mxu0 0
      %1421 = vmatpush1.bf16.msra.mxu0 %v1125
      %1422 = vmatprep.subr.bf16.mxu0 0
      %1423 = vmatpush1.bf16.msra.mxu0 %v1126
      %1424 = vmatprep.subr.bf16.mxu0 0
      %1425 = vmatpush1.bf16.msra.mxu0 %v1127
      %1426 = vmatprep.subr.bf16.mxu0 0
      %1427 = vmatpush1.bf16.msra.mxu0 %v1128
      %1428 = vmatprep.subr.bf16.mxu0 0
      %1429 = vmatpush1.bf16.msra.mxu0 %v1129
      %1430 = vmatprep.subr.bf16.mxu0 0
      %1431 = vmatpush1.bf16.msra.mxu0 %v1130
      %1432 = vmatprep.subr.bf16.mxu0 0
      %1433 = vmatpush1.bf16.msra.mxu0 %v1131
      %1434 = vmatprep.subr.bf16.mxu0 0
      %1435 = vmatpush1.bf16.msra.mxu0 %v1132
      %1436 = vmatprep.subr.bf16.mxu0 0
      %1437 = vmatpush1.bf16.msra.mxu0 %v1133
      %1438 = vmatprep.subr.bf16.mxu0 0
      %1439 = vmatpush1.bf16.msra.mxu0 %v1134
      %1440 = vmatprep.mubr.bf16.mxu0 %v523
      %1441 = vmatmul.mubr.bf16.gmra.mrb[0].mxu0 %v522
      %v1442 = vpop.f32.mrb[0].mxu0
      %v1443 = vadd.f32 %v1282, %v1442
      %v1444 = vpop.f32.mrb[0].mxu0
      %v1445 = vpop.f32.mrb[0].mxu0
      %v1446 = vadd.f32 %v1285, %v1445
      %v1447 = vpop.f32.mrb[0].mxu0
      %1448 = vmatprep.mubr.bf16.mxu0 %v532
      %1449 = vmatmul.mubr.bf16.gmra.mrb[0].mxu0 %v531
      %v1450 = vpop.f32.mrb[0].mxu0
      %v1451 = vadd.f32 %v1290, %v1450
      %v1452 = vpop.f32.mrb[0].mxu0
      %v1453 = vpop.f32.mrb[0].mxu0
      %v1454 = vadd.f32 %v1293, %v1453
      %v1455 = vpop.f32.mrb[0].mxu0
      %1456 = vmatprep.mubr.bf16.mxu0 %v541
      %1457 = vmatmul.mubr.bf16.gmra.mrb[0].mxu0 %v540
      %v1458 = vpop.f32.mrb[0].mxu0
      %v1459 = vadd.f32 %v1298, %v1458
      %v1460 = vpop.f32.mrb[0].mxu0
      %v1461 = vpop.f32.mrb[0].mxu0
      %v1462 = vadd.f32 %v1301, %v1461
      %v1463 = vpop.f32.mrb[0].mxu0
      %1464 = vmatprep.mubr.bf16.mxu0 %v550
      %1465 = vmatmul.mubr.bf16.gmra.mrb[0].mxu0 %v549
      %v1466 = vpop.f32.mrb[0].mxu0
      %v1467 = vadd.f32 %v1306, %v1466
      %v1468 = vpop.f32.mrb[0].mxu0
      %v1469 = vpop.f32.mrb[0].mxu0
      %v1470 = vadd.f32 %v1309, %v1469
      %v1471 = vpop.f32.mrb[0].mxu0
      %1472 = vmatprep.mubr.bf16.mxu0 %v559
      %1473 = vmatmul.mubr.bf16.gmra.mrb[0].mxu0 %v558
      %v1474 = vpop.f32.mrb[0].mxu0
      %v1475 = vadd.f32 %v1314, %v1474
      %v1476 = vpop.f32.mrb[0].mxu0
      %v1477 = vpop.f32.mrb[0].mxu0
      %v1478 = vadd.f32 %v1317, %v1477
      %v1479 = vpop.f32.mrb[0].mxu0
      %1480 = vmatprep.mubr.bf16.mxu0 %v568
      %1481 = vmatmul.mubr.bf16.gmra.mrb[0].mxu0 %v567
      %v1482 = vpop.f32.mrb[0].mxu0
      %v1483 = vadd.f32 %v1322, %v1482
      %v1484 = vpop.f32.mrb[0].mxu0
      %v1485 = vpop.f32.mrb[0].mxu0
      %v1486 = vadd.f32 %v1325, %v1485
      %v1487 = vpop.f32.mrb[0].mxu0
      %1488 = vmatprep.mubr.bf16.mxu0 %v577
      %1489 = vmatmul.mubr.bf16.gmra.mrb[0].mxu0 %v576
      %v1490 = vpop.f32.mrb[0].mxu0
      %v1491 = vadd.f32 %v1330, %v1490
      %v1492 = vpop.f32.mrb[0].mxu0
      %v1493 = vpop.f32.mrb[0].mxu0
      %v1494 = vadd.f32 %v1333, %v1493
      %v1495 = vpop.f32.mrb[0].mxu0
      %1496 = vmatprep.mubr.bf16.mxu0 %v586
      %1497 = vmatmul.mubr.bf16.gmra.mrb[0].mxu0 %v585
      %v1498 = vpop.f32.mrb[0].mxu0
      %v1499 = vadd.f32 %v1338, %v1498
      %v1500 = vpop.f32.mrb[0].mxu0
      %v1501 = vpop.f32.mrb[0].mxu0
      %v1502 = vadd.f32 %v1341, %v1501
      %v1503 = vpop.f32.mrb[0].mxu0
      %1504 = vmatprep.mubr.bf16.mxu0 %v595
      %1505 = vmatmul.mubr.bf16.gmra.mrb[0].mxu0 %v594
      %v1506 = vpop.f32.mrb[0].mxu0
      %v1507 = vadd.f32 %v1346, %v1506
      %v1508 = vpop.f32.mrb[0].mxu0
      %v1509 = vpop.f32.mrb[0].mxu0
      %v1510 = vadd.f32 %v1349, %v1509
      %v1511 = vpop.f32.mrb[0].mxu0
      %1512 = vmatprep.mubr.bf16.mxu0 %v604
      %1513 = vmatmul.mubr.bf16.gmra.mrb[0].mxu0 %v603
      %v1514 = vpop.f32.mrb[0].mxu0
      %v1515 = vadd.f32 %v1354, %v1514
      %v1516 = vpop.f32.mrb[0].mxu0
      %v1517 = vpop.f32.mrb[0].mxu0
      %v1518 = vadd.f32 %v1357, %v1517
      %v1519 = vpop.f32.mrb[0].mxu0
      %1520 = vmatprep.mubr.bf16.mxu0 %v613
      %1521 = vmatmul.mubr.bf16.gmra.mrb[0].mxu0 %v612
      %v1522 = vpop.f32.mrb[0].mxu0
      %v1523 = vadd.f32 %v1362, %v1522
      %v1524 = vpop.f32.mrb[0].mxu0
      %v1525 = vpop.f32.mrb[0].mxu0
      %v1526 = vadd.f32 %v1365, %v1525
      %v1527 = vpop.f32.mrb[0].mxu0
      %1528 = vmatprep.mubr.bf16.mxu0 %v622
      %1529 = vmatmul.mubr.bf16.gmra.mrb[0].mxu0 %v621
      %v1530 = vpop.f32.mrb[0].mxu0
      %v1531 = vadd.f32 %v1370, %v1530
      %v1532 = vpop.f32.mrb[0].mxu0
      %v1533 = vpop.f32.mrb[0].mxu0
      %v1534 = vadd.f32 %v1373, %v1533
      %v1535 = vpop.f32.mrb[0].mxu0
      %1536 = vmatprep.mubr.bf16.mxu0 %v631
      %1537 = vmatmul.mubr.bf16.gmra.mrb[0].mxu0 %v630
      %v1538 = vpop.f32.mrb[0].mxu0
      %v1539 = vadd.f32 %v1378, %v1538
      %v1540 = vpop.f32.mrb[0].mxu0
      %v1541 = vpop.f32.mrb[0].mxu0
      %v1542 = vadd.f32 %v1381, %v1541
      %v1543 = vpop.f32.mrb[0].mxu0
      %1544 = vmatprep.mubr.bf16.mxu0 %v640
      %1545 = vmatmul.mubr.bf16.gmra.mrb[0].mxu0 %v639
      %v1546 = vpop.f32.mrb[0].mxu0
      %v1547 = vadd.f32 %v1386, %v1546
      %v1548 = vpop.f32.mrb[0].mxu0
      %v1549 = vpop.f32.mrb[0].mxu0
      %v1550 = vadd.f32 %v1389, %v1549
      %v1551 = vpop.f32.mrb[0].mxu0
      %1552 = vmatprep.mubr.bf16.mxu0 %v649
      %1553 = vmatmul.mubr.bf16.gmra.mrb[0].mxu0 %v648
      %v1554 = vpop.f32.mrb[0].mxu0
      %v1555 = vadd.f32 %v1394, %v1554
      %v1556 = vpop.f32.mrb[0].mxu0
      %v1557 = vpop.f32.mrb[0].mxu0
      %v1558 = vadd.f32 %v1397, %v1557
      %v1559 = vpop.f32.mrb[0].mxu0
      %1560 = vmatprep.mubr.bf16.mxu0 %v658
      %1561 = vmatmul.mubr.bf16.gmra.mrb[0].mxu0 %v657
      %v1562 = vpop.f32.mrb[0].mxu0
      %v1563 = vadd.f32 %v1402, %v1562
      %v1564 = vpop.f32.mrb[0].mxu0
      %v1565 = vpop.f32.mrb[0].mxu0
      %v1566 = vadd.f32 %v1405, %v1565
      %v1567 = vpop.f32.mrb[0].mxu0
      %1568 = vdwg.mxu0
      %1569 = vmatprep.subr.bf16.mxu0 0
      %1570 = vmatpush1.bf16.msra.mxu0 %v1135
      %1571 = vmatprep.subr.bf16.mxu0 0
      %1572 = vmatpush1.bf16.msra.mxu0 %v1136
      %1573 = vmatprep.subr.bf16.mxu0 0
      %1574 = vmatpush1.bf16.msra.mxu0 %v1137
      %1575 = vmatprep.subr.bf16.mxu0 0
      %1576 = vmatpush1.bf16.msra.mxu0 %v1138
      %1577 = vmatprep.subr.bf16.mxu0 0
      %1578 = vmatpush1.bf16.msra.mxu0 %v1139
      %1579 = vmatprep.subr.bf16.mxu0 0
      %1580 = vmatpush1.bf16.msra.mxu0 %v1140
      %1581 = vmatprep.subr.bf16.mxu0 0
      %1582 = vmatpush1.bf16.msra.mxu0 %v1141
      %1583 = vmatprep.subr.bf16.mxu0 0
      %1584 = vmatpush1.bf16.msra.mxu0 %v1142
      %1585 = vmatprep.subr.bf16.mxu0 0
      %1586 = vmatpush1.bf16.msra.mxu0 %v1143
      %1587 = vmatprep.subr.bf16.mxu0 0
      %1588 = vmatpush1.bf16.msra.mxu0 %v1144
      %1589 = vmatprep.subr.bf16.mxu0 0
      %1590 = vmatpush1.bf16.msra.mxu0 %v1145
      %1591 = vmatprep.subr.bf16.mxu0 0
      %1592 = vmatpush1.bf16.msra.mxu0 %v1146
      %1593 = vmatprep.subr.bf16.mxu0 0
      %1594 = vmatpush1.bf16.msra.mxu0 %v1147
      %1595 = vmatprep.subr.bf16.mxu0 0
      %1596 = vmatpush1.bf16.msra.mxu0 %v1148
      %1597 = vmatprep.subr.bf16.mxu0 0
      %1598 = vmatpush1.bf16.msra.mxu0 %v1149
      %1599 = vmatprep.subr.bf16.mxu0 0
      %1600 = vmatpush1.bf16.msra.mxu0 %v1150
      %1601 = vmatprep.mubr.bf16.mxu0 %v525
      %1602 = vmatmul.mubr.bf16.gmra.mrb[0].mxu0 %v524
      %v1603 = vpop.f32.mrb[0].mxu0
      %v1604 = vadd.f32 %v1443, %v1603
      %v1605 = vpop.f32.mrb[0].mxu0
      %v1606 = vpop.f32.mrb[0].mxu0
      %v1607 = vadd.f32 %v1446, %v1606
      %v1608 = vpop.f32.mrb[0].mxu0
      %1609 = vmatprep.mubr.bf16.mxu0 %v534
      %1610 = vmatmul.mubr.bf16.gmra.mrb[0].mxu0 %v533
      %v1611 = vpop.f32.mrb[0].mxu0
      %v1612 = vadd.f32 %v1451, %v1611
      %v1613 = vpop.f32.mrb[0].mxu0
      %v1614 = vpop.f32.mrb[0].mxu0
      %v1615 = vadd.f32 %v1454, %v1614
      %v1616 = vpop.f32.mrb[0].mxu0
      %1617 = vmatprep.mubr.bf16.mxu0 %v543
      %1618 = vmatmul.mubr.bf16.gmra.mrb[0].mxu0 %v542
      %v1619 = vpop.f32.mrb[0].mxu0
      %v1620 = vadd.f32 %v1459, %v1619
      %v1621 = vpop.f32.mrb[0].mxu0
      %v1622 = vpop.f32.mrb[0].mxu0
      %v1623 = vadd.f32 %v1462, %v1622
      %v1624 = vpop.f32.mrb[0].mxu0
      %1625 = vmatprep.mubr.bf16.mxu0 %v552
      %1626 = vmatmul.mubr.bf16.gmra.mrb[0].mxu0 %v551
      %v1627 = vpop.f32.mrb[0].mxu0
      %v1628 = vadd.f32 %v1467, %v1627
      %v1629 = vpop.f32.mrb[0].mxu0
      %v1630 = vpop.f32.mrb[0].mxu0
      %v1631 = vadd.f32 %v1470, %v1630
      %v1632 = vpop.f32.mrb[0].mxu0
      %1633 = vmatprep.mubr.bf16.mxu0 %v561
      %1634 = vmatmul.mubr.bf16.gmra.mrb[0].mxu0 %v560
      %v1635 = vpop.f32.mrb[0].mxu0
      %v1636 = vadd.f32 %v1475, %v1635
      %v1637 = vpop.f32.mrb[0].mxu0
      %v1638 = vpop.f32.mrb[0].mxu0
      %v1639 = vadd.f32 %v1478, %v1638
      %v1640 = vpop.f32.mrb[0].mxu0
      %1641 = vmatprep.mubr.bf16.mxu0 %v570
      %1642 = vmatmul.mubr.bf16.gmra.mrb[0].mxu0 %v569
      %v1643 = vpop.f32.mrb[0].mxu0
      %v1644 = vadd.f32 %v1483, %v1643
      %v1645 = vpop.f32.mrb[0].mxu0
      %v1646 = vpop.f32.mrb[0].mxu0
      %v1647 = vadd.f32 %v1486, %v1646
      %v1648 = vpop.f32.mrb[0].mxu0
      %1649 = vmatprep.mubr.bf16.mxu0 %v579
      %1650 = vmatmul.mubr.bf16.gmra.mrb[0].mxu0 %v578
      %v1651 = vpop.f32.mrb[0].mxu0
      %v1652 = vadd.f32 %v1491, %v1651
      %v1653 = vpop.f32.mrb[0].mxu0
      %v1654 = vpop.f32.mrb[0].mxu0
      %v1655 = vadd.f32 %v1494, %v1654
      %v1656 = vpop.f32.mrb[0].mxu0
      %1657 = vmatprep.mubr.bf16.mxu0 %v588
      %1658 = vmatmul.mubr.bf16.gmra.mrb[0].mxu0 %v587
      %v1659 = vpop.f32.mrb[0].mxu0
      %v1660 = vadd.f32 %v1499, %v1659
      %v1661 = vpop.f32.mrb[0].mxu0
      %v1662 = vpop.f32.mrb[0].mxu0
      %v1663 = vadd.f32 %v1502, %v1662
      %v1664 = vpop.f32.mrb[0].mxu0
      %1665 = vmatprep.mubr.bf16.mxu0 %v597
      %1666 = vmatmul.mubr.bf16.gmra.mrb[0].mxu0 %v596
      %v1667 = vpop.f32.mrb[0].mxu0
      %v1668 = vadd.f32 %v1507, %v1667
      %v1669 = vpop.f32.mrb[0].mxu0
      %v1670 = vpop.f32.mrb[0].mxu0
      %v1671 = vadd.f32 %v1510, %v1670
      %v1672 = vpop.f32.mrb[0].mxu0
      %1673 = vmatprep.mubr.bf16.mxu0 %v606
      %1674 = vmatmul.mubr.bf16.gmra.mrb[0].mxu0 %v605
      %v1675 = vpop.f32.mrb[0].mxu0
      %v1676 = vadd.f32 %v1515, %v1675
      %v1677 = vpop.f32.mrb[0].mxu0
      %v1678 = vpop.f32.mrb[0].mxu0
      %v1679 = vadd.f32 %v1518, %v1678
      %v1680 = vpop.f32.mrb[0].mxu0
      %1681 = vmatprep.mubr.bf16.mxu0 %v615
      %1682 = vmatmul.mubr.bf16.gmra.mrb[0].mxu0 %v614
      %v1683 = vpop.f32.mrb[0].mxu0
      %v1684 = vadd.f32 %v1523, %v1683
      %v1685 = vpop.f32.mrb[0].mxu0
      %v1686 = vpop.f32.mrb[0].mxu0
      %v1687 = vadd.f32 %v1526, %v1686
      %v1688 = vpop.f32.mrb[0].mxu0
      %1689 = vmatprep.mubr.bf16.mxu0 %v624
      %1690 = vmatmul.mubr.bf16.gmra.mrb[0].mxu0 %v623
      %v1691 = vpop.f32.mrb[0].mxu0
      %v1692 = vadd.f32 %v1531, %v1691
      %v1693 = vpop.f32.mrb[0].mxu0
      %v1694 = vpop.f32.mrb[0].mxu0
      %v1695 = vadd.f32 %v1534, %v1694
      %v1696 = vpop.f32.mrb[0].mxu0
      %1697 = vmatprep.mubr.bf16.mxu0 %v633
      %1698 = vmatmul.mubr.bf16.gmra.mrb[0].mxu0 %v632
      %v1699 = vpop.f32.mrb[0].mxu0
      %v1700 = vadd.f32 %v1539, %v1699
      %v1701 = vpop.f32.mrb[0].mxu0
      %v1702 = vpop.f32.mrb[0].mxu0
      %v1703 = vadd.f32 %v1542, %v1702
      %v1704 = vpop.f32.mrb[0].mxu0
      %1705 = vmatprep.mubr.bf16.mxu0 %v642
      %1706 = vmatmul.mubr.bf16.gmra.mrb[0].mxu0 %v641
      %v1707 = vpop.f32.mrb[0].mxu0
      %v1708 = vadd.f32 %v1547, %v1707
      %v1709 = vpop.f32.mrb[0].mxu0
      %v1710 = vpop.f32.mrb[0].mxu0
      %v1711 = vadd.f32 %v1550, %v1710
      %v1712 = vpop.f32.mrb[0].mxu0
      %1713 = vmatprep.mubr.bf16.mxu0 %v651
      %1714 = vmatmul.mubr.bf16.gmra.mrb[0].mxu0 %v650
      %v1715 = vpop.f32.mrb[0].mxu0
      %v1716 = vadd.f32 %v1555, %v1715
      %v1717 = vpop.f32.mrb[0].mxu0
      %v1718 = vpop.f32.mrb[0].mxu0
      %v1719 = vadd.f32 %v1558, %v1718
      %v1720 = vpop.f32.mrb[0].mxu0
      %1721 = vmatprep.mubr.bf16.mxu0 %v660
      %1722 = vmatmul.mubr.bf16.gmra.mrb[0].mxu0 %v659
      %v1723 = vpop.f32.mrb[0].mxu0
      %v1724 = vadd.f32 %v1563, %v1723
      %v1725 = vpop.f32.mrb[0].mxu0
      %v1726 = vpop.f32.mrb[0].mxu0
      %v1727 = vadd.f32 %v1566, %v1726
      %v1728 = vpop.f32.mrb[0].mxu0
      %1729 = vdwg.mxu0
      %1730 = vmatprep.subr.bf16.mxu0 0
      %1731 = vmatpush1.bf16.msra.mxu0 %v1151
      %1732 = vmatprep.subr.bf16.mxu0 0
      %1733 = vmatpush1.bf16.msra.mxu0 %v1152
      %1734 = vmatprep.subr.bf16.mxu0 0
      %1735 = vmatpush1.bf16.msra.mxu0 %v1153
      %1736 = vmatprep.subr.bf16.mxu0 0
      %1737 = vmatpush1.bf16.msra.mxu0 %v1154
      %1738 = vmatprep.subr.bf16.mxu0 0
      %1739 = vmatpush1.bf16.msra.mxu0 %v1155
      %1740 = vmatprep.subr.bf16.mxu0 0
      %1741 = vmatpush1.bf16.msra.mxu0 %v1156
      %1742 = vmatprep.subr.bf16.mxu0 0
      %1743 = vmatpush1.bf16.msra.mxu0 %v1157
      %1744 = vmatprep.subr.bf16.mxu0 0
      %1745 = vmatpush1.bf16.msra.mxu0 %v1158
      %1746 = vmatprep.subr.bf16.mxu0 0
      %1747 = vmatpush1.bf16.msra.mxu0 %v1159
      %1748 = vmatprep.subr.bf16.mxu0 0
      %1749 = vmatpush1.bf16.msra.mxu0 %v1160
      %1750 = vmatprep.subr.bf16.mxu0 0
      %1751 = vmatpush1.bf16.msra.mxu0 %v1161
      %1752 = vmatprep.subr.bf16.mxu0 0
      %1753 = vmatpush1.bf16.msra.mxu0 %v1162
      %1754 = vmatprep.subr.bf16.mxu0 0
      %1755 = vmatpush1.bf16.msra.mxu0 %v1163
      %1756 = vmatprep.subr.bf16.mxu0 0
      %1757 = vmatpush1.bf16.msra.mxu0 %v1164
      %1758 = vmatprep.subr.bf16.mxu0 0
      %1759 = vmatpush1.bf16.msra.mxu0 %v1165
      %1760 = vmatprep.subr.bf16.mxu0 0
      %1761 = vmatpush1.bf16.msra.mxu0 %v1166
      %1762 = vmatprep.mubr.bf16.mxu0 %v527
      %1763 = vmatmul.mubr.bf16.gmra.mrb[0].mxu0 %v526
      %v1764 = vpop.f32.mrb[0].mxu0
      %v1765 = vadd.f32 %v1604, %v1764
      %v1766 = vpop.f32.mrb[0].mxu0
      %v1767 = vpop.f32.mrb[0].mxu0
      %v1768 = vadd.f32 %v1607, %v1767
      %v1769 = vpop.f32.mrb[0].mxu0
      %1770 = vmatprep.mubr.bf16.mxu0 %v536
      %1771 = vmatmul.mubr.bf16.gmra.mrb[0].mxu0 %v535
      %v1772 = vpop.f32.mrb[0].mxu0
      %v1773 = vadd.f32 %v1612, %v1772
      %v1774 = vpop.f32.mrb[0].mxu0
      %v1775 = vpop.f32.mrb[0].mxu0
      %v1776 = vadd.f32 %v1615, %v1775
      %v1777 = vpop.f32.mrb[0].mxu0
      %1778 = vmatprep.mubr.bf16.mxu0 %v545
      %1779 = vmatmul.mubr.bf16.gmra.mrb[0].mxu0 %v544
      %v1780 = vpop.f32.mrb[0].mxu0
      %v1781 = vadd.f32 %v1620, %v1780
      %v1782 = vpop.f32.mrb[0].mxu0
      %v1783 = vpop.f32.mrb[0].mxu0
      %v1784 = vadd.f32 %v1623, %v1783
      %v1785 = vpop.f32.mrb[0].mxu0
      %1786 = vmatprep.mubr.bf16.mxu0 %v554
      %1787 = vmatmul.mubr.bf16.gmra.mrb[0].mxu0 %v553
      %v1788 = vpop.f32.mrb[0].mxu0
      %v1789 = vadd.f32 %v1628, %v1788
      %v1790 = vpop.f32.mrb[0].mxu0
      %v1791 = vpop.f32.mrb[0].mxu0
      %v1792 = vadd.f32 %v1631, %v1791
      %v1793 = vpop.f32.mrb[0].mxu0
      %1794 = vmatprep.mubr.bf16.mxu0 %v563
      %1795 = vmatmul.mubr.bf16.gmra.mrb[0].mxu0 %v562
      %v1796 = vpop.f32.mrb[0].mxu0
      %v1797 = vadd.f32 %v1636, %v1796
      %v1798 = vpop.f32.mrb[0].mxu0
      %v1799 = vpop.f32.mrb[0].mxu0
      %v1800 = vadd.f32 %v1639, %v1799
      %v1801 = vpop.f32.mrb[0].mxu0
      %1802 = vmatprep.mubr.bf16.mxu0 %v572
      %1803 = vmatmul.mubr.bf16.gmra.mrb[0].mxu0 %v571
      %v1804 = vpop.f32.mrb[0].mxu0
      %v1805 = vadd.f32 %v1644, %v1804
      %v1806 = vpop.f32.mrb[0].mxu0
      %v1807 = vpop.f32.mrb[0].mxu0
      %v1808 = vadd.f32 %v1647, %v1807
      %v1809 = vpop.f32.mrb[0].mxu0
      %1810 = vmatprep.mubr.bf16.mxu0 %v581
      %1811 = vmatmul.mubr.bf16.gmra.mrb[0].mxu0 %v580
      %v1812 = vpop.f32.mrb[0].mxu0
      %v1813 = vadd.f32 %v1652, %v1812
      %v1814 = vpop.f32.mrb[0].mxu0
      %v1815 = vpop.f32.mrb[0].mxu0
      %v1816 = vadd.f32 %v1655, %v1815
      %v1817 = vpop.f32.mrb[0].mxu0
      %1818 = vmatprep.mubr.bf16.mxu0 %v590
      %1819 = vmatmul.mubr.bf16.gmra.mrb[0].mxu0 %v589
      %v1820 = vpop.f32.mrb[0].mxu0
      %v1821 = vadd.f32 %v1660, %v1820
      %v1822 = vpop.f32.mrb[0].mxu0
      %v1823 = vpop.f32.mrb[0].mxu0
      %v1824 = vadd.f32 %v1663, %v1823
      %v1825 = vpop.f32.mrb[0].mxu0
      %1826 = vmatprep.mubr.bf16.mxu0 %v599
      %1827 = vmatmul.mubr.bf16.gmra.mrb[0].mxu0 %v598
      %v1828 = vpop.f32.mrb[0].mxu0
      %v1829 = vadd.f32 %v1668, %v1828
      %v1830 = vpop.f32.mrb[0].mxu0
      %v1831 = vpop.f32.mrb[0].mxu0
      %v1832 = vadd.f32 %v1671, %v1831
      %v1833 = vpop.f32.mrb[0].mxu0
      %1834 = vmatprep.mubr.bf16.mxu0 %v608
      %1835 = vmatmul.mubr.bf16.gmra.mrb[0].mxu0 %v607
      %v1836 = vpop.f32.mrb[0].mxu0
      %v1837 = vadd.f32 %v1676, %v1836
      %v1838 = vpop.f32.mrb[0].mxu0
      %v1839 = vpop.f32.mrb[0].mxu0
      %v1840 = vadd.f32 %v1679, %v1839
      %v1841 = vpop.f32.mrb[0].mxu0
      %1842 = vmatprep.mubr.bf16.mxu0 %v617
      %1843 = vmatmul.mubr.bf16.gmra.mrb[0].mxu0 %v616
      %v1844 = vpop.f32.mrb[0].mxu0
      %v1845 = vadd.f32 %v1684, %v1844
      %v1846 = vpop.f32.mrb[0].mxu0
      %v1847 = vpop.f32.mrb[0].mxu0
      %v1848 = vadd.f32 %v1687, %v1847
      %v1849 = vpop.f32.mrb[0].mxu0
      %1850 = vmatprep.mubr.bf16.mxu0 %v626
      %1851 = vmatmul.mubr.bf16.gmra.mrb[0].mxu0 %v625
      %v1852 = vpop.f32.mrb[0].mxu0
      %v1853 = vadd.f32 %v1692, %v1852
      %v1854 = vpop.f32.mrb[0].mxu0
      %v1855 = vpop.f32.mrb[0].mxu0
      %v1856 = vadd.f32 %v1695, %v1855
      %v1857 = vpop.f32.mrb[0].mxu0
      %1858 = vmatprep.mubr.bf16.mxu0 %v635
      %1859 = vmatmul.mubr.bf16.gmra.mrb[0].mxu0 %v634
      %v1860 = vpop.f32.mrb[0].mxu0
      %v1861 = vadd.f32 %v1700, %v1860
      %v1862 = vpop.f32.mrb[0].mxu0
      %v1863 = vpop.f32.mrb[0].mxu0
      %v1864 = vadd.f32 %v1703, %v1863
      %v1865 = vpop.f32.mrb[0].mxu0
      %1866 = vmatprep.mubr.bf16.mxu0 %v644
      %1867 = vmatmul.mubr.bf16.gmra.mrb[0].mxu0 %v643
      %v1868 = vpop.f32.mrb[0].mxu0
      %v1869 = vadd.f32 %v1708, %v1868
      %v1870 = vpop.f32.mrb[0].mxu0
      %v1871 = vpop.f32.mrb[0].mxu0
      %v1872 = vadd.f32 %v1711, %v1871
      %v1873 = vpop.f32.mrb[0].mxu0
      %1874 = vmatprep.mubr.bf16.mxu0 %v653
      %1875 = vmatmul.mubr.bf16.gmra.mrb[0].mxu0 %v652
      %v1876 = vpop.f32.mrb[0].mxu0
      %v1877 = vadd.f32 %v1716, %v1876
      %v1878 = vpop.f32.mrb[0].mxu0
      %v1879 = vpop.f32.mrb[0].mxu0
      %v1880 = vadd.f32 %v1719, %v1879
      %v1881 = vpop.f32.mrb[0].mxu0
      %1882 = vmatprep.mubr.bf16.mxu0 %v662
      %1883 = vmatmul.mubr.bf16.gmra.mrb[0].mxu0 %v661
      %v1884 = vpop.f32.mrb[0].mxu0
      %v1885 = vadd.f32 %v1724, %v1884
      %v1886 = vpop.f32.mrb[0].mxu0
      %v1887 = vpop.f32.mrb[0].mxu0
      %v1888 = vadd.f32 %v1727, %v1887
      %v1889 = vpop.f32.mrb[0].mxu0
      %1890 = vdwg.mxu0
      %1891 = vmatprep.subr.bf16.mxu0 0
      %1892 = vmatpush1.bf16.msra.mxu0 %v1167
      %1893 = vmatprep.subr.bf16.mxu0 0
      %1894 = vmatpush1.bf16.msra.mxu0 %v1168
      %1895 = vmatprep.subr.bf16.mxu0 0
      %1896 = vmatpush1.bf16.msra.mxu0 %v1169
      %1897 = vmatprep.subr.bf16.mxu0 0
      %1898 = vmatpush1.bf16.msra.mxu0 %v1170
      %1899 = vmatprep.subr.bf16.mxu0 0
      %1900 = vmatpush1.bf16.msra.mxu0 %v1171
      %1901 = vmatprep.subr.bf16.mxu0 0
      %1902 = vmatpush1.bf16.msra.mxu0 %v1172
      %1903 = vmatprep.subr.bf16.mxu0 0
      %1904 = vmatpush1.bf16.msra.mxu0 %v1173
      %1905 = vmatprep.subr.bf16.mxu0 0
      %1906 = vmatpush1.bf16.msra.mxu0 %v1174
      %1907 = vmatprep.subr.bf16.mxu0 0
      %1908 = vmatpush1.bf16.msra.mxu0 0
      %1909 = vmatprep.subr.bf16.mxu0 0
      %1910 = vmatpush1.bf16.msra.mxu0 0
      %1911 = vmatprep.subr.bf16.mxu0 0
      %1912 = vmatpush1.bf16.msra.mxu0 0
      %1913 = vmatprep.subr.bf16.mxu0 0
      %1914 = vmatpush1.bf16.msra.mxu0 0
      %1915 = vmatprep.subr.bf16.mxu0 0
      %1916 = vmatpush1.bf16.msra.mxu0 0
      %1917 = vmatprep.subr.bf16.mxu0 0
      %1918 = vmatpush1.bf16.msra.mxu0 0
      %1919 = vmatprep.subr.bf16.mxu0 0
      %1920 = vmatpush1.bf16.msra.mxu0 0
      %1921 = vmatprep.subr.bf16.mxu0 0
      %1922 = vmatpush1.bf16.msra.mxu0 0
      %1923 = vmatprep.mubr.bf16.mxu0 0
      %1924 = vmatmul.mubr.bf16.gmra.mrb[0].mxu0 %v528
      %v1925 = vpop.f32.mrb[0].mxu0
      %v1926 = vadd.f32 %v1765, %v1925
      %v1927 = vpop.f32.mrb[0].mxu0
      %v1928 = vpop.f32.mrb[0].mxu0
      %v1929 = vadd.f32 %v1768, %v1928
      %v1930 = vpop.f32.mrb[0].mxu0
      %1931 = vmatprep.mubr.bf16.mxu0 0
      %1932 = vmatmul.mubr.bf16.gmra.mrb[0].mxu0 %v537
      %v1933 = vpop.f32.mrb[0].mxu0
      %v1934 = vadd.f32 %v1773, %v1933
      %v1935 = vpop.f32.mrb[0].mxu0
      %v1936 = vpop.f32.mrb[0].mxu0
      %v1937 = vadd.f32 %v1776, %v1936
      %v1938 = vpop.f32.mrb[0].mxu0
      %1939 = vmatprep.mubr.bf16.mxu0 0
      %1940 = vmatmul.mubr.bf16.gmra.mrb[0].mxu0 %v546
      %v1941 = vpop.f32.mrb[0].mxu0
      %v1942 = vadd.f32 %v1781, %v1941
      %v1943 = vpop.f32.mrb[0].mxu0
      %v1944 = vpop.f32.mrb[0].mxu0
      %v1945 = vadd.f32 %v1784, %v1944
      %v1946 = vpop.f32.mrb[0].mxu0
      %1947 = vmatprep.mubr.bf16.mxu0 0
      %1948 = vmatmul.mubr.bf16.gmra.mrb[0].mxu0 %v555
      %v1949 = vpop.f32.mrb[0].mxu0
      %v1950 = vadd.f32 %v1789, %v1949
      %v1951 = vpop.f32.mrb[0].mxu0
      %v1952 = vpop.f32.mrb[0].mxu0
      %v1953 = vadd.f32 %v1792, %v1952
      %v1954 = vpop.f32.mrb[0].mxu0
      %1955 = vmatprep.mubr.bf16.mxu0 0
      %1956 = vmatmul.mubr.bf16.gmra.mrb[0].mxu0 %v564
      %v1957 = vpop.f32.mrb[0].mxu0
      %v1958 = vadd.f32 %v1797, %v1957
      %v1959 = vpop.f32.mrb[0].mxu0
      %v1960 = vpop.f32.mrb[0].mxu0
      %v1961 = vadd.f32 %v1800, %v1960
      %v1962 = vpop.f32.mrb[0].mxu0
      %1963 = vmatprep.mubr.bf16.mxu0 0
      %1964 = vmatmul.mubr.bf16.gmra.mrb[0].mxu0 %v573
      %v1965 = vpop.f32.mrb[0].mxu0
      %v1966 = vadd.f32 %v1805, %v1965
      %v1967 = vpop.f32.mrb[0].mxu0
      %v1968 = vpop.f32.mrb[0].mxu0
      %v1969 = vadd.f32 %v1808, %v1968
      %v1970 = vpop.f32.mrb[0].mxu0
      %1971 = vmatprep.mubr.bf16.mxu0 0
      %1972 = vmatmul.mubr.bf16.gmra.mrb[0].mxu0 %v582
      %v1973 = vpop.f32.mrb[0].mxu0
      %v1974 = vadd.f32 %v1813, %v1973
      %v1975 = vpop.f32.mrb[0].mxu0
      %v1976 = vpop.f32.mrb[0].mxu0
      %v1977 = vadd.f32 %v1816, %v1976
      %v1978 = vpop.f32.mrb[0].mxu0
      %1979 = vmatprep.mubr.bf16.mxu0 0
      %1980 = vmatmul.mubr.bf16.gmra.mrb[0].mxu0 %v591
      %v1981 = vpop.f32.mrb[0].mxu0
      %v1982 = vadd.f32 %v1821, %v1981
      %v1983 = vpop.f32.mrb[0].mxu0
      %v1984 = vpop.f32.mrb[0].mxu0
      %v1985 = vadd.f32 %v1824, %v1984
      %v1986 = vpop.f32.mrb[0].mxu0
      %1987 = vmatprep.mubr.bf16.mxu0 0
      %1988 = vmatmul.mubr.bf16.gmra.mrb[0].mxu0 %v600
      %v1989 = vpop.f32.mrb[0].mxu0
      %v1990 = vadd.f32 %v1829, %v1989
      %v1991 = vpop.f32.mrb[0].mxu0
      %v1992 = vpop.f32.mrb[0].mxu0
      %v1993 = vadd.f32 %v1832, %v1992
      %v1994 = vpop.f32.mrb[0].mxu0
      %1995 = vmatprep.mubr.bf16.mxu0 0
      %1996 = vmatmul.mubr.bf16.gmra.mrb[0].mxu0 %v609
      %v1997 = vpop.f32.mrb[0].mxu0
      %v1998 = vadd.f32 %v1837, %v1997
      %v1999 = vpop.f32.mrb[0].mxu0
      %v2000 = vpop.f32.mrb[0].mxu0
      %v2001 = vadd.f32 %v1840, %v2000
      %v2002 = vpop.f32.mrb[0].mxu0
      %2003 = vmatprep.mubr.bf16.mxu0 0
      %2004 = vmatmul.mubr.bf16.gmra.mrb[0].mxu0 %v618
      %v2005 = vpop.f32.mrb[0].mxu0
      %v2006 = vadd.f32 %v1845, %v2005
      %v2007 = vpop.f32.mrb[0].mxu0
      %v2008 = vpop.f32.mrb[0].mxu0
      %v2009 = vadd.f32 %v1848, %v2008
      %v2010 = vpop.f32.mrb[0].mxu0
      %2011 = vmatprep.mubr.bf16.mxu0 0
      %2012 = vmatmul.mubr.bf16.gmra.mrb[0].mxu0 %v627
      %v2013 = vpop.f32.mrb[0].mxu0
      %v2014 = vadd.f32 %v1853, %v2013
      %v2015 = vpop.f32.mrb[0].mxu0
      %v2016 = vpop.f32.mrb[0].mxu0
      %v2017 = vadd.f32 %v1856, %v2016
      %v2018 = vpop.f32.mrb[0].mxu0
      %2019 = vmatprep.mubr.bf16.mxu0 0
      %2020 = vmatmul.mubr.bf16.gmra.mrb[0].mxu0 %v636
      %v2021 = vpop.f32.mrb[0].mxu0
      %v2022 = vadd.f32 %v1861, %v2021
      %v2023 = vpop.f32.mrb[0].mxu0
      %v2024 = vpop.f32.mrb[0].mxu0
      %v2025 = vadd.f32 %v1864, %v2024
      %v2026 = vpop.f32.mrb[0].mxu0
      %2027 = vmatprep.mubr.bf16.mxu0 0
      %2028 = vmatmul.mubr.bf16.gmra.mrb[0].mxu0 %v645
      %v2029 = vpop.f32.mrb[0].mxu0
      %v2030 = vadd.f32 %v1869, %v2029
      %v2031 = vpop.f32.mrb[0].mxu0
      %v2032 = vpop.f32.mrb[0].mxu0
      %v2033 = vadd.f32 %v1872, %v2032
      %v2034 = vpop.f32.mrb[0].mxu0
      %2035 = vmatprep.mubr.bf16.mxu0 0
      %2036 = vmatmul.mubr.bf16.gmra.mrb[0].mxu0 %v654
      %v2037 = vpop.f32.mrb[0].mxu0
      %v2038 = vadd.f32 %v1877, %v2037
      %v2039 = vpop.f32.mrb[0].mxu0
      %v2040 = vpop.f32.mrb[0].mxu0
      %v2041 = vadd.f32 %v1880, %v2040
      %v2042 = vpop.f32.mrb[0].mxu0
      %2043 = vmatprep.mubr.bf16.mxu0 0
      %2044 = vmatmul.mubr.bf16.gmra.mrb[0].mxu0 %v663
      %v2045 = vpop.f32.mrb[0].mxu0
      %v2046 = vadd.f32 %v1885, %v2045
      %v2047 = vpop.f32.mrb[0].mxu0
      %v2048 = vpop.f32.mrb[0].mxu0
      %v2049 = vadd.f32 %v1888, %v2048
      %v2050 = vpop.f32.mrb[0].mxu0
      %2051 = vdwg.mxu0
      %v2052 = vmax.f32 %v1926, 0.0
      %v2053 = vmax.f32 %v1929, 0.0
      %v2054 = vmax.f32 %v1934, 0.0
      %v2055 = vmax.f32 %v1937, 0.0
      %v2056 = vmax.f32 %v1942, 0.0
      %v2057 = vmax.f32 %v1945, 0.0
      %v2058 = vmax.f32 %v1950, 0.0
      %v2059 = vmax.f32 %v1953, 0.0
      %v2060 = vmax.f32 %v1958, 0.0
      %v2061 = vmax.f32 %v1961, 0.0
      %v2062 = vmax.f32 %v1966, 0.0
      %v2063 = vmax.f32 %v1969, 0.0
      %v2064 = vmax.f32 %v1974, 0.0
      %v2065 = vmax.f32 %v1977, 0.0
      %v2066 = vmax.f32 %v1982, 0.0
      %v2067 = vmax.f32 %v1985, 0.0
      %v2068 = vmax.f32 %v1990, 0.0
      %v2069 = vmax.f32 %v1993, 0.0
      %v2070 = vmax.f32 %v1998, 0.0
      %v2071 = vmax.f32 %v2001, 0.0
      %v2072 = vmax.f32 %v2006, 0.0
      %v2073 = vmax.f32 %v2009, 0.0
      %v2074 = vmax.f32 %v2014, 0.0
      %v2075 = vmax.f32 %v2017, 0.0
      %v2076 = vmax.f32 %v2022, 0.0
      %v2077 = vmax.f32 %v2025, 0.0
      %v2078 = vmax.f32 %v2030, 0.0
      %v2079 = vmax.f32 %v2033, 0.0
      %v2080 = vmax.f32 %v2038, 0.0
      %v2081 = vmax.f32 %v2041, 0.0
      %v2082 = vmax.f32 %v2046, 0.0
      %v2083 = vmax.f32 %v2049, 0.0
      %v2084 = vpack.c.bf16 %v2053, %v2052
      %v2085 = vpack.c.bf16 %v2055, %v2054
      %v2086 = vpack.c.bf16 %v2057, %v2056
      %v2087 = vpack.c.bf16 %v2059, %v2058
      %v2088 = vpack.c.bf16 %v2061, %v2060
      %v2089 = vpack.c.bf16 %v2063, %v2062
      %v2090 = vpack.c.bf16 %v2065, %v2064
      %v2091 = vpack.c.bf16 %v2067, %v2066
      %v2092 = vpack.c.bf16 %v2069, %v2068
      %v2093 = vpack.c.bf16 %v2071, %v2070
      %v2094 = vpack.c.bf16 %v2073, %v2072
      %v2095 = vpack.c.bf16 %v2075, %v2074
      %v2096 = vpack.c.bf16 %v2077, %v2076
      %v2097 = vpack.c.bf16 %v2079, %v2078
      %v2098 = vpack.c.bf16 %v2081, %v2080
      %v2099 = vpack.c.bf16 %v2083, %v2082
      %v2100 = vld [vmem:[%s3] sm:$0xf]
      %v2101 = vld [vmem:[%s3 + $0x4] sm:$0xf]
      %v2102 = vld [vmem:[%s3 + $0x8] sm:$0xf]
      %v2103 = vld [vmem:[%s3 + $0xc] sm:$0xf]
      %v2104 = vld [vmem:[%s3 + $0x10] sm:$0xf]
      %v2105 = vld [vmem:[%s3 + $0x14] sm:$0xf]
      %v2106 = vld [vmem:[%s3 + $0x18] sm:$0xf]
      %v2107 = vld [vmem:[%s3 + $0x1c] sm:$0xf]
      %v2108 = vld [vmem:[%s3 + $0x20] sm:$0xf]
      %v2109 = vld [vmem:[%s3 + $0x24] sm:$0xf]
      %v2110 = vld [vmem:[%s3 + $0x28] sm:$0xf]
      %v2111 = vld [vmem:[%s3 + $0x2c] sm:$0xf]
      %v2112 = vld [vmem:[%s3 + $0x30] sm:$0xf]
      %v2113 = vld [vmem:[%s3 + $0x34] sm:$0xf]
      %v2114 = vld [vmem:[%s3 + $0x38] sm:$0xf]
      %v2115 = vld [vmem:[%s3 + $0x3c] sm:$0xf]
      %v2116 = vld [vmem:[%s4] sm:$0x1]
      %v2118 = vlaneseq
      %v2119 = vshrl.u32 %v2118, 7
      %v2120 = vsub.s32 0, %v2119
      %v2121 = vrot.slane %v2116, %v2120
      %v2139 = vunpack.c.l.b16 %v2100
      %v2140 = vunpack.c.l.b16 %v2101
      %v2141 = vunpack.c.l.b16 %v2102
      %v2142 = vunpack.c.l.b16 %v2103
      %v2143 = vunpack.c.l.b16 %v2104
      %v2144 = vunpack.c.l.b16 %v2105
      %v2145 = vunpack.c.l.b16 %v2106
      %v2146 = vunpack.c.l.b16 %v2107
      %v2147 = vunpack.c.l.b16 %v2108
      %v2148 = vunpack.c.l.b16 %v2109
      %v2149 = vunpack.c.l.b16 %v2110
      %v2150 = vunpack.c.l.b16 %v2111
      %v2151 = vunpack.c.l.b16 %v2112
      %v2152 = vunpack.c.l.b16 %v2113
      %v2153 = vunpack.c.l.b16 %v2114
      %v2154 = vunpack.c.l.b16 %v2115
      %v2155 = vpack.c.b16 %v2140, %v2139
      %v2156 = vpack.c.b16 %v2142, %v2141
      %v2157 = vpack.c.b16 %v2144, %v2143
      %v2158 = vpack.c.b16 %v2146, %v2145
      %v2159 = vpack.c.b16 %v2148, %v2147
      %v2160 = vpack.c.b16 %v2150, %v2149
      %v2161 = vpack.c.b16 %v2152, %v2151
      %v2162 = vpack.c.b16 %v2154, %v2153
      %2171 = vmatprep.subr.bf16.mxu0 0
      %2172 = vmatpush1.bf16.msra.mxu0 %v2155
      %2173 = vmatprep.subr.bf16.mxu0 0
      %2174 = vmatpush1.bf16.msra.mxu0 %v2156
      %2175 = vmatprep.subr.bf16.mxu0 0
      %2176 = vmatpush1.bf16.msra.mxu0 %v2157
      %2177 = vmatprep.subr.bf16.mxu0 0
      %2178 = vmatpush1.bf16.msra.mxu0 %v2158
      %2179 = vmatprep.subr.bf16.mxu0 0
      %2180 = vmatpush1.bf16.msra.mxu0 %v2159
      %2181 = vmatprep.subr.bf16.mxu0 0
      %2182 = vmatpush1.bf16.msra.mxu0 %v2160
      %2183 = vmatprep.subr.bf16.mxu0 0
      %2184 = vmatpush1.bf16.msra.mxu0 %v2161
      %2185 = vmatprep.subr.bf16.mxu0 0
      %2186 = vmatpush1.bf16.msra.mxu0 %v2162
      %2187 = vmatprep.subr.bf16.mxu0 0
      %2188 = vmatpush1.bf16.msra.mxu0 0
      %2189 = vmatprep.subr.bf16.mxu0 0
      %2190 = vmatpush1.bf16.msra.mxu0 0
      %2191 = vmatprep.subr.bf16.mxu0 0
      %2192 = vmatpush1.bf16.msra.mxu0 0
      %2193 = vmatprep.subr.bf16.mxu0 0
      %2194 = vmatpush1.bf16.msra.mxu0 0
      %2195 = vmatprep.subr.bf16.mxu0 0
      %2196 = vmatpush1.bf16.msra.mxu0 0
      %2197 = vmatprep.subr.bf16.mxu0 0
      %2198 = vmatpush1.bf16.msra.mxu0 0
      %2199 = vmatprep.subr.bf16.mxu0 0
      %2200 = vmatpush1.bf16.msra.mxu0 0
      %2201 = vmatprep.subr.bf16.mxu0 0
      %2202 = vmatpush1.bf16.msra.mxu0 0
      %2203 = vmatprep.mubr.bf16.mxu0 0
      %2204 = vmatmul.mubr.bf16.gmra.mrb[0].mxu0 %v2084
      %v2205 = vpop.f32.mrb[0].mxu0
      %v2206 = vadd.f32 %v2121, %v2205
      %v2207 = vpop.f32.mrb[0].mxu0
      %v2208 = vpop.f32.mrb[0].mxu0
      %v2209 = vadd.f32 %v2121, %v2208
      %v2210 = vpop.f32.mrb[0].mxu0
      %2211 = vmatprep.mubr.bf16.mxu0 0
      %2212 = vmatmul.mubr.bf16.gmra.mrb[0].mxu0 %v2085
      %v2213 = vpop.f32.mrb[0].mxu0
      %v2214 = vadd.f32 %v2121, %v2213
      %v2215 = vpop.f32.mrb[0].mxu0
      %v2216 = vpop.f32.mrb[0].mxu0
      %v2217 = vadd.f32 %v2121, %v2216
      %v2218 = vpop.f32.mrb[0].mxu0
      %2219 = vmatprep.mubr.bf16.mxu0 0
      %2220 = vmatmul.mubr.bf16.gmra.mrb[0].mxu0 %v2086
      %v2221 = vpop.f32.mrb[0].mxu0
      %v2222 = vadd.f32 %v2121, %v2221
      %v2223 = vpop.f32.mrb[0].mxu0
      %v2224 = vpop.f32.mrb[0].mxu0
      %v2225 = vadd.f32 %v2121, %v2224
      %v2226 = vpop.f32.mrb[0].mxu0
      %2227 = vmatprep.mubr.bf16.mxu0 0
      %2228 = vmatmul.mubr.bf16.gmra.mrb[0].mxu0 %v2087
      %v2229 = vpop.f32.mrb[0].mxu0
      %v2230 = vadd.f32 %v2121, %v2229
      %v2231 = vpop.f32.mrb[0].mxu0
      %v2232 = vpop.f32.mrb[0].mxu0
      %v2233 = vadd.f32 %v2121, %v2232
      %v2234 = vpop.f32.mrb[0].mxu0
      %2235 = vmatprep.mubr.bf16.mxu0 0
      %2236 = vmatmul.mubr.bf16.gmra.mrb[0].mxu0 %v2088
      %v2237 = vpop.f32.mrb[0].mxu0
      %v2238 = vadd.f32 %v2121, %v2237
      %v2239 = vpop.f32.mrb[0].mxu0
      %v2240 = vpop.f32.mrb[0].mxu0
      %v2241 = vadd.f32 %v2121, %v2240
      %v2242 = vpop.f32.mrb[0].mxu0
      %2243 = vmatprep.mubr.bf16.mxu0 0
      %2244 = vmatmul.mubr.bf16.gmra.mrb[0].mxu0 %v2089
      %v2245 = vpop.f32.mrb[0].mxu0
      %v2246 = vadd.f32 %v2121, %v2245
      %v2247 = vpop.f32.mrb[0].mxu0
      %v2248 = vpop.f32.mrb[0].mxu0
      %v2249 = vadd.f32 %v2121, %v2248
      %v2250 = vpop.f32.mrb[0].mxu0
      %2251 = vmatprep.mubr.bf16.mxu0 0
      %2252 = vmatmul.mubr.bf16.gmra.mrb[0].mxu0 %v2090
      %v2253 = vpop.f32.mrb[0].mxu0
      %v2254 = vadd.f32 %v2121, %v2253
      %v2255 = vpop.f32.mrb[0].mxu0
      %v2256 = vpop.f32.mrb[0].mxu0
      %v2257 = vadd.f32 %v2121, %v2256
      %v2258 = vpop.f32.mrb[0].mxu0
      %2259 = vmatprep.mubr.bf16.mxu0 0
      %2260 = vmatmul.mubr.bf16.gmra.mrb[0].mxu0 %v2091
      %v2261 = vpop.f32.mrb[0].mxu0
      %v2262 = vadd.f32 %v2121, %v2261
      %v2263 = vpop.f32.mrb[0].mxu0
      %v2264 = vpop.f32.mrb[0].mxu0
      %v2265 = vadd.f32 %v2121, %v2264
      %v2266 = vpop.f32.mrb[0].mxu0
      %2267 = vmatprep.mubr.bf16.mxu0 0
      %2268 = vmatmul.mubr.bf16.gmra.mrb[0].mxu0 %v2092
      %v2269 = vpop.f32.mrb[0].mxu0
      %v2270 = vadd.f32 %v2121, %v2269
      %v2271 = vpop.f32.mrb[0].mxu0
      %v2272 = vpop.f32.mrb[0].mxu0
      %v2273 = vadd.f32 %v2121, %v2272
      %v2274 = vpop.f32.mrb[0].mxu0
      %2275 = vmatprep.mubr.bf16.mxu0 0
      %2276 = vmatmul.mubr.bf16.gmra.mrb[0].mxu0 %v2093
      %v2277 = vpop.f32.mrb[0].mxu0
      %v2278 = vadd.f32 %v2121, %v2277
      %v2279 = vpop.f32.mrb[0].mxu0
      %v2280 = vpop.f32.mrb[0].mxu0
      %v2281 = vadd.f32 %v2121, %v2280
      %v2282 = vpop.f32.mrb[0].mxu0
      %2283 = vmatprep.mubr.bf16.mxu0 0
      %2284 = vmatmul.mubr.bf16.gmra.mrb[0].mxu0 %v2094
      %v2285 = vpop.f32.mrb[0].mxu0
      %v2286 = vadd.f32 %v2121, %v2285
      %v2287 = vpop.f32.mrb[0].mxu0
      %v2288 = vpop.f32.mrb[0].mxu0
      %v2289 = vadd.f32 %v2121, %v2288
      %v2290 = vpop.f32.mrb[0].mxu0
      %2291 = vmatprep.mubr.bf16.mxu0 0
      %2292 = vmatmul.mubr.bf16.gmra.mrb[0].mxu0 %v2095
      %v2293 = vpop.f32.mrb[0].mxu0
      %v2294 = vadd.f32 %v2121, %v2293
      %v2295 = vpop.f32.mrb[0].mxu0
      %v2296 = vpop.f32.mrb[0].mxu0
      %v2297 = vadd.f32 %v2121, %v2296
      %v2298 = vpop.f32.mrb[0].mxu0
      %2299 = vmatprep.mubr.bf16.mxu0 0
      %2300 = vmatmul.mubr.bf16.gmra.mrb[0].mxu0 %v2096
      %v2301 = vpop.f32.mrb[0].mxu0
      %v2302 = vadd.f32 %v2121, %v2301
      %v2303 = vpop.f32.mrb[0].mxu0
      %v2304 = vpop.f32.mrb[0].mxu0
      %v2305 = vadd.f32 %v2121, %v2304
      %v2306 = vpop.f32.mrb[0].mxu0
      %2307 = vmatprep.mubr.bf16.mxu0 0
      %2308 = vmatmul.mubr.bf16.gmra.mrb[0].mxu0 %v2097
      %v2309 = vpop.f32.mrb[0].mxu0
      %v2310 = vadd.f32 %v2121, %v2309
      %v2311 = vpop.f32.mrb[0].mxu0
      %v2312 = vpop.f32.mrb[0].mxu0
      %v2313 = vadd.f32 %v2121, %v2312
      %v2314 = vpop.f32.mrb[0].mxu0
      %2315 = vmatprep.mubr.bf16.mxu0 0
      %2316 = vmatmul.mubr.bf16.gmra.mrb[0].mxu0 %v2098
      %v2317 = vpop.f32.mrb[0].mxu0
      %v2318 = vadd.f32 %v2121, %v2317
      %v2319 = vpop.f32.mrb[0].mxu0
      %v2320 = vpop.f32.mrb[0].mxu0
      %v2321 = vadd.f32 %v2121, %v2320
      %v2322 = vpop.f32.mrb[0].mxu0
      %2323 = vmatprep.mubr.bf16.mxu0 0
      %2324 = vmatmul.mubr.bf16.gmra.mrb[0].mxu0 %v2099
      %v2325 = vpop.f32.mrb[0].mxu0
      %v2326 = vadd.f32 %v2121, %v2325
      %v2327 = vpop.f32.mrb[0].mxu0
      %v2328 = vpop.f32.mrb[0].mxu0
      %v2329 = vadd.f32 %v2121, %v2328
      %v2330 = vpop.f32.mrb[0].mxu0
      %2331 = vdwg.mxu0
      %2332 = vst [vmem:[%s229] sm:$0xff] %v2206
      %2333 = vst [vmem:[%s229 + $0x8] sm:$0xff] %v2209
      %2334 = vst [vmem:[%s229 + $0x10] sm:$0xff] %v2214
      %2335 = vst [vmem:[%s229 + $0x18] sm:$0xff] %v2217
      %2336 = vst [vmem:[%s229 + $0x20] sm:$0xff] %v2222
      %2337 = vst [vmem:[%s229 + $0x28] sm:$0xff] %v2225
      %2338 = vst [vmem:[%s229 + $0x30] sm:$0xff] %v2230
      %2339 = vst [vmem:[%s229 + $0x38] sm:$0xff] %v2233
      %2340 = vst [vmem:[%s229 + $0x40] sm:$0xff] %v2238
      %2341 = vst [vmem:[%s229 + $0x48] sm:$0xff] %v2241
      %2342 = vst [vmem:[%s229 + $0x50] sm:$0xff] %v2246
      %2343 = vst [vmem:[%s229 + $0x58] sm:$0xff] %v2249
      %2344 = vst [vmem:[%s229 + $0x60] sm:$0xff] %v2254
      %2345 = vst [vmem:[%s229 + $0x68] sm:$0xff] %v2257
      %2346 = vst [vmem:[%s229 + $0x70] sm:$0xff] %v2262
      %2347 = vst [vmem:[%s229 + $0x78] sm:$0xff] %v2265
      %2348 = vst [vmem:[%s229 + $0x80] sm:$0xff] %v2270
      %2349 = vst [vmem:[%s229 + $0x88] sm:$0xff] %v2273
      %2350 = vst [vmem:[%s229 + $0x90] sm:$0xff] %v2278
      %2351 = vst [vmem:[%s229 + $0x98] sm:$0xff] %v2281
      %2352 = vst [vmem:[%s229 + $0xa0] sm:$0xff] %v2286
      %2353 = vst [vmem:[%s229 + $0xa8] sm:$0xff] %v2289
      %2354 = vst [vmem:[%s229 + $0xb0] sm:$0xff] %v2294
      %2355 = vst [vmem:[%s229 + $0xb8] sm:$0xff] %v2297
      %2356 = vst [vmem:[%s229 + $0xc0] sm:$0xff] %v2302
      %2357 = vst [vmem:[%s229 + $0xc8] sm:$0xff] %v2305
      %2358 = vst [vmem:[%s229 + $0xd0] sm:$0xff] %v2310
      %2359 = vst [vmem:[%s229 + $0xd8] sm:$0xff] %v2313
      %2360 = vst [vmem:[%s229 + $0xe0] sm:$0xff] %v2318
      %2361 = vst [vmem:[%s229 + $0xe8] sm:$0xff] %v2321
      %2362 = vst [vmem:[%s229 + $0xf0] sm:$0xff] %v2326
      %2363 = vst [vmem:[%s229 + $0xf8] sm:$0xff] %v2329
      %s2364 = smul.u32 32, %s16
      %p2365 = scmp.lt.s32.totalorder %s2364, 63
      %s2366 = scalar_select %p2365, %s2364, 63
      %s2367 = smul.addr %s2366, 8
      %s2368 = scalar_lea.vmem %s5, %s2367
      // Predicated region
      $region41: #{deepcl_forward.20} parent=39 // pred_check
        %p2369 = pneg %p144
      $region42: #{deepcl_forward.20} parent=39 // pred_check_branch
        %2371 = sbr.rel (%p2369) target = $region44
      $region43: #{deepcl_forward.20} parent=39 // pred_region
        %s2372 = smul.u32 32, %s16
      $region44: #{deepcl_forward.20} parent=39 // pred_fallthru
        _
    $region40: #{deepcl_forward.20} parent=5 // pred_fallthru
      _
    %p2373 = scmp.le.s32.totalorder 2, %s11
    // Predicated region
    $region45: #{deepcl_forward.20} parent=5 // pred_check
      %p2374 = pneg %p2373
    $region46: #{deepcl_forward.20} parent=5 // pred_check_branch
      %2376 = sbr.rel (%p2374) target = $region48
    $region47: #{deepcl_forward.20} parent=5 // pred_region
      %s2377 = ssub.s32 %s11, 2
      // Predicated region
      $region49: #{deepcl_forward.20} parent=47 // pred_check
        %p2378 = pneg %p150
      $region50: #{deepcl_forward.20} parent=47 // pred_check_branch
        %2380 = sbr.rel (%p2378) target = $region52
      $region51: #{deepcl_forward.20} parent=47 // pred_region
        %s2381 = smul.u32 32, %s17
        %p2382 = scmp.lt.s32.totalorder %s2381, 63
        %s2383 = scalar_select %p2382, %s2381, 63
        %s2384 = smul.addr %s2383, 8
        %s2385 = scalar_lea.vmem %s5, %s2384
      $region52: #{deepcl_forward.20} parent=47 // pred_fallthru
        _
    $region48: #{deepcl_forward.20} parent=5 // pred_fallthru
      _
  $region6: #{deepcl_forward.20} parent=0 // loop_footer
    %s15 = sadd.s32 1, %s11
  $region7: #{deepcl_forward.20} parent=0 // loop_footer_branch
    %10 = sbr.rel target = $region3
  $region8: #{deepcl_forward.20} parent=0 // loop_exit
    _

// kernel: deepcl_forward.22
$region0: #{deepcl_forward.22}
  #allocation0 [shape = 'u32[]', space=smem, size = 0x4, offset = 0x4, fixed_abs, tag = 'smem constant byte address 0x4 - core index']
  #allocation1 [shape = 'u32[144,128]{1,0:T(1,128)}', space=vmem, size = 0x12000, scoped, tag = 'internal scratch']
  %s0 = inlined_call_operand.vmem [shape: f32[512,128], index: 0, kind: input, shape index: {}]
  %s1 = inlined_call_operand.vmem [shape: bf16[128,128], index: 1, kind: input, shape index: {}]
  %s2 = inlined_call_operand.vmem [shape: f32[512,128], index: 2, kind: input, shape index: {}]
  %s3 = inlined_call_operand.vmem [shape: f32[512,128], index: 3, kind: output, shape index: {}]
  %s4 = sld [smem:[#allocation0]]
  $region45: #{deepcl_forward.22} parent=0
    _
  %s6 = ssub.s32 1, %s4
  %s7 = scalar_select 0, %s6, %s4
  loop: start=0, step=1, limit=4
  $region2: #{deepcl_forward.22} parent=0 // loop_pre_header
    _
  $region3: #{deepcl_forward.22} parent=0 // loop_header
    %s9 = sphi 0, %s13
    %p10 = scmp.ge.s32.totalorder %s9, 4
    %s19 = sphi 0, %s21
    %s22 = sphi 0, %s19
    %s23 = sphi 0, %s22
    %s39 = sphi 0, %s23
    %s43 = sphi 0, %s43
    %s45 = sphi 0, %s43
    %s46 = sphi 0, %s45
    %s60 = sphi 0, %s46
    %s66 = sphi 0, %s68
    %s69 = sphi 0, %s66
    %s70 = sphi 0, %s69
    %s86 = sphi 0, %s70
    %s92 = sphi 0, %s94
    %s95 = sphi 0, %s92
    %s96 = sphi 0, %s95
    %s112 = sphi 0, %s96
  $region4: #{deepcl_forward.22} parent=0 // loop_header_branch
    %12 = sbr.rel (%p10) target = $region8
  $region5: #{deepcl_forward.22} parent=0 // loop_body
    %s14 = ssub.s32 %s9, 1
    %s15 = ssub.s32 %s9, 2
    %s16 = sadd.s32 %s9, 1
    %s17 = ssub.s32 %s9, %s16
    %p18 = scmp.eq.s32.totalorder %s17, 0
    %s20 = sadd.s32 %s19, 1
    %s21 = scalar_select %p18, %s19, %s20
    %p24 = pneg %p18
    %p25 = scmp.eq.s32.totalorder %s9, 1
    %p26 = por %p24, %p25
    %p27 = scmp.ne.s32.totalorder %s19, %s22
    %p28 = scmp.eq.s32.totalorder %s9, 0
    %p29 = por %p27, %p28
    %p30 = scmp.ne.s32.totalorder %s19, %s22
    %p31 = scmp.eq.s32.totalorder %s14, 1
    %p32 = por %p30, %p31
    %p33 = scmp.ne.s32.totalorder %s22, %s23
    %p34 = scmp.eq.s32.totalorder %s14, 0
    %p35 = por %p33, %p34
    %p36 = scmp.ne.s32.totalorder %s22, %s23
    %p37 = scmp.eq.s32.totalorder %s15, 1
    %p38 = por %p36, %p37
    %p40 = scmp.ne.s32.totalorder %s23, %s39
    %p41 = scmp.eq.s32.totalorder %s15, 0
    %p42 = por %p40, %p41
    %s44 = sadd.s32 %s43, 1
    %p47 = scmp.eq.s32.totalorder %s9, 1
    %p48 = scmp.ne.s32.totalorder %s43, %s45
    %p49 = scmp.eq.s32.totalorder %s9, 0
    %p50 = por %p48, %p49
    %p51 = scmp.ne.s32.totalorder %s43, %s45
    %p52 = scmp.eq.s32.totalorder %s14, 1
    %p53 = por %p51, %p52
    %p54 = scmp.ne.s32.totalorder %s45, %s46
    %p55 = scmp.eq.s32.totalorder %s14, 0
    %p56 = por %p54, %p55
    %p57 = scmp.ne.s32.totalorder %s45, %s46
    %p58 = scmp.eq.s32.totalorder %s15, 1
    %p59 = por %p57, %p58
    %p61 = scmp.ne.s32.totalorder %s46, %s60
    %p62 = scmp.eq.s32.totalorder %s15, 0
    %p63 = por %p61, %p62
    %s64 = ssub.s32 %s9, %s16
    %p65 = scmp.eq.s32.totalorder %s64, 0
    %s67 = sadd.s32 %s66, 1
    %s68 = scalar_select %p65, %s66, %s67
    %p71 = pneg %p65
    %p72 = scmp.eq.s32.totalorder %s9, 1
    %p73 = por %p71, %p72
    %p74 = scmp.ne.s32.totalorder %s66, %s69
    %p75 = scmp.eq.s32.totalorder %s9, 0
    %p76 = por %p74, %p75
    %p77 = scmp.ne.s32.totalorder %s66, %s69
    %p78 = scmp.eq.s32.totalorder %s14, 1
    %p79 = por %p77, %p78
    %p80 = scmp.ne.s32.totalorder %s69, %s70
    %p81 = scmp.eq.s32.totalorder %s14, 0
    %p82 = por %p80, %p81
    %p83 = scmp.ne.s32.totalorder %s69, %s70
    %p84 = scmp.eq.s32.totalorder %s15, 1
    %p85 = por %p83, %p84
    %p87 = scmp.ne.s32.totalorder %s70, %s86
    %p88 = scmp.eq.s32.totalorder %s15, 0
    %p89 = por %p87, %p88
    %s90 = ssub.s32 %s9, %s16
    %p91 = scmp.eq.s32.totalorder %s90, 0
    %s93 = sadd.s32 %s92, 1
    %s94 = scalar_select %p91, %s92, %s93
    %p97 = pneg %p91
    %p98 = scmp.eq.s32.totalorder %s9, 1
    %p99 = por %p97, %p98
    %p100 = scmp.ne.s32.totalorder %s92, %s95
    %p101 = scmp.eq.s32.totalorder %s9, 0
    %p102 = por %p100, %p101
    %p103 = scmp.ne.s32.totalorder %s92, %s95
    %p104 = scmp.eq.s32.totalorder %s14, 1
    %p105 = por %p103, %p104
    %p106 = scmp.ne.s32.totalorder %s95, %s96
    %p107 = scmp.eq.s32.totalorder %s14, 0
    %p108 = por %p106, %p107
    %p109 = scmp.ne.s32.totalorder %s95, %s96
    %p110 = scmp.eq.s32.totalorder %s15, 1
    %p111 = por %p109, %p110
    %p113 = scmp.ne.s32.totalorder %s96, %s112
    %p114 = scmp.eq.s32.totalorder %s15, 0
    %p115 = por %p113, %p114
    %p116 = scmp.le.s32.totalorder 1, %s9
    %p117 = scmp.lt.s32.totalorder %s9, 3
    %p118 = pnand %p116, %p117
    %p119 = pneg %p118
    // Predicated region
    $region9: #{deepcl_forward.22} parent=5 // pred_check
      _
    $region10: #{deepcl_forward.22} parent=5 // pred_check_branch
      %121 = sbr.rel (%p118) target = $region12
    $region11: #{deepcl_forward.22} parent=5 // pred_region
      %s122 = ssub.s32 %s9, 1
      // Predicated region
      $region13: #{deepcl_forward.22} parent=11 // pred_check
        %p123 = pneg %p56
      $region14: #{deepcl_forward.22} parent=11 // pred_check_branch
        %125 = sbr.rel (%p123) target = $region16
      $region15: #{deepcl_forward.22} parent=11 // pred_region
        _
      $region16: #{deepcl_forward.22} parent=11 // pred_fallthru
        _
    $region12: #{deepcl_forward.22} parent=5 // pred_fallthru
      _
    %p126 = scmp.lt.s32.totalorder %s9, 2
    // Predicated region
    $region17: #{deepcl_forward.22} parent=5 // pred_check
      %p127 = pneg %p126
    $region18: #{deepcl_forward.22} parent=5 // pred_check_branch
      %129 = sbr.rel (%p127) target = $region20
    $region19: #{deepcl_forward.22} parent=5 // pred_region
      // Predicated region
      $region21: #{deepcl_forward.22} parent=19 // pred_check
        %p130 = pneg %p29
      $region22: #{deepcl_forward.22} parent=19 // pred_check_branch
        %132 = sbr.rel (%p130) target = $region24
      $region23: #{deepcl_forward.22} parent=19 // pred_region
        %s133 = smul.u32 32, %s9
        %p134 = scmp.lt.s32.totalorder %s133, 63
        %s135 = scalar_select %p134, %s133, 63
        %s136 = smul.addr %s135, 8
        %s137 = scalar_lea.vmem %s0, %s136
        %s138 = smul.u32 32, %s9
      $region24: #{deepcl_forward.22} parent=19 // pred_fallthru
        _
      // Predicated region
      $region25: #{deepcl_forward.22} parent=19 // pred_check
        %p139 = pneg %p76
      $region26: #{deepcl_forward.22} parent=19 // pred_check_branch
        %141 = sbr.rel (%p139) target = $region28
      $region27: #{deepcl_forward.22} parent=19 // pred_region
        %s142 = smul.u32 32, %s9
        %p143 = scmp.lt.s32.totalorder %s142, 63
        %s144 = scalar_select %p143, %s142, 63
        %s145 = smul.addr %s144, 8
        %s146 = scalar_lea.vmem %s2, %s145
        %s147 = smul.u32 32, %s9
      $region28: #{deepcl_forward.22} parent=19 // pred_fallthru
        _
    $region20: #{deepcl_forward.22} parent=5 // pred_fallthru
      _
    %p148 = scmp.le.s32.totalorder 1, %s9
    %p149 = scmp.lt.s32.totalorder %s9, 3
    %p150 = pnand %p148, %p149
    %p151 = pneg %p150
    // Predicated region
    $region29: #{deepcl_forward.22} parent=5 // pred_check
      _
    $region30: #{deepcl_forward.22} parent=5 // pred_check_branch
      %153 = sbr.rel (%p150) target = $region32
    $region31: #{deepcl_forward.22} parent=5 // pred_region
      %s154 = ssub.s32 %s9, 1
      %s155 = smul.u32 32, %s14
      %p156 = scmp.lt.s32.totalorder %s155, 63
      %s157 = scalar_select %p156, %s155, 63
      %s158 = smul.addr %s157, 8
      %s159 = scalar_lea.vmem %s0, %s158
      %p160 = pneg %p35
      %p161 = pneg %p32
      %p162 = pneg %p56
      %p163 = pneg %p53
      %s164 = smul.u32 32, %s14
      %p165 = scmp.lt.s32.totalorder %s164, 63
      %s166 = scalar_select %p165, %s164, 63
      %s167 = smul.addr %s166, 8
      %s168 = scalar_lea.vmem %s2, %s167
      %p169 = pneg %p82
      %p170 = pneg %p79
      %p171 = pneg %p108
      %p172 = pneg %p105
      %s173 = smul.u32 32, %s14
      %p174 = scmp.lt.s32.totalorder %s173, 63
      %s175 = scalar_select %p174, %s173, 63
      %s176 = smul.addr %s175, 8
      %s177 = scalar_lea.vmem %s3, %s176
      %s178 = smul.u32 32, %s14
      %p179 = scmp.lt.s32.totalorder %s178, 63
      %s180 = scalar_select %p179, %s178, 63
      %s181 = smul.addr %s180, 8
      %s182 = scalar_lea.vmem %s0, %s181
      %s183 = smul.u32 32, %s14
      %s184 = smul.u32 32, %s14
      %p185 = scmp.lt.s32.totalorder %s184, 63
      %s186 = scalar_select %p185, %s184, 63
      %s187 = smul.addr %s186, 8
      %s188 = scalar_lea.vmem %s2, %s187
      %s189 = smul.u32 32, %s14
      %s190 = smul.u32 32, %s14
      %p191 = scmp.lt.s32.totalorder %s190, 63
      %s192 = scalar_select %p191, %s190, 63
      %s193 = smul.addr %s192, 8
      %s194 = scalar_lea.vmem %s3, %s193
      %s195 = smul.u32 32, %s14
      %v197 = vld [vmem:[%s182] sm:$0xff]
      %v198 = vld [vmem:[%s182 + $0x8] sm:$0xff]
      %v199 = vld [vmem:[%s182 + $0x10] sm:$0xff]
      %v200 = vld [vmem:[%s182 + $0x18] sm:$0xff]
      %v201 = vld [vmem:[%s182 + $0x20] sm:$0xff]
      %v202 = vld [vmem:[%s182 + $0x28] sm:$0xff]
      %v203 = vld [vmem:[%s182 + $0x30] sm:$0xff]
      %v204 = vld [vmem:[%s182 + $0x38] sm:$0xff]
      %v205 = vld [vmem:[%s182 + $0x40] sm:$0xff]
      %v206 = vld [vmem:[%s182 + $0x48] sm:$0xff]
      %v207 = vld [vmem:[%s182 + $0x50] sm:$0xff]
      %v208 = vld [vmem:[%s182 + $0x58] sm:$0xff]
      %v209 = vld [vmem:[%s182 + $0x60] sm:$0xff]
      %v210 = vld [vmem:[%s182 + $0x68] sm:$0xff]
      %v211 = vld [vmem:[%s182 + $0x70] sm:$0xff]
      %v212 = vld [vmem:[%s182 + $0x78] sm:$0xff]
      %v213 = vld [vmem:[%s182 + $0x80] sm:$0xff]
      %v214 = vld [vmem:[%s182 + $0x88] sm:$0xff]
      %v215 = vld [vmem:[%s182 + $0x90] sm:$0xff]
      %v216 = vld [vmem:[%s182 + $0x98] sm:$0xff]
      %v217 = vld [vmem:[%s182 + $0xa0] sm:$0xff]
      %v218 = vld [vmem:[%s182 + $0xa8] sm:$0xff]
      %v219 = vld [vmem:[%s182 + $0xb0] sm:$0xff]
      %v220 = vld [vmem:[%s182 + $0xb8] sm:$0xff]
      %v221 = vld [vmem:[%s182 + $0xc0] sm:$0xff]
      %v222 = vld [vmem:[%s182 + $0xc8] sm:$0xff]
      %v223 = vld [vmem:[%s182 + $0xd0] sm:$0xff]
      %v224 = vld [vmem:[%s182 + $0xd8] sm:$0xff]
      %v225 = vld [vmem:[%s182 + $0xe0] sm:$0xff]
      %v226 = vld [vmem:[%s182 + $0xe8] sm:$0xff]
      %v227 = vld [vmem:[%s182 + $0xf0] sm:$0xff]
      %v228 = vld [vmem:[%s182 + $0xf8] sm:$0xff]
      %v229 = vpack.c.bf16 %v198, %v197
      %v230 = vpack.c.bf16 %v200, %v199
      %v231 = vpack.c.bf16 %v202, %v201
      %v232 = vpack.c.bf16 %v204, %v203
      %v233 = vpack.c.bf16 %v206, %v205
      %v234 = vpack.c.bf16 %v208, %v207
      %v235 = vpack.c.bf16 %v210, %v209
      %v236 = vpack.c.bf16 %v212, %v211
      %v237 = vpack.c.bf16 %v214, %v213
      %v238 = vpack.c.bf16 %v216, %v215
      %v239 = vpack.c.bf16 %v218, %v217
      %v240 = vpack.c.bf16 %v220, %v219
      %v241 = vpack.c.bf16 %v222, %v221
      %v242 = vpack.c.bf16 %v224, %v223
      %v243 = vpack.c.bf16 %v226, %v225
      %v244 = vpack.c.bf16 %v228, %v227
      %v245 = vld [vmem:[%s1] sm:$0xf]
      %v246 = vld [vmem:[%s1 + $0x4] sm:$0xf]
      %v247 = vld [vmem:[%s1 + $0x8] sm:$0xf]
      %v248 = vld [vmem:[%s1 + $0xc] sm:$0xf]
      %v249 = vld [vmem:[%s1 + $0x10] sm:$0xf]
      %v250 = vld [vmem:[%s1 + $0x14] sm:$0xf]
      %v251 = vld [vmem:[%s1 + $0x18] sm:$0xf]
      %v252 = vld [vmem:[%s1 + $0x1c] sm:$0xf]
      %v253 = vld [vmem:[%s1 + $0x20] sm:$0xf]
      %v254 = vld [vmem:[%s1 + $0x24] sm:$0xf]
      %v255 = vld [vmem:[%s1 + $0x28] sm:$0xf]
      %v256 = vld [vmem:[%s1 + $0x2c] sm:$0xf]
      %v257 = vld [vmem:[%s1 + $0x30] sm:$0xf]
      %v258 = vld [vmem:[%s1 + $0x34] sm:$0xf]
      %v259 = vld [vmem:[%s1 + $0x38] sm:$0xf]
      %v260 = vld [vmem:[%s1 + $0x3c] sm:$0xf]
      %v277 = vunpack.c.l.b16 %v245
      %v278 = vunpack.c.l.b16 %v246
      %v279 = vunpack.c.l.b16 %v247
      %v280 = vunpack.c.l.b16 %v248
      %v281 = vunpack.c.l.b16 %v249
      %v282 = vunpack.c.l.b16 %v250
      %v283 = vunpack.c.l.b16 %v251
      %v284 = vunpack.c.l.b16 %v252
      %v285 = vunpack.c.l.b16 %v253
      %v286 = vunpack.c.l.b16 %v254
      %v287 = vunpack.c.l.b16 %v255
      %v288 = vunpack.c.l.b16 %v256
      %v289 = vunpack.c.l.b16 %v257
      %v290 = vunpack.c.l.b16 %v258
      %v291 = vunpack.c.l.b16 %v259
      %v292 = vunpack.c.l.b16 %v260
      %v293 = vpack.c.b16 %v278, %v277
      %v294 = vpack.c.b16 %v280, %v279
      %v295 = vpack.c.b16 %v282, %v281
      %v296 = vpack.c.b16 %v284, %v283
      %v297 = vpack.c.b16 %v286, %v285
      %v298 = vpack.c.b16 %v288, %v287
      %v299 = vpack.c.b16 %v290, %v289
      %v300 = vpack.c.b16 %v292, %v291
      %309 = vmatprep.subr.bf16.mxu0 0
      %310 = vmatpush1.bf16.msra.mxu0 %v293
      %311 = vmatprep.subr.bf16.mxu0 0
      %312 = vmatpush1.bf16.msra.mxu0 %v294
      %313 = vmatprep.subr.bf16.mxu0 0
      %314 = vmatpush1.bf16.msra.mxu0 %v295
      %315 = vmatprep.subr.bf16.mxu0 0
      %316 = vmatpush1.bf16.msra.mxu0 %v296
      %317 = vmatprep.subr.bf16.mxu0 0
      %318 = vmatpush1.bf16.msra.mxu0 %v297
      %319 = vmatprep.subr.bf16.mxu0 0
      %320 = vmatpush1.bf16.msra.mxu0 %v298
      %321 = vmatprep.subr.bf16.mxu0 0
      %322 = vmatpush1.bf16.msra.mxu0 %v299
      %323 = vmatprep.subr.bf16.mxu0 0
      %324 = vmatpush1.bf16.msra.mxu0 %v300
      %325 = vmatprep.subr.bf16.mxu0 0
      %326 = vmatpush1.bf16.msra.mxu0 0
      %327 = vmatprep.subr.bf16.mxu0 0
      %328 = vmatpush1.bf16.msra.mxu0 0
      %329 = vmatprep.subr.bf16.mxu0 0
      %330 = vmatpush1.bf16.msra.mxu0 0
      %331 = vmatprep.subr.bf16.mxu0 0
      %332 = vmatpush1.bf16.msra.mxu0 0
      %333 = vmatprep.subr.bf16.mxu0 0
      %334 = vmatpush1.bf16.msra.mxu0 0
      %335 = vmatprep.subr.bf16.mxu0 0
      %336 = vmatpush1.bf16.msra.mxu0 0
      %337 = vmatprep.subr.bf16.mxu0 0
      %338 = vmatpush1.bf16.msra.mxu0 0
      %339 = vmatprep.subr.bf16.mxu0 0
      %340 = vmatpush1.bf16.msra.mxu0 0
      %341 = vmatprep.mubr.bf16.mxu0 0
      %342 = vmatmul.mubr.bf16.gmra.mrb[0].mxu0 %v229
      %v343 = vpop.f32.mrb[0].mxu0
      %v344 = vadd.f32 0.0, %v343
      %v345 = vpop.f32.mrb[0].mxu0
      %v346 = vpop.f32.mrb[0].mxu0
      %v347 = vadd.f32 0.0, %v346
      %v348 = vpop.f32.mrb[0].mxu0
      %349 = vmatprep.mubr.bf16.mxu0 0
      %350 = vmatmul.mubr.bf16.gmra.mrb[0].mxu0 %v230
      %v351 = vpop.f32.mrb[0].mxu0
      %v352 = vadd.f32 0.0, %v351
      %v353 = vpop.f32.mrb[0].mxu0
      %v354 = vpop.f32.mrb[0].mxu0
      %v355 = vadd.f32 0.0, %v354
      %v356 = vpop.f32.mrb[0].mxu0
      %357 = vmatprep.mubr.bf16.mxu0 0
      %358 = vmatmul.mubr.bf16.gmra.mrb[0].mxu0 %v231
      %v359 = vpop.f32.mrb[0].mxu0
      %v360 = vadd.f32 0.0, %v359
      %v361 = vpop.f32.mrb[0].mxu0
      %v362 = vpop.f32.mrb[0].mxu0
      %v363 = vadd.f32 0.0, %v362
      %v364 = vpop.f32.mrb[0].mxu0
      %365 = vmatprep.mubr.bf16.mxu0 0
      %366 = vmatmul.mubr.bf16.gmra.mrb[0].mxu0 %v232
      %v367 = vpop.f32.mrb[0].mxu0
      %v368 = vadd.f32 0.0, %v367
      %v369 = vpop.f32.mrb[0].mxu0
      %v370 = vpop.f32.mrb[0].mxu0
      %v371 = vadd.f32 0.0, %v370
      %v372 = vpop.f32.mrb[0].mxu0
      %373 = vmatprep.mubr.bf16.mxu0 0
      %374 = vmatmul.mubr.bf16.gmra.mrb[0].mxu0 %v233
      %v375 = vpop.f32.mrb[0].mxu0
      %v376 = vadd.f32 0.0, %v375
      %v377 = vpop.f32.mrb[0].mxu0
      %v378 = vpop.f32.mrb[0].mxu0
      %v379 = vadd.f32 0.0, %v378
      %v380 = vpop.f32.mrb[0].mxu0
      %381 = vmatprep.mubr.bf16.mxu0 0
      %382 = vmatmul.mubr.bf16.gmra.mrb[0].mxu0 %v234
      %v383 = vpop.f32.mrb[0].mxu0
      %v384 = vadd.f32 0.0, %v383
      %v385 = vpop.f32.mrb[0].mxu0
      %v386 = vpop.f32.mrb[0].mxu0
      %v387 = vadd.f32 0.0, %v386
      %v388 = vpop.f32.mrb[0].mxu0
      %389 = vmatprep.mubr.bf16.mxu0 0
      %390 = vmatmul.mubr.bf16.gmra.mrb[0].mxu0 %v235
      %v391 = vpop.f32.mrb[0].mxu0
      %v392 = vadd.f32 0.0, %v391
      %v393 = vpop.f32.mrb[0].mxu0
      %v394 = vpop.f32.mrb[0].mxu0
      %v395 = vadd.f32 0.0, %v394
      %v396 = vpop.f32.mrb[0].mxu0
      %397 = vmatprep.mubr.bf16.mxu0 0
      %398 = vmatmul.mubr.bf16.gmra.mrb[0].mxu0 %v236
      %v399 = vpop.f32.mrb[0].mxu0
      %v400 = vadd.f32 0.0, %v399
      %v401 = vpop.f32.mrb[0].mxu0
      %v402 = vpop.f32.mrb[0].mxu0
      %v403 = vadd.f32 0.0, %v402
      %v404 = vpop.f32.mrb[0].mxu0
      %405 = vmatprep.mubr.bf16.mxu0 0
      %406 = vmatmul.mubr.bf16.gmra.mrb[0].mxu0 %v237
      %v407 = vpop.f32.mrb[0].mxu0
      %v408 = vadd.f32 0.0, %v407
      %v409 = vpop.f32.mrb[0].mxu0
      %v410 = vpop.f32.mrb[0].mxu0
      %v411 = vadd.f32 0.0, %v410
      %v412 = vpop.f32.mrb[0].mxu0
      %413 = vmatprep.mubr.bf16.mxu0 0
      %414 = vmatmul.mubr.bf16.gmra.mrb[0].mxu0 %v238
      %v415 = vpop.f32.mrb[0].mxu0
      %v416 = vadd.f32 0.0, %v415
      %v417 = vpop.f32.mrb[0].mxu0
      %v418 = vpop.f32.mrb[0].mxu0
      %v419 = vadd.f32 0.0, %v418
      %v420 = vpop.f32.mrb[0].mxu0
      %421 = vmatprep.mubr.bf16.mxu0 0
      %422 = vmatmul.mubr.bf16.gmra.mrb[0].mxu0 %v239
      %v423 = vpop.f32.mrb[0].mxu0
      %v424 = vadd.f32 0.0, %v423
      %v425 = vpop.f32.mrb[0].mxu0
      %v426 = vpop.f32.mrb[0].mxu0
      %v427 = vadd.f32 0.0, %v426
      %v428 = vpop.f32.mrb[0].mxu0
      %429 = vmatprep.mubr.bf16.mxu0 0
      %430 = vmatmul.mubr.bf16.gmra.mrb[0].mxu0 %v240
      %v431 = vpop.f32.mrb[0].mxu0
      %v432 = vadd.f32 0.0, %v431
      %v433 = vpop.f32.mrb[0].mxu0
      %v434 = vpop.f32.mrb[0].mxu0
      %v435 = vadd.f32 0.0, %v434
      %v436 = vpop.f32.mrb[0].mxu0
      %437 = vmatprep.mubr.bf16.mxu0 0
      %438 = vmatmul.mubr.bf16.gmra.mrb[0].mxu0 %v241
      %v439 = vpop.f32.mrb[0].mxu0
      %v440 = vadd.f32 0.0, %v439
      %v441 = vpop.f32.mrb[0].mxu0
      %v442 = vpop.f32.mrb[0].mxu0
      %v443 = vadd.f32 0.0, %v442
      %v444 = vpop.f32.mrb[0].mxu0
      %445 = vmatprep.mubr.bf16.mxu0 0
      %446 = vmatmul.mubr.bf16.gmra.mrb[0].mxu0 %v242
      %v447 = vpop.f32.mrb[0].mxu0
      %v448 = vadd.f32 0.0, %v447
      %v449 = vpop.f32.mrb[0].mxu0
      %v450 = vpop.f32.mrb[0].mxu0
      %v451 = vadd.f32 0.0, %v450
      %v452 = vpop.f32.mrb[0].mxu0
      %453 = vmatprep.mubr.bf16.mxu0 0
      %454 = vmatmul.mubr.bf16.gmra.mrb[0].mxu0 %v243
      %v455 = vpop.f32.mrb[0].mxu0
      %v456 = vadd.f32 0.0, %v455
      %v457 = vpop.f32.mrb[0].mxu0
      %v458 = vpop.f32.mrb[0].mxu0
      %v459 = vadd.f32 0.0, %v458
      %v460 = vpop.f32.mrb[0].mxu0
      %461 = vmatprep.mubr.bf16.mxu0 0
      %462 = vmatmul.mubr.bf16.gmra.mrb[0].mxu0 %v244
      %v463 = vpop.f32.mrb[0].mxu0
      %v464 = vadd.f32 0.0, %v463
      %v465 = vpop.f32.mrb[0].mxu0
      %v466 = vpop.f32.mrb[0].mxu0
      %v467 = vadd.f32 0.0, %v466
      %v468 = vpop.f32.mrb[0].mxu0
      %469 = vdwg.mxu0
      %v470 = vld [vmem:[%s188] sm:$0xff]
      %v471 = vld [vmem:[%s188 + $0x8] sm:$0xff]
      %v472 = vld [vmem:[%s188 + $0x10] sm:$0xff]
      %v473 = vld [vmem:[%s188 + $0x18] sm:$0xff]
      %v474 = vld [vmem:[%s188 + $0x20] sm:$0xff]
      %v475 = vld [vmem:[%s188 + $0x28] sm:$0xff]
      %v476 = vld [vmem:[%s188 + $0x30] sm:$0xff]
      %v477 = vld [vmem:[%s188 + $0x38] sm:$0xff]
      %v478 = vld [vmem:[%s188 + $0x40] sm:$0xff]
      %v479 = vld [vmem:[%s188 + $0x48] sm:$0xff]
      %v480 = vld [vmem:[%s188 + $0x50] sm:$0xff]
      %v481 = vld [vmem:[%s188 + $0x58] sm:$0xff]
      %v482 = vld [vmem:[%s188 + $0x60] sm:$0xff]
      %v483 = vld [vmem:[%s188 + $0x68] sm:$0xff]
      %v484 = vld [vmem:[%s188 + $0x70] sm:$0xff]
      %v485 = vld [vmem:[%s188 + $0x78] sm:$0xff]
      %v486 = vld [vmem:[%s188 + $0x80] sm:$0xff]
      %v487 = vld [vmem:[%s188 + $0x88] sm:$0xff]
      %v488 = vld [vmem:[%s188 + $0x90] sm:$0xff]
      %v489 = vld [vmem:[%s188 + $0x98] sm:$0xff]
      %v490 = vld [vmem:[%s188 + $0xa0] sm:$0xff]
      %v491 = vld [vmem:[%s188 + $0xa8] sm:$0xff]
      %v492 = vld [vmem:[%s188 + $0xb0] sm:$0xff]
      %v493 = vld [vmem:[%s188 + $0xb8] sm:$0xff]
      %v494 = vld [vmem:[%s188 + $0xc0] sm:$0xff]
      %v495 = vld [vmem:[%s188 + $0xc8] sm:$0xff]
      %v496 = vld [vmem:[%s188 + $0xd0] sm:$0xff]
      %v497 = vld [vmem:[%s188 + $0xd8] sm:$0xff]
      %v498 = vld [vmem:[%s188 + $0xe0] sm:$0xff]
      %v499 = vld [vmem:[%s188 + $0xe8] sm:$0xff]
      %v500 = vld [vmem:[%s188 + $0xf0] sm:$0xff]
      %v501 = vld [vmem:[%s188 + $0xf8] sm:$0xff]
      %v502 = vxor.u32 %v344, 2147483648
      %v503 = vxor.u32 %v347, 2147483648
      %v504 = vxor.u32 %v352, 2147483648
      %v505 = vxor.u32 %v355, 2147483648
      %v506 = vxor.u32 %v360, 2147483648
      %v507 = vxor.u32 %v363, 2147483648
      %v508 = vxor.u32 %v368, 2147483648
      %v509 = vxor.u32 %v371, 2147483648
      %v510 = vxor.u32 %v376, 2147483648
      %v511 = vxor.u32 %v379, 2147483648
      %v512 = vxor.u32 %v384, 2147483648
      %v513 = vxor.u32 %v387, 2147483648
      %v514 = vxor.u32 %v392, 2147483648
      %v515 = vxor.u32 %v395, 2147483648
      %v516 = vxor.u32 %v400, 2147483648
      %v517 = vxor.u32 %v403, 2147483648
      %v518 = vxor.u32 %v408, 2147483648
      %v519 = vxor.u32 %v411, 2147483648
      %v520 = vxor.u32 %v416, 2147483648
      %v521 = vxor.u32 %v419, 2147483648
      %v522 = vxor.u32 %v424, 2147483648
      %v523 = vxor.u32 %v427, 2147483648
      %v524 = vxor.u32 %v432, 2147483648
      %v525 = vxor.u32 %v435, 2147483648
      %v526 = vxor.u32 %v440, 2147483648
      %v527 = vxor.u32 %v443, 2147483648
      %v528 = vxor.u32 %v448, 2147483648
      %v529 = vxor.u32 %v451, 2147483648
      %v530 = vxor.u32 %v456, 2147483648
      %v531 = vxor.u32 %v459, 2147483648
      %v532 = vxor.u32 %v464, 2147483648
      %v533 = vxor.u32 %v467, 2147483648
      %v534 = vmul.f32 %v502, 1.442695
      %v535 = vpow.pop %v534
      %v536 = vmul.f32 %v503, 1.442695
      %v537 = vpow.pop %v536
      %v538 = vmul.f32 %v504, 1.442695
      %v539 = vpow.pop %v538
      %v540 = vmul.f32 %v505, 1.442695
      %v541 = vpow.pop %v540
      %v542 = vmul.f32 %v506, 1.442695
      %v543 = vpow.pop %v542
      %v544 = vmul.f32 %v507, 1.442695
      %v545 = vpow.pop %v544
      %v546 = vmul.f32 %v508, 1.442695
      %v547 = vpow.pop %v546
      %v548 = vmul.f32 %v509, 1.442695
      %v549 = vpow.pop %v548
      %v550 = vmul.f32 %v510, 1.442695
      %v551 = vpow.pop %v550
      %v552 = vmul.f32 %v511, 1.442695
      %v553 = vpow.pop %v552
      %v554 = vmul.f32 %v512, 1.442695
      %v555 = vpow.pop %v554
      %v556 = vmul.f32 %v513, 1.442695
      %v557 = vpow.pop %v556
      %v558 = vmul.f32 %v514, 1.442695
      %v559 = vpow.pop %v558
      %v560 = vmul.f32 %v515, 1.442695
      %v561 = vpow.pop %v560
      %v562 = vmul.f32 %v516, 1.442695
      %v563 = vpow.pop %v562
      %v564 = vmul.f32 %v517, 1.442695
      %v565 = vpow.pop %v564
      %v566 = vmul.f32 %v518, 1.442695
      %v567 = vpow.pop %v566
      %v568 = vmul.f32 %v519, 1.442695
      %v569 = vpow.pop %v568
      %v570 = vmul.f32 %v520, 1.442695
      %v571 = vpow.pop %v570
      %v572 = vmul.f32 %v521, 1.442695
      %v573 = vpow.pop %v572
      %v574 = vmul.f32 %v522, 1.442695
      %v575 = vpow.pop %v574
      %v576 = vmul.f32 %v523, 1.442695
      %v577 = vpow.pop %v576
      %v578 = vmul.f32 %v524, 1.442695
      %v579 = vpow.pop %v578
      %v580 = vmul.f32 %v525, 1.442695
      %v581 = vpow.pop %v580
      %v582 = vmul.f32 %v526, 1.442695
      %v583 = vpow.pop %v582
      %v584 = vmul.f32 %v527, 1.442695
      %v585 = vpow.pop %v584
      %v586 = vmul.f32 %v528, 1.442695
      %v587 = vpow.pop %v586
      %v588 = vmul.f32 %v529, 1.442695
      %v589 = vpow.pop %v588
      %v590 = vmul.f32 %v530, 1.442695
      %v591 = vpow.pop %v590
      %v592 = vmul.f32 %v531, 1.442695
      %v593 = vpow.pop %v592
      %v594 = vmul.f32 %v532, 1.442695
      %v595 = vpow.pop %v594
      %v596 = vmul.f32 %v533, 1.442695
      %v597 = vpow.pop %v596
      %v598 = vadd.f32 %v535, 1.0
      %v599 = vadd.f32 %v537, 1.0
      %v600 = vadd.f32 %v539, 1.0
      %v601 = vadd.f32 %v541, 1.0
      %v602 = vadd.f32 %v543, 1.0
      %v603 = vadd.f32 %v545, 1.0
      %v604 = vadd.f32 %v547, 1.0
      %v605 = vadd.f32 %v549, 1.0
      %v606 = vadd.f32 %v551, 1.0
      %v607 = vadd.f32 %v553, 1.0
      %v608 = vadd.f32 %v555, 1.0
      %v609 = vadd.f32 %v557, 1.0
      %v610 = vadd.f32 %v559, 1.0
      %v611 = vadd.f32 %v561, 1.0
      %v612 = vadd.f32 %v563, 1.0
      %v613 = vadd.f32 %v565, 1.0
      %v614 = vadd.f32 %v567, 1.0
      %v615 = vadd.f32 %v569, 1.0
      %v616 = vadd.f32 %v571, 1.0
      %v617 = vadd.f32 %v573, 1.0
      %v618 = vadd.f32 %v575, 1.0
      %v619 = vadd.f32 %v577, 1.0
      %v620 = vadd.f32 %v579, 1.0
      %v621 = vadd.f32 %v581, 1.0
      %v622 = vadd.f32 %v583, 1.0
      %v623 = vadd.f32 %v585, 1.0
      %v624 = vadd.f32 %v587, 1.0
      %v625 = vadd.f32 %v589, 1.0
      %v626 = vadd.f32 %v591, 1.0
      %v627 = vadd.f32 %v593, 1.0
      %v628 = vadd.f32 %v595, 1.0
      %v629 = vadd.f32 %v597, 1.0
      %v630 = vrcp.pop %v598
      %v631 = vmul.f32 1.0, %v630
      %v632 = vrcp.pop %v599
      %v633 = vmul.f32 1.0, %v632
      %v634 = vrcp.pop %v600
      %v635 = vmul.f32 1.0, %v634
      %v636 = vrcp.pop %v601
      %v637 = vmul.f32 1.0, %v636
      %v638 = vrcp.pop %v602
      %v639 = vmul.f32 1.0, %v638
      %v640 = vrcp.pop %v603
      %v641 = vmul.f32 1.0, %v640
      %v642 = vrcp.pop %v604
      %v643 = vmul.f32 1.0, %v642
      %v644 = vrcp.pop %v605
      %v645 = vmul.f32 1.0, %v644
      %v646 = vrcp.pop %v606
      %v647 = vmul.f32 1.0, %v646
      %v648 = vrcp.pop %v607
      %v649 = vmul.f32 1.0, %v648
      %v650 = vrcp.pop %v608
      %v651 = vmul.f32 1.0, %v650
      %v652 = vrcp.pop %v609
      %v653 = vmul.f32 1.0, %v652
      %v654 = vrcp.pop %v610
      %v655 = vmul.f32 1.0, %v654
      %v656 = vrcp.pop %v611
      %v657 = vmul.f32 1.0, %v656
      %v658 = vrcp.pop %v612
      %v659 = vmul.f32 1.0, %v658
      %v660 = vrcp.pop %v613
      %v661 = vmul.f32 1.0, %v660
      %v662 = vrcp.pop %v614
      %v663 = vmul.f32 1.0, %v662
      %v664 = vrcp.pop %v615
      %v665 = vmul.f32 1.0, %v664
      %v666 = vrcp.pop %v616
      %v667 = vmul.f32 1.0, %v666
      %v668 = vrcp.pop %v617
      %v669 = vmul.f32 1.0, %v668
      %v670 = vrcp.pop %v618
      %v671 = vmul.f32 1.0, %v670
      %v672 = vrcp.pop %v619
      %v673 = vmul.f32 1.0, %v672
      %v674 = vrcp.pop %v620
      %v675 = vmul.f32 1.0, %v674
      %v676 = vrcp.pop %v621
      %v677 = vmul.f32 1.0, %v676
      %v678 = vrcp.pop %v622
      %v679 = vmul.f32 1.0, %v678
      %v680 = vrcp.pop %v623
      %v681 = vmul.f32 1.0, %v680
      %v682 = vrcp.pop %v624
      %v683 = vmul.f32 1.0, %v682
      %v684 = vrcp.pop %v625
      %v685 = vmul.f32 1.0, %v684
      %v686 = vrcp.pop %v626
      %v687 = vmul.f32 1.0, %v686
      %v688 = vrcp.pop %v627
      %v689 = vmul.f32 1.0, %v688
      %v690 = vrcp.pop %v628
      %v691 = vmul.f32 1.0, %v690
      %v692 = vrcp.pop %v629
      %v693 = vmul.f32 1.0, %v692
      %v694 = vmul.f32 %v470, %v631
      %v695 = vmul.f32 %v471, %v633
      %v696 = vmul.f32 %v472, %v635
      %v697 = vmul.f32 %v473, %v637
      %v698 = vmul.f32 %v474, %v639
      %v699 = vmul.f32 %v475, %v641
      %v700 = vmul.f32 %v476, %v643
      %v701 = vmul.f32 %v477, %v645
      %v702 = vmul.f32 %v478, %v647
      %v703 = vmul.f32 %v479, %v649
      %v704 = vmul.f32 %v480, %v651
      %v705 = vmul.f32 %v481, %v653
      %v706 = vmul.f32 %v482, %v655
      %v707 = vmul.f32 %v483, %v657
      %v708 = vmul.f32 %v484, %v659
      %v709 = vmul.f32 %v485, %v661
      %v710 = vmul.f32 %v486, %v663
      %v711 = vmul.f32 %v487, %v665
      %v712 = vmul.f32 %v488, %v667
      %v713 = vmul.f32 %v489, %v669
      %v714 = vmul.f32 %v490, %v671
      %v715 = vmul.f32 %v491, %v673
      %v716 = vmul.f32 %v492, %v675
      %v717 = vmul.f32 %v493, %v677
      %v718 = vmul.f32 %v494, %v679
      %v719 = vmul.f32 %v495, %v681
      %v720 = vmul.f32 %v496, %v683
      %v721 = vmul.f32 %v497, %v685
      %v722 = vmul.f32 %v498, %v687
      %v723 = vmul.f32 %v499, %v689
      %v724 = vmul.f32 %v500, %v691
      %v725 = vmul.f32 %v501, %v693
      %726 = vst [vmem:[%s194] sm:$0xff] %v694
      %727 = vst [vmem:[%s194 + $0x8] sm:$0xff] %v695
      %728 = vst [vmem:[%s194 + $0x10] sm:$0xff] %v696
      %729 = vst [vmem:[%s194 + $0x18] sm:$0xff] %v697
      %730 = vst [vmem:[%s194 + $0x20] sm:$0xff] %v698
      %731 = vst [vmem:[%s194 + $0x28] sm:$0xff] %v699
      %732 = vst [vmem:[%s194 + $0x30] sm:$0xff] %v700
      %733 = vst [vmem:[%s194 + $0x38] sm:$0xff] %v701
      %734 = vst [vmem:[%s194 + $0x40] sm:$0xff] %v702
      %735 = vst [vmem:[%s194 + $0x48] sm:$0xff] %v703
      %736 = vst [vmem:[%s194 + $0x50] sm:$0xff] %v704
      %737 = vst [vmem:[%s194 + $0x58] sm:$0xff] %v705
      %738 = vst [vmem:[%s194 + $0x60] sm:$0xff] %v706
      %739 = vst [vmem:[%s194 + $0x68] sm:$0xff] %v707
      %740 = vst [vmem:[%s194 + $0x70] sm:$0xff] %v708
      %741 = vst [vmem:[%s194 + $0x78] sm:$0xff] %v709
      %742 = vst [vmem:[%s194 + $0x80] sm:$0xff] %v710
      %743 = vst [vmem:[%s194 + $0x88] sm:$0xff] %v711
      %744 = vst [vmem:[%s194 + $0x90] sm:$0xff] %v712
      %745 = vst [vmem:[%s194 + $0x98] sm:$0xff] %v713
      %746 = vst [vmem:[%s194 + $0xa0] sm:$0xff] %v714
      %747 = vst [vmem:[%s194 + $0xa8] sm:$0xff] %v715
      %748 = vst [vmem:[%s194 + $0xb0] sm:$0xff] %v716
      %749 = vst [vmem:[%s194 + $0xb8] sm:$0xff] %v717
      %750 = vst [vmem:[%s194 + $0xc0] sm:$0xff] %v718
      %751 = vst [vmem:[%s194 + $0xc8] sm:$0xff] %v719
      %752 = vst [vmem:[%s194 + $0xd0] sm:$0xff] %v720
      %753 = vst [vmem:[%s194 + $0xd8] sm:$0xff] %v721
      %754 = vst [vmem:[%s194 + $0xe0] sm:$0xff] %v722
      %755 = vst [vmem:[%s194 + $0xe8] sm:$0xff] %v723
      %756 = vst [vmem:[%s194 + $0xf0] sm:$0xff] %v724
      %757 = vst [vmem:[%s194 + $0xf8] sm:$0xff] %v725
      %s758 = smul.u32 32, %s14
      %p759 = scmp.lt.s32.totalorder %s758, 63
      %s760 = scalar_select %p759, %s758, 63
      %s761 = smul.addr %s760, 8
      %s762 = scalar_lea.vmem %s3, %s761
      // Predicated region
      $region33: #{deepcl_forward.22} parent=31 // pred_check
        %p763 = pneg %p105
      $region34: #{deepcl_forward.22} parent=31 // pred_check_branch
        %765 = sbr.rel (%p763) target = $region36
      $region35: #{deepcl_forward.22} parent=31 // pred_region
        %s766 = smul.u32 32, %s14
      $region36: #{deepcl_forward.22} parent=31 // pred_fallthru
        _
    $region32: #{deepcl_forward.22} parent=5 // pred_fallthru
      _
    %p767 = scmp.le.s32.totalorder 2, %s9
    // Predicated region
    $region37: #{deepcl_forward.22} parent=5 // pred_check
      %p768 = pneg %p767
    $region38: #{deepcl_forward.22} parent=5 // pred_check_branch
      %770 = sbr.rel (%p768) target = $region40
    $region39: #{deepcl_forward.22} parent=5 // pred_region
      %s771 = ssub.s32 %s9, 2
      // Predicated region
      $region41: #{deepcl_forward.22} parent=39 // pred_check
        %p772 = pneg %p111
      $region42: #{deepcl_forward.22} parent=39 // pred_check_branch
        %774 = sbr.rel (%p772) target = $region44
      $region43: #{deepcl_forward.22} parent=39 // pred_region
        %s775 = smul.u32 32, %s15
        %p776 = scmp.lt.s32.totalorder %s775, 63
        %s777 = scalar_select %p776, %s775, 63
        %s778 = smul.addr %s777, 8
        %s779 = scalar_lea.vmem %s3, %s778
      $region44: #{deepcl_forward.22} parent=39 // pred_fallthru
        _
    $region40: #{deepcl_forward.22} parent=5 // pred_fallthru
      _
  $region6: #{deepcl_forward.22} parent=0 // loop_footer
    %s13 = sadd.s32 1, %s9
  $region7: #{deepcl_forward.22} parent=0 // loop_footer_branch
    %8 = sbr.rel target = $region3
  $region8: #{deepcl_forward.22} parent=0 // loop_exit
    _

</llo_original>
